<compile_context>
chip_gen: v7x
topology: tpu7x:2x2x1
jax: 0.10.0
libtpu: 0.0.40
codegen_flags: <defaults>
</compile_context>

<pallas_src>
import functools

import jax
import jax.numpy as jnp
from jax.experimental import pallas as pl
from jax.experimental.pallas import tpu as pltpu

F32 = jnp.float32
BF16 = jnp.bfloat16


def _vmem():
    return pl.BlockSpec(memory_space=pltpu.MemorySpace.VMEM)


def _task_spec(shape):
    """BlockSpec selecting one task-slice of a (T, ...) stacked tensor; leading dim squeezed."""
    n_rest = len(shape) - 1
    return pl.BlockSpec((None,) + tuple(shape[1:]),
                        lambda t, _n=n_rest: (t,) + (0,) * _n)


# --------------------------------------------------------------------------- #
# Kernel A: fused per-task pipeline (TCN block x2 + GRU + MHA + mean), grid over T.
# --------------------------------------------------------------------------- #
def task_pipeline_kernel(x_ref,
                         w1a_ref, b1a_ref, w2a_ref, b2a_ref, wda_ref, bda_ref,
                         w1b_ref, b1b_ref, w2b_ref, b2b_ref,
                         gwih_ref, gwhh_ref, gbih_ref, gbhh_ref,
                         wqkv_ref, bqkv_ref, wo_ref, bo_ref,
                         out_ref, *, num_heads):
    B, S, Fin = x_ref.shape
    C = out_ref.shape[-1]

    x = x_ref[...]
    # apply_mask: x * (x != 0) is the identity for finite inputs -> dropped (dead VPU work).

    def conv_same(inp, w_ref, b_ref, d):
        """Dilated k=3 Conv1d with symmetric 'same' padding, as a single im2col matmul."""
        Bi, Si, Ci = inp.shape
        z = jnp.zeros((Bi, d, Ci), F32)
        prev = jnp.concatenate([z, inp[:, :Si - d, :]], axis=1)   # input at position s - d
        nxt = jnp.concatenate([inp[:, d:, :], z], axis=1)         # input at position s + d
        taps = jnp.concatenate([prev, inp, nxt], axis=-1)         # (B, S, 3*Cin)
        y = jnp.dot(taps.reshape(Bi * Si, 3 * Ci).astype(BF16), w_ref[...],
                    preferred_element_type=F32)
        return y.reshape(Bi, Si, -1) + b_ref[...]

    # ---- TemporalBlock 0 (dilation 1, 1x1-conv residual: Fin != 64) ----
    h = jnp.maximum(conv_same(x, w1a_ref, b1a_ref, 1), 0.0)       # dropout: identity (eval)
    h = jnp.maximum(conv_same(h, w2a_ref, b2a_ref, 1), 0.0)
    res0 = (jnp.dot(x.reshape(B * S, Fin).astype(BF16), wda_ref[...],
                    preferred_element_type=F32) + bda_ref[...]).reshape(B, S, C)
    tcn0 = jnp.maximum(h + res0, 0.0)

    # ---- TemporalBlock 1 (dilation 2, identity residual) ----
    h = jnp.maximum(conv_same(tcn0, w1b_ref, b1b_ref, 2), 0.0)
    h = jnp.maximum(conv_same(h, w2b_ref, b2b_ref, 2), 0.0)
    tcn1 = jnp.maximum(h + tcn0, 0.0)

    # ---- GRU (hidden = 64), PyTorch gate order (r, z, n), zero initial state ----
    # Input projection hoisted out of the serial recurrence; S-step loop statically unrolled.
    H = C
    gi_all = (jnp.dot(tcn1.reshape(B * S, C).astype(BF16), gwih_ref[...],
                      preferred_element_type=F32) + gbih_ref[...]).reshape(B, S, 3 * H)
    whh = gwhh_ref[...]
    bhh = gbhh_ref[...]
    hprev = jnp.zeros((B, H), F32)
    hs = []
    for t in range(S):
        gi = gi_all[:, t, :]
        gh = jnp.dot(hprev.astype(BF16), whh, preferred_element_type=F32) + bhh
        r = jax.nn.sigmoid(gi[:, :H] + gh[:, :H])
        z = jax.nn.sigmoid(gi[:, H:2 * H] + gh[:, H:2 * H])
        n = jnp.tanh(gi[:, 2 * H:] + r * gh[:, 2 * H:])
        hprev = (1.0 - z) * n + z * hprev
        hs.append(hprev)
    gru_out = jnp.stack(hs, axis=1)                               # (B, S, H)

    # residual add (feature dims match: 64 == 64)
    attn_in = gru_out + tcn1

    # ---- MultiheadAttention (self, batch_first) fused with the mean over S ----
    #   mean_s(ctx @ Wo + bo) == mean_s(ctx) @ Wo + bo
    E = C
    dh = E // num_heads
    scale = 1.0 / (dh ** 0.5)
    qkv = (jnp.dot(attn_in.reshape(B * S, E).astype(BF16), wqkv_ref[...],
                   preferred_element_type=F32) + bqkv_ref[...])
    q = qkv[:, :E].reshape(B, S, E)
    k = qkv[:, E:2 * E].reshape(B, S, E)
    v = qkv[:, 2 * E:].reshape(B, S, E)
    ctx_means = []
    for hd in range(num_heads):
        lo = hd * dh
        qh = q[:, :, lo:lo + dh] * scale
        kh = k[:, :, lo:lo + dh]
        vh = v[:, :, lo:lo + dh]
        logits = jnp.einsum('bqd,bkd->bqk', qh.astype(BF16), kh.astype(BF16),
                            preferred_element_type=F32)
        probs = jax.nn.softmax(logits, axis=-1)
        ctx = jnp.einsum('bqk,bkd->bqd', probs.astype(BF16), vh.astype(BF16),
                         preferred_element_type=F32)
        ctx_means.append(jnp.mean(ctx, axis=1))                   # (B, dh)
    ctx_mean = jnp.concatenate(ctx_means, axis=-1)                # (B, E)
    out_ref[...] = (jnp.dot(ctx_mean.astype(BF16), wo_ref[...],
                            preferred_element_type=F32) + bo_ref[...])


def run_task_pipeline(x, tp, *, num_heads=4):
    T, B, S, Fin = x.shape
    C = tp["att_wo"].shape[-1]
    names = ["b0_w1", "b0_b1", "b0_w2", "b0_b2", "b0_wd", "b0_bd",
             "b1_w1", "b1_b1", "b1_w2", "b1_b2",
             "gru_wih", "gru_whh", "gru_bih", "gru_bhh",
             "att_wqkv", "att_bqkv", "att_wo", "att_bo"]
    ws = [tp[n] for n in names]
    in_specs = [_task_spec(x.shape)] + [_task_spec(w.shape) for w in ws]
    return pl.pallas_call(
        functools.partial(task_pipeline_kernel, num_heads=num_heads),
        out_shape=jax.ShapeDtypeStruct((T, B, C), F32),           # time-major for the shared GRU
        grid=(T,),
        in_specs=in_specs,
        out_specs=pl.BlockSpec((None, B, C), lambda t: (t, 0, 0)),
        compiler_params=pltpu.CompilerParams(dimension_semantics=("parallel",)),
    )(x, *ws)


# --------------------------------------------------------------------------- #
# Kernel B: shared GRU (over the task axis) + shared residual + per-task heads + output layer.
# --------------------------------------------------------------------------- #
def shared_head_kernel(si_ref, gwih_ref, gwhh_ref, gbih_ref, gbhh_ref,
                       wsr_ref, bsr_ref, wres_ref, bres_ref, wfc_ref, bfc_ref,
                       wout_ref, bout_ref, out_ref):
    T, B, E = si_ref.shape
    Hs = gwhh_ref.shape[0]

    si = si_ref[...]                                              # (T, B, E), time-major
    si_flat = si.reshape(T * B, E).astype(BF16)

    # ---- shared GRU (hidden = 128), input projection hoisted, T-step loop unrolled ----
    gi_all = (jnp.dot(si_flat, gwih_ref[...], preferred_element_type=F32)
              + gbih_ref[...]).reshape(T, B, 3 * Hs)
    whh = gwhh_ref[...]
    bhh = gbhh_ref[...]
    h = jnp.zeros((B, Hs), F32)
    hs = []
    for t in range(T):
        gi = gi_all[t]
        gh = jnp.dot(h.astype(BF16), whh, preferred_element_type=F32) + bhh
        r = jax.nn.sigmoid(gi[:, :Hs] + gh[:, :Hs])
        z = jax.nn.sigmoid(gi[:, Hs:2 * Hs] + gh[:, Hs:2 * Hs])
        n = jnp.tanh(gi[:, 2 * Hs:] + r * gh[:, 2 * Hs:])
        h = (1.0 - z) * n + z * h
        hs.append(h)
    sg = jnp.stack(hs, axis=0)                                    # (T, B, Hs)

    # ---- shared residual transform ----
    sr = (jnp.dot(si_flat, wsr_ref[...], preferred_element_type=F32)
          + bsr_ref[...]).reshape(T, B, Hs)
    s = (sg + sr).astype(BF16)                                    # (T, B, Hs)

    # ---- per-task heads as batched einsums (no Python loop over tasks) ----
    res = jnp.einsum('tbh,thc->tbc', s, wres_ref[...],
                     preferred_element_type=F32) + bres_ref[...]
    per = jnp.maximum(jnp.einsum('tbh,thc->tbc', s, wfc_ref[...],
                                 preferred_element_type=F32) + bfc_ref[...], 0.0)
    # dropout: identity (eval)
    merged = (per + res).astype(BF16)                             # (T, B, 64)

    # ---- merged output layer: cat over tasks then Linear(64*T, T) == sum_t merged_t @ Wout_t ----
    per_task = jnp.einsum('tbc,tco->tbo', merged, wout_ref[...],
                          preferred_element_type=F32)             # (T, B, T)
    out_ref[...] = jnp.sum(per_task, axis=0) + bout_ref[...]


def run_shared_head(shared_inputs_tm, sp):
    _, B, _ = shared_inputs_tm.shape
    Tout = sp["bout"].shape[-1]
    args = [shared_inputs_tm,
            sp["gru_wih"], sp["gru_whh"], sp["gru_bih"], sp["gru_bhh"],
            sp["wsr"], sp["bsr"], sp["wres"], sp["bres"], sp["wfc"], sp["bfc"],
            sp["wout"], sp["bout"]]
    return pl.pallas_call(
        shared_head_kernel,
        out_shape=jax.ShapeDtypeStruct((B, Tout), F32),
        in_specs=[_vmem()] * len(args),
        out_specs=_vmem(),
    )(*args)


# --------------------------------------------------------------------------- #
# Full forward pass: exactly two pallas_call launches.
# --------------------------------------------------------------------------- #
def forward(params, x):
    shared_inputs_tm = run_task_pipeline(x, params["task"])       # (T, B, 64), time-major
    return run_shared_head(shared_inputs_tm, params["shared"])    # (B, T)


# --------------------------------------------------------------------------- #
# Deterministic synthetic parameters (kernel-ready: stacked over T, matmul weights in bf16,
# conv weights pre-flattened to (3*Cin, Cout), all Linear/GRU/MHA weights as (in, out)).
# --------------------------------------------------------------------------- #
def init_params(key, T, F_in):
    keys = iter(jax.random.split(key, 64))

    def u(shape, fan_in, dtype=F32):
        b = 1.0 / (fan_in ** 0.5)
        return jax.random.uniform(next(keys), shape, F32, -b, b).astype(dtype)

    C, Hs = 64, 128
    task = dict(
        b0_w1=u((T, 3 * F_in, C), 3 * F_in, BF16), b0_b1=u((T, 1, C), 3 * F_in),
        b0_w2=u((T, 3 * C, C), 3 * C, BF16),       b0_b2=u((T, 1, C), 3 * C),
        b0_wd=u((T, F_in, C), F_in, BF16),         b0_bd=u((T, 1, C), F_in),
        b1_w1=u((T, 3 * C, C), 3 * C, BF16),       b1_b1=u((T, 1, C), 3 * C),
        b1_w2=u((T, 3 * C, C), 3 * C, BF16),       b1_b2=u((T, 1, C), 3 * C),
        gru_wih=u((T, C, 3 * C), C, BF16),  gru_whh=u((T, C, 3 * C), C, BF16),
        gru_bih=u((T, 1, 3 * C), C),        gru_bhh=u((T, 1, 3 * C), C),
        att_wqkv=u((T, C, 3 * C), C, BF16), att_bqkv=u((T, 1, 3 * C), C),
        att_wo=u((T, C, C), C, BF16),       att_bo=u((T, 1, C), C),
    )
    shared = dict(
        gru_wih=u((C, 3 * Hs), Hs, BF16), gru_whh=u((Hs, 3 * Hs), Hs, BF16),
        gru_bih=u((1, 3 * Hs), Hs),       gru_bhh=u((1, 3 * Hs), Hs),
        wsr=u((C, Hs), C, BF16),   bsr=u((1, Hs), C),
        wres=u((T, Hs, C), Hs, BF16), bres=u((T, 1, C), Hs),
        wfc=u((T, Hs, C), Hs, BF16),  bfc=u((T, 1, C), Hs),
        wout=u((T, C, T), C * T, BF16), bout=u((1, T), C * T),
    )
    return {"task": task, "shared": shared}


if __name__ == "__main__":
    T, B, S, F_in = 3, 2, 8, 4                 # tasks, batch, seq, features
    key = jax.random.PRNGKey(0)
    kx, km, kp = jax.random.split(key, 3)
    x = jax.random.normal(kx, (T, B, S, F_in), F32)
    # introduce some exact zeros (the original model masks zeros; masking is an identity here)
    x = jnp.where(jax.random.uniform(km, x.shape) < 0.2, 0.0, x)

    params = init_params(kp, T, F_in)
    fwd = jax.jit(forward)
    out = jax.block_until_ready(fwd(params, x))
    assert out.shape == (B, T), out.shape
    assert bool(jnp.all(jnp.isfinite(out)))
    print("KERNEL_OK")
</pallas_src>

<mosaic_0001>
module attributes {stable_mosaic.version = 11 : i64} {
  func.func @task_pipeline_kernel(%arg0: i32, %arg1: memref<1x2x8x4xf32, #tpu.memory_space<vmem>>, %arg2: memref<1x12x64xbf16, #tpu.memory_space<vmem>>, %arg3: memref<1x1x64xf32, #tpu.memory_space<vmem>>, %arg4: memref<1x192x64xbf16, #tpu.memory_space<vmem>>, %arg5: memref<1x1x64xf32, #tpu.memory_space<vmem>>, %arg6: memref<1x4x64xbf16, #tpu.memory_space<vmem>>, %arg7: memref<1x1x64xf32, #tpu.memory_space<vmem>>, %arg8: memref<1x192x64xbf16, #tpu.memory_space<vmem>>, %arg9: memref<1x1x64xf32, #tpu.memory_space<vmem>>, %arg10: memref<1x192x64xbf16, #tpu.memory_space<vmem>>, %arg11: memref<1x1x64xf32, #tpu.memory_space<vmem>>, %arg12: memref<1x64x192xbf16, #tpu.memory_space<vmem>>, %arg13: memref<1x64x192xbf16, #tpu.memory_space<vmem>>, %arg14: memref<1x1x192xf32, #tpu.memory_space<vmem>>, %arg15: memref<1x1x192xf32, #tpu.memory_space<vmem>>, %arg16: memref<1x64x192xbf16, #tpu.memory_space<vmem>>, %arg17: memref<1x1x192xf32, #tpu.memory_space<vmem>>, %arg18: memref<1x64x64xbf16, #tpu.memory_space<vmem>>, %arg19: memref<1x1x64xf32, #tpu.memory_space<vmem>>, %arg20: memref<1x2x64xf32, #tpu.memory_space<vmem>>) attributes {dimension_semantics = [#tpu.dimension_semantics<parallel>], iteration_bounds = array<i64: 3>, scalar_prefetch = 0 : i64, scratch_operands = 0 : i64, tpu.core_type = #tpu.core_type<tc>, window_params = [{transform_indices = @transform_0, window_bounds = array<i64: 1, 2, 8, 4>}, {transform_indices = @transform_1, window_bounds = array<i64: 1, 12, 64>}, {transform_indices = @transform_2, window_bounds = array<i64: 1, 1, 64>}, {transform_indices = @transform_3, window_bounds = array<i64: 1, 192, 64>}, {transform_indices = @transform_4, window_bounds = array<i64: 1, 1, 64>}, {transform_indices = @transform_5, window_bounds = array<i64: 1, 4, 64>}, {transform_indices = @transform_6, window_bounds = array<i64: 1, 1, 64>}, {transform_indices = @transform_7, window_bounds = array<i64: 1, 192, 64>}, {transform_indices = @transform_8, window_bounds = array<i64: 1, 1, 64>}, {transform_indices = @transform_9, window_bounds = array<i64: 1, 192, 64>}, {transform_indices = @transform_10, window_bounds = array<i64: 1, 1, 64>}, {transform_indices = @transform_11, window_bounds = array<i64: 1, 64, 192>}, {transform_indices = @transform_12, window_bounds = array<i64: 1, 64, 192>}, {transform_indices = @transform_13, window_bounds = array<i64: 1, 1, 192>}, {transform_indices = @transform_14, window_bounds = array<i64: 1, 1, 192>}, {transform_indices = @transform_15, window_bounds = array<i64: 1, 64, 192>}, {transform_indices = @transform_16, window_bounds = array<i64: 1, 1, 192>}, {transform_indices = @transform_17, window_bounds = array<i64: 1, 64, 64>}, {transform_indices = @transform_18, window_bounds = array<i64: 1, 1, 64>}, {transform_indices = @transform_19, window_bounds = array<i64: 1, 2, 64>}]} {
    %c0 = arith.constant 0 : index
    %c0_0 = arith.constant 0 : index
    %c0_1 = arith.constant 0 : index
    %c0_2 = arith.constant 0 : index
    %0 = vector.load %arg1[%c0, %c0_0, %c0_1, %c0_2] : memref<1x2x8x4xf32, #tpu.memory_space<vmem>>, vector<1x2x8x4xf32>
    %1 = vector.shape_cast %0 : vector<1x2x8x4xf32> to vector<2x8x4xf32>
    %cst = arith.constant 0.000000e+00 : f32
    %2 = vector.broadcast %cst : f32 to vector<2x1x4xf32>
    %3 = vector.extract_strided_slice %1 {offsets = [0, 0, 0], sizes = [2, 7, 4], strides = [1, 1, 1]} : vector<2x8x4xf32> to vector<2x7x4xf32>
    %4 = tpu.concatenate %2, %3 in 1 : vector<2x1x4xf32>, vector<2x7x4xf32> -> vector<2x8x4xf32>
    %5 = vector.extract_strided_slice %1 {offsets = [0, 1, 0], sizes = [2, 7, 4], strides = [1, 1, 1]} : vector<2x8x4xf32> to vector<2x7x4xf32>
    %6 = tpu.concatenate %5, %2 in 1 : vector<2x7x4xf32>, vector<2x1x4xf32> -> vector<2x8x4xf32>
    %7 = tpu.concatenate %4, %1, %6 in 2 : vector<2x8x4xf32>, vector<2x8x4xf32>, vector<2x8x4xf32> -> vector<2x8x12xf32>
    %8 = vector.shape_cast %7 : vector<2x8x12xf32> to vector<16x12xf32>
    %9 = arith.truncf %8 : vector<16x12xf32> to vector<16x12xbf16>
    %c0_3 = arith.constant 0 : index
    %c0_4 = arith.constant 0 : index
    %c0_5 = arith.constant 0 : index
    %10 = vector.load %arg2[%c0_3, %c0_4, %c0_5] : memref<1x12x64xbf16, #tpu.memory_space<vmem>>, vector<1x12x64xbf16>
    %11 = vector.shape_cast %10 : vector<1x12x64xbf16> to vector<12x64xbf16>
    %cst_6 = arith.constant dense<0.000000e+00> : vector<16x64xf32>
    %12 = tpu.matmul %9, %11, %cst_6 {dimension_numbers = #tpu.dot_dimension_numbers<[1], [0], [0], [1], [0, 0, 1, 1], [], []>} : vector<16x12xbf16>, vector<12x64xbf16>, vector<16x64xf32> -> vector<16x64xf32>
    %13 = vector.shape_cast %12 : vector<16x64xf32> to vector<2x8x64xf32>
    %c0_7 = arith.constant 0 : index
    %c0_8 = arith.constant 0 : index
    %c0_9 = arith.constant 0 : index
    %14 = vector.load %arg3[%c0_7, %c0_8, %c0_9] : memref<1x1x64xf32, #tpu.memory_space<vmem>>, vector<1x1x64xf32>
    %15 = vector.shape_cast %14 : vector<1x1x64xf32> to vector<1x64xf32>
    %16 = vector.shape_cast %15 : vector<1x64xf32> to vector<1x1x64xf32>
    %17 = vector.broadcast %16 : vector<1x1x64xf32> to vector<2x8x64xf32>
    %18 = arith.addf %13, %17 : vector<2x8x64xf32>
    %cst_10 = arith.constant 0.000000e+00 : f32
    %19 = vector.broadcast %cst_10 : f32 to vector<2x8x64xf32>
    %20 = arith.maximumf %18, %19 : vector<2x8x64xf32>
    %cst_11 = arith.constant 0.000000e+00 : f32
    %21 = vector.broadcast %cst_11 : f32 to vector<2x1x64xf32>
    %22 = vector.extract_strided_slice %20 {offsets = [0, 0, 0], sizes = [2, 7, 64], strides = [1, 1, 1]} : vector<2x8x64xf32> to vector<2x7x64xf32>
    %23 = tpu.concatenate %21, %22 in 1 : vector<2x1x64xf32>, vector<2x7x64xf32> -> vector<2x8x64xf32>
    %24 = vector.extract_strided_slice %20 {offsets = [0, 1, 0], sizes = [2, 7, 64], strides = [1, 1, 1]} : vector<2x8x64xf32> to vector<2x7x64xf32>
    %25 = tpu.concatenate %24, %21 in 1 : vector<2x7x64xf32>, vector<2x1x64xf32> -> vector<2x8x64xf32>
    %26 = tpu.concatenate %23, %20, %25 in 2 : vector<2x8x64xf32>, vector<2x8x64xf32>, vector<2x8x64xf32> -> vector<2x8x192xf32>
    %27 = vector.shape_cast %26 : vector<2x8x192xf32> to vector<16x192xf32>
    %28 = arith.truncf %27 : vector<16x192xf32> to vector<16x192xbf16>
    %c0_12 = arith.constant 0 : index
    %c0_13 = arith.constant 0 : index
    %c0_14 = arith.constant 0 : index
    %29 = vector.load %arg4[%c0_12, %c0_13, %c0_14] : memref<1x192x64xbf16, #tpu.memory_space<vmem>>, vector<1x192x64xbf16>
    %30 = vector.shape_cast %29 : vector<1x192x64xbf16> to vector<192x64xbf16>
    %cst_15 = arith.constant dense<0.000000e+00> : vector<16x64xf32>
    %31 = tpu.matmul %28, %30, %cst_15 {dimension_numbers = #tpu.dot_dimension_numbers<[1], [0], [0], [1], [0, 0, 1, 1], [], []>} : vector<16x192xbf16>, vector<192x64xbf16>, vector<16x64xf32> -> vector<16x64xf32>
    %32 = vector.shape_cast %31 : vector<16x64xf32> to vector<2x8x64xf32>
    %c0_16 = arith.constant 0 : index
    %c0_17 = arith.constant 0 : index
    %c0_18 = arith.constant 0 : index
    %33 = vector.load %arg5[%c0_16, %c0_17, %c0_18] : memref<1x1x64xf32, #tpu.memory_space<vmem>>, vector<1x1x64xf32>
    %34 = vector.shape_cast %33 : vector<1x1x64xf32> to vector<1x64xf32>
    %35 = vector.shape_cast %34 : vector<1x64xf32> to vector<1x1x64xf32>
    %36 = vector.broadcast %35 : vector<1x1x64xf32> to vector<2x8x64xf32>
    %37 = arith.addf %32, %36 : vector<2x8x64xf32>
    %cst_19 = arith.constant 0.000000e+00 : f32
    %38 = vector.broadcast %cst_19 : f32 to vector<2x8x64xf32>
    %39 = arith.maximumf %37, %38 : vector<2x8x64xf32>
    %40 = vector.shape_cast %1 : vector<2x8x4xf32> to vector<16x4xf32>
    %41 = arith.truncf %40 : vector<16x4xf32> to vector<16x4xbf16>
    %c0_20 = arith.constant 0 : index
    %c0_21 = arith.constant 0 : index
    %c0_22 = arith.constant 0 : index
    %42 = vector.load %arg6[%c0_20, %c0_21, %c0_22] : memref<1x4x64xbf16, #tpu.memory_space<vmem>>, vector<1x4x64xbf16>
    %43 = vector.shape_cast %42 : vector<1x4x64xbf16> to vector<4x64xbf16>
    %cst_23 = arith.constant dense<0.000000e+00> : vector<16x64xf32>
    %44 = tpu.matmul %41, %43, %cst_23 {dimension_numbers = #tpu.dot_dimension_numbers<[1], [0], [0], [1], [0, 0, 1, 1], [], []>} : vector<16x4xbf16>, vector<4x64xbf16>, vector<16x64xf32> -> vector<16x64xf32>
    %c0_24 = arith.constant 0 : index
    %c0_25 = arith.constant 0 : index
    %c0_26 = arith.constant 0 : index
    %45 = vector.load %arg7[%c0_24, %c0_25, %c0_26] : memref<1x1x64xf32, #tpu.memory_space<vmem>>, vector<1x1x64xf32>
    %46 = vector.shape_cast %45 : vector<1x1x64xf32> to vector<1x64xf32>
    %47 = vector.broadcast %46 : vector<1x64xf32> to vector<16x64xf32>
    %48 = arith.addf %44, %47 : vector<16x64xf32>
    %49 = vector.shape_cast %48 : vector<16x64xf32> to vector<2x8x64xf32>
    %50 = arith.addf %39, %49 : vector<2x8x64xf32>
    %cst_27 = arith.constant 0.000000e+00 : f32
    %51 = vector.broadcast %cst_27 : f32 to vector<2x8x64xf32>
    %52 = arith.maximumf %50, %51 : vector<2x8x64xf32>
    %cst_28 = arith.constant 0.000000e+00 : f32
    %53 = vector.broadcast %cst_28 : f32 to vector<2x2x64xf32>
    %54 = vector.extract_strided_slice %52 {offsets = [0, 0, 0], sizes = [2, 6, 64], strides = [1, 1, 1]} : vector<2x8x64xf32> to vector<2x6x64xf32>
    %55 = tpu.concatenate %53, %54 in 1 : vector<2x2x64xf32>, vector<2x6x64xf32> -> vector<2x8x64xf32>
    %56 = vector.extract_strided_slice %52 {offsets = [0, 2, 0], sizes = [2, 6, 64], strides = [1, 1, 1]} : vector<2x8x64xf32> to vector<2x6x64xf32>
    %57 = tpu.concatenate %56, %53 in 1 : vector<2x6x64xf32>, vector<2x2x64xf32> -> vector<2x8x64xf32>
    %58 = tpu.concatenate %55, %52, %57 in 2 : vector<2x8x64xf32>, vector<2x8x64xf32>, vector<2x8x64xf32> -> vector<2x8x192xf32>
    %59 = vector.shape_cast %58 : vector<2x8x192xf32> to vector<16x192xf32>
    %60 = arith.truncf %59 : vector<16x192xf32> to vector<16x192xbf16>
    %c0_29 = arith.constant 0 : index
    %c0_30 = arith.constant 0 : index
    %c0_31 = arith.constant 0 : index
    %61 = vector.load %arg8[%c0_29, %c0_30, %c0_31] : memref<1x192x64xbf16, #tpu.memory_space<vmem>>, vector<1x192x64xbf16>
    %62 = vector.shape_cast %61 : vector<1x192x64xbf16> to vector<192x64xbf16>
    %cst_32 = arith.constant dense<0.000000e+00> : vector<16x64xf32>
    %63 = tpu.matmul %60, %62, %cst_32 {dimension_numbers = #tpu.dot_dimension_numbers<[1], [0], [0], [1], [0, 0, 1, 1], [], []>} : vector<16x192xbf16>, vector<192x64xbf16>, vector<16x64xf32> -> vector<16x64xf32>
    %64 = vector.shape_cast %63 : vector<16x64xf32> to vector<2x8x64xf32>
    %c0_33 = arith.constant 0 : index
    %c0_34 = arith.constant 0 : index
    %c0_35 = arith.constant 0 : index
    %65 = vector.load %arg9[%c0_33, %c0_34, %c0_35] : memref<1x1x64xf32, #tpu.memory_space<vmem>>, vector<1x1x64xf32>
    %66 = vector.shape_cast %65 : vector<1x1x64xf32> to vector<1x64xf32>
    %67 = vector.shape_cast %66 : vector<1x64xf32> to vector<1x1x64xf32>
    %68 = vector.broadcast %67 : vector<1x1x64xf32> to vector<2x8x64xf32>
    %69 = arith.addf %64, %68 : vector<2x8x64xf32>
    %cst_36 = arith.constant 0.000000e+00 : f32
    %70 = vector.broadcast %cst_36 : f32 to vector<2x8x64xf32>
    %71 = arith.maximumf %69, %70 : vector<2x8x64xf32>
    %cst_37 = arith.constant 0.000000e+00 : f32
    %72 = vector.broadcast %cst_37 : f32 to vector<2x2x64xf32>
    %73 = vector.extract_strided_slice %71 {offsets = [0, 0, 0], sizes = [2, 6, 64], strides = [1, 1, 1]} : vector<2x8x64xf32> to vector<2x6x64xf32>
    %74 = tpu.concatenate %72, %73 in 1 : vector<2x2x64xf32>, vector<2x6x64xf32> -> vector<2x8x64xf32>
    %75 = vector.extract_strided_slice %71 {offsets = [0, 2, 0], sizes = [2, 6, 64], strides = [1, 1, 1]} : vector<2x8x64xf32> to vector<2x6x64xf32>
    %76 = tpu.concatenate %75, %72 in 1 : vector<2x6x64xf32>, vector<2x2x64xf32> -> vector<2x8x64xf32>
    %77 = tpu.concatenate %74, %71, %76 in 2 : vector<2x8x64xf32>, vector<2x8x64xf32>, vector<2x8x64xf32> -> vector<2x8x192xf32>
    %78 = vector.shape_cast %77 : vector<2x8x192xf32> to vector<16x192xf32>
    %79 = arith.truncf %78 : vector<16x192xf32> to vector<16x192xbf16>
    %c0_38 = arith.constant 0 : index
    %c0_39 = arith.constant 0 : index
    %c0_40 = arith.constant 0 : index
    %80 = vector.load %arg10[%c0_38, %c0_39, %c0_40] : memref<1x192x64xbf16, #tpu.memory_space<vmem>>, vector<1x192x64xbf16>
    %81 = vector.shape_cast %80 : vector<1x192x64xbf16> to vector<192x64xbf16>
    %cst_41 = arith.constant dense<0.000000e+00> : vector<16x64xf32>
    %82 = tpu.matmul %79, %81, %cst_41 {dimension_numbers = #tpu.dot_dimension_numbers<[1], [0], [0], [1], [0, 0, 1, 1], [], []>} : vector<16x192xbf16>, vector<192x64xbf16>, vector<16x64xf32> -> vector<16x64xf32>
    %83 = vector.shape_cast %82 : vector<16x64xf32> to vector<2x8x64xf32>
    %c0_42 = arith.constant 0 : index
    %c0_43 = arith.constant 0 : index
    %c0_44 = arith.constant 0 : index
    %84 = vector.load %arg11[%c0_42, %c0_43, %c0_44] : memref<1x1x64xf32, #tpu.memory_space<vmem>>, vector<1x1x64xf32>
    %85 = vector.shape_cast %84 : vector<1x1x64xf32> to vector<1x64xf32>
    %86 = vector.shape_cast %85 : vector<1x64xf32> to vector<1x1x64xf32>
    %87 = vector.broadcast %86 : vector<1x1x64xf32> to vector<2x8x64xf32>
    %88 = arith.addf %83, %87 : vector<2x8x64xf32>
    %cst_45 = arith.constant 0.000000e+00 : f32
    %89 = vector.broadcast %cst_45 : f32 to vector<2x8x64xf32>
    %90 = arith.maximumf %88, %89 : vector<2x8x64xf32>
    %91 = arith.addf %90, %52 : vector<2x8x64xf32>
    %cst_46 = arith.constant 0.000000e+00 : f32
    %92 = vector.broadcast %cst_46 : f32 to vector<2x8x64xf32>
    %93 = arith.maximumf %91, %92 : vector<2x8x64xf32>
    %94 = vector.shape_cast %93 : vector<2x8x64xf32> to vector<16x64xf32>
    %95 = arith.truncf %94 : vector<16x64xf32> to vector<16x64xbf16>
    %c0_47 = arith.constant 0 : index
    %c0_48 = arith.constant 0 : index
    %c0_49 = arith.constant 0 : index
    %96 = vector.load %arg12[%c0_47, %c0_48, %c0_49] : memref<1x64x192xbf16, #tpu.memory_space<vmem>>, vector<1x64x192xbf16>
    %97 = vector.shape_cast %96 : vector<1x64x192xbf16> to vector<64x192xbf16>
    %cst_50 = arith.constant dense<0.000000e+00> : vector<16x192xf32>
    %98 = tpu.matmul %95, %97, %cst_50 {dimension_numbers = #tpu.dot_dimension_numbers<[1], [0], [0], [1], [0, 0, 1, 1], [], []>} : vector<16x64xbf16>, vector<64x192xbf16>, vector<16x192xf32> -> vector<16x192xf32>
    %c0_51 = arith.constant 0 : index
    %c0_52 = arith.constant 0 : index
    %c0_53 = arith.constant 0 : index
    %99 = vector.load %arg14[%c0_51, %c0_52, %c0_53] : memref<1x1x192xf32, #tpu.memory_space<vmem>>, vector<1x1x192xf32>
    %100 = vector.shape_cast %99 : vector<1x1x192xf32> to vector<1x192xf32>
    %101 = vector.broadcast %100 : vector<1x192xf32> to vector<16x192xf32>
    %102 = arith.addf %98, %101 : vector<16x192xf32>
    %103 = vector.shape_cast %102 : vector<16x192xf32> to vector<2x8x192xf32>
    %c0_54 = arith.constant 0 : index
    %c0_55 = arith.constant 0 : index
    %c0_56 = arith.constant 0 : index
    %104 = vector.load %arg13[%c0_54, %c0_55, %c0_56] : memref<1x64x192xbf16, #tpu.memory_space<vmem>>, vector<1x64x192xbf16>
    %105 = vector.shape_cast %104 : vector<1x64x192xbf16> to vector<64x192xbf16>
    %c0_57 = arith.constant 0 : index
    %c0_58 = arith.constant 0 : index
    %c0_59 = arith.constant 0 : index
    %106 = vector.load %arg15[%c0_57, %c0_58, %c0_59] : memref<1x1x192xf32, #tpu.memory_space<vmem>>, vector<1x1x192xf32>
    %107 = vector.shape_cast %106 : vector<1x1x192xf32> to vector<1x192xf32>
    %cst_60 = arith.constant 0.000000e+00 : f32
    %108 = vector.broadcast %cst_60 : f32 to vector<2x64xf32>
    %109 = vector.extract_strided_slice %103 {offsets = [0, 0, 0], sizes = [2, 1, 192], strides = [1, 1, 1]} : vector<2x8x192xf32> to vector<2x1x192xf32>
    %110 = vector.shape_cast %109 : vector<2x1x192xf32> to vector<2x192xf32>
    %111 = arith.truncf %108 : vector<2x64xf32> to vector<2x64xbf16>
    %cst_61 = arith.constant dense<0.000000e+00> : vector<2x192xf32>
    %112 = tpu.matmul %111, %105, %cst_61 {dimension_numbers = #tpu.dot_dimension_numbers<[1], [0], [0], [1], [0, 0, 1, 1], [], []>} : vector<2x64xbf16>, vector<64x192xbf16>, vector<2x192xf32> -> vector<2x192xf32>
    %113 = vector.broadcast %107 : vector<1x192xf32> to vector<2x192xf32>
    %114 = arith.addf %112, %113 : vector<2x192xf32>
    %115 = vector.extract_strided_slice %110 {offsets = [0, 0], sizes = [2, 64], strides = [1, 1]} : vector<2x192xf32> to vector<2x64xf32>
    %116 = vector.extract_strided_slice %114 {offsets = [0, 0], sizes = [2, 64], strides = [1, 1]} : vector<2x192xf32> to vector<2x64xf32>
    %117 = arith.addf %115, %116 : vector<2x64xf32>
    %118 = arith.negf %117 : vector<2x64xf32>
    %119 = math.exp %118 : vector<2x64xf32>
    %cst_62 = arith.constant 1.000000e+00 : f32
    %120 = vector.broadcast %cst_62 : f32 to vector<2x64xf32>
    %121 = arith.addf %120, %119 : vector<2x64xf32>
    %122 = arith.divf %120, %121 : vector<2x64xf32>
    %123 = vector.extract_strided_slice %110 {offsets = [0, 64], sizes = [2, 64], strides = [1, 1]} : vector<2x192xf32> to vector<2x64xf32>
    %124 = vector.extract_strided_slice %114 {offsets = [0, 64], sizes = [2, 64], strides = [1, 1]} : vector<2x192xf32> to vector<2x64xf32>
    %125 = arith.addf %123, %124 : vector<2x64xf32>
    %126 = arith.negf %125 : vector<2x64xf32>
    %127 = math.exp %126 : vector<2x64xf32>
    %cst_63 = arith.constant 1.000000e+00 : f32
    %128 = vector.broadcast %cst_63 : f32 to vector<2x64xf32>
    %129 = arith.addf %128, %127 : vector<2x64xf32>
    %130 = arith.divf %128, %129 : vector<2x64xf32>
    %131 = vector.extract_strided_slice %110 {offsets = [0, 128], sizes = [2, 64], strides = [1, 1]} : vector<2x192xf32> to vector<2x64xf32>
    %132 = vector.extract_strided_slice %114 {offsets = [0, 128], sizes = [2, 64], strides = [1, 1]} : vector<2x192xf32> to vector<2x64xf32>
    %133 = arith.mulf %122, %132 : vector<2x64xf32>
    %134 = arith.addf %131, %133 : vector<2x64xf32>
    %135 = math.tanh %134 : vector<2x64xf32>
    %cst_64 = arith.constant 1.000000e+00 : f32
    %136 = vector.broadcast %cst_64 : f32 to vector<2x64xf32>
    %137 = arith.subf %136, %130 : vector<2x64xf32>
    %138 = arith.mulf %137, %135 : vector<2x64xf32>
    %139 = arith.mulf %130, %108 : vector<2x64xf32>
    %140 = arith.addf %138, %139 : vector<2x64xf32>
    %141 = vector.extract_strided_slice %103 {offsets = [0, 1, 0], sizes = [2, 1, 192], strides = [1, 1, 1]} : vector<2x8x192xf32> to vector<2x1x192xf32>
    %142 = vector.shape_cast %141 : vector<2x1x192xf32> to vector<2x192xf32>
    %143 = arith.truncf %140 : vector<2x64xf32> to vector<2x64xbf16>
    %cst_65 = arith.constant dense<0.000000e+00> : vector<2x192xf32>
    %144 = tpu.matmul %143, %105, %cst_65 {dimension_numbers = #tpu.dot_dimension_numbers<[1], [0], [0], [1], [0, 0, 1, 1], [], []>} : vector<2x64xbf16>, vector<64x192xbf16>, vector<2x192xf32> -> vector<2x192xf32>
    %145 = vector.broadcast %107 : vector<1x192xf32> to vector<2x192xf32>
    %146 = arith.addf %144, %145 : vector<2x192xf32>
    %147 = vector.extract_strided_slice %142 {offsets = [0, 0], sizes = [2, 64], strides = [1, 1]} : vector<2x192xf32> to vector<2x64xf32>
    %148 = vector.extract_strided_slice %146 {offsets = [0, 0], sizes = [2, 64], strides = [1, 1]} : vector<2x192xf32> to vector<2x64xf32>
    %149 = arith.addf %147, %148 : vector<2x64xf32>
    %150 = arith.negf %149 : vector<2x64xf32>
    %151 = math.exp %150 : vector<2x64xf32>
    %cst_66 = arith.constant 1.000000e+00 : f32
    %152 = vector.broadcast %cst_66 : f32 to vector<2x64xf32>
    %153 = arith.addf %152, %151 : vector<2x64xf32>
    %154 = arith.divf %152, %153 : vector<2x64xf32>
    %155 = vector.extract_strided_slice %142 {offsets = [0, 64], sizes = [2, 64], strides = [1, 1]} : vector<2x192xf32> to vector<2x64xf32>
    %156 = vector.extract_strided_slice %146 {offsets = [0, 64], sizes = [2, 64], strides = [1, 1]} : vector<2x192xf32> to vector<2x64xf32>
    %157 = arith.addf %155, %156 : vector<2x64xf32>
    %158 = arith.negf %157 : vector<2x64xf32>
    %159 = math.exp %158 : vector<2x64xf32>
    %cst_67 = arith.constant 1.000000e+00 : f32
    %160 = vector.broadcast %cst_67 : f32 to vector<2x64xf32>
    %161 = arith.addf %160, %159 : vector<2x64xf32>
    %162 = arith.divf %160, %161 : vector<2x64xf32>
    %163 = vector.extract_strided_slice %142 {offsets = [0, 128], sizes = [2, 64], strides = [1, 1]} : vector<2x192xf32> to vector<2x64xf32>
    %164 = vector.extract_strided_slice %146 {offsets = [0, 128], sizes = [2, 64], strides = [1, 1]} : vector<2x192xf32> to vector<2x64xf32>
    %165 = arith.mulf %154, %164 : vector<2x64xf32>
    %166 = arith.addf %163, %165 : vector<2x64xf32>
    %167 = math.tanh %166 : vector<2x64xf32>
    %cst_68 = arith.constant 1.000000e+00 : f32
    %168 = vector.broadcast %cst_68 : f32 to vector<2x64xf32>
    %169 = arith.subf %168, %162 : vector<2x64xf32>
    %170 = arith.mulf %169, %167 : vector<2x64xf32>
    %171 = arith.mulf %162, %140 : vector<2x64xf32>
    %172 = arith.addf %170, %171 : vector<2x64xf32>
    %173 = vector.extract_strided_slice %103 {offsets = [0, 2, 0], sizes = [2, 1, 192], strides = [1, 1, 1]} : vector<2x8x192xf32> to vector<2x1x192xf32>
    %174 = vector.shape_cast %173 : vector<2x1x192xf32> to vector<2x192xf32>
    %175 = arith.truncf %172 : vector<2x64xf32> to vector<2x64xbf16>
    %cst_69 = arith.constant dense<0.000000e+00> : vector<2x192xf32>
    %176 = tpu.matmul %175, %105, %cst_69 {dimension_numbers = #tpu.dot_dimension_numbers<[1], [0], [0], [1], [0, 0, 1, 1], [], []>} : vector<2x64xbf16>, vector<64x192xbf16>, vector<2x192xf32> -> vector<2x192xf32>
    %177 = vector.broadcast %107 : vector<1x192xf32> to vector<2x192xf32>
    %178 = arith.addf %176, %177 : vector<2x192xf32>
    %179 = vector.extract_strided_slice %174 {offsets = [0, 0], sizes = [2, 64], strides = [1, 1]} : vector<2x192xf32> to vector<2x64xf32>
    %180 = vector.extract_strided_slice %178 {offsets = [0, 0], sizes = [2, 64], strides = [1, 1]} : vector<2x192xf32> to vector<2x64xf32>
    %181 = arith.addf %179, %180 : vector<2x64xf32>
    %182 = arith.negf %181 : vector<2x64xf32>
    %183 = math.exp %182 : vector<2x64xf32>
    %cst_70 = arith.constant 1.000000e+00 : f32
    %184 = vector.broadcast %cst_70 : f32 to vector<2x64xf32>
    %185 = arith.addf %184, %183 : vector<2x64xf32>
    %186 = arith.divf %184, %185 : vector<2x64xf32>
    %187 = vector.extract_strided_slice %174 {offsets = [0, 64], sizes = [2, 64], strides = [1, 1]} : vector<2x192xf32> to vector<2x64xf32>
    %188 = vector.extract_strided_slice %178 {offsets = [0, 64], sizes = [2, 64], strides = [1, 1]} : vector<2x192xf32> to vector<2x64xf32>
    %189 = arith.addf %187, %188 : vector<2x64xf32>
    %190 = arith.negf %189 : vector<2x64xf32>
    %191 = math.exp %190 : vector<2x64xf32>
    %cst_71 = arith.constant 1.000000e+00 : f32
    %192 = vector.broadcast %cst_71 : f32 to vector<2x64xf32>
    %193 = arith.addf %192, %191 : vector<2x64xf32>
    %194 = arith.divf %192, %193 : vector<2x64xf32>
    %195 = vector.extract_strided_slice %174 {offsets = [0, 128], sizes = [2, 64], strides = [1, 1]} : vector<2x192xf32> to vector<2x64xf32>
    %196 = vector.extract_strided_slice %178 {offsets = [0, 128], sizes = [2, 64], strides = [1, 1]} : vector<2x192xf32> to vector<2x64xf32>
    %197 = arith.mulf %186, %196 : vector<2x64xf32>
    %198 = arith.addf %195, %197 : vector<2x64xf32>
    %199 = math.tanh %198 : vector<2x64xf32>
    %cst_72 = arith.constant 1.000000e+00 : f32
    %200 = vector.broadcast %cst_72 : f32 to vector<2x64xf32>
    %201 = arith.subf %200, %194 : vector<2x64xf32>
    %202 = arith.mulf %201, %199 : vector<2x64xf32>
    %203 = arith.mulf %194, %172 : vector<2x64xf32>
    %204 = arith.addf %202, %203 : vector<2x64xf32>
    %205 = vector.extract_strided_slice %103 {offsets = [0, 3, 0], sizes = [2, 1, 192], strides = [1, 1, 1]} : vector<2x8x192xf32> to vector<2x1x192xf32>
    %206 = vector.shape_cast %205 : vector<2x1x192xf32> to vector<2x192xf32>
    %207 = arith.truncf %204 : vector<2x64xf32> to vector<2x64xbf16>
    %cst_73 = arith.constant dense<0.000000e+00> : vector<2x192xf32>
    %208 = tpu.matmul %207, %105, %cst_73 {dimension_numbers = #tpu.dot_dimension_numbers<[1], [0], [0], [1], [0, 0, 1, 1], [], []>} : vector<2x64xbf16>, vector<64x192xbf16>, vector<2x192xf32> -> vector<2x192xf32>
    %209 = vector.broadcast %107 : vector<1x192xf32> to vector<2x192xf32>
    %210 = arith.addf %208, %209 : vector<2x192xf32>
    %211 = vector.extract_strided_slice %206 {offsets = [0, 0], sizes = [2, 64], strides = [1, 1]} : vector<2x192xf32> to vector<2x64xf32>
    %212 = vector.extract_strided_slice %210 {offsets = [0, 0], sizes = [2, 64], strides = [1, 1]} : vector<2x192xf32> to vector<2x64xf32>
    %213 = arith.addf %211, %212 : vector<2x64xf32>
    %214 = arith.negf %213 : vector<2x64xf32>
    %215 = math.exp %214 : vector<2x64xf32>
    %cst_74 = arith.constant 1.000000e+00 : f32
    %216 = vector.broadcast %cst_74 : f32 to vector<2x64xf32>
    %217 = arith.addf %216, %215 : vector<2x64xf32>
    %218 = arith.divf %216, %217 : vector<2x64xf32>
    %219 = vector.extract_strided_slice %206 {offsets = [0, 64], sizes = [2, 64], strides = [1, 1]} : vector<2x192xf32> to vector<2x64xf32>
    %220 = vector.extract_strided_slice %210 {offsets = [0, 64], sizes = [2, 64], strides = [1, 1]} : vector<2x192xf32> to vector<2x64xf32>
    %221 = arith.addf %219, %220 : vector<2x64xf32>
    %222 = arith.negf %221 : vector<2x64xf32>
    %223 = math.exp %222 : vector<2x64xf32>
    %cst_75 = arith.constant 1.000000e+00 : f32
    %224 = vector.broadcast %cst_75 : f32 to vector<2x64xf32>
    %225 = arith.addf %224, %223 : vector<2x64xf32>
    %226 = arith.divf %224, %225 : vector<2x64xf32>
    %227 = vector.extract_strided_slice %206 {offsets = [0, 128], sizes = [2, 64], strides = [1, 1]} : vector<2x192xf32> to vector<2x64xf32>
    %228 = vector.extract_strided_slice %210 {offsets = [0, 128], sizes = [2, 64], strides = [1, 1]} : vector<2x192xf32> to vector<2x64xf32>
    %229 = arith.mulf %218, %228 : vector<2x64xf32>
    %230 = arith.addf %227, %229 : vector<2x64xf32>
    %231 = math.tanh %230 : vector<2x64xf32>
    %cst_76 = arith.constant 1.000000e+00 : f32
    %232 = vector.broadcast %cst_76 : f32 to vector<2x64xf32>
    %233 = arith.subf %232, %226 : vector<2x64xf32>
    %234 = arith.mulf %233, %231 : vector<2x64xf32>
    %235 = arith.mulf %226, %204 : vector<2x64xf32>
    %236 = arith.addf %234, %235 : vector<2x64xf32>
    %237 = vector.extract_strided_slice %103 {offsets = [0, 4, 0], sizes = [2, 1, 192], strides = [1, 1, 1]} : vector<2x8x192xf32> to vector<2x1x192xf32>
    %238 = vector.shape_cast %237 : vector<2x1x192xf32> to vector<2x192xf32>
    %239 = arith.truncf %236 : vector<2x64xf32> to vector<2x64xbf16>
    %cst_77 = arith.constant dense<0.000000e+00> : vector<2x192xf32>
    %240 = tpu.matmul %239, %105, %cst_77 {dimension_numbers = #tpu.dot_dimension_numbers<[1], [0], [0], [1], [0, 0, 1, 1], [], []>} : vector<2x64xbf16>, vector<64x192xbf16>, vector<2x192xf32> -> vector<2x192xf32>
    %241 = vector.broadcast %107 : vector<1x192xf32> to vector<2x192xf32>
    %242 = arith.addf %240, %241 : vector<2x192xf32>
    %243 = vector.extract_strided_slice %238 {offsets = [0, 0], sizes = [2, 64], strides = [1, 1]} : vector<2x192xf32> to vector<2x64xf32>
    %244 = vector.extract_strided_slice %242 {offsets = [0, 0], sizes = [2, 64], strides = [1, 1]} : vector<2x192xf32> to vector<2x64xf32>
    %245 = arith.addf %243, %244 : vector<2x64xf32>
    %246 = arith.negf %245 : vector<2x64xf32>
    %247 = math.exp %246 : vector<2x64xf32>
    %cst_78 = arith.constant 1.000000e+00 : f32
    %248 = vector.broadcast %cst_78 : f32 to vector<2x64xf32>
    %249 = arith.addf %248, %247 : vector<2x64xf32>
    %250 = arith.divf %248, %249 : vector<2x64xf32>
    %251 = vector.extract_strided_slice %238 {offsets = [0, 64], sizes = [2, 64], strides = [1, 1]} : vector<2x192xf32> to vector<2x64xf32>
    %252 = vector.extract_strided_slice %242 {offsets = [0, 64], sizes = [2, 64], strides = [1, 1]} : vector<2x192xf32> to vector<2x64xf32>
    %253 = arith.addf %251, %252 : vector<2x64xf32>
    %254 = arith.negf %253 : vector<2x64xf32>
    %255 = math.exp %254 : vector<2x64xf32>
    %cst_79 = arith.constant 1.000000e+00 : f32
    %256 = vector.broadcast %cst_79 : f32 to vector<2x64xf32>
    %257 = arith.addf %256, %255 : vector<2x64xf32>
    %258 = arith.divf %256, %257 : vector<2x64xf32>
    %259 = vector.extract_strided_slice %238 {offsets = [0, 128], sizes = [2, 64], strides = [1, 1]} : vector<2x192xf32> to vector<2x64xf32>
    %260 = vector.extract_strided_slice %242 {offsets = [0, 128], sizes = [2, 64], strides = [1, 1]} : vector<2x192xf32> to vector<2x64xf32>
    %261 = arith.mulf %250, %260 : vector<2x64xf32>
    %262 = arith.addf %259, %261 : vector<2x64xf32>
    %263 = math.tanh %262 : vector<2x64xf32>
    %cst_80 = arith.constant 1.000000e+00 : f32
    %264 = vector.broadcast %cst_80 : f32 to vector<2x64xf32>
    %265 = arith.subf %264, %258 : vector<2x64xf32>
    %266 = arith.mulf %265, %263 : vector<2x64xf32>
    %267 = arith.mulf %258, %236 : vector<2x64xf32>
    %268 = arith.addf %266, %267 : vector<2x64xf32>
    %269 = vector.extract_strided_slice %103 {offsets = [0, 5, 0], sizes = [2, 1, 192], strides = [1, 1, 1]} : vector<2x8x192xf32> to vector<2x1x192xf32>
    %270 = vector.shape_cast %269 : vector<2x1x192xf32> to vector<2x192xf32>
    %271 = arith.truncf %268 : vector<2x64xf32> to vector<2x64xbf16>
    %cst_81 = arith.constant dense<0.000000e+00> : vector<2x192xf32>
    %272 = tpu.matmul %271, %105, %cst_81 {dimension_numbers = #tpu.dot_dimension_numbers<[1], [0], [0], [1], [0, 0, 1, 1], [], []>} : vector<2x64xbf16>, vector<64x192xbf16>, vector<2x192xf32> -> vector<2x192xf32>
    %273 = vector.broadcast %107 : vector<1x192xf32> to vector<2x192xf32>
    %274 = arith.addf %272, %273 : vector<2x192xf32>
    %275 = vector.extract_strided_slice %270 {offsets = [0, 0], sizes = [2, 64], strides = [1, 1]} : vector<2x192xf32> to vector<2x64xf32>
    %276 = vector.extract_strided_slice %274 {offsets = [0, 0], sizes = [2, 64], strides = [1, 1]} : vector<2x192xf32> to vector<2x64xf32>
    %277 = arith.addf %275, %276 : vector<2x64xf32>
    %278 = arith.negf %277 : vector<2x64xf32>
    %279 = math.exp %278 : vector<2x64xf32>
    %cst_82 = arith.constant 1.000000e+00 : f32
    %280 = vector.broadcast %cst_82 : f32 to vector<2x64xf32>
    %281 = arith.addf %280, %279 : vector<2x64xf32>
    %282 = arith.divf %280, %281 : vector<2x64xf32>
    %283 = vector.extract_strided_slice %270 {offsets = [0, 64], sizes = [2, 64], strides = [1, 1]} : vector<2x192xf32> to vector<2x64xf32>
    %284 = vector.extract_strided_slice %274 {offsets = [0, 64], sizes = [2, 64], strides = [1, 1]} : vector<2x192xf32> to vector<2x64xf32>
    %285 = arith.addf %283, %284 : vector<2x64xf32>
    %286 = arith.negf %285 : vector<2x64xf32>
    %287 = math.exp %286 : vector<2x64xf32>
    %cst_83 = arith.constant 1.000000e+00 : f32
    %288 = vector.broadcast %cst_83 : f32 to vector<2x64xf32>
    %289 = arith.addf %288, %287 : vector<2x64xf32>
    %290 = arith.divf %288, %289 : vector<2x64xf32>
    %291 = vector.extract_strided_slice %270 {offsets = [0, 128], sizes = [2, 64], strides = [1, 1]} : vector<2x192xf32> to vector<2x64xf32>
    %292 = vector.extract_strided_slice %274 {offsets = [0, 128], sizes = [2, 64], strides = [1, 1]} : vector<2x192xf32> to vector<2x64xf32>
    %293 = arith.mulf %282, %292 : vector<2x64xf32>
    %294 = arith.addf %291, %293 : vector<2x64xf32>
    %295 = math.tanh %294 : vector<2x64xf32>
    %cst_84 = arith.constant 1.000000e+00 : f32
    %296 = vector.broadcast %cst_84 : f32 to vector<2x64xf32>
    %297 = arith.subf %296, %290 : vector<2x64xf32>
    %298 = arith.mulf %297, %295 : vector<2x64xf32>
    %299 = arith.mulf %290, %268 : vector<2x64xf32>
    %300 = arith.addf %298, %299 : vector<2x64xf32>
    %301 = vector.extract_strided_slice %103 {offsets = [0, 6, 0], sizes = [2, 1, 192], strides = [1, 1, 1]} : vector<2x8x192xf32> to vector<2x1x192xf32>
    %302 = vector.shape_cast %301 : vector<2x1x192xf32> to vector<2x192xf32>
    %303 = arith.truncf %300 : vector<2x64xf32> to vector<2x64xbf16>
    %cst_85 = arith.constant dense<0.000000e+00> : vector<2x192xf32>
    %304 = tpu.matmul %303, %105, %cst_85 {dimension_numbers = #tpu.dot_dimension_numbers<[1], [0], [0], [1], [0, 0, 1, 1], [], []>} : vector<2x64xbf16>, vector<64x192xbf16>, vector<2x192xf32> -> vector<2x192xf32>
    %305 = vector.broadcast %107 : vector<1x192xf32> to vector<2x192xf32>
    %306 = arith.addf %304, %305 : vector<2x192xf32>
    %307 = vector.extract_strided_slice %302 {offsets = [0, 0], sizes = [2, 64], strides = [1, 1]} : vector<2x192xf32> to vector<2x64xf32>
    %308 = vector.extract_strided_slice %306 {offsets = [0, 0], sizes = [2, 64], strides = [1, 1]} : vector<2x192xf32> to vector<2x64xf32>
    %309 = arith.addf %307, %308 : vector<2x64xf32>
    %310 = arith.negf %309 : vector<2x64xf32>
    %311 = math.exp %310 : vector<2x64xf32>
    %cst_86 = arith.constant 1.000000e+00 : f32
    %312 = vector.broadcast %cst_86 : f32 to vector<2x64xf32>
    %313 = arith.addf %312, %311 : vector<2x64xf32>
    %314 = arith.divf %312, %313 : vector<2x64xf32>
    %315 = vector.extract_strided_slice %302 {offsets = [0, 64], sizes = [2, 64], strides = [1, 1]} : vector<2x192xf32> to vector<2x64xf32>
    %316 = vector.extract_strided_slice %306 {offsets = [0, 64], sizes = [2, 64], strides = [1, 1]} : vector<2x192xf32> to vector<2x64xf32>
    %317 = arith.addf %315, %316 : vector<2x64xf32>
    %318 = arith.negf %317 : vector<2x64xf32>
    %319 = math.exp %318 : vector<2x64xf32>
    %cst_87 = arith.constant 1.000000e+00 : f32
    %320 = vector.broadcast %cst_87 : f32 to vector<2x64xf32>
    %321 = arith.addf %320, %319 : vector<2x64xf32>
    %322 = arith.divf %320, %321 : vector<2x64xf32>
    %323 = vector.extract_strided_slice %302 {offsets = [0, 128], sizes = [2, 64], strides = [1, 1]} : vector<2x192xf32> to vector<2x64xf32>
    %324 = vector.extract_strided_slice %306 {offsets = [0, 128], sizes = [2, 64], strides = [1, 1]} : vector<2x192xf32> to vector<2x64xf32>
    %325 = arith.mulf %314, %324 : vector<2x64xf32>
    %326 = arith.addf %323, %325 : vector<2x64xf32>
    %327 = math.tanh %326 : vector<2x64xf32>
    %cst_88 = arith.constant 1.000000e+00 : f32
    %328 = vector.broadcast %cst_88 : f32 to vector<2x64xf32>
    %329 = arith.subf %328, %322 : vector<2x64xf32>
    %330 = arith.mulf %329, %327 : vector<2x64xf32>
    %331 = arith.mulf %322, %300 : vector<2x64xf32>
    %332 = arith.addf %330, %331 : vector<2x64xf32>
    %333 = vector.extract_strided_slice %103 {offsets = [0, 7, 0], sizes = [2, 1, 192], strides = [1, 1, 1]} : vector<2x8x192xf32> to vector<2x1x192xf32>
    %334 = vector.shape_cast %333 : vector<2x1x192xf32> to vector<2x192xf32>
    %335 = arith.truncf %332 : vector<2x64xf32> to vector<2x64xbf16>
    %cst_89 = arith.constant dense<0.000000e+00> : vector<2x192xf32>
    %336 = tpu.matmul %335, %105, %cst_89 {dimension_numbers = #tpu.dot_dimension_numbers<[1], [0], [0], [1], [0, 0, 1, 1], [], []>} : vector<2x64xbf16>, vector<64x192xbf16>, vector<2x192xf32> -> vector<2x192xf32>
    %337 = vector.broadcast %107 : vector<1x192xf32> to vector<2x192xf32>
    %338 = arith.addf %336, %337 : vector<2x192xf32>
    %339 = vector.extract_strided_slice %334 {offsets = [0, 0], sizes = [2, 64], strides = [1, 1]} : vector<2x192xf32> to vector<2x64xf32>
    %340 = vector.extract_strided_slice %338 {offsets = [0, 0], sizes = [2, 64], strides = [1, 1]} : vector<2x192xf32> to vector<2x64xf32>
    %341 = arith.addf %339, %340 : vector<2x64xf32>
    %342 = arith.negf %341 : vector<2x64xf32>
    %343 = math.exp %342 : vector<2x64xf32>
    %cst_90 = arith.constant 1.000000e+00 : f32
    %344 = vector.broadcast %cst_90 : f32 to vector<2x64xf32>
    %345 = arith.addf %344, %343 : vector<2x64xf32>
    %346 = arith.divf %344, %345 : vector<2x64xf32>
    %347 = vector.extract_strided_slice %334 {offsets = [0, 64], sizes = [2, 64], strides = [1, 1]} : vector<2x192xf32> to vector<2x64xf32>
    %348 = vector.extract_strided_slice %338 {offsets = [0, 64], sizes = [2, 64], strides = [1, 1]} : vector<2x192xf32> to vector<2x64xf32>
    %349 = arith.addf %347, %348 : vector<2x64xf32>
    %350 = arith.negf %349 : vector<2x64xf32>
    %351 = math.exp %350 : vector<2x64xf32>
    %cst_91 = arith.constant 1.000000e+00 : f32
    %352 = vector.broadcast %cst_91 : f32 to vector<2x64xf32>
    %353 = arith.addf %352, %351 : vector<2x64xf32>
    %354 = arith.divf %352, %353 : vector<2x64xf32>
    %355 = vector.extract_strided_slice %334 {offsets = [0, 128], sizes = [2, 64], strides = [1, 1]} : vector<2x192xf32> to vector<2x64xf32>
    %356 = vector.extract_strided_slice %338 {offsets = [0, 128], sizes = [2, 64], strides = [1, 1]} : vector<2x192xf32> to vector<2x64xf32>
    %357 = arith.mulf %346, %356 : vector<2x64xf32>
    %358 = arith.addf %355, %357 : vector<2x64xf32>
    %359 = math.tanh %358 : vector<2x64xf32>
    %cst_92 = arith.constant 1.000000e+00 : f32
    %360 = vector.broadcast %cst_92 : f32 to vector<2x64xf32>
    %361 = arith.subf %360, %354 : vector<2x64xf32>
    %362 = arith.mulf %361, %359 : vector<2x64xf32>
    %363 = arith.mulf %354, %332 : vector<2x64xf32>
    %364 = arith.addf %362, %363 : vector<2x64xf32>
    %365 = vector.shape_cast %140 : vector<2x64xf32> to vector<2x1x64xf32>
    %366 = vector.shape_cast %172 : vector<2x64xf32> to vector<2x1x64xf32>
    %367 = vector.shape_cast %204 : vector<2x64xf32> to vector<2x1x64xf32>
    %368 = vector.shape_cast %236 : vector<2x64xf32> to vector<2x1x64xf32>
    %369 = vector.shape_cast %268 : vector<2x64xf32> to vector<2x1x64xf32>
    %370 = vector.shape_cast %300 : vector<2x64xf32> to vector<2x1x64xf32>
    %371 = vector.shape_cast %332 : vector<2x64xf32> to vector<2x1x64xf32>
    %372 = vector.shape_cast %364 : vector<2x64xf32> to vector<2x1x64xf32>
    %373 = tpu.concatenate %365, %366, %367, %368, %369, %370, %371, %372 in 1 : vector<2x1x64xf32>, vector<2x1x64xf32>, vector<2x1x64xf32>, vector<2x1x64xf32>, vector<2x1x64xf32>, vector<2x1x64xf32>, vector<2x1x64xf32>, vector<2x1x64xf32> -> vector<2x8x64xf32>
    %374 = arith.addf %373, %93 : vector<2x8x64xf32>
    %375 = vector.shape_cast %374 : vector<2x8x64xf32> to vector<16x64xf32>
    %376 = arith.truncf %375 : vector<16x64xf32> to vector<16x64xbf16>
    %c0_93 = arith.constant 0 : index
    %c0_94 = arith.constant 0 : index
    %c0_95 = arith.constant 0 : index
    %377 = vector.load %arg16[%c0_93, %c0_94, %c0_95] : memref<1x64x192xbf16, #tpu.memory_space<vmem>>, vector<1x64x192xbf16>
    %378 = vector.shape_cast %377 : vector<1x64x192xbf16> to vector<64x192xbf16>
    %cst_96 = arith.constant dense<0.000000e+00> : vector<16x192xf32>
    %379 = tpu.matmul %376, %378, %cst_96 {dimension_numbers = #tpu.dot_dimension_numbers<[1], [0], [0], [1], [0, 0, 1, 1], [], []>} : vector<16x64xbf16>, vector<64x192xbf16>, vector<16x192xf32> -> vector<16x192xf32>
    %c0_97 = arith.constant 0 : index
    %c0_98 = arith.constant 0 : index
    %c0_99 = arith.constant 0 : index
    %380 = vector.load %arg17[%c0_97, %c0_98, %c0_99] : memref<1x1x192xf32, #tpu.memory_space<vmem>>, vector<1x1x192xf32>
    %381 = vector.shape_cast %380 : vector<1x1x192xf32> to vector<1x192xf32>
    %382 = vector.broadcast %381 : vector<1x192xf32> to vector<16x192xf32>
    %383 = arith.addf %379, %382 : vector<16x192xf32>
    %384 = vector.extract_strided_slice %383 {offsets = [0, 0], sizes = [16, 64], strides = [1, 1]} : vector<16x192xf32> to vector<16x64xf32>
    %385 = vector.shape_cast %384 : vector<16x64xf32> to vector<2x8x64xf32>
    %386 = vector.extract_strided_slice %383 {offsets = [0, 64], sizes = [16, 64], strides = [1, 1]} : vector<16x192xf32> to vector<16x64xf32>
    %387 = vector.shape_cast %386 : vector<16x64xf32> to vector<2x8x64xf32>
    %388 = vector.extract_strided_slice %383 {offsets = [0, 128], sizes = [16, 64], strides = [1, 1]} : vector<16x192xf32> to vector<16x64xf32>
    %389 = vector.shape_cast %388 : vector<16x64xf32> to vector<2x8x64xf32>
    %390 = vector.extract_strided_slice %385 {offsets = [0, 0, 0], sizes = [2, 8, 16], strides = [1, 1, 1]} : vector<2x8x64xf32> to vector<2x8x16xf32>
    %cst_100 = arith.constant 2.500000e-01 : f32
    %391 = vector.broadcast %cst_100 : f32 to vector<2x8x16xf32>
    %392 = arith.mulf %390, %391 : vector<2x8x16xf32>
    %393 = vector.extract_strided_slice %387 {offsets = [0, 0, 0], sizes = [2, 8, 16], strides = [1, 1, 1]} : vector<2x8x64xf32> to vector<2x8x16xf32>
    %394 = vector.extract_strided_slice %389 {offsets = [0, 0, 0], sizes = [2, 8, 16], strides = [1, 1, 1]} : vector<2x8x64xf32> to vector<2x8x16xf32>
    %395 = arith.truncf %392 : vector<2x8x16xf32> to vector<2x8x16xbf16>
    %396 = arith.truncf %393 : vector<2x8x16xf32> to vector<2x8x16xbf16>
    "tpu.trace_start"() <{level = 10 : i32, message = "bqd,bkd->bqk"}> : () -> ()
    %cst_101 = arith.constant dense<0.000000e+00> : vector<2x8x8xf32>
    %397 = tpu.matmul %395, %396, %cst_101 {dimension_numbers = #tpu.dot_dimension_numbers<[2], [2], [1], [1], [0, 0, 0, 1, 1, 1], [0], [0]>} : vector<2x8x16xbf16>, vector<2x8x16xbf16>, vector<2x8x8xf32> -> vector<2x8x8xf32>
    "tpu.trace_stop"() : () -> ()
    %cst_102 = arith.constant dense<0xFF800000> : vector<2x8xf32>
    %398 = vector.multi_reduction <maximumf>, %397, %cst_102 [2] : vector<2x8x8xf32> to vector<2x8xf32>
    %cst_103 = arith.constant 0xFF800000 : f32
    %399 = vector.broadcast %cst_103 : f32 to vector<2x8xf32>
    %400 = arith.maximumf %399, %398 : vector<2x8xf32>
    %401 = vector.shape_cast %400 : vector<2x8xf32> to vector<2x8x1xf32>
    %402 = vector.broadcast %401 : vector<2x8x1xf32> to vector<2x8x8xf32>
    %403 = arith.subf %397, %402 : vector<2x8x8xf32>
    %404 = math.exp %403 : vector<2x8x8xf32>
    %cst_104 = arith.constant dense<0.000000e+00> : vector<2x8xf32>
    %405 = vector.multi_reduction <add>, %404, %cst_104 [2] : vector<2x8x8xf32> to vector<2x8xf32>
    %406 = vector.shape_cast %405 : vector<2x8xf32> to vector<2x8x1xf32>
    %407 = vector.broadcast %406 : vector<2x8x1xf32> to vector<2x8x8xf32>
    %408 = arith.divf %404, %407 : vector<2x8x8xf32>
    %409 = arith.truncf %408 : vector<2x8x8xf32> to vector<2x8x8xbf16>
    %410 = arith.truncf %394 : vector<2x8x16xf32> to vector<2x8x16xbf16>
    "tpu.trace_start"() <{level = 10 : i32, message = "bqk,bkd->bqd"}> : () -> ()
    %cst_105 = arith.constant dense<0.000000e+00> : vector<2x8x16xf32>
    %411 = tpu.matmul %409, %410, %cst_105 {dimension_numbers = #tpu.dot_dimension_numbers<[2], [1], [1], [2], [0, 0, 0, 1, 1, 2], [0], [0]>} : vector<2x8x8xbf16>, vector<2x8x16xbf16>, vector<2x8x16xf32> -> vector<2x8x16xf32>
    "tpu.trace_stop"() : () -> ()
    %cst_106 = arith.constant dense<0.000000e+00> : vector<2x16xf32>
    %412 = vector.multi_reduction <add>, %411, %cst_106 [1] : vector<2x8x16xf32> to vector<2x16xf32>
    %cst_107 = arith.constant 8.000000e+00 : f32
    %413 = vector.broadcast %cst_107 : f32 to vector<2x16xf32>
    %414 = arith.divf %412, %413 : vector<2x16xf32>
    %415 = vector.extract_strided_slice %385 {offsets = [0, 0, 16], sizes = [2, 8, 16], strides = [1, 1, 1]} : vector<2x8x64xf32> to vector<2x8x16xf32>
    %cst_108 = arith.constant 2.500000e-01 : f32
    %416 = vector.broadcast %cst_108 : f32 to vector<2x8x16xf32>
    %417 = arith.mulf %415, %416 : vector<2x8x16xf32>
    %418 = vector.extract_strided_slice %387 {offsets = [0, 0, 16], sizes = [2, 8, 16], strides = [1, 1, 1]} : vector<2x8x64xf32> to vector<2x8x16xf32>
    %419 = vector.extract_strided_slice %389 {offsets = [0, 0, 16], sizes = [2, 8, 16], strides = [1, 1, 1]} : vector<2x8x64xf32> to vector<2x8x16xf32>
    %420 = arith.truncf %417 : vector<2x8x16xf32> to vector<2x8x16xbf16>
    %421 = arith.truncf %418 : vector<2x8x16xf32> to vector<2x8x16xbf16>
    "tpu.trace_start"() <{level = 10 : i32, message = "bqd,bkd->bqk"}> : () -> ()
    %cst_109 = arith.constant dense<0.000000e+00> : vector<2x8x8xf32>
    %422 = tpu.matmul %420, %421, %cst_109 {dimension_numbers = #tpu.dot_dimension_numbers<[2], [2], [1], [1], [0, 0, 0, 1, 1, 1], [0], [0]>} : vector<2x8x16xbf16>, vector<2x8x16xbf16>, vector<2x8x8xf32> -> vector<2x8x8xf32>
    "tpu.trace_stop"() : () -> ()
    %cst_110 = arith.constant dense<0xFF800000> : vector<2x8xf32>
    %423 = vector.multi_reduction <maximumf>, %422, %cst_110 [2] : vector<2x8x8xf32> to vector<2x8xf32>
    %cst_111 = arith.constant 0xFF800000 : f32
    %424 = vector.broadcast %cst_111 : f32 to vector<2x8xf32>
    %425 = arith.maximumf %424, %423 : vector<2x8xf32>
    %426 = vector.shape_cast %425 : vector<2x8xf32> to vector<2x8x1xf32>
    %427 = vector.broadcast %426 : vector<2x8x1xf32> to vector<2x8x8xf32>
    %428 = arith.subf %422, %427 : vector<2x8x8xf32>
    %429 = math.exp %428 : vector<2x8x8xf32>
    %cst_112 = arith.constant dense<0.000000e+00> : vector<2x8xf32>
    %430 = vector.multi_reduction <add>, %429, %cst_112 [2] : vector<2x8x8xf32> to vector<2x8xf32>
    %431 = vector.shape_cast %430 : vector<2x8xf32> to vector<2x8x1xf32>
    %432 = vector.broadcast %431 : vector<2x8x1xf32> to vector<2x8x8xf32>
    %433 = arith.divf %429, %432 : vector<2x8x8xf32>
    %434 = arith.truncf %433 : vector<2x8x8xf32> to vector<2x8x8xbf16>
    %435 = arith.truncf %419 : vector<2x8x16xf32> to vector<2x8x16xbf16>
    "tpu.trace_start"() <{level = 10 : i32, message = "bqk,bkd->bqd"}> : () -> ()
    %cst_113 = arith.constant dense<0.000000e+00> : vector<2x8x16xf32>
    %436 = tpu.matmul %434, %435, %cst_113 {dimension_numbers = #tpu.dot_dimension_numbers<[2], [1], [1], [2], [0, 0, 0, 1, 1, 2], [0], [0]>} : vector<2x8x8xbf16>, vector<2x8x16xbf16>, vector<2x8x16xf32> -> vector<2x8x16xf32>
    "tpu.trace_stop"() : () -> ()
    %cst_114 = arith.constant dense<0.000000e+00> : vector<2x16xf32>
    %437 = vector.multi_reduction <add>, %436, %cst_114 [1] : vector<2x8x16xf32> to vector<2x16xf32>
    %cst_115 = arith.constant 8.000000e+00 : f32
    %438 = vector.broadcast %cst_115 : f32 to vector<2x16xf32>
    %439 = arith.divf %437, %438 : vector<2x16xf32>
    %440 = vector.extract_strided_slice %385 {offsets = [0, 0, 32], sizes = [2, 8, 16], strides = [1, 1, 1]} : vector<2x8x64xf32> to vector<2x8x16xf32>
    %cst_116 = arith.constant 2.500000e-01 : f32
    %441 = vector.broadcast %cst_116 : f32 to vector<2x8x16xf32>
    %442 = arith.mulf %440, %441 : vector<2x8x16xf32>
    %443 = vector.extract_strided_slice %387 {offsets = [0, 0, 32], sizes = [2, 8, 16], strides = [1, 1, 1]} : vector<2x8x64xf32> to vector<2x8x16xf32>
    %444 = vector.extract_strided_slice %389 {offsets = [0, 0, 32], sizes = [2, 8, 16], strides = [1, 1, 1]} : vector<2x8x64xf32> to vector<2x8x16xf32>
    %445 = arith.truncf %442 : vector<2x8x16xf32> to vector<2x8x16xbf16>
    %446 = arith.truncf %443 : vector<2x8x16xf32> to vector<2x8x16xbf16>
    "tpu.trace_start"() <{level = 10 : i32, message = "bqd,bkd->bqk"}> : () -> ()
    %cst_117 = arith.constant dense<0.000000e+00> : vector<2x8x8xf32>
    %447 = tpu.matmul %445, %446, %cst_117 {dimension_numbers = #tpu.dot_dimension_numbers<[2], [2], [1], [1], [0, 0, 0, 1, 1, 1], [0], [0]>} : vector<2x8x16xbf16>, vector<2x8x16xbf16>, vector<2x8x8xf32> -> vector<2x8x8xf32>
    "tpu.trace_stop"() : () -> ()
    %cst_118 = arith.constant dense<0xFF800000> : vector<2x8xf32>
    %448 = vector.multi_reduction <maximumf>, %447, %cst_118 [2] : vector<2x8x8xf32> to vector<2x8xf32>
    %cst_119 = arith.constant 0xFF800000 : f32
    %449 = vector.broadcast %cst_119 : f32 to vector<2x8xf32>
    %450 = arith.maximumf %449, %448 : vector<2x8xf32>
    %451 = vector.shape_cast %450 : vector<2x8xf32> to vector<2x8x1xf32>
    %452 = vector.broadcast %451 : vector<2x8x1xf32> to vector<2x8x8xf32>
    %453 = arith.subf %447, %452 : vector<2x8x8xf32>
    %454 = math.exp %453 : vector<2x8x8xf32>
    %cst_120 = arith.constant dense<0.000000e+00> : vector<2x8xf32>
    %455 = vector.multi_reduction <add>, %454, %cst_120 [2] : vector<2x8x8xf32> to vector<2x8xf32>
    %456 = vector.shape_cast %455 : vector<2x8xf32> to vector<2x8x1xf32>
    %457 = vector.broadcast %456 : vector<2x8x1xf32> to vector<2x8x8xf32>
    %458 = arith.divf %454, %457 : vector<2x8x8xf32>
    %459 = arith.truncf %458 : vector<2x8x8xf32> to vector<2x8x8xbf16>
    %460 = arith.truncf %444 : vector<2x8x16xf32> to vector<2x8x16xbf16>
    "tpu.trace_start"() <{level = 10 : i32, message = "bqk,bkd->bqd"}> : () -> ()
    %cst_121 = arith.constant dense<0.000000e+00> : vector<2x8x16xf32>
    %461 = tpu.matmul %459, %460, %cst_121 {dimension_numbers = #tpu.dot_dimension_numbers<[2], [1], [1], [2], [0, 0, 0, 1, 1, 2], [0], [0]>} : vector<2x8x8xbf16>, vector<2x8x16xbf16>, vector<2x8x16xf32> -> vector<2x8x16xf32>
    "tpu.trace_stop"() : () -> ()
    %cst_122 = arith.constant dense<0.000000e+00> : vector<2x16xf32>
    %462 = vector.multi_reduction <add>, %461, %cst_122 [1] : vector<2x8x16xf32> to vector<2x16xf32>
    %cst_123 = arith.constant 8.000000e+00 : f32
    %463 = vector.broadcast %cst_123 : f32 to vector<2x16xf32>
    %464 = arith.divf %462, %463 : vector<2x16xf32>
    %465 = vector.extract_strided_slice %385 {offsets = [0, 0, 48], sizes = [2, 8, 16], strides = [1, 1, 1]} : vector<2x8x64xf32> to vector<2x8x16xf32>
    %cst_124 = arith.constant 2.500000e-01 : f32
    %466 = vector.broadcast %cst_124 : f32 to vector<2x8x16xf32>
    %467 = arith.mulf %465, %466 : vector<2x8x16xf32>
    %468 = vector.extract_strided_slice %387 {offsets = [0, 0, 48], sizes = [2, 8, 16], strides = [1, 1, 1]} : vector<2x8x64xf32> to vector<2x8x16xf32>
    %469 = vector.extract_strided_slice %389 {offsets = [0, 0, 48], sizes = [2, 8, 16], strides = [1, 1, 1]} : vector<2x8x64xf32> to vector<2x8x16xf32>
    %470 = arith.truncf %467 : vector<2x8x16xf32> to vector<2x8x16xbf16>
    %471 = arith.truncf %468 : vector<2x8x16xf32> to vector<2x8x16xbf16>
    "tpu.trace_start"() <{level = 10 : i32, message = "bqd,bkd->bqk"}> : () -> ()
    %cst_125 = arith.constant dense<0.000000e+00> : vector<2x8x8xf32>
    %472 = tpu.matmul %470, %471, %cst_125 {dimension_numbers = #tpu.dot_dimension_numbers<[2], [2], [1], [1], [0, 0, 0, 1, 1, 1], [0], [0]>} : vector<2x8x16xbf16>, vector<2x8x16xbf16>, vector<2x8x8xf32> -> vector<2x8x8xf32>
    "tpu.trace_stop"() : () -> ()
    %cst_126 = arith.constant dense<0xFF800000> : vector<2x8xf32>
    %473 = vector.multi_reduction <maximumf>, %472, %cst_126 [2] : vector<2x8x8xf32> to vector<2x8xf32>
    %cst_127 = arith.constant 0xFF800000 : f32
    %474 = vector.broadcast %cst_127 : f32 to vector<2x8xf32>
    %475 = arith.maximumf %474, %473 : vector<2x8xf32>
    %476 = vector.shape_cast %475 : vector<2x8xf32> to vector<2x8x1xf32>
    %477 = vector.broadcast %476 : vector<2x8x1xf32> to vector<2x8x8xf32>
    %478 = arith.subf %472, %477 : vector<2x8x8xf32>
    %479 = math.exp %478 : vector<2x8x8xf32>
    %cst_128 = arith.constant dense<0.000000e+00> : vector<2x8xf32>
    %480 = vector.multi_reduction <add>, %479, %cst_128 [2] : vector<2x8x8xf32> to vector<2x8xf32>
    %481 = vector.shape_cast %480 : vector<2x8xf32> to vector<2x8x1xf32>
    %482 = vector.broadcast %481 : vector<2x8x1xf32> to vector<2x8x8xf32>
    %483 = arith.divf %479, %482 : vector<2x8x8xf32>
    %484 = arith.truncf %483 : vector<2x8x8xf32> to vector<2x8x8xbf16>
    %485 = arith.truncf %469 : vector<2x8x16xf32> to vector<2x8x16xbf16>
    "tpu.trace_start"() <{level = 10 : i32, message = "bqk,bkd->bqd"}> : () -> ()
    %cst_129 = arith.constant dense<0.000000e+00> : vector<2x8x16xf32>
    %486 = tpu.matmul %484, %485, %cst_129 {dimension_numbers = #tpu.dot_dimension_numbers<[2], [1], [1], [2], [0, 0, 0, 1, 1, 2], [0], [0]>} : vector<2x8x8xbf16>, vector<2x8x16xbf16>, vector<2x8x16xf32> -> vector<2x8x16xf32>
    "tpu.trace_stop"() : () -> ()
    %cst_130 = arith.constant dense<0.000000e+00> : vector<2x16xf32>
    %487 = vector.multi_reduction <add>, %486, %cst_130 [1] : vector<2x8x16xf32> to vector<2x16xf32>
    %cst_131 = arith.constant 8.000000e+00 : f32
    %488 = vector.broadcast %cst_131 : f32 to vector<2x16xf32>
    %489 = arith.divf %487, %488 : vector<2x16xf32>
    %490 = tpu.concatenate %414, %439, %464, %489 in 1 : vector<2x16xf32>, vector<2x16xf32>, vector<2x16xf32>, vector<2x16xf32> -> vector<2x64xf32>
    %491 = arith.truncf %490 : vector<2x64xf32> to vector<2x64xbf16>
    %c0_132 = arith.constant 0 : index
    %c0_133 = arith.constant 0 : index
    %c0_134 = arith.constant 0 : index
    %492 = vector.load %arg18[%c0_132, %c0_133, %c0_134] : memref<1x64x64xbf16, #tpu.memory_space<vmem>>, vector<1x64x64xbf16>
    %493 = vector.shape_cast %492 : vector<1x64x64xbf16> to vector<64x64xbf16>
    %cst_135 = arith.constant dense<0.000000e+00> : vector<2x64xf32>
    %494 = tpu.matmul %491, %493, %cst_135 {dimension_numbers = #tpu.dot_dimension_numbers<[1], [0], [0], [1], [0, 0, 1, 1], [], []>} : vector<2x64xbf16>, vector<64x64xbf16>, vector<2x64xf32> -> vector<2x64xf32>
    %c0_136 = arith.constant 0 : index
    %c0_137 = arith.constant 0 : index
    %c0_138 = arith.constant 0 : index
    %495 = vector.load %arg19[%c0_136, %c0_137, %c0_138] : memref<1x1x64xf32, #tpu.memory_space<vmem>>, vector<1x1x64xf32>
    %496 = vector.shape_cast %495 : vector<1x1x64xf32> to vector<1x64xf32>
    %497 = vector.broadcast %496 : vector<1x64xf32> to vector<2x64xf32>
    %498 = arith.addf %494, %497 : vector<2x64xf32>
    %c0_139 = arith.constant 0 : index
    %c0_140 = arith.constant 0 : index
    %c0_141 = arith.constant 0 : index
    %499 = vector.load %arg20[%c0_139, %c0_140, %c0_141] : memref<1x2x64xf32, #tpu.memory_space<vmem>>, vector<1x2x64xf32>
    %500 = vector.shape_cast %499 : vector<1x2x64xf32> to vector<2x64xf32>
    %501 = vector.shape_cast %498 : vector<2x64xf32> to vector<1x2x64xf32>
    tpu.vector_store %arg20[%c0_139, %c0_140, %c0_141], %501 {strides = array<i32>} : memref<1x2x64xf32, #tpu.memory_space<vmem>>, vector<1x2x64xf32>,
    return
  }
  func.func @transform_0(%arg0: i32) -> (i32, i32, i32, i32) {
    %c0_i32 = arith.constant 0 : i32
    %c0_i32_0 = arith.constant 0 : i32
    %c0_i32_1 = arith.constant 0 : i32
    %c0_i32_2 = arith.constant 0 : i32
    return %arg0, %c0_i32, %c0_i32_0, %c0_i32_1 : i32, i32, i32, i32
  }
  func.func @transform_1(%arg0: i32) -> (i32, i32, i32) {
    %c0_i32 = arith.constant 0 : i32
    %c0_i32_0 = arith.constant 0 : i32
    %c0_i32_1 = arith.constant 0 : i32
    return %arg0, %c0_i32, %c0_i32_0 : i32, i32, i32
  }
  func.func @transform_2(%arg0: i32) -> (i32, i32, i32) {
    %c0_i32 = arith.constant 0 : i32
    %c0_i32_0 = arith.constant 0 : i32
    %c0_i32_1 = arith.constant 0 : i32
    return %arg0, %c0_i32, %c0_i32_0 : i32, i32, i32
  }
  func.func @transform_3(%arg0: i32) -> (i32, i32, i32) {
    %c0_i32 = arith.constant 0 : i32
    %c0_i32_0 = arith.constant 0 : i32
    %c0_i32_1 = arith.constant 0 : i32
    return %arg0, %c0_i32, %c0_i32_0 : i32, i32, i32
  }
  func.func @transform_4(%arg0: i32) -> (i32, i32, i32) {
    %c0_i32 = arith.constant 0 : i32
    %c0_i32_0 = arith.constant 0 : i32
    %c0_i32_1 = arith.constant 0 : i32
    return %arg0, %c0_i32, %c0_i32_0 : i32, i32, i32
  }
  func.func @transform_5(%arg0: i32) -> (i32, i32, i32) {
    %c0_i32 = arith.constant 0 : i32
    %c0_i32_0 = arith.constant 0 : i32
    %c0_i32_1 = arith.constant 0 : i32
    return %arg0, %c0_i32, %c0_i32_0 : i32, i32, i32
  }
  func.func @transform_6(%arg0: i32) -> (i32, i32, i32) {
    %c0_i32 = arith.constant 0 : i32
    %c0_i32_0 = arith.constant 0 : i32
    %c0_i32_1 = arith.constant 0 : i32
    return %arg0, %c0_i32, %c0_i32_0 : i32, i32, i32
  }
  func.func @transform_7(%arg0: i32) -> (i32, i32, i32) {
    %c0_i32 = arith.constant 0 : i32
    %c0_i32_0 = arith.constant 0 : i32
    %c0_i32_1 = arith.constant 0 : i32
    return %arg0, %c0_i32, %c0_i32_0 : i32, i32, i32
  }
  func.func @transform_8(%arg0: i32) -> (i32, i32, i32) {
    %c0_i32 = arith.constant 0 : i32
    %c0_i32_0 = arith.constant 0 : i32
    %c0_i32_1 = arith.constant 0 : i32
    return %arg0, %c0_i32, %c0_i32_0 : i32, i32, i32
  }
  func.func @transform_9(%arg0: i32) -> (i32, i32, i32) {
    %c0_i32 = arith.constant 0 : i32
    %c0_i32_0 = arith.constant 0 : i32
    %c0_i32_1 = arith.constant 0 : i32
    return %arg0, %c0_i32, %c0_i32_0 : i32, i32, i32
  }
  func.func @transform_10(%arg0: i32) -> (i32, i32, i32) {
    %c0_i32 = arith.constant 0 : i32
    %c0_i32_0 = arith.constant 0 : i32
    %c0_i32_1 = arith.constant 0 : i32
    return %arg0, %c0_i32, %c0_i32_0 : i32, i32, i32
  }
  func.func @transform_11(%arg0: i32) -> (i32, i32, i32) {
    %c0_i32 = arith.constant 0 : i32
    %c0_i32_0 = arith.constant 0 : i32
    %c0_i32_1 = arith.constant 0 : i32
    return %arg0, %c0_i32, %c0_i32_0 : i32, i32, i32
  }
  func.func @transform_12(%arg0: i32) -> (i32, i32, i32) {
    %c0_i32 = arith.constant 0 : i32
    %c0_i32_0 = arith.constant 0 : i32
    %c0_i32_1 = arith.constant 0 : i32
    return %arg0, %c0_i32, %c0_i32_0 : i32, i32, i32
  }
  func.func @transform_13(%arg0: i32) -> (i32, i32, i32) {
    %c0_i32 = arith.constant 0 : i32
    %c0_i32_0 = arith.constant 0 : i32
    %c0_i32_1 = arith.constant 0 : i32
    return %arg0, %c0_i32, %c0_i32_0 : i32, i32, i32
  }
  func.func @transform_14(%arg0: i32) -> (i32, i32, i32) {
    %c0_i32 = arith.constant 0 : i32
    %c0_i32_0 = arith.constant 0 : i32
    %c0_i32_1 = arith.constant 0 : i32
    return %arg0, %c0_i32, %c0_i32_0 : i32, i32, i32
  }
  func.func @transform_15(%arg0: i32) -> (i32, i32, i32) {
    %c0_i32 = arith.constant 0 : i32
    %c0_i32_0 = arith.constant 0 : i32
    %c0_i32_1 = arith.constant 0 : i32
    return %arg0, %c0_i32, %c0_i32_0 : i32, i32, i32
  }
  func.func @transform_16(%arg0: i32) -> (i32, i32, i32) {
    %c0_i32 = arith.constant 0 : i32
    %c0_i32_0 = arith.constant 0 : i32
    %c0_i32_1 = arith.constant 0 : i32
    return %arg0, %c0_i32, %c0_i32_0 : i32, i32, i32
  }
  func.func @transform_17(%arg0: i32) -> (i32, i32, i32) {
    %c0_i32 = arith.constant 0 : i32
    %c0_i32_0 = arith.constant 0 : i32
    %c0_i32_1 = arith.constant 0 : i32
    return %arg0, %c0_i32, %c0_i32_0 : i32, i32, i32
  }
  func.func @transform_18(%arg0: i32) -> (i32, i32, i32) {
    %c0_i32 = arith.constant 0 : i32
    %c0_i32_0 = arith.constant 0 : i32
    %c0_i32_1 = arith.constant 0 : i32
    return %arg0, %c0_i32, %c0_i32_0 : i32, i32, i32
  }
  func.func @transform_19(%arg0: i32) -> (i32, i32, i32) {
    %c0_i32 = arith.constant 0 : i32
    %c0_i32_0 = arith.constant 0 : i32
    %c0_i32_1 = arith.constant 0 : i32
    return %arg0, %c0_i32, %c0_i32_0 : i32, i32, i32
  }
}

module attributes {stable_mosaic.version = 11 : i64} {
  func.func @shared_head_kernel(%arg0: memref<3x2x64xf32, #tpu.memory_space<vmem>>, %arg1: memref<64x384xbf16, #tpu.memory_space<vmem>>, %arg2: memref<128x384xbf16, #tpu.memory_space<vmem>>, %arg3: memref<1x384xf32, #tpu.memory_space<vmem>>, %arg4: memref<1x384xf32, #tpu.memory_space<vmem>>, %arg5: memref<64x128xbf16, #tpu.memory_space<vmem>>, %arg6: memref<1x128xf32, #tpu.memory_space<vmem>>, %arg7: memref<3x128x64xbf16, #tpu.memory_space<vmem>>, %arg8: memref<3x1x64xf32, #tpu.memory_space<vmem>>, %arg9: memref<3x128x64xbf16, #tpu.memory_space<vmem>>, %arg10: memref<3x1x64xf32, #tpu.memory_space<vmem>>, %arg11: memref<3x64x3xbf16, #tpu.memory_space<vmem>>, %arg12: memref<1x3xf32, #tpu.memory_space<vmem>>, %arg13: memref<2x3xf32, #tpu.memory_space<vmem>>) attributes {dimension_semantics = [], scalar_prefetch = 0 : i64, scratch_operands = 0 : i64, tpu.core_type = #tpu.core_type<tc>} {
    %c0 = arith.constant 0 : index
    %c0_0 = arith.constant 0 : index
    %c0_1 = arith.constant 0 : index
    %0 = vector.load %arg0[%c0, %c0_0, %c0_1] : memref<3x2x64xf32, #tpu.memory_space<vmem>>, vector<3x2x64xf32>
    %1 = vector.shape_cast %0 : vector<3x2x64xf32> to vector<6x64xf32>
    %2 = arith.truncf %1 : vector<6x64xf32> to vector<6x64xbf16>
    %c0_2 = arith.constant 0 : index
    %c0_3 = arith.constant 0 : index
    %3 = vector.load %arg1[%c0_2, %c0_3] : memref<64x384xbf16, #tpu.memory_space<vmem>>, vector<64x384xbf16>
    %cst = arith.constant dense<0.000000e+00> : vector<6x384xf32>
    %4 = tpu.matmul %2, %3, %cst {dimension_numbers = #tpu.dot_dimension_numbers<[1], [0], [0], [1], [0, 0, 1, 1], [], []>} : vector<6x64xbf16>, vector<64x384xbf16>, vector<6x384xf32> -> vector<6x384xf32>
    %c0_4 = arith.constant 0 : index
    %c0_5 = arith.constant 0 : index
    %5 = vector.load %arg3[%c0_4, %c0_5] : memref<1x384xf32, #tpu.memory_space<vmem>>, vector<1x384xf32>
    %6 = vector.broadcast %5 : vector<1x384xf32> to vector<6x384xf32>
    %7 = arith.addf %4, %6 : vector<6x384xf32>
    %8 = vector.shape_cast %7 : vector<6x384xf32> to vector<3x2x384xf32>
    %c0_6 = arith.constant 0 : index
    %c0_7 = arith.constant 0 : index
    %9 = vector.load %arg2[%c0_6, %c0_7] : memref<128x384xbf16, #tpu.memory_space<vmem>>, vector<128x384xbf16>
    %c0_8 = arith.constant 0 : index
    %c0_9 = arith.constant 0 : index
    %10 = vector.load %arg4[%c0_8, %c0_9] : memref<1x384xf32, #tpu.memory_space<vmem>>, vector<1x384xf32>
    %cst_10 = arith.constant 0.000000e+00 : f32
    %11 = vector.broadcast %cst_10 : f32 to vector<2x128xf32>
    %12 = vector.extract_strided_slice %8 {offsets = [0, 0, 0], sizes = [1, 2, 384], strides = [1, 1, 1]} : vector<3x2x384xf32> to vector<1x2x384xf32>
    %13 = vector.shape_cast %12 : vector<1x2x384xf32> to vector<2x384xf32>
    %14 = arith.truncf %11 : vector<2x128xf32> to vector<2x128xbf16>
    %cst_11 = arith.constant dense<0.000000e+00> : vector<2x384xf32>
    %15 = tpu.matmul %14, %9, %cst_11 {dimension_numbers = #tpu.dot_dimension_numbers<[1], [0], [0], [1], [0, 0, 1, 1], [], []>} : vector<2x128xbf16>, vector<128x384xbf16>, vector<2x384xf32> -> vector<2x384xf32>
    %16 = vector.broadcast %10 : vector<1x384xf32> to vector<2x384xf32>
    %17 = arith.addf %15, %16 : vector<2x384xf32>
    %18 = vector.extract_strided_slice %13 {offsets = [0, 0], sizes = [2, 128], strides = [1, 1]} : vector<2x384xf32> to vector<2x128xf32>
    %19 = vector.extract_strided_slice %17 {offsets = [0, 0], sizes = [2, 128], strides = [1, 1]} : vector<2x384xf32> to vector<2x128xf32>
    %20 = arith.addf %18, %19 : vector<2x128xf32>
    %21 = arith.negf %20 : vector<2x128xf32>
    %22 = math.exp %21 : vector<2x128xf32>
    %cst_12 = arith.constant 1.000000e+00 : f32
    %23 = vector.broadcast %cst_12 : f32 to vector<2x128xf32>
    %24 = arith.addf %23, %22 : vector<2x128xf32>
    %25 = arith.divf %23, %24 : vector<2x128xf32>
    %26 = vector.extract_strided_slice %13 {offsets = [0, 128], sizes = [2, 128], strides = [1, 1]} : vector<2x384xf32> to vector<2x128xf32>
    %27 = vector.extract_strided_slice %17 {offsets = [0, 128], sizes = [2, 128], strides = [1, 1]} : vector<2x384xf32> to vector<2x128xf32>
    %28 = arith.addf %26, %27 : vector<2x128xf32>
    %29 = arith.negf %28 : vector<2x128xf32>
    %30 = math.exp %29 : vector<2x128xf32>
    %cst_13 = arith.constant 1.000000e+00 : f32
    %31 = vector.broadcast %cst_13 : f32 to vector<2x128xf32>
    %32 = arith.addf %31, %30 : vector<2x128xf32>
    %33 = arith.divf %31, %32 : vector<2x128xf32>
    %34 = vector.extract_strided_slice %13 {offsets = [0, 256], sizes = [2, 128], strides = [1, 1]} : vector<2x384xf32> to vector<2x128xf32>
    %35 = vector.extract_strided_slice %17 {offsets = [0, 256], sizes = [2, 128], strides = [1, 1]} : vector<2x384xf32> to vector<2x128xf32>
    %36 = arith.mulf %25, %35 : vector<2x128xf32>
    %37 = arith.addf %34, %36 : vector<2x128xf32>
    %38 = math.tanh %37 : vector<2x128xf32>
    %cst_14 = arith.constant 1.000000e+00 : f32
    %39 = vector.broadcast %cst_14 : f32 to vector<2x128xf32>
    %40 = arith.subf %39, %33 : vector<2x128xf32>
    %41 = arith.mulf %40, %38 : vector<2x128xf32>
    %42 = arith.mulf %33, %11 : vector<2x128xf32>
    %43 = arith.addf %41, %42 : vector<2x128xf32>
    %44 = vector.extract_strided_slice %8 {offsets = [1, 0, 0], sizes = [1, 2, 384], strides = [1, 1, 1]} : vector<3x2x384xf32> to vector<1x2x384xf32>
    %45 = vector.shape_cast %44 : vector<1x2x384xf32> to vector<2x384xf32>
    %46 = arith.truncf %43 : vector<2x128xf32> to vector<2x128xbf16>
    %cst_15 = arith.constant dense<0.000000e+00> : vector<2x384xf32>
    %47 = tpu.matmul %46, %9, %cst_15 {dimension_numbers = #tpu.dot_dimension_numbers<[1], [0], [0], [1], [0, 0, 1, 1], [], []>} : vector<2x128xbf16>, vector<128x384xbf16>, vector<2x384xf32> -> vector<2x384xf32>
    %48 = vector.broadcast %10 : vector<1x384xf32> to vector<2x384xf32>
    %49 = arith.addf %47, %48 : vector<2x384xf32>
    %50 = vector.extract_strided_slice %45 {offsets = [0, 0], sizes = [2, 128], strides = [1, 1]} : vector<2x384xf32> to vector<2x128xf32>
    %51 = vector.extract_strided_slice %49 {offsets = [0, 0], sizes = [2, 128], strides = [1, 1]} : vector<2x384xf32> to vector<2x128xf32>
    %52 = arith.addf %50, %51 : vector<2x128xf32>
    %53 = arith.negf %52 : vector<2x128xf32>
    %54 = math.exp %53 : vector<2x128xf32>
    %cst_16 = arith.constant 1.000000e+00 : f32
    %55 = vector.broadcast %cst_16 : f32 to vector<2x128xf32>
    %56 = arith.addf %55, %54 : vector<2x128xf32>
    %57 = arith.divf %55, %56 : vector<2x128xf32>
    %58 = vector.extract_strided_slice %45 {offsets = [0, 128], sizes = [2, 128], strides = [1, 1]} : vector<2x384xf32> to vector<2x128xf32>
    %59 = vector.extract_strided_slice %49 {offsets = [0, 128], sizes = [2, 128], strides = [1, 1]} : vector<2x384xf32> to vector<2x128xf32>
    %60 = arith.addf %58, %59 : vector<2x128xf32>
    %61 = arith.negf %60 : vector<2x128xf32>
    %62 = math.exp %61 : vector<2x128xf32>
    %cst_17 = arith.constant 1.000000e+00 : f32
    %63 = vector.broadcast %cst_17 : f32 to vector<2x128xf32>
    %64 = arith.addf %63, %62 : vector<2x128xf32>
    %65 = arith.divf %63, %64 : vector<2x128xf32>
    %66 = vector.extract_strided_slice %45 {offsets = [0, 256], sizes = [2, 128], strides = [1, 1]} : vector<2x384xf32> to vector<2x128xf32>
    %67 = vector.extract_strided_slice %49 {offsets = [0, 256], sizes = [2, 128], strides = [1, 1]} : vector<2x384xf32> to vector<2x128xf32>
    %68 = arith.mulf %57, %67 : vector<2x128xf32>
    %69 = arith.addf %66, %68 : vector<2x128xf32>
    %70 = math.tanh %69 : vector<2x128xf32>
    %cst_18 = arith.constant 1.000000e+00 : f32
    %71 = vector.broadcast %cst_18 : f32 to vector<2x128xf32>
    %72 = arith.subf %71, %65 : vector<2x128xf32>
    %73 = arith.mulf %72, %70 : vector<2x128xf32>
    %74 = arith.mulf %65, %43 : vector<2x128xf32>
    %75 = arith.addf %73, %74 : vector<2x128xf32>
    %76 = vector.extract_strided_slice %8 {offsets = [2, 0, 0], sizes = [1, 2, 384], strides = [1, 1, 1]} : vector<3x2x384xf32> to vector<1x2x384xf32>
    %77 = vector.shape_cast %76 : vector<1x2x384xf32> to vector<2x384xf32>
    %78 = arith.truncf %75 : vector<2x128xf32> to vector<2x128xbf16>
    %cst_19 = arith.constant dense<0.000000e+00> : vector<2x384xf32>
    %79 = tpu.matmul %78, %9, %cst_19 {dimension_numbers = #tpu.dot_dimension_numbers<[1], [0], [0], [1], [0, 0, 1, 1], [], []>} : vector<2x128xbf16>, vector<128x384xbf16>, vector<2x384xf32> -> vector<2x384xf32>
    %80 = vector.broadcast %10 : vector<1x384xf32> to vector<2x384xf32>
    %81 = arith.addf %79, %80 : vector<2x384xf32>
    %82 = vector.extract_strided_slice %77 {offsets = [0, 0], sizes = [2, 128], strides = [1, 1]} : vector<2x384xf32> to vector<2x128xf32>
    %83 = vector.extract_strided_slice %81 {offsets = [0, 0], sizes = [2, 128], strides = [1, 1]} : vector<2x384xf32> to vector<2x128xf32>
    %84 = arith.addf %82, %83 : vector<2x128xf32>
    %85 = arith.negf %84 : vector<2x128xf32>
    %86 = math.exp %85 : vector<2x128xf32>
    %cst_20 = arith.constant 1.000000e+00 : f32
    %87 = vector.broadcast %cst_20 : f32 to vector<2x128xf32>
    %88 = arith.addf %87, %86 : vector<2x128xf32>
    %89 = arith.divf %87, %88 : vector<2x128xf32>
    %90 = vector.extract_strided_slice %77 {offsets = [0, 128], sizes = [2, 128], strides = [1, 1]} : vector<2x384xf32> to vector<2x128xf32>
    %91 = vector.extract_strided_slice %81 {offsets = [0, 128], sizes = [2, 128], strides = [1, 1]} : vector<2x384xf32> to vector<2x128xf32>
    %92 = arith.addf %90, %91 : vector<2x128xf32>
    %93 = arith.negf %92 : vector<2x128xf32>
    %94 = math.exp %93 : vector<2x128xf32>
    %cst_21 = arith.constant 1.000000e+00 : f32
    %95 = vector.broadcast %cst_21 : f32 to vector<2x128xf32>
    %96 = arith.addf %95, %94 : vector<2x128xf32>
    %97 = arith.divf %95, %96 : vector<2x128xf32>
    %98 = vector.extract_strided_slice %77 {offsets = [0, 256], sizes = [2, 128], strides = [1, 1]} : vector<2x384xf32> to vector<2x128xf32>
    %99 = vector.extract_strided_slice %81 {offsets = [0, 256], sizes = [2, 128], strides = [1, 1]} : vector<2x384xf32> to vector<2x128xf32>
    %100 = arith.mulf %89, %99 : vector<2x128xf32>
    %101 = arith.addf %98, %100 : vector<2x128xf32>
    %102 = math.tanh %101 : vector<2x128xf32>
    %cst_22 = arith.constant 1.000000e+00 : f32
    %103 = vector.broadcast %cst_22 : f32 to vector<2x128xf32>
    %104 = arith.subf %103, %97 : vector<2x128xf32>
    %105 = arith.mulf %104, %102 : vector<2x128xf32>
    %106 = arith.mulf %97, %75 : vector<2x128xf32>
    %107 = arith.addf %105, %106 : vector<2x128xf32>
    %108 = vector.shape_cast %43 : vector<2x128xf32> to vector<1x2x128xf32>
    %109 = vector.shape_cast %75 : vector<2x128xf32> to vector<1x2x128xf32>
    %110 = vector.shape_cast %107 : vector<2x128xf32> to vector<1x2x128xf32>
    %111 = tpu.concatenate %108, %109, %110 in 0 : vector<1x2x128xf32>, vector<1x2x128xf32>, vector<1x2x128xf32> -> vector<3x2x128xf32>
    %c0_23 = arith.constant 0 : index
    %c0_24 = arith.constant 0 : index
    %112 = vector.load %arg5[%c0_23, %c0_24] : memref<64x128xbf16, #tpu.memory_space<vmem>>, vector<64x128xbf16>
    %cst_25 = arith.constant dense<0.000000e+00> : vector<6x128xf32>
    %113 = tpu.matmul %2, %112, %cst_25 {dimension_numbers = #tpu.dot_dimension_numbers<[1], [0], [0], [1], [0, 0, 1, 1], [], []>} : vector<6x64xbf16>, vector<64x128xbf16>, vector<6x128xf32> -> vector<6x128xf32>
    %c0_26 = arith.constant 0 : index
    %c0_27 = arith.constant 0 : index
    %114 = vector.load %arg6[%c0_26, %c0_27] : memref<1x128xf32, #tpu.memory_space<vmem>>, vector<1x128xf32>
    %115 = vector.broadcast %114 : vector<1x128xf32> to vector<6x128xf32>
    %116 = arith.addf %113, %115 : vector<6x128xf32>
    %117 = vector.shape_cast %116 : vector<6x128xf32> to vector<3x2x128xf32>
    %118 = arith.addf %111, %117 : vector<3x2x128xf32>
    %119 = arith.truncf %118 : vector<3x2x128xf32> to vector<3x2x128xbf16>
    %c0_28 = arith.constant 0 : index
    %c0_29 = arith.constant 0 : index
    %c0_30 = arith.constant 0 : index
    %120 = vector.load %arg7[%c0_28, %c0_29, %c0_30] : memref<3x128x64xbf16, #tpu.memory_space<vmem>>, vector<3x128x64xbf16>
    "tpu.trace_start"() <{level = 10 : i32, message = "tbh,thc->tbc"}> : () -> ()
    %cst_31 = arith.constant dense<0.000000e+00> : vector<3x2x64xf32>
    %121 = tpu.matmul %119, %120, %cst_31 {dimension_numbers = #tpu.dot_dimension_numbers<[2], [1], [1], [2], [0, 0, 0, 1, 1, 2], [0], [0]>} : vector<3x2x128xbf16>, vector<3x128x64xbf16>, vector<3x2x64xf32> -> vector<3x2x64xf32>
    "tpu.trace_stop"() : () -> ()
    %c0_32 = arith.constant 0 : index
    %c0_33 = arith.constant 0 : index
    %c0_34 = arith.constant 0 : index
    %122 = vector.load %arg8[%c0_32, %c0_33, %c0_34] : memref<3x1x64xf32, #tpu.memory_space<vmem>>, vector<3x1x64xf32>
    %123 = vector.broadcast %122 : vector<3x1x64xf32> to vector<3x2x64xf32>
    %124 = arith.addf %121, %123 : vector<3x2x64xf32>
    %c0_35 = arith.constant 0 : index
    %c0_36 = arith.constant 0 : index
    %c0_37 = arith.constant 0 : index
    %125 = vector.load %arg9[%c0_35, %c0_36, %c0_37] : memref<3x128x64xbf16, #tpu.memory_space<vmem>>, vector<3x128x64xbf16>
    "tpu.trace_start"() <{level = 10 : i32, message = "tbh,thc->tbc"}> : () -> ()
    %cst_38 = arith.constant dense<0.000000e+00> : vector<3x2x64xf32>
    %126 = tpu.matmul %119, %125, %cst_38 {dimension_numbers = #tpu.dot_dimension_numbers<[2], [1], [1], [2], [0, 0, 0, 1, 1, 2], [0], [0]>} : vector<3x2x128xbf16>, vector<3x128x64xbf16>, vector<3x2x64xf32> -> vector<3x2x64xf32>
    "tpu.trace_stop"() : () -> ()
    %c0_39 = arith.constant 0 : index
    %c0_40 = arith.constant 0 : index
    %c0_41 = arith.constant 0 : index
    %127 = vector.load %arg10[%c0_39, %c0_40, %c0_41] : memref<3x1x64xf32, #tpu.memory_space<vmem>>, vector<3x1x64xf32>
    %128 = vector.broadcast %127 : vector<3x1x64xf32> to vector<3x2x64xf32>
    %129 = arith.addf %126, %128 : vector<3x2x64xf32>
    %cst_42 = arith.constant 0.000000e+00 : f32
    %130 = vector.broadcast %cst_42 : f32 to vector<3x2x64xf32>
    %131 = arith.maximumf %129, %130 : vector<3x2x64xf32>
    %132 = arith.addf %131, %124 : vector<3x2x64xf32>
    %133 = arith.truncf %132 : vector<3x2x64xf32> to vector<3x2x64xbf16>
    %c0_43 = arith.constant 0 : index
    %c0_44 = arith.constant 0 : index
    %c0_45 = arith.constant 0 : index
    %134 = vector.load %arg11[%c0_43, %c0_44, %c0_45] : memref<3x64x3xbf16, #tpu.memory_space<vmem>>, vector<3x64x3xbf16>
    "tpu.trace_start"() <{level = 10 : i32, message = "tbc,tco->tbo"}> : () -> ()
    %cst_46 = arith.constant dense<0.000000e+00> : vector<3x2x3xf32>
    %135 = tpu.matmul %133, %134, %cst_46 {dimension_numbers = #tpu.dot_dimension_numbers<[2], [1], [1], [2], [0, 0, 0, 1, 1, 2], [0], [0]>} : vector<3x2x64xbf16>, vector<3x64x3xbf16>, vector<3x2x3xf32> -> vector<3x2x3xf32>
    "tpu.trace_stop"() : () -> ()
    %cst_47 = arith.constant dense<0.000000e+00> : vector<2x3xf32>
    %136 = vector.multi_reduction <add>, %135, %cst_47 [0] : vector<3x2x3xf32> to vector<2x3xf32>
    %c0_48 = arith.constant 0 : index
    %c0_49 = arith.constant 0 : index
    %137 = vector.load %arg12[%c0_48, %c0_49] : memref<1x3xf32, #tpu.memory_space<vmem>>, vector<1x3xf32>
    %138 = vector.broadcast %137 : vector<1x3xf32> to vector<2x3xf32>
    %139 = arith.addf %136, %138 : vector<2x3xf32>
    %c0_50 = arith.constant 0 : index
    %c0_51 = arith.constant 0 : index
    %140 = vector.load %arg13[%c0_50, %c0_51] : memref<2x3xf32, #tpu.memory_space<vmem>>, vector<2x3xf32>
    tpu.vector_store %arg13[%c0_50, %c0_51], %139 {strides = array<i32>} : memref<2x3xf32, #tpu.memory_space<vmem>>, vector<2x3xf32>,
    return
  }
}

</mosaic_0001>

<llo_original>
// kernel: forward.3
$region0: #{forward.3}
  #allocation0 [shape = 'u32[]', space=smem, size = 0x4, offset = 0x4, fixed_abs, tag = 'smem constant byte address 0x4 - core index']
  #allocation1 [shape = 'u32[144,128]{1,0:T(1,128)}', space=vmem, size = 0x12000, scoped, tag = 'internal scratch']
  %s0 = inlined_call_operand.vmem [shape: f32[3,2,64], index: 0, kind: input, shape index: {}]
  %s1 = inlined_call_operand.vmem [shape: bf16[64,384], index: 1, kind: input, shape index: {}]
  %s2 = inlined_call_operand.vmem [shape: bf16[128,384], index: 2, kind: input, shape index: {}]
  %s3 = inlined_call_operand.vmem [shape: f32[1,384], index: 3, kind: input, shape index: {}]
  %s4 = inlined_call_operand.vmem [shape: f32[1,384], index: 4, kind: input, shape index: {}]
  %s5 = inlined_call_operand.vmem [shape: bf16[64,128], index: 5, kind: input, shape index: {}]
  %s6 = inlined_call_operand.vmem [shape: f32[1,128], index: 6, kind: input, shape index: {}]
  %s7 = inlined_call_operand.vmem [shape: bf16[3,128,64], index: 7, kind: input, shape index: {}]
  %s8 = inlined_call_operand.vmem [shape: f32[3,1,64], index: 8, kind: input, shape index: {}]
  %s9 = inlined_call_operand.vmem [shape: bf16[3,128,64], index: 9, kind: input, shape index: {}]
  %s10 = inlined_call_operand.vmem [shape: f32[3,1,64], index: 10, kind: input, shape index: {}]
  %s11 = inlined_call_operand.vmem [shape: bf16[3,64,3], index: 11, kind: input, shape index: {}]
  %s12 = inlined_call_operand.vmem [shape: f32[1,3], index: 12, kind: input, shape index: {}]
  %s13 = inlined_call_operand.hbm [shape: f32[2,3], index: 13, kind: output, shape index: {}]
  %s14 = sld [smem:[#allocation0]]
  $region62: #{forward.3} parent=0
    _
  %s16 = ssub.s32 1, %s14
  %s17 = scalar_select 0, %s16, %s14
  $region1: #{forward.3} parent=0
    #allocation2 [shape = 'u8[1024]{0}', space=vmem, size = 0x400, scoped, tag = 'output window, operand 0, single buffered']
    #allocation3 [shape = 's32[1]{0}', space=sflag, size = 0x4, scoped, tag = 'scoped memory for forward.3']
    %18 = vsyncpa [#allocation3], 0
    // Predicated region
    $region2: #{forward.3} parent=1 // pred_check
      _
    $region3: #{forward.3} parent=1 // pred_check_branch
      %20 = sbr.rel (0) target = $region5
    $region4: #{forward.3} parent=1 // pred_region
      _
    $region5: #{forward.3} parent=1 // pred_fallthru
      _
    // Predicated region
    $region6: #{forward.3} parent=1 // pred_check
      _
    $region7: #{forward.3} parent=1 // pred_check_branch
      %22 = sbr.rel (0) target = $region9
    $region8: #{forward.3} parent=1 // pred_region
      _
    $region9: #{forward.3} parent=1 // pred_fallthru
      _
    // Predicated region
    $region10: #{forward.3} parent=1 // pred_check
      _
    $region11: #{forward.3} parent=1 // pred_check_branch
      %24 = sbr.rel (0) target = $region13
    $region12: #{forward.3} parent=1 // pred_region
      _
    $region13: #{forward.3} parent=1 // pred_fallthru
      _
    // Predicated region
    $region14: #{forward.3} parent=1 // pred_check
      _
    $region15: #{forward.3} parent=1 // pred_check_branch
      %26 = sbr.rel (0) target = $region17
    $region16: #{forward.3} parent=1 // pred_region
      _
    $region17: #{forward.3} parent=1 // pred_fallthru
      _
    // Predicated region
    $region18: #{forward.3} parent=1 // pred_check
      _
    $region19: #{forward.3} parent=1 // pred_check_branch
      %28 = sbr.rel (0) target = $region21
    $region20: #{forward.3} parent=1 // pred_region
      _
    $region21: #{forward.3} parent=1 // pred_fallthru
      _
    // Predicated region
    $region22: #{forward.3} parent=1 // pred_check
      _
    $region23: #{forward.3} parent=1 // pred_check_branch
      %30 = sbr.rel (0) target = $region25
    $region24: #{forward.3} parent=1 // pred_region
      _
    $region25: #{forward.3} parent=1 // pred_fallthru
      _
    // Predicated region
    $region26: #{forward.3} parent=1 // pred_check
      _
    $region27: #{forward.3} parent=1 // pred_check_branch
      %32 = sbr.rel (0) target = $region29
    $region28: #{forward.3} parent=1 // pred_region
      _
    $region29: #{forward.3} parent=1 // pred_fallthru
      _
    // Predicated region
    $region30: #{forward.3} parent=1 // pred_check
      _
    $region31: #{forward.3} parent=1 // pred_check_branch
      %34 = sbr.rel (0) target = $region33
    $region32: #{forward.3} parent=1 // pred_region
      _
    $region33: #{forward.3} parent=1 // pred_fallthru
      _
    // Predicated region
    $region34: #{forward.3} parent=1 // pred_check
      _
    $region35: #{forward.3} parent=1 // pred_check_branch
      %36 = sbr.rel (0) target = $region37
    $region36: #{forward.3} parent=1 // pred_region
      _
    $region37: #{forward.3} parent=1 // pred_fallthru
      _
    // Predicated region
    $region38: #{forward.3} parent=1 // pred_check
      _
    $region39: #{forward.3} parent=1 // pred_check_branch
      %38 = sbr.rel (0) target = $region41
    $region40: #{forward.3} parent=1 // pred_region
      _
    $region41: #{forward.3} parent=1 // pred_fallthru
      _
    // Predicated region
    $region42: #{forward.3} parent=1 // pred_check
      _
    $region43: #{forward.3} parent=1 // pred_check_branch
      %40 = sbr.rel (0) target = $region45
    $region44: #{forward.3} parent=1 // pred_region
      _
    $region45: #{forward.3} parent=1 // pred_fallthru
      _
    // Predicated region
    $region46: #{forward.3} parent=1 // pred_check
      _
    $region47: #{forward.3} parent=1 // pred_check_branch
      %42 = sbr.rel (0) target = $region49
    $region48: #{forward.3} parent=1 // pred_region
      _
    $region49: #{forward.3} parent=1 // pred_fallthru
      _
    // Predicated region
    $region50: #{forward.3} parent=1 // pred_check
      _
    $region51: #{forward.3} parent=1 // pred_check_branch
      %44 = sbr.rel (0) target = $region53
    $region52: #{forward.3} parent=1 // pred_region
      _
    $region53: #{forward.3} parent=1 // pred_fallthru
      _
    %v46 = vld [vmem:[%s0] sm:$0x3]
    %v47 = vld [vmem:[%s0 + $0x2] sm:$0x3]
    %v48 = vld [vmem:[%s0 + $0x4] sm:$0x3]
    %v52 = vcombine.low %v46, %v47
    %v54 = vunpack.c.l.s4 1983009808
    %v55 = vunpack.c.0.s8 %v54
    %v56 = vlaneseq
    %v57 = vshrl.u32 %v56, 7
    %v58 = vsub.s32 %v55, %v57
    %v59 = vrot.slane %v52, %v58
    %v61 = vunpack.c.l.s4 1983009808
    %v62 = vunpack.c.0.s8 %v61
    %v63 = vlaneseq
    %v64 = vshrl.u32 %v63, 7
    %v65 = vsub.s32 %v62, %v64
    %v66 = vrot.slane %v48, %v65
    %v67 = vcombine.low %v59, %v66
    %v69 = vpack.c.bf16 %v67, %v67
    %v70 = vld [vmem:[%s1] sm:$0xff]
    %v71 = vld [vmem:[%s1 + $0x8] sm:$0xf]
    %v72 = vld [vmem:[%s1 + $0xc] sm:$0xff]
    %v73 = vld [vmem:[%s1 + $0x14] sm:$0xf]
    %v74 = vld [vmem:[%s1 + $0x18] sm:$0xff]
    %v75 = vld [vmem:[%s1 + $0x20] sm:$0xf]
    %v76 = vld [vmem:[%s1 + $0x24] sm:$0xff]
    %v77 = vld [vmem:[%s1 + $0x2c] sm:$0xf]
    %v78 = vld [vmem:[%s1 + $0x30] sm:$0xff]
    %v79 = vld [vmem:[%s1 + $0x38] sm:$0xf]
    %v80 = vld [vmem:[%s1 + $0x3c] sm:$0xff]
    %v81 = vld [vmem:[%s1 + $0x44] sm:$0xf]
    %v82 = vld [vmem:[%s1 + $0x48] sm:$0xff]
    %v83 = vld [vmem:[%s1 + $0x50] sm:$0xf]
    %v84 = vld [vmem:[%s1 + $0x54] sm:$0xff]
    %v85 = vld [vmem:[%s1 + $0x5c] sm:$0xf]
    %v86 = vld [vmem:[%s3] sm:$0x7]
    %v88 = vlaneseq
    %v89 = vshrl.u32 %v88, 7
    %v90 = vsub.s32 0, %v89
    %v91 = vrot.slane %v86, %v90
    %v92 = vlaneseq
    %v93 = vshrl.u32 %v92, 7
    %v94 = vsub.s32 1, %v93
    %v95 = vrot.slane %v86, %v94
    %v96 = vlaneseq
    %v97 = vshrl.u32 %v96, 7
    %v98 = vsub.s32 2, %v97
    %v99 = vrot.slane %v86, %v98
    %v119 = vunpack.c.l.b16 %v70
    %v120 = vunpack.c.h.b16 %v70
    %v121 = vunpack.c.l.b16 %v71
    %v122 = vunpack.c.l.b16 %v72
    %v123 = vunpack.c.h.b16 %v72
    %v124 = vunpack.c.l.b16 %v73
    %v125 = vunpack.c.l.b16 %v74
    %v126 = vunpack.c.h.b16 %v74
    %v127 = vunpack.c.l.b16 %v75
    %v128 = vunpack.c.l.b16 %v76
    %v129 = vunpack.c.h.b16 %v76
    %v130 = vunpack.c.l.b16 %v77
    %v131 = vunpack.c.l.b16 %v78
    %v132 = vunpack.c.h.b16 %v78
    %v133 = vunpack.c.l.b16 %v79
    %v134 = vunpack.c.l.b16 %v80
    %v135 = vunpack.c.h.b16 %v80
    %v136 = vunpack.c.l.b16 %v81
    %v137 = vunpack.c.l.b16 %v82
    %v138 = vunpack.c.h.b16 %v82
    %v139 = vunpack.c.l.b16 %v83
    %v140 = vunpack.c.l.b16 %v84
    %v141 = vunpack.c.h.b16 %v84
    %v142 = vunpack.c.l.b16 %v85
    %v143 = vpack.c.b16 %v122, %v119
    %v144 = vpack.c.b16 %v123, %v120
    %v145 = vpack.c.b16 %v124, %v121
    %v146 = vpack.c.b16 %v128, %v125
    %v147 = vpack.c.b16 %v129, %v126
    %v148 = vpack.c.b16 %v130, %v127
    %v149 = vpack.c.b16 %v134, %v131
    %v150 = vpack.c.b16 %v135, %v132
    %v151 = vpack.c.b16 %v136, %v133
    %v152 = vpack.c.b16 %v140, %v137
    %v153 = vpack.c.b16 %v141, %v138
    %v154 = vpack.c.b16 %v142, %v139
    %vm167 = vcmask 523264
    %v169 = vsel %vm167, %v69, 0
    %171 = vmatprep.subr.bf16.mxu0 %v144
    %172 = vmatpush1.bf16.msra.mxu0 %v143
    %173 = vmatprep.subr.bf16.mxu0 %v147
    %174 = vmatpush1.bf16.msra.mxu0 %v146
    %175 = vmatprep.subr.bf16.mxu0 %v150
    %176 = vmatpush1.bf16.msra.mxu0 %v149
    %177 = vmatprep.subr.bf16.mxu0 %v153
    %178 = vmatpush1.bf16.msra.mxu0 %v152
    %179 = vmatprep.subr.bf16.mxu0 0
    %180 = vmatpush1.bf16.msra.mxu0 0
    %181 = vmatprep.subr.bf16.mxu0 0
    %182 = vmatpush1.bf16.msra.mxu0 0
    %183 = vmatprep.subr.bf16.mxu0 0
    %184 = vmatpush1.bf16.msra.mxu0 0
    %185 = vmatprep.subr.bf16.mxu0 0
    %186 = vmatpush1.bf16.msra.mxu0 0
    %187 = vmatprep.subr.bf16.mxu0 0
    %188 = vmatpush1.bf16.msra.mxu0 0
    %189 = vmatprep.subr.bf16.mxu0 0
    %190 = vmatpush1.bf16.msra.mxu0 0
    %191 = vmatprep.subr.bf16.mxu0 0
    %192 = vmatpush1.bf16.msra.mxu0 0
    %193 = vmatprep.subr.bf16.mxu0 0
    %194 = vmatpush1.bf16.msra.mxu0 0
    %195 = vmatprep.subr.bf16.mxu0 0
    %196 = vmatpush1.bf16.msra.mxu0 0
    %197 = vmatprep.subr.bf16.mxu0 0
    %198 = vmatpush1.bf16.msra.mxu0 0
    %199 = vmatprep.subr.bf16.mxu0 0
    %200 = vmatpush1.bf16.msra.mxu0 0
    %201 = vmatprep.subr.bf16.mxu0 0
    %202 = vmatpush1.bf16.msra.mxu0 0
    %203 = vmatprep.mubr.bf16.mxu0 0
    %204 = vmatmul.mubr.bf16.gmra.mrb[0].mxu0 %v169
    %v205 = vpop.f32.mrb[0].mxu0
    %v206 = vadd.f32 %v91, %v205
    %v207 = vpop.f32.mrb[0].mxu0
    %v208 = vadd.f32 %v95, %v207
    %v209 = vpop.f32.mrb[0].mxu0
    %v210 = vpop.f32.mrb[0].mxu0
    %211 = vdwg.mxu0
    %212 = vmatprep.subr.bf16.mxu0 0
    %213 = vmatpush1.bf16.msra.mxu0 %v145
    %214 = vmatprep.subr.bf16.mxu0 0
    %215 = vmatpush1.bf16.msra.mxu0 %v148
    %216 = vmatprep.subr.bf16.mxu0 0
    %217 = vmatpush1.bf16.msra.mxu0 %v151
    %218 = vmatprep.subr.bf16.mxu0 0
    %219 = vmatpush1.bf16.msra.mxu0 %v154
    %220 = vmatprep.subr.bf16.mxu0 0
    %221 = vmatpush1.bf16.msra.mxu0 0
    %222 = vmatprep.subr.bf16.mxu0 0
    %223 = vmatpush1.bf16.msra.mxu0 0
    %224 = vmatprep.subr.bf16.mxu0 0
    %225 = vmatpush1.bf16.msra.mxu0 0
    %226 = vmatprep.subr.bf16.mxu0 0
    %227 = vmatpush1.bf16.msra.mxu0 0
    %228 = vmatprep.subr.bf16.mxu0 0
    %229 = vmatpush1.bf16.msra.mxu0 0
    %230 = vmatprep.subr.bf16.mxu0 0
    %231 = vmatpush1.bf16.msra.mxu0 0
    %232 = vmatprep.subr.bf16.mxu0 0
    %233 = vmatpush1.bf16.msra.mxu0 0
    %234 = vmatprep.subr.bf16.mxu0 0
    %235 = vmatpush1.bf16.msra.mxu0 0
    %236 = vmatprep.subr.bf16.mxu0 0
    %237 = vmatpush1.bf16.msra.mxu0 0
    %238 = vmatprep.subr.bf16.mxu0 0
    %239 = vmatpush1.bf16.msra.mxu0 0
    %240 = vmatprep.subr.bf16.mxu0 0
    %241 = vmatpush1.bf16.msra.mxu0 0
    %242 = vmatprep.subr.bf16.mxu0 0
    %243 = vmatpush1.bf16.msra.mxu0 0
    %244 = vmatprep.mubr.bf16.mxu0 0
    %245 = vmatmul.mubr.bf16.gmra.mrb[0].mxu0 %v169
    %v246 = vpop.f32.mrb[0].mxu0
    %v247 = vadd.f32 %v99, %v246
    %v248 = vpop.f32.mrb[0].mxu0
    %v249 = vpop.f32.mrb[0].mxu0
    %v250 = vpop.f32.mrb[0].mxu0
    %251 = vdwg.mxu0
    %v255 = vcombine.low %v206, %v208
    %v256 = vcombine.high %v206, %v208
    %v257 = vcombine.high %v247, %v247
    %v259 = vunpack.c.l.s4 1983009808
    %v260 = vunpack.c.0.s8 %v259
    %v261 = vlaneseq
    %v262 = vshrl.u32 %v261, 7
    %v263 = vsub.s32 %v260, %v262
    %v264 = vrot.slane %v255, %v263
    %v266 = vunpack.c.l.s4 1983009808
    %v267 = vunpack.c.0.s8 %v266
    %v268 = vlaneseq
    %v269 = vshrl.u32 %v268, 7
    %v270 = vsub.s32 %v267, %v269
    %v271 = vrot.slane %v256, %v270
    %v273 = vunpack.c.l.s4 1983009808
    %v274 = vunpack.c.0.s8 %v273
    %v275 = vlaneseq
    %v276 = vshrl.u32 %v275, 7
    %v277 = vsub.s32 %v274, %v276
    %v278 = vrot.slane %v247, %v277
    %v280 = vunpack.c.l.s4 1983009808
    %v281 = vunpack.c.0.s8 %v280
    %v282 = vlaneseq
    %v283 = vshrl.u32 %v282, 7
    %v284 = vsub.s32 %v281, %v283
    %v285 = vrot.slane %v257, %v284
    %v286 = vcombine.low %v264, %v278
    %v287 = vcombine.high %v264, %v278
    %v288 = vcombine.low %v271, %v285
    %v292 = vld [vmem:[%s2] sm:$0xff]
    %v293 = vld [vmem:[%s2 + $0x8] sm:$0xf]
    %v294 = vld [vmem:[%s2 + $0xc] sm:$0xff]
    %v295 = vld [vmem:[%s2 + $0x14] sm:$0xf]
    %v296 = vld [vmem:[%s2 + $0x18] sm:$0xff]
    %v297 = vld [vmem:[%s2 + $0x20] sm:$0xf]
    %v298 = vld [vmem:[%s2 + $0x24] sm:$0xff]
    %v299 = vld [vmem:[%s2 + $0x2c] sm:$0xf]
    %v300 = vld [vmem:[%s2 + $0x30] sm:$0xff]
    %v301 = vld [vmem:[%s2 + $0x38] sm:$0xf]
    %v302 = vld [vmem:[%s2 + $0x3c] sm:$0xff]
    %v303 = vld [vmem:[%s2 + $0x44] sm:$0xf]
    %v304 = vld [vmem:[%s2 + $0x48] sm:$0xff]
    %v305 = vld [vmem:[%s2 + $0x50] sm:$0xf]
    %v306 = vld [vmem:[%s2 + $0x54] sm:$0xff]
    %v307 = vld [vmem:[%s2 + $0x5c] sm:$0xf]
    %v308 = vld [vmem:[%s2 + $0x60] sm:$0xff]
    %v309 = vld [vmem:[%s2 + $0x68] sm:$0xf]
    %v310 = vld [vmem:[%s2 + $0x6c] sm:$0xff]
    %v311 = vld [vmem:[%s2 + $0x74] sm:$0xf]
    %v312 = vld [vmem:[%s2 + $0x78] sm:$0xff]
    %v313 = vld [vmem:[%s2 + $0x80] sm:$0xf]
    %v314 = vld [vmem:[%s2 + $0x84] sm:$0xff]
    %v315 = vld [vmem:[%s2 + $0x8c] sm:$0xf]
    %v316 = vld [vmem:[%s2 + $0x90] sm:$0xff]
    %v317 = vld [vmem:[%s2 + $0x98] sm:$0xf]
    %v318 = vld [vmem:[%s2 + $0x9c] sm:$0xff]
    %v319 = vld [vmem:[%s2 + $0xa4] sm:$0xf]
    %v320 = vld [vmem:[%s2 + $0xa8] sm:$0xff]
    %v321 = vld [vmem:[%s2 + $0xb0] sm:$0xf]
    %v322 = vld [vmem:[%s2 + $0xb4] sm:$0xff]
    %v323 = vld [vmem:[%s2 + $0xbc] sm:$0xf]
    %v324 = vld [vmem:[%s4] sm:$0x7]
    %v326 = vlaneseq
    %v327 = vshrl.u32 %v326, 7
    %v328 = vsub.s32 0, %v327
    %v329 = vrot.slane %v324, %v328
    %v330 = vlaneseq
    %v331 = vshrl.u32 %v330, 7
    %v332 = vsub.s32 1, %v331
    %v333 = vrot.slane %v324, %v332
    %v334 = vlaneseq
    %v335 = vshrl.u32 %v334, 7
    %v336 = vsub.s32 2, %v335
    %v337 = vrot.slane %v324, %v336
    %v373 = vunpack.c.l.b16 %v292
    %v374 = vunpack.c.h.b16 %v292
    %v375 = vunpack.c.l.b16 %v293
    %v376 = vunpack.c.l.b16 %v294
    %v377 = vunpack.c.h.b16 %v294
    %v378 = vunpack.c.l.b16 %v295
    %v379 = vunpack.c.l.b16 %v296
    %v380 = vunpack.c.h.b16 %v296
    %v381 = vunpack.c.l.b16 %v297
    %v382 = vunpack.c.l.b16 %v298
    %v383 = vunpack.c.h.b16 %v298
    %v384 = vunpack.c.l.b16 %v299
    %v385 = vunpack.c.l.b16 %v300
    %v386 = vunpack.c.h.b16 %v300
    %v387 = vunpack.c.l.b16 %v301
    %v388 = vunpack.c.l.b16 %v302
    %v389 = vunpack.c.h.b16 %v302
    %v390 = vunpack.c.l.b16 %v303
    %v391 = vunpack.c.l.b16 %v304
    %v392 = vunpack.c.h.b16 %v304
    %v393 = vunpack.c.l.b16 %v305
    %v394 = vunpack.c.l.b16 %v306
    %v395 = vunpack.c.h.b16 %v306
    %v396 = vunpack.c.l.b16 %v307
    %v397 = vunpack.c.l.b16 %v308
    %v398 = vunpack.c.h.b16 %v308
    %v399 = vunpack.c.l.b16 %v309
    %v400 = vunpack.c.l.b16 %v310
    %v401 = vunpack.c.h.b16 %v310
    %v402 = vunpack.c.l.b16 %v311
    %v403 = vunpack.c.l.b16 %v312
    %v404 = vunpack.c.h.b16 %v312
    %v405 = vunpack.c.l.b16 %v313
    %v406 = vunpack.c.l.b16 %v314
    %v407 = vunpack.c.h.b16 %v314
    %v408 = vunpack.c.l.b16 %v315
    %v409 = vunpack.c.l.b16 %v316
    %v410 = vunpack.c.h.b16 %v316
    %v411 = vunpack.c.l.b16 %v317
    %v412 = vunpack.c.l.b16 %v318
    %v413 = vunpack.c.h.b16 %v318
    %v414 = vunpack.c.l.b16 %v319
    %v415 = vunpack.c.l.b16 %v320
    %v416 = vunpack.c.h.b16 %v320
    %v417 = vunpack.c.l.b16 %v321
    %v418 = vunpack.c.l.b16 %v322
    %v419 = vunpack.c.h.b16 %v322
    %v420 = vunpack.c.l.b16 %v323
    %v421 = vpack.c.b16 %v376, %v373
    %v422 = vpack.c.b16 %v377, %v374
    %v423 = vpack.c.b16 %v378, %v375
    %v424 = vpack.c.b16 %v382, %v379
    %v425 = vpack.c.b16 %v383, %v380
    %v426 = vpack.c.b16 %v384, %v381
    %v427 = vpack.c.b16 %v388, %v385
    %v428 = vpack.c.b16 %v389, %v386
    %v429 = vpack.c.b16 %v390, %v387
    %v430 = vpack.c.b16 %v394, %v391
    %v431 = vpack.c.b16 %v395, %v392
    %v432 = vpack.c.b16 %v396, %v393
    %v433 = vpack.c.b16 %v400, %v397
    %v434 = vpack.c.b16 %v401, %v398
    %v435 = vpack.c.b16 %v402, %v399
    %v436 = vpack.c.b16 %v406, %v403
    %v437 = vpack.c.b16 %v407, %v404
    %v438 = vpack.c.b16 %v408, %v405
    %v439 = vpack.c.b16 %v412, %v409
    %v440 = vpack.c.b16 %v413, %v410
    %v441 = vpack.c.b16 %v414, %v411
    %v442 = vpack.c.b16 %v418, %v415
    %v443 = vpack.c.b16 %v419, %v416
    %v444 = vpack.c.b16 %v420, %v417
    %469 = vmatprep.subr.bf16.mxu0 %v422
    %470 = vmatpush1.bf16.msra.mxu0 %v421
    %471 = vmatprep.subr.bf16.mxu0 %v425
    %472 = vmatpush1.bf16.msra.mxu0 %v424
    %473 = vmatprep.subr.bf16.mxu0 %v428
    %474 = vmatpush1.bf16.msra.mxu0 %v427
    %475 = vmatprep.subr.bf16.mxu0 %v431
    %476 = vmatpush1.bf16.msra.mxu0 %v430
    %477 = vmatprep.subr.bf16.mxu0 %v434
    %478 = vmatpush1.bf16.msra.mxu0 %v433
    %479 = vmatprep.subr.bf16.mxu0 %v437
    %480 = vmatpush1.bf16.msra.mxu0 %v436
    %481 = vmatprep.subr.bf16.mxu0 %v440
    %482 = vmatpush1.bf16.msra.mxu0 %v439
    %483 = vmatprep.subr.bf16.mxu0 %v443
    %484 = vmatpush1.bf16.msra.mxu0 %v442
    %485 = vmatprep.subr.bf16.mxu0 0
    %486 = vmatpush1.bf16.msra.mxu0 0
    %487 = vmatprep.subr.bf16.mxu0 0
    %488 = vmatpush1.bf16.msra.mxu0 0
    %489 = vmatprep.subr.bf16.mxu0 0
    %490 = vmatpush1.bf16.msra.mxu0 0
    %491 = vmatprep.subr.bf16.mxu0 0
    %492 = vmatpush1.bf16.msra.mxu0 0
    %493 = vmatprep.subr.bf16.mxu0 0
    %494 = vmatpush1.bf16.msra.mxu0 0
    %495 = vmatprep.subr.bf16.mxu0 0
    %496 = vmatpush1.bf16.msra.mxu0 0
    %497 = vmatprep.subr.bf16.mxu0 0
    %498 = vmatpush1.bf16.msra.mxu0 0
    %499 = vmatprep.subr.bf16.mxu0 0
    %500 = vmatpush1.bf16.msra.mxu0 0
    %501 = vmatprep.mubr.bf16.mxu0 0
    %502 = vmatmul.mubr.bf16.gmra.mrb[0].mxu0 0
    %v503 = vpop.f32.mrb[0].mxu0
    %v504 = vadd.f32 %v329, %v503
    %v505 = vpop.f32.mrb[0].mxu0
    %v506 = vadd.f32 %v333, %v505
    %v507 = vpop.f32.mrb[0].mxu0
    %v508 = vpop.f32.mrb[0].mxu0
    %509 = vdwg.mxu0
    %510 = vmatprep.subr.bf16.mxu0 0
    %511 = vmatpush1.bf16.msra.mxu0 %v423
    %512 = vmatprep.subr.bf16.mxu0 0
    %513 = vmatpush1.bf16.msra.mxu0 %v426
    %514 = vmatprep.subr.bf16.mxu0 0
    %515 = vmatpush1.bf16.msra.mxu0 %v429
    %516 = vmatprep.subr.bf16.mxu0 0
    %517 = vmatpush1.bf16.msra.mxu0 %v432
    %518 = vmatprep.subr.bf16.mxu0 0
    %519 = vmatpush1.bf16.msra.mxu0 %v435
    %520 = vmatprep.subr.bf16.mxu0 0
    %521 = vmatpush1.bf16.msra.mxu0 %v438
    %522 = vmatprep.subr.bf16.mxu0 0
    %523 = vmatpush1.bf16.msra.mxu0 %v441
    %524 = vmatprep.subr.bf16.mxu0 0
    %525 = vmatpush1.bf16.msra.mxu0 %v444
    %526 = vmatprep.subr.bf16.mxu0 0
    %527 = vmatpush1.bf16.msra.mxu0 0
    %528 = vmatprep.subr.bf16.mxu0 0
    %529 = vmatpush1.bf16.msra.mxu0 0
    %530 = vmatprep.subr.bf16.mxu0 0
    %531 = vmatpush1.bf16.msra.mxu0 0
    %532 = vmatprep.subr.bf16.mxu0 0
    %533 = vmatpush1.bf16.msra.mxu0 0
    %534 = vmatprep.subr.bf16.mxu0 0
    %535 = vmatpush1.bf16.msra.mxu0 0
    %536 = vmatprep.subr.bf16.mxu0 0
    %537 = vmatpush1.bf16.msra.mxu0 0
    %538 = vmatprep.subr.bf16.mxu0 0
    %539 = vmatpush1.bf16.msra.mxu0 0
    %540 = vmatprep.subr.bf16.mxu0 0
    %541 = vmatpush1.bf16.msra.mxu0 0
    %542 = vmatprep.mubr.bf16.mxu0 0
    %543 = vmatmul.mubr.bf16.gmra.mrb[0].mxu0 0
    %v544 = vpop.f32.mrb[0].mxu0
    %v545 = vadd.f32 %v337, %v544
    %v546 = vpop.f32.mrb[0].mxu0
    %v547 = vpop.f32.mrb[0].mxu0
    %v548 = vpop.f32.mrb[0].mxu0
    %549 = vdwg.mxu0
    %v550 = vadd.f32 %v286, %v504
    %v551 = vxor.u32 %v550, 2147483648
    %v552 = vmul.f32 %v551, 1.442695
    %v553 = vpow.pop %v552
    %v554 = vadd.f32 %v553, 1.0
    %v555 = vrcp.pop %v554
    %v556 = vmul.f32 1.0, %v555
    %v557 = vrot.slane %v286, 2
    %v559 = vadd.f32 %v557, %v506
    %v560 = vxor.u32 %v559, 2147483648
    %v561 = vmul.f32 %v560, 1.442695
    %v562 = vpow.pop %v561
    %v563 = vadd.f32 %v562, 1.0
    %v564 = vrcp.pop %v563
    %v565 = vmul.f32 1.0, %v564
    %v566 = vmul.f32 %v556, %v545
    %v567 = vrot.slane %v286, 4
    %v569 = vadd.f32 %v567, %v566
    %v570 = vtanh.pop %v569
    %v571 = vsub.f32 1.0, %v565
    %v572 = vmul.f32 %v571, %v570
    %v573 = vmul.f32 %v565, 0.0
    %v574 = vadd.f32 %v572, %v573
    %v575 = vpack.c.bf16 %v574, %v574
    %576 = vmatprep.subr.bf16.mxu0 %v422
    %577 = vmatpush1.bf16.msra.mxu0 %v421
    %578 = vmatprep.subr.bf16.mxu0 %v425
    %579 = vmatpush1.bf16.msra.mxu0 %v424
    %580 = vmatprep.subr.bf16.mxu0 %v428
    %581 = vmatpush1.bf16.msra.mxu0 %v427
    %582 = vmatprep.subr.bf16.mxu0 %v431
    %583 = vmatpush1.bf16.msra.mxu0 %v430
    %584 = vmatprep.subr.bf16.mxu0 %v434
    %585 = vmatpush1.bf16.msra.mxu0 %v433
    %586 = vmatprep.subr.bf16.mxu0 %v437
    %587 = vmatpush1.bf16.msra.mxu0 %v436
    %588 = vmatprep.subr.bf16.mxu0 %v440
    %589 = vmatpush1.bf16.msra.mxu0 %v439
    %590 = vmatprep.subr.bf16.mxu0 %v443
    %591 = vmatpush1.bf16.msra.mxu0 %v442
    %592 = vmatprep.subr.bf16.mxu0 0
    %593 = vmatpush1.bf16.msra.mxu0 0
    %594 = vmatprep.subr.bf16.mxu0 0
    %595 = vmatpush1.bf16.msra.mxu0 0
    %596 = vmatprep.subr.bf16.mxu0 0
    %597 = vmatpush1.bf16.msra.mxu0 0
    %598 = vmatprep.subr.bf16.mxu0 0
    %599 = vmatpush1.bf16.msra.mxu0 0
    %600 = vmatprep.subr.bf16.mxu0 0
    %601 = vmatpush1.bf16.msra.mxu0 0
    %602 = vmatprep.subr.bf16.mxu0 0
    %603 = vmatpush1.bf16.msra.mxu0 0
    %604 = vmatprep.subr.bf16.mxu0 0
    %605 = vmatpush1.bf16.msra.mxu0 0
    %606 = vmatprep.subr.bf16.mxu0 0
    %607 = vmatpush1.bf16.msra.mxu0 0
    %608 = vmatprep.mubr.bf16.mxu0 0
    %609 = vmatmul.mubr.bf16.gmra.mrb[0].mxu0 %v575
    %v610 = vpop.f32.mrb[0].mxu0
    %v611 = vadd.f32 %v329, %v610
    %v612 = vpop.f32.mrb[0].mxu0
    %v613 = vadd.f32 %v333, %v612
    %v614 = vpop.f32.mrb[0].mxu0
    %v615 = vpop.f32.mrb[0].mxu0
    %616 = vdwg.mxu0
    %617 = vmatprep.subr.bf16.mxu0 0
    %618 = vmatpush1.bf16.msra.mxu0 %v423
    %619 = vmatprep.subr.bf16.mxu0 0
    %620 = vmatpush1.bf16.msra.mxu0 %v426
    %621 = vmatprep.subr.bf16.mxu0 0
    %622 = vmatpush1.bf16.msra.mxu0 %v429
    %623 = vmatprep.subr.bf16.mxu0 0
    %624 = vmatpush1.bf16.msra.mxu0 %v432
    %625 = vmatprep.subr.bf16.mxu0 0
    %626 = vmatpush1.bf16.msra.mxu0 %v435
    %627 = vmatprep.subr.bf16.mxu0 0
    %628 = vmatpush1.bf16.msra.mxu0 %v438
    %629 = vmatprep.subr.bf16.mxu0 0
    %630 = vmatpush1.bf16.msra.mxu0 %v441
    %631 = vmatprep.subr.bf16.mxu0 0
    %632 = vmatpush1.bf16.msra.mxu0 %v444
    %633 = vmatprep.subr.bf16.mxu0 0
    %634 = vmatpush1.bf16.msra.mxu0 0
    %635 = vmatprep.subr.bf16.mxu0 0
    %636 = vmatpush1.bf16.msra.mxu0 0
    %637 = vmatprep.subr.bf16.mxu0 0
    %638 = vmatpush1.bf16.msra.mxu0 0
    %639 = vmatprep.subr.bf16.mxu0 0
    %640 = vmatpush1.bf16.msra.mxu0 0
    %641 = vmatprep.subr.bf16.mxu0 0
    %642 = vmatpush1.bf16.msra.mxu0 0
    %643 = vmatprep.subr.bf16.mxu0 0
    %644 = vmatpush1.bf16.msra.mxu0 0
    %645 = vmatprep.subr.bf16.mxu0 0
    %646 = vmatpush1.bf16.msra.mxu0 0
    %647 = vmatprep.subr.bf16.mxu0 0
    %648 = vmatpush1.bf16.msra.mxu0 0
    %649 = vmatprep.mubr.bf16.mxu0 0
    %650 = vmatmul.mubr.bf16.gmra.mrb[0].mxu0 %v575
    %v651 = vpop.f32.mrb[0].mxu0
    %v652 = vadd.f32 %v337, %v651
    %v653 = vpop.f32.mrb[0].mxu0
    %v654 = vpop.f32.mrb[0].mxu0
    %v655 = vpop.f32.mrb[0].mxu0
    %656 = vdwg.mxu0
    %v657 = vadd.f32 %v287, %v611
    %v658 = vxor.u32 %v657, 2147483648
    %v659 = vmul.f32 %v658, 1.442695
    %v660 = vpow.pop %v659
    %v661 = vadd.f32 %v660, 1.0
    %v662 = vrcp.pop %v661
    %v663 = vmul.f32 1.0, %v662
    %v664 = vrot.slane %v287, 2
    %v666 = vadd.f32 %v664, %v613
    %v667 = vxor.u32 %v666, 2147483648
    %v668 = vmul.f32 %v667, 1.442695
    %v669 = vpow.pop %v668
    %v670 = vadd.f32 %v669, 1.0
    %v671 = vrcp.pop %v670
    %v672 = vmul.f32 1.0, %v671
    %v673 = vmul.f32 %v663, %v652
    %v674 = vrot.slane %v287, 4
    %v676 = vadd.f32 %v674, %v673
    %v677 = vtanh.pop %v676
    %v678 = vsub.f32 1.0, %v672
    %v679 = vmul.f32 %v678, %v677
    %v680 = vmul.f32 %v672, %v574
    %v681 = vadd.f32 %v679, %v680
    %v682 = vpack.c.bf16 %v681, %v681
    %683 = vmatprep.subr.bf16.mxu0 %v422
    %684 = vmatpush1.bf16.msra.mxu0 %v421
    %685 = vmatprep.subr.bf16.mxu0 %v425
    %686 = vmatpush1.bf16.msra.mxu0 %v424
    %687 = vmatprep.subr.bf16.mxu0 %v428
    %688 = vmatpush1.bf16.msra.mxu0 %v427
    %689 = vmatprep.subr.bf16.mxu0 %v431
    %690 = vmatpush1.bf16.msra.mxu0 %v430
    %691 = vmatprep.subr.bf16.mxu0 %v434
    %692 = vmatpush1.bf16.msra.mxu0 %v433
    %693 = vmatprep.subr.bf16.mxu0 %v437
    %694 = vmatpush1.bf16.msra.mxu0 %v436
    %695 = vmatprep.subr.bf16.mxu0 %v440
    %696 = vmatpush1.bf16.msra.mxu0 %v439
    %697 = vmatprep.subr.bf16.mxu0 %v443
    %698 = vmatpush1.bf16.msra.mxu0 %v442
    %699 = vmatprep.subr.bf16.mxu0 0
    %700 = vmatpush1.bf16.msra.mxu0 0
    %701 = vmatprep.subr.bf16.mxu0 0
    %702 = vmatpush1.bf16.msra.mxu0 0
    %703 = vmatprep.subr.bf16.mxu0 0
    %704 = vmatpush1.bf16.msra.mxu0 0
    %705 = vmatprep.subr.bf16.mxu0 0
    %706 = vmatpush1.bf16.msra.mxu0 0
    %707 = vmatprep.subr.bf16.mxu0 0
    %708 = vmatpush1.bf16.msra.mxu0 0
    %709 = vmatprep.subr.bf16.mxu0 0
    %710 = vmatpush1.bf16.msra.mxu0 0
    %711 = vmatprep.subr.bf16.mxu0 0
    %712 = vmatpush1.bf16.msra.mxu0 0
    %713 = vmatprep.subr.bf16.mxu0 0
    %714 = vmatpush1.bf16.msra.mxu0 0
    %715 = vmatprep.mubr.bf16.mxu0 0
    %716 = vmatmul.mubr.bf16.gmra.mrb[0].mxu0 %v682
    %v717 = vpop.f32.mrb[0].mxu0
    %v718 = vadd.f32 %v329, %v717
    %v719 = vpop.f32.mrb[0].mxu0
    %v720 = vadd.f32 %v333, %v719
    %v721 = vpop.f32.mrb[0].mxu0
    %v722 = vpop.f32.mrb[0].mxu0
    %723 = vdwg.mxu0
    %724 = vmatprep.subr.bf16.mxu0 0
    %725 = vmatpush1.bf16.msra.mxu0 %v423
    %726 = vmatprep.subr.bf16.mxu0 0
    %727 = vmatpush1.bf16.msra.mxu0 %v426
    %728 = vmatprep.subr.bf16.mxu0 0
    %729 = vmatpush1.bf16.msra.mxu0 %v429
    %730 = vmatprep.subr.bf16.mxu0 0
    %731 = vmatpush1.bf16.msra.mxu0 %v432
    %732 = vmatprep.subr.bf16.mxu0 0
    %733 = vmatpush1.bf16.msra.mxu0 %v435
    %734 = vmatprep.subr.bf16.mxu0 0
    %735 = vmatpush1.bf16.msra.mxu0 %v438
    %736 = vmatprep.subr.bf16.mxu0 0
    %737 = vmatpush1.bf16.msra.mxu0 %v441
    %738 = vmatprep.subr.bf16.mxu0 0
    %739 = vmatpush1.bf16.msra.mxu0 %v444
    %740 = vmatprep.subr.bf16.mxu0 0
    %741 = vmatpush1.bf16.msra.mxu0 0
    %742 = vmatprep.subr.bf16.mxu0 0
    %743 = vmatpush1.bf16.msra.mxu0 0
    %744 = vmatprep.subr.bf16.mxu0 0
    %745 = vmatpush1.bf16.msra.mxu0 0
    %746 = vmatprep.subr.bf16.mxu0 0
    %747 = vmatpush1.bf16.msra.mxu0 0
    %748 = vmatprep.subr.bf16.mxu0 0
    %749 = vmatpush1.bf16.msra.mxu0 0
    %750 = vmatprep.subr.bf16.mxu0 0
    %751 = vmatpush1.bf16.msra.mxu0 0
    %752 = vmatprep.subr.bf16.mxu0 0
    %753 = vmatpush1.bf16.msra.mxu0 0
    %754 = vmatprep.subr.bf16.mxu0 0
    %755 = vmatpush1.bf16.msra.mxu0 0
    %756 = vmatprep.mubr.bf16.mxu0 0
    %757 = vmatmul.mubr.bf16.gmra.mrb[0].mxu0 %v682
    %v758 = vpop.f32.mrb[0].mxu0
    %v759 = vadd.f32 %v337, %v758
    %v760 = vpop.f32.mrb[0].mxu0
    %v761 = vpop.f32.mrb[0].mxu0
    %v762 = vpop.f32.mrb[0].mxu0
    %763 = vdwg.mxu0
    %v764 = vadd.f32 %v288, %v718
    %v765 = vxor.u32 %v764, 2147483648
    %v766 = vmul.f32 %v765, 1.442695
    %v767 = vpow.pop %v766
    %v768 = vadd.f32 %v767, 1.0
    %v769 = vrcp.pop %v768
    %v770 = vmul.f32 1.0, %v769
    %v771 = vrot.slane %v288, 2
    %v773 = vadd.f32 %v771, %v720
    %v774 = vxor.u32 %v773, 2147483648
    %v775 = vmul.f32 %v774, 1.442695
    %v776 = vpow.pop %v775
    %v777 = vadd.f32 %v776, 1.0
    %v778 = vrcp.pop %v777
    %v779 = vmul.f32 1.0, %v778
    %v780 = vmul.f32 %v770, %v759
    %v781 = vrot.slane %v288, 4
    %v783 = vadd.f32 %v781, %v780
    %v784 = vtanh.pop %v783
    %v785 = vsub.f32 1.0, %v779
    %v786 = vmul.f32 %v785, %v784
    %v787 = vmul.f32 %v779, %v681
    %v788 = vadd.f32 %v786, %v787
    %v789 = vld [vmem:[%s5] sm:$0xf]
    %v790 = vld [vmem:[%s5 + $0x4] sm:$0xf]
    %v791 = vld [vmem:[%s5 + $0x8] sm:$0xf]
    %v792 = vld [vmem:[%s5 + $0xc] sm:$0xf]
    %v793 = vld [vmem:[%s5 + $0x10] sm:$0xf]
    %v794 = vld [vmem:[%s5 + $0x14] sm:$0xf]
    %v795 = vld [vmem:[%s5 + $0x18] sm:$0xf]
    %v796 = vld [vmem:[%s5 + $0x1c] sm:$0xf]
    %v797 = vld [vmem:[%s6] sm:$0x1]
    %v799 = vlaneseq
    %v800 = vshrl.u32 %v799, 7
    %v801 = vsub.s32 0, %v800
    %v802 = vrot.slane %v797, %v801
    %v812 = vunpack.c.l.b16 %v789
    %v813 = vunpack.c.l.b16 %v790
    %v814 = vunpack.c.l.b16 %v791
    %v815 = vunpack.c.l.b16 %v792
    %v816 = vunpack.c.l.b16 %v793
    %v817 = vunpack.c.l.b16 %v794
    %v818 = vunpack.c.l.b16 %v795
    %v819 = vunpack.c.l.b16 %v796
    %v820 = vpack.c.b16 %v813, %v812
    %v821 = vpack.c.b16 %v815, %v814
    %v822 = vpack.c.b16 %v817, %v816
    %v823 = vpack.c.b16 %v819, %v818
    %828 = vmatprep.subr.bf16.mxu0 0
    %829 = vmatpush1.bf16.msra.mxu0 %v820
    %830 = vmatprep.subr.bf16.mxu0 0
    %831 = vmatpush1.bf16.msra.mxu0 %v821
    %832 = vmatprep.subr.bf16.mxu0 0
    %833 = vmatpush1.bf16.msra.mxu0 %v822
    %834 = vmatprep.subr.bf16.mxu0 0
    %835 = vmatpush1.bf16.msra.mxu0 %v823
    %836 = vmatprep.subr.bf16.mxu0 0
    %837 = vmatpush1.bf16.msra.mxu0 0
    %838 = vmatprep.subr.bf16.mxu0 0
    %839 = vmatpush1.bf16.msra.mxu0 0
    %840 = vmatprep.subr.bf16.mxu0 0
    %841 = vmatpush1.bf16.msra.mxu0 0
    %842 = vmatprep.subr.bf16.mxu0 0
    %843 = vmatpush1.bf16.msra.mxu0 0
    %844 = vmatprep.subr.bf16.mxu0 0
    %845 = vmatpush1.bf16.msra.mxu0 0
    %846 = vmatprep.subr.bf16.mxu0 0
    %847 = vmatpush1.bf16.msra.mxu0 0
    %848 = vmatprep.subr.bf16.mxu0 0
    %849 = vmatpush1.bf16.msra.mxu0 0
    %850 = vmatprep.subr.bf16.mxu0 0
    %851 = vmatpush1.bf16.msra.mxu0 0
    %852 = vmatprep.subr.bf16.mxu0 0
    %853 = vmatpush1.bf16.msra.mxu0 0
    %854 = vmatprep.subr.bf16.mxu0 0
    %855 = vmatpush1.bf16.msra.mxu0 0
    %856 = vmatprep.subr.bf16.mxu0 0
    %857 = vmatpush1.bf16.msra.mxu0 0
    %858 = vmatprep.subr.bf16.mxu0 0
    %859 = vmatpush1.bf16.msra.mxu0 0
    %860 = vmatprep.mubr.bf16.mxu0 0
    %861 = vmatmul.mubr.bf16.gmra.mrb[0].mxu0 %v169
    %v862 = vpop.f32.mrb[0].mxu0
    %v863 = vadd.f32 %v802, %v862
    %v864 = vpop.f32.mrb[0].mxu0
    %v865 = vpop.f32.mrb[0].mxu0
    %v866 = vpop.f32.mrb[0].mxu0
    %867 = vdwg.mxu0
    %v869 = vcombine.high %v863, %v863
    %v871 = vunpack.c.l.s4 1983009808
    %v872 = vunpack.c.0.s8 %v871
    %v873 = vlaneseq
    %v874 = vshrl.u32 %v873, 7
    %v875 = vsub.s32 %v872, %v874
    %v876 = vrot.slane %v863, %v875
    %v878 = vunpack.c.l.s4 1983009808
    %v879 = vunpack.c.0.s8 %v878
    %v880 = vlaneseq
    %v881 = vshrl.u32 %v880, 7
    %v882 = vsub.s32 %v879, %v881
    %v883 = vrot.slane %v869, %v882
    %v884 = vcombine.high %v876, %v876
    %v888 = vadd.f32 %v574, %v876
    %v889 = vadd.f32 %v681, %v884
    %v890 = vadd.f32 %v788, %v883
    %v891 = vpack.c.bf16 %v888, %v888
    %v892 = vpack.c.bf16 %v889, %v889
    %v893 = vpack.c.bf16 %v890, %v890
    %v894 = vld [vmem:[%s7] sm:$0xf]
    %v895 = vld [vmem:[%s7 + $0x4] sm:$0xf]
    %v896 = vld [vmem:[%s7 + $0x8] sm:$0xf]
    %v897 = vld [vmem:[%s7 + $0xc] sm:$0xf]
    %v898 = vld [vmem:[%s7 + $0x10] sm:$0xf]
    %v899 = vld [vmem:[%s7 + $0x14] sm:$0xf]
    %v900 = vld [vmem:[%s7 + $0x18] sm:$0xf]
    %v901 = vld [vmem:[%s7 + $0x1c] sm:$0xf]
    %v902 = vld [vmem:[%s7 + $0x20] sm:$0xf]
    %v903 = vld [vmem:[%s7 + $0x24] sm:$0xf]
    %v904 = vld [vmem:[%s7 + $0x28] sm:$0xf]
    %v905 = vld [vmem:[%s7 + $0x2c] sm:$0xf]
    %v906 = vld [vmem:[%s7 + $0x30] sm:$0xf]
    %v907 = vld [vmem:[%s7 + $0x34] sm:$0xf]
    %v908 = vld [vmem:[%s7 + $0x38] sm:$0xf]
    %v909 = vld [vmem:[%s7 + $0x3c] sm:$0xf]
    %v910 = vld [vmem:[%s7 + $0x40] sm:$0xf]
    %v911 = vld [vmem:[%s7 + $0x44] sm:$0xf]
    %v912 = vld [vmem:[%s7 + $0x48] sm:$0xf]
    %v913 = vld [vmem:[%s7 + $0x4c] sm:$0xf]
    %v914 = vld [vmem:[%s7 + $0x50] sm:$0xf]
    %v915 = vld [vmem:[%s7 + $0x54] sm:$0xf]
    %v916 = vld [vmem:[%s7 + $0x58] sm:$0xf]
    %v917 = vld [vmem:[%s7 + $0x5c] sm:$0xf]
    %v918 = vld [vmem:[%s7 + $0x60] sm:$0xf]
    %v919 = vld [vmem:[%s7 + $0x64] sm:$0xf]
    %v920 = vld [vmem:[%s7 + $0x68] sm:$0xf]
    %v921 = vld [vmem:[%s7 + $0x6c] sm:$0xf]
    %v922 = vld [vmem:[%s7 + $0x70] sm:$0xf]
    %v923 = vld [vmem:[%s7 + $0x74] sm:$0xf]
    %v924 = vld [vmem:[%s7 + $0x78] sm:$0xf]
    %v925 = vld [vmem:[%s7 + $0x7c] sm:$0xf]
    %v926 = vld [vmem:[%s7 + $0x80] sm:$0xf]
    %v927 = vld [vmem:[%s7 + $0x84] sm:$0xf]
    %v928 = vld [vmem:[%s7 + $0x88] sm:$0xf]
    %v929 = vld [vmem:[%s7 + $0x8c] sm:$0xf]
    %v930 = vld [vmem:[%s7 + $0x90] sm:$0xf]
    %v931 = vld [vmem:[%s7 + $0x94] sm:$0xf]
    %v932 = vld [vmem:[%s7 + $0x98] sm:$0xf]
    %v933 = vld [vmem:[%s7 + $0x9c] sm:$0xf]
    %v934 = vld [vmem:[%s7 + $0xa0] sm:$0xf]
    %v935 = vld [vmem:[%s7 + $0xa4] sm:$0xf]
    %v936 = vld [vmem:[%s7 + $0xa8] sm:$0xf]
    %v937 = vld [vmem:[%s7 + $0xac] sm:$0xf]
    %v938 = vld [vmem:[%s7 + $0xb0] sm:$0xf]
    %v939 = vld [vmem:[%s7 + $0xb4] sm:$0xf]
    %v940 = vld [vmem:[%s7 + $0xb8] sm:$0xf]
    %v941 = vld [vmem:[%s7 + $0xbc] sm:$0xf]
    %v942 = vld [vmem:[%s8] sm:$0x1]
    %v943 = vld [vmem:[%s8 + $0x1] sm:$0x1]
    %v944 = vld [vmem:[%s8 + $0x2] sm:$0x1]
    %v948 = vlaneseq
    %v949 = vshrl.u32 %v948, 7
    %v950 = vsub.s32 0, %v949
    %v951 = vrot.slane %v942, %v950
    %v952 = vlaneseq
    %v953 = vshrl.u32 %v952, 7
    %v954 = vsub.s32 0, %v953
    %v955 = vrot.slane %v943, %v954
    %v956 = vlaneseq
    %v957 = vshrl.u32 %v956, 7
    %v958 = vsub.s32 0, %v957
    %v959 = vrot.slane %v944, %v958
    %v979 = vunpack.c.l.b16 %v894
    %v980 = vunpack.c.l.b16 %v895
    %v981 = vunpack.c.l.b16 %v896
    %v982 = vunpack.c.l.b16 %v897
    %v983 = vunpack.c.l.b16 %v898
    %v984 = vunpack.c.l.b16 %v899
    %v985 = vunpack.c.l.b16 %v900
    %v986 = vunpack.c.l.b16 %v901
    %v987 = vunpack.c.l.b16 %v902
    %v988 = vunpack.c.l.b16 %v903
    %v989 = vunpack.c.l.b16 %v904
    %v990 = vunpack.c.l.b16 %v905
    %v991 = vunpack.c.l.b16 %v906
    %v992 = vunpack.c.l.b16 %v907
    %v993 = vunpack.c.l.b16 %v908
    %v994 = vunpack.c.l.b16 %v909
    %v995 = vpack.c.b16 %v980, %v979
    %v996 = vpack.c.b16 %v982, %v981
    %v997 = vpack.c.b16 %v984, %v983
    %v998 = vpack.c.b16 %v986, %v985
    %v999 = vpack.c.b16 %v988, %v987
    %v1000 = vpack.c.b16 %v990, %v989
    %v1001 = vpack.c.b16 %v992, %v991
    %v1002 = vpack.c.b16 %v994, %v993
    %1011 = vmatprep.subr.bf16.mxu0 0
    %1012 = vmatpush1.bf16.msra.mxu0 %v995
    %1013 = vmatprep.subr.bf16.mxu0 0
    %1014 = vmatpush1.bf16.msra.mxu0 %v996
    %1015 = vmatprep.subr.bf16.mxu0 0
    %1016 = vmatpush1.bf16.msra.mxu0 %v997
    %1017 = vmatprep.subr.bf16.mxu0 0
    %1018 = vmatpush1.bf16.msra.mxu0 %v998
    %1019 = vmatprep.subr.bf16.mxu0 0
    %1020 = vmatpush1.bf16.msra.mxu0 %v999
    %1021 = vmatprep.subr.bf16.mxu0 0
    %1022 = vmatpush1.bf16.msra.mxu0 %v1000
    %1023 = vmatprep.subr.bf16.mxu0 0
    %1024 = vmatpush1.bf16.msra.mxu0 %v1001
    %1025 = vmatprep.subr.bf16.mxu0 0
    %1026 = vmatpush1.bf16.msra.mxu0 %v1002
    %1027 = vmatprep.subr.bf16.mxu0 0
    %1028 = vmatpush1.bf16.msra.mxu0 0
    %1029 = vmatprep.subr.bf16.mxu0 0
    %1030 = vmatpush1.bf16.msra.mxu0 0
    %1031 = vmatprep.subr.bf16.mxu0 0
    %1032 = vmatpush1.bf16.msra.mxu0 0
    %1033 = vmatprep.subr.bf16.mxu0 0
    %1034 = vmatpush1.bf16.msra.mxu0 0
    %1035 = vmatprep.subr.bf16.mxu0 0
    %1036 = vmatpush1.bf16.msra.mxu0 0
    %1037 = vmatprep.subr.bf16.mxu0 0
    %1038 = vmatpush1.bf16.msra.mxu0 0
    %1039 = vmatprep.subr.bf16.mxu0 0
    %1040 = vmatpush1.bf16.msra.mxu0 0
    %1041 = vmatprep.subr.bf16.mxu0 0
    %1042 = vmatpush1.bf16.msra.mxu0 0
    %1043 = vmatprep.mubr.bf16.mxu0 0
    %1044 = vmatmul.mubr.bf16.gmra.mrb[0].mxu0 %v891
    %v1045 = vpop.f32.mrb[0].mxu0
    %v1046 = vadd.f32 %v951, %v1045
    %v1047 = vpop.f32.mrb[0].mxu0
    %v1048 = vpop.f32.mrb[0].mxu0
    %v1049 = vpop.f32.mrb[0].mxu0
    %1050 = vdwg.mxu0
    %v1067 = vunpack.c.l.b16 %v910
    %v1068 = vunpack.c.l.b16 %v911
    %v1069 = vunpack.c.l.b16 %v912
    %v1070 = vunpack.c.l.b16 %v913
    %v1071 = vunpack.c.l.b16 %v914
    %v1072 = vunpack.c.l.b16 %v915
    %v1073 = vunpack.c.l.b16 %v916
    %v1074 = vunpack.c.l.b16 %v917
    %v1075 = vunpack.c.l.b16 %v918
    %v1076 = vunpack.c.l.b16 %v919
    %v1077 = vunpack.c.l.b16 %v920
    %v1078 = vunpack.c.l.b16 %v921
    %v1079 = vunpack.c.l.b16 %v922
    %v1080 = vunpack.c.l.b16 %v923
    %v1081 = vunpack.c.l.b16 %v924
    %v1082 = vunpack.c.l.b16 %v925
    %v1083 = vpack.c.b16 %v1068, %v1067
    %v1084 = vpack.c.b16 %v1070, %v1069
    %v1085 = vpack.c.b16 %v1072, %v1071
    %v1086 = vpack.c.b16 %v1074, %v1073
    %v1087 = vpack.c.b16 %v1076, %v1075
    %v1088 = vpack.c.b16 %v1078, %v1077
    %v1089 = vpack.c.b16 %v1080, %v1079
    %v1090 = vpack.c.b16 %v1082, %v1081
    %1099 = vmatprep.subr.bf16.mxu0 0
    %1100 = vmatpush1.bf16.msra.mxu0 %v1083
    %1101 = vmatprep.subr.bf16.mxu0 0
    %1102 = vmatpush1.bf16.msra.mxu0 %v1084
    %1103 = vmatprep.subr.bf16.mxu0 0
    %1104 = vmatpush1.bf16.msra.mxu0 %v1085
    %1105 = vmatprep.subr.bf16.mxu0 0
    %1106 = vmatpush1.bf16.msra.mxu0 %v1086
    %1107 = vmatprep.subr.bf16.mxu0 0
    %1108 = vmatpush1.bf16.msra.mxu0 %v1087
    %1109 = vmatprep.subr.bf16.mxu0 0
    %1110 = vmatpush1.bf16.msra.mxu0 %v1088
    %1111 = vmatprep.subr.bf16.mxu0 0
    %1112 = vmatpush1.bf16.msra.mxu0 %v1089
    %1113 = vmatprep.subr.bf16.mxu0 0
    %1114 = vmatpush1.bf16.msra.mxu0 %v1090
    %1115 = vmatprep.subr.bf16.mxu0 0
    %1116 = vmatpush1.bf16.msra.mxu0 0
    %1117 = vmatprep.subr.bf16.mxu0 0
    %1118 = vmatpush1.bf16.msra.mxu0 0
    %1119 = vmatprep.subr.bf16.mxu0 0
    %1120 = vmatpush1.bf16.msra.mxu0 0
    %1121 = vmatprep.subr.bf16.mxu0 0
    %1122 = vmatpush1.bf16.msra.mxu0 0
    %1123 = vmatprep.subr.bf16.mxu0 0
    %1124 = vmatpush1.bf16.msra.mxu0 0
    %1125 = vmatprep.subr.bf16.mxu0 0
    %1126 = vmatpush1.bf16.msra.mxu0 0
    %1127 = vmatprep.subr.bf16.mxu0 0
    %1128 = vmatpush1.bf16.msra.mxu0 0
    %1129 = vmatprep.subr.bf16.mxu0 0
    %1130 = vmatpush1.bf16.msra.mxu0 0
    %1131 = vmatprep.mubr.bf16.mxu0 0
    %1132 = vmatmul.mubr.bf16.gmra.mrb[0].mxu0 %v892
    %v1133 = vpop.f32.mrb[0].mxu0
    %v1134 = vadd.f32 %v955, %v1133
    %v1135 = vpop.f32.mrb[0].mxu0
    %v1136 = vpop.f32.mrb[0].mxu0
    %v1137 = vpop.f32.mrb[0].mxu0
    %1138 = vdwg.mxu0
    %v1155 = vunpack.c.l.b16 %v926
    %v1156 = vunpack.c.l.b16 %v927
    %v1157 = vunpack.c.l.b16 %v928
    %v1158 = vunpack.c.l.b16 %v929
    %v1159 = vunpack.c.l.b16 %v930
    %v1160 = vunpack.c.l.b16 %v931
    %v1161 = vunpack.c.l.b16 %v932
    %v1162 = vunpack.c.l.b16 %v933
    %v1163 = vunpack.c.l.b16 %v934
    %v1164 = vunpack.c.l.b16 %v935
    %v1165 = vunpack.c.l.b16 %v936
    %v1166 = vunpack.c.l.b16 %v937
    %v1167 = vunpack.c.l.b16 %v938
    %v1168 = vunpack.c.l.b16 %v939
    %v1169 = vunpack.c.l.b16 %v940
    %v1170 = vunpack.c.l.b16 %v941
    %v1171 = vpack.c.b16 %v1156, %v1155
    %v1172 = vpack.c.b16 %v1158, %v1157
    %v1173 = vpack.c.b16 %v1160, %v1159
    %v1174 = vpack.c.b16 %v1162, %v1161
    %v1175 = vpack.c.b16 %v1164, %v1163
    %v1176 = vpack.c.b16 %v1166, %v1165
    %v1177 = vpack.c.b16 %v1168, %v1167
    %v1178 = vpack.c.b16 %v1170, %v1169
    %1187 = vmatprep.subr.bf16.mxu0 0
    %1188 = vmatpush1.bf16.msra.mxu0 %v1171
    %1189 = vmatprep.subr.bf16.mxu0 0
    %1190 = vmatpush1.bf16.msra.mxu0 %v1172
    %1191 = vmatprep.subr.bf16.mxu0 0
    %1192 = vmatpush1.bf16.msra.mxu0 %v1173
    %1193 = vmatprep.subr.bf16.mxu0 0
    %1194 = vmatpush1.bf16.msra.mxu0 %v1174
    %1195 = vmatprep.subr.bf16.mxu0 0
    %1196 = vmatpush1.bf16.msra.mxu0 %v1175
    %1197 = vmatprep.subr.bf16.mxu0 0
    %1198 = vmatpush1.bf16.msra.mxu0 %v1176
    %1199 = vmatprep.subr.bf16.mxu0 0
    %1200 = vmatpush1.bf16.msra.mxu0 %v1177
    %1201 = vmatprep.subr.bf16.mxu0 0
    %1202 = vmatpush1.bf16.msra.mxu0 %v1178
    %1203 = vmatprep.subr.bf16.mxu0 0
    %1204 = vmatpush1.bf16.msra.mxu0 0
    %1205 = vmatprep.subr.bf16.mxu0 0
    %1206 = vmatpush1.bf16.msra.mxu0 0
    %1207 = vmatprep.subr.bf16.mxu0 0
    %1208 = vmatpush1.bf16.msra.mxu0 0
    %1209 = vmatprep.subr.bf16.mxu0 0
    %1210 = vmatpush1.bf16.msra.mxu0 0
    %1211 = vmatprep.subr.bf16.mxu0 0
    %1212 = vmatpush1.bf16.msra.mxu0 0
    %1213 = vmatprep.subr.bf16.mxu0 0
    %1214 = vmatpush1.bf16.msra.mxu0 0
    %1215 = vmatprep.subr.bf16.mxu0 0
    %1216 = vmatpush1.bf16.msra.mxu0 0
    %1217 = vmatprep.subr.bf16.mxu0 0
    %1218 = vmatpush1.bf16.msra.mxu0 0
    %1219 = vmatprep.mubr.bf16.mxu0 0
    %1220 = vmatmul.mubr.bf16.gmra.mrb[0].mxu0 %v893
    %v1221 = vpop.f32.mrb[0].mxu0
    %v1222 = vadd.f32 %v959, %v1221
    %v1223 = vpop.f32.mrb[0].mxu0
    %v1224 = vpop.f32.mrb[0].mxu0
    %v1225 = vpop.f32.mrb[0].mxu0
    %1226 = vdwg.mxu0
    %v1227 = vld [vmem:[%s9] sm:$0xf]
    %v1228 = vld [vmem:[%s9 + $0x4] sm:$0xf]
    %v1229 = vld [vmem:[%s9 + $0x8] sm:$0xf]
    %v1230 = vld [vmem:[%s9 + $0xc] sm:$0xf]
    %v1231 = vld [vmem:[%s9 + $0x10] sm:$0xf]
    %v1232 = vld [vmem:[%s9 + $0x14] sm:$0xf]
    %v1233 = vld [vmem:[%s9 + $0x18] sm:$0xf]
    %v1234 = vld [vmem:[%s9 + $0x1c] sm:$0xf]
    %v1235 = vld [vmem:[%s9 + $0x20] sm:$0xf]
    %v1236 = vld [vmem:[%s9 + $0x24] sm:$0xf]
    %v1237 = vld [vmem:[%s9 + $0x28] sm:$0xf]
    %v1238 = vld [vmem:[%s9 + $0x2c] sm:$0xf]
    %v1239 = vld [vmem:[%s9 + $0x30] sm:$0xf]
    %v1240 = vld [vmem:[%s9 + $0x34] sm:$0xf]
    %v1241 = vld [vmem:[%s9 + $0x38] sm:$0xf]
    %v1242 = vld [vmem:[%s9 + $0x3c] sm:$0xf]
    %v1243 = vld [vmem:[%s9 + $0x40] sm:$0xf]
    %v1244 = vld [vmem:[%s9 + $0x44] sm:$0xf]
    %v1245 = vld [vmem:[%s9 + $0x48] sm:$0xf]
    %v1246 = vld [vmem:[%s9 + $0x4c] sm:$0xf]
    %v1247 = vld [vmem:[%s9 + $0x50] sm:$0xf]
    %v1248 = vld [vmem:[%s9 + $0x54] sm:$0xf]
    %v1249 = vld [vmem:[%s9 + $0x58] sm:$0xf]
    %v1250 = vld [vmem:[%s9 + $0x5c] sm:$0xf]
    %v1251 = vld [vmem:[%s9 + $0x60] sm:$0xf]
    %v1252 = vld [vmem:[%s9 + $0x64] sm:$0xf]
    %v1253 = vld [vmem:[%s9 + $0x68] sm:$0xf]
    %v1254 = vld [vmem:[%s9 + $0x6c] sm:$0xf]
    %v1255 = vld [vmem:[%s9 + $0x70] sm:$0xf]
    %v1256 = vld [vmem:[%s9 + $0x74] sm:$0xf]
    %v1257 = vld [vmem:[%s9 + $0x78] sm:$0xf]
    %v1258 = vld [vmem:[%s9 + $0x7c] sm:$0xf]
    %v1259 = vld [vmem:[%s9 + $0x80] sm:$0xf]
    %v1260 = vld [vmem:[%s9 + $0x84] sm:$0xf]
    %v1261 = vld [vmem:[%s9 + $0x88] sm:$0xf]
    %v1262 = vld [vmem:[%s9 + $0x8c] sm:$0xf]
    %v1263 = vld [vmem:[%s9 + $0x90] sm:$0xf]
    %v1264 = vld [vmem:[%s9 + $0x94] sm:$0xf]
    %v1265 = vld [vmem:[%s9 + $0x98] sm:$0xf]
    %v1266 = vld [vmem:[%s9 + $0x9c] sm:$0xf]
    %v1267 = vld [vmem:[%s9 + $0xa0] sm:$0xf]
    %v1268 = vld [vmem:[%s9 + $0xa4] sm:$0xf]
    %v1269 = vld [vmem:[%s9 + $0xa8] sm:$0xf]
    %v1270 = vld [vmem:[%s9 + $0xac] sm:$0xf]
    %v1271 = vld [vmem:[%s9 + $0xb0] sm:$0xf]
    %v1272 = vld [vmem:[%s9 + $0xb4] sm:$0xf]
    %v1273 = vld [vmem:[%s9 + $0xb8] sm:$0xf]
    %v1274 = vld [vmem:[%s9 + $0xbc] sm:$0xf]
    %v1275 = vld [vmem:[%s10] sm:$0x1]
    %v1276 = vld [vmem:[%s10 + $0x1] sm:$0x1]
    %v1277 = vld [vmem:[%s10 + $0x2] sm:$0x1]
    %v1281 = vlaneseq
    %v1282 = vshrl.u32 %v1281, 7
    %v1283 = vsub.s32 0, %v1282
    %v1284 = vrot.slane %v1275, %v1283
    %v1285 = vlaneseq
    %v1286 = vshrl.u32 %v1285, 7
    %v1287 = vsub.s32 0, %v1286
    %v1288 = vrot.slane %v1276, %v1287
    %v1289 = vlaneseq
    %v1290 = vshrl.u32 %v1289, 7
    %v1291 = vsub.s32 0, %v1290
    %v1292 = vrot.slane %v1277, %v1291
    %v1312 = vunpack.c.l.b16 %v1227
    %v1313 = vunpack.c.l.b16 %v1228
    %v1314 = vunpack.c.l.b16 %v1229
    %v1315 = vunpack.c.l.b16 %v1230
    %v1316 = vunpack.c.l.b16 %v1231
    %v1317 = vunpack.c.l.b16 %v1232
    %v1318 = vunpack.c.l.b16 %v1233
    %v1319 = vunpack.c.l.b16 %v1234
    %v1320 = vunpack.c.l.b16 %v1235
    %v1321 = vunpack.c.l.b16 %v1236
    %v1322 = vunpack.c.l.b16 %v1237
    %v1323 = vunpack.c.l.b16 %v1238
    %v1324 = vunpack.c.l.b16 %v1239
    %v1325 = vunpack.c.l.b16 %v1240
    %v1326 = vunpack.c.l.b16 %v1241
    %v1327 = vunpack.c.l.b16 %v1242
    %v1328 = vpack.c.b16 %v1313, %v1312
    %v1329 = vpack.c.b16 %v1315, %v1314
    %v1330 = vpack.c.b16 %v1317, %v1316
    %v1331 = vpack.c.b16 %v1319, %v1318
    %v1332 = vpack.c.b16 %v1321, %v1320
    %v1333 = vpack.c.b16 %v1323, %v1322
    %v1334 = vpack.c.b16 %v1325, %v1324
    %v1335 = vpack.c.b16 %v1327, %v1326
    %1344 = vmatprep.subr.bf16.mxu0 0
    %1345 = vmatpush1.bf16.msra.mxu0 %v1328
    %1346 = vmatprep.subr.bf16.mxu0 0
    %1347 = vmatpush1.bf16.msra.mxu0 %v1329
    %1348 = vmatprep.subr.bf16.mxu0 0
    %1349 = vmatpush1.bf16.msra.mxu0 %v1330
    %1350 = vmatprep.subr.bf16.mxu0 0
    %1351 = vmatpush1.bf16.msra.mxu0 %v1331
    %1352 = vmatprep.subr.bf16.mxu0 0
    %1353 = vmatpush1.bf16.msra.mxu0 %v1332
    %1354 = vmatprep.subr.bf16.mxu0 0
    %1355 = vmatpush1.bf16.msra.mxu0 %v1333
    %1356 = vmatprep.subr.bf16.mxu0 0
    %1357 = vmatpush1.bf16.msra.mxu0 %v1334
    %1358 = vmatprep.subr.bf16.mxu0 0
    %1359 = vmatpush1.bf16.msra.mxu0 %v1335
    %1360 = vmatprep.subr.bf16.mxu0 0
    %1361 = vmatpush1.bf16.msra.mxu0 0
    %1362 = vmatprep.subr.bf16.mxu0 0
    %1363 = vmatpush1.bf16.msra.mxu0 0
    %1364 = vmatprep.subr.bf16.mxu0 0
    %1365 = vmatpush1.bf16.msra.mxu0 0
    %1366 = vmatprep.subr.bf16.mxu0 0
    %1367 = vmatpush1.bf16.msra.mxu0 0
    %1368 = vmatprep.subr.bf16.mxu0 0
    %1369 = vmatpush1.bf16.msra.mxu0 0
    %1370 = vmatprep.subr.bf16.mxu0 0
    %1371 = vmatpush1.bf16.msra.mxu0 0
    %1372 = vmatprep.subr.bf16.mxu0 0
    %1373 = vmatpush1.bf16.msra.mxu0 0
    %1374 = vmatprep.subr.bf16.mxu0 0
    %1375 = vmatpush1.bf16.msra.mxu0 0
    %1376 = vmatprep.mubr.bf16.mxu0 0
    %1377 = vmatmul.mubr.bf16.gmra.mrb[0].mxu0 %v891
    %v1378 = vpop.f32.mrb[0].mxu0
    %v1379 = vadd.f32 %v1284, %v1378
    %v1380 = vpop.f32.mrb[0].mxu0
    %v1381 = vpop.f32.mrb[0].mxu0
    %v1382 = vpop.f32.mrb[0].mxu0
    %1383 = vdwg.mxu0
    %v1400 = vunpack.c.l.b16 %v1243
    %v1401 = vunpack.c.l.b16 %v1244
    %v1402 = vunpack.c.l.b16 %v1245
    %v1403 = vunpack.c.l.b16 %v1246
    %v1404 = vunpack.c.l.b16 %v1247
    %v1405 = vunpack.c.l.b16 %v1248
    %v1406 = vunpack.c.l.b16 %v1249
    %v1407 = vunpack.c.l.b16 %v1250
    %v1408 = vunpack.c.l.b16 %v1251
    %v1409 = vunpack.c.l.b16 %v1252
    %v1410 = vunpack.c.l.b16 %v1253
    %v1411 = vunpack.c.l.b16 %v1254
    %v1412 = vunpack.c.l.b16 %v1255
    %v1413 = vunpack.c.l.b16 %v1256
    %v1414 = vunpack.c.l.b16 %v1257
    %v1415 = vunpack.c.l.b16 %v1258
    %v1416 = vpack.c.b16 %v1401, %v1400
    %v1417 = vpack.c.b16 %v1403, %v1402
    %v1418 = vpack.c.b16 %v1405, %v1404
    %v1419 = vpack.c.b16 %v1407, %v1406
    %v1420 = vpack.c.b16 %v1409, %v1408
    %v1421 = vpack.c.b16 %v1411, %v1410
    %v1422 = vpack.c.b16 %v1413, %v1412
    %v1423 = vpack.c.b16 %v1415, %v1414
    %1432 = vmatprep.subr.bf16.mxu0 0
    %1433 = vmatpush1.bf16.msra.mxu0 %v1416
    %1434 = vmatprep.subr.bf16.mxu0 0
    %1435 = vmatpush1.bf16.msra.mxu0 %v1417
    %1436 = vmatprep.subr.bf16.mxu0 0
    %1437 = vmatpush1.bf16.msra.mxu0 %v1418
    %1438 = vmatprep.subr.bf16.mxu0 0
    %1439 = vmatpush1.bf16.msra.mxu0 %v1419
    %1440 = vmatprep.subr.bf16.mxu0 0
    %1441 = vmatpush1.bf16.msra.mxu0 %v1420
    %1442 = vmatprep.subr.bf16.mxu0 0
    %1443 = vmatpush1.bf16.msra.mxu0 %v1421
    %1444 = vmatprep.subr.bf16.mxu0 0
    %1445 = vmatpush1.bf16.msra.mxu0 %v1422
    %1446 = vmatprep.subr.bf16.mxu0 0
    %1447 = vmatpush1.bf16.msra.mxu0 %v1423
    %1448 = vmatprep.subr.bf16.mxu0 0
    %1449 = vmatpush1.bf16.msra.mxu0 0
    %1450 = vmatprep.subr.bf16.mxu0 0
    %1451 = vmatpush1.bf16.msra.mxu0 0
    %1452 = vmatprep.subr.bf16.mxu0 0
    %1453 = vmatpush1.bf16.msra.mxu0 0
    %1454 = vmatprep.subr.bf16.mxu0 0
    %1455 = vmatpush1.bf16.msra.mxu0 0
    %1456 = vmatprep.subr.bf16.mxu0 0
    %1457 = vmatpush1.bf16.msra.mxu0 0
    %1458 = vmatprep.subr.bf16.mxu0 0
    %1459 = vmatpush1.bf16.msra.mxu0 0
    %1460 = vmatprep.subr.bf16.mxu0 0
    %1461 = vmatpush1.bf16.msra.mxu0 0
    %1462 = vmatprep.subr.bf16.mxu0 0
    %1463 = vmatpush1.bf16.msra.mxu0 0
    %1464 = vmatprep.mubr.bf16.mxu0 0
    %1465 = vmatmul.mubr.bf16.gmra.mrb[0].mxu0 %v892
    %v1466 = vpop.f32.mrb[0].mxu0
    %v1467 = vadd.f32 %v1288, %v1466
    %v1468 = vpop.f32.mrb[0].mxu0
    %v1469 = vpop.f32.mrb[0].mxu0
    %v1470 = vpop.f32.mrb[0].mxu0
    %1471 = vdwg.mxu0
    %v1488 = vunpack.c.l.b16 %v1259
    %v1489 = vunpack.c.l.b16 %v1260
    %v1490 = vunpack.c.l.b16 %v1261
    %v1491 = vunpack.c.l.b16 %v1262
    %v1492 = vunpack.c.l.b16 %v1263
    %v1493 = vunpack.c.l.b16 %v1264
    %v1494 = vunpack.c.l.b16 %v1265
    %v1495 = vunpack.c.l.b16 %v1266
    %v1496 = vunpack.c.l.b16 %v1267
    %v1497 = vunpack.c.l.b16 %v1268
    %v1498 = vunpack.c.l.b16 %v1269
    %v1499 = vunpack.c.l.b16 %v1270
    %v1500 = vunpack.c.l.b16 %v1271
    %v1501 = vunpack.c.l.b16 %v1272
    %v1502 = vunpack.c.l.b16 %v1273
    %v1503 = vunpack.c.l.b16 %v1274
    %v1504 = vpack.c.b16 %v1489, %v1488
    %v1505 = vpack.c.b16 %v1491, %v1490
    %v1506 = vpack.c.b16 %v1493, %v1492
    %v1507 = vpack.c.b16 %v1495, %v1494
    %v1508 = vpack.c.b16 %v1497, %v1496
    %v1509 = vpack.c.b16 %v1499, %v1498
    %v1510 = vpack.c.b16 %v1501, %v1500
    %v1511 = vpack.c.b16 %v1503, %v1502
    %1520 = vmatprep.subr.bf16.mxu0 0
    %1521 = vmatpush1.bf16.msra.mxu0 %v1504
    %1522 = vmatprep.subr.bf16.mxu0 0
    %1523 = vmatpush1.bf16.msra.mxu0 %v1505
    %1524 = vmatprep.subr.bf16.mxu0 0
    %1525 = vmatpush1.bf16.msra.mxu0 %v1506
    %1526 = vmatprep.subr.bf16.mxu0 0
    %1527 = vmatpush1.bf16.msra.mxu0 %v1507
    %1528 = vmatprep.subr.bf16.mxu0 0
    %1529 = vmatpush1.bf16.msra.mxu0 %v1508
    %1530 = vmatprep.subr.bf16.mxu0 0
    %1531 = vmatpush1.bf16.msra.mxu0 %v1509
    %1532 = vmatprep.subr.bf16.mxu0 0
    %1533 = vmatpush1.bf16.msra.mxu0 %v1510
    %1534 = vmatprep.subr.bf16.mxu0 0
    %1535 = vmatpush1.bf16.msra.mxu0 %v1511
    %1536 = vmatprep.subr.bf16.mxu0 0
    %1537 = vmatpush1.bf16.msra.mxu0 0
    %1538 = vmatprep.subr.bf16.mxu0 0
    %1539 = vmatpush1.bf16.msra.mxu0 0
    %1540 = vmatprep.subr.bf16.mxu0 0
    %1541 = vmatpush1.bf16.msra.mxu0 0
    %1542 = vmatprep.subr.bf16.mxu0 0
    %1543 = vmatpush1.bf16.msra.mxu0 0
    %1544 = vmatprep.subr.bf16.mxu0 0
    %1545 = vmatpush1.bf16.msra.mxu0 0
    %1546 = vmatprep.subr.bf16.mxu0 0
    %1547 = vmatpush1.bf16.msra.mxu0 0
    %1548 = vmatprep.subr.bf16.mxu0 0
    %1549 = vmatpush1.bf16.msra.mxu0 0
    %1550 = vmatprep.subr.bf16.mxu0 0
    %1551 = vmatpush1.bf16.msra.mxu0 0
    %1552 = vmatprep.mubr.bf16.mxu0 0
    %1553 = vmatmul.mubr.bf16.gmra.mrb[0].mxu0 %v893
    %v1554 = vpop.f32.mrb[0].mxu0
    %v1555 = vadd.f32 %v1292, %v1554
    %v1556 = vpop.f32.mrb[0].mxu0
    %v1557 = vpop.f32.mrb[0].mxu0
    %v1558 = vpop.f32.mrb[0].mxu0
    %1559 = vdwg.mxu0
    %v1560 = vmax.f32 %v1379, 0.0
    %v1561 = vmax.f32 %v1467, 0.0
    %v1562 = vmax.f32 %v1555, 0.0
    %v1563 = vadd.f32 %v1560, %v1046
    %v1564 = vadd.f32 %v1561, %v1134
    %v1565 = vadd.f32 %v1562, %v1222
    %v1566 = vpack.c.bf16 %v1563, %v1563
    %v1567 = vpack.c.bf16 %v1564, %v1564
    %v1568 = vpack.c.bf16 %v1565, %v1565
    %v1569 = vld [vmem:[%s11] sm:$0xf]
    %v1570 = vld [vmem:[%s11 + $0x4] sm:$0xf]
    %v1571 = vld [vmem:[%s11 + $0x8] sm:$0xf]
    %v1572 = vld [vmem:[%s11 + $0xc] sm:$0xf]
    %v1573 = vld [vmem:[%s11 + $0x10] sm:$0xf]
    %v1574 = vld [vmem:[%s11 + $0x14] sm:$0xf]
    %v1575 = vld [vmem:[%s11 + $0x18] sm:$0xf]
    %v1576 = vld [vmem:[%s11 + $0x1c] sm:$0xf]
    %v1577 = vld [vmem:[%s11 + $0x20] sm:$0xf]
    %v1578 = vld [vmem:[%s11 + $0x24] sm:$0xf]
    %v1579 = vld [vmem:[%s11 + $0x28] sm:$0xf]
    %v1580 = vld [vmem:[%s11 + $0x2c] sm:$0xf]
    %v1581 = vld [vmem:[%s11 + $0x30] sm:$0xf]
    %v1582 = vld [vmem:[%s11 + $0x34] sm:$0xf]
    %v1583 = vld [vmem:[%s11 + $0x38] sm:$0xf]
    %v1584 = vld [vmem:[%s11 + $0x3c] sm:$0xf]
    %v1585 = vld [vmem:[%s11 + $0x40] sm:$0xf]
    %v1586 = vld [vmem:[%s11 + $0x44] sm:$0xf]
    %v1587 = vld [vmem:[%s11 + $0x48] sm:$0xf]
    %v1588 = vld [vmem:[%s11 + $0x4c] sm:$0xf]
    %v1589 = vld [vmem:[%s11 + $0x50] sm:$0xf]
    %v1590 = vld [vmem:[%s11 + $0x54] sm:$0xf]
    %v1591 = vld [vmem:[%s11 + $0x58] sm:$0xf]
    %v1592 = vld [vmem:[%s11 + $0x5c] sm:$0xf]
    %v1601 = vunpack.c.l.b16 %v1569
    %v1602 = vunpack.c.l.b16 %v1570
    %v1603 = vunpack.c.l.b16 %v1571
    %v1604 = vunpack.c.l.b16 %v1572
    %v1605 = vunpack.c.l.b16 %v1573
    %v1606 = vunpack.c.l.b16 %v1574
    %v1607 = vunpack.c.l.b16 %v1575
    %v1608 = vunpack.c.l.b16 %v1576
    %v1609 = vpack.c.b16 %v1602, %v1601
    %v1610 = vpack.c.b16 %v1604, %v1603
    %v1611 = vpack.c.b16 %v1606, %v1605
    %v1612 = vpack.c.b16 %v1608, %v1607
    %v1618 = vsel %vm167, %v1566, 0
    %1620 = vmatprep.subr.bf16.mxu0 0
    %1621 = vmatpush1.bf16.msra.mxu0 %v1609
    %1622 = vmatprep.subr.bf16.mxu0 0
    %1623 = vmatpush1.bf16.msra.mxu0 %v1610
    %1624 = vmatprep.subr.bf16.mxu0 0
    %1625 = vmatpush1.bf16.msra.mxu0 %v1611
    %1626 = vmatprep.subr.bf16.mxu0 0
    %1627 = vmatpush1.bf16.msra.mxu0 %v1612
    %1628 = vmatprep.subr.bf16.mxu0 0
    %1629 = vmatpush1.bf16.msra.mxu0 0
    %1630 = vmatprep.subr.bf16.mxu0 0
    %1631 = vmatpush1.bf16.msra.mxu0 0
    %1632 = vmatprep.subr.bf16.mxu0 0
    %1633 = vmatpush1.bf16.msra.mxu0 0
    %1634 = vmatprep.subr.bf16.mxu0 0
    %1635 = vmatpush1.bf16.msra.mxu0 0
    %1636 = vmatprep.subr.bf16.mxu0 0
    %1637 = vmatpush1.bf16.msra.mxu0 0
    %1638 = vmatprep.subr.bf16.mxu0 0
    %1639 = vmatpush1.bf16.msra.mxu0 0
    %1640 = vmatprep.subr.bf16.mxu0 0
    %1641 = vmatpush1.bf16.msra.mxu0 0
    %1642 = vmatprep.subr.bf16.mxu0 0
    %1643 = vmatpush1.bf16.msra.mxu0 0
    %1644 = vmatprep.subr.bf16.mxu0 0
    %1645 = vmatpush1.bf16.msra.mxu0 0
    %1646 = vmatprep.subr.bf16.mxu0 0
    %1647 = vmatpush1.bf16.msra.mxu0 0
    %1648 = vmatprep.subr.bf16.mxu0 0
    %1649 = vmatpush1.bf16.msra.mxu0 0
    %1650 = vmatprep.subr.bf16.mxu0 0
    %1651 = vmatpush1.bf16.msra.mxu0 0
    %1652 = vmatprep.mubr.bf16.mxu0 0
    %1653 = vmatmul.mubr.bf16.gmra.mrb[0].mxu0 %v1618
    %v1654 = vpop.f32.mrb[0].mxu0
    %v1655 = vadd.f32 0.0, %v1654
    %v1656 = vpop.f32.mrb[0].mxu0
    %v1657 = vpop.f32.mrb[0].mxu0
    %v1658 = vpop.f32.mrb[0].mxu0
    %1659 = vdwg.mxu0
    %v1668 = vunpack.c.l.b16 %v1577
    %v1669 = vunpack.c.l.b16 %v1578
    %v1670 = vunpack.c.l.b16 %v1579
    %v1671 = vunpack.c.l.b16 %v1580
    %v1672 = vunpack.c.l.b16 %v1581
    %v1673 = vunpack.c.l.b16 %v1582
    %v1674 = vunpack.c.l.b16 %v1583
    %v1675 = vunpack.c.l.b16 %v1584
    %v1676 = vpack.c.b16 %v1669, %v1668
    %v1677 = vpack.c.b16 %v1671, %v1670
    %v1678 = vpack.c.b16 %v1673, %v1672
    %v1679 = vpack.c.b16 %v1675, %v1674
    %v1685 = vsel %vm167, %v1567, 0
    %1687 = vmatprep.subr.bf16.mxu0 0
    %1688 = vmatpush1.bf16.msra.mxu0 %v1676
    %1689 = vmatprep.subr.bf16.mxu0 0
    %1690 = vmatpush1.bf16.msra.mxu0 %v1677
    %1691 = vmatprep.subr.bf16.mxu0 0
    %1692 = vmatpush1.bf16.msra.mxu0 %v1678
    %1693 = vmatprep.subr.bf16.mxu0 0
    %1694 = vmatpush1.bf16.msra.mxu0 %v1679
    %1695 = vmatprep.subr.bf16.mxu0 0
    %1696 = vmatpush1.bf16.msra.mxu0 0
    %1697 = vmatprep.subr.bf16.mxu0 0
    %1698 = vmatpush1.bf16.msra.mxu0 0
    %1699 = vmatprep.subr.bf16.mxu0 0
    %1700 = vmatpush1.bf16.msra.mxu0 0
    %1701 = vmatprep.subr.bf16.mxu0 0
    %1702 = vmatpush1.bf16.msra.mxu0 0
    %1703 = vmatprep.subr.bf16.mxu0 0
    %1704 = vmatpush1.bf16.msra.mxu0 0
    %1705 = vmatprep.subr.bf16.mxu0 0
    %1706 = vmatpush1.bf16.msra.mxu0 0
    %1707 = vmatprep.subr.bf16.mxu0 0
    %1708 = vmatpush1.bf16.msra.mxu0 0
    %1709 = vmatprep.subr.bf16.mxu0 0
    %1710 = vmatpush1.bf16.msra.mxu0 0
    %1711 = vmatprep.subr.bf16.mxu0 0
    %1712 = vmatpush1.bf16.msra.mxu0 0
    %1713 = vmatprep.subr.bf16.mxu0 0
    %1714 = vmatpush1.bf16.msra.mxu0 0
    %1715 = vmatprep.subr.bf16.mxu0 0
    %1716 = vmatpush1.bf16.msra.mxu0 0
    %1717 = vmatprep.subr.bf16.mxu0 0
    %1718 = vmatpush1.bf16.msra.mxu0 0
    %1719 = vmatprep.mubr.bf16.mxu0 0
    %1720 = vmatmul.mubr.bf16.gmra.mrb[0].mxu0 %v1685
    %v1721 = vpop.f32.mrb[0].mxu0
    %v1722 = vadd.f32 0.0, %v1721
    %v1723 = vpop.f32.mrb[0].mxu0
    %v1724 = vpop.f32.mrb[0].mxu0
    %v1725 = vpop.f32.mrb[0].mxu0
    %1726 = vdwg.mxu0
    %v1735 = vunpack.c.l.b16 %v1585
    %v1736 = vunpack.c.l.b16 %v1586
    %v1737 = vunpack.c.l.b16 %v1587
    %v1738 = vunpack.c.l.b16 %v1588
    %v1739 = vunpack.c.l.b16 %v1589
    %v1740 = vunpack.c.l.b16 %v1590
    %v1741 = vunpack.c.l.b16 %v1591
    %v1742 = vunpack.c.l.b16 %v1592
    %v1743 = vpack.c.b16 %v1736, %v1735
    %v1744 = vpack.c.b16 %v1738, %v1737
    %v1745 = vpack.c.b16 %v1740, %v1739
    %v1746 = vpack.c.b16 %v1742, %v1741
    %v1752 = vsel %vm167, %v1568, 0
    %1754 = vmatprep.subr.bf16.mxu0 0
    %1755 = vmatpush1.bf16.msra.mxu0 %v1743
    %1756 = vmatprep.subr.bf16.mxu0 0
    %1757 = vmatpush1.bf16.msra.mxu0 %v1744
    %1758 = vmatprep.subr.bf16.mxu0 0
    %1759 = vmatpush1.bf16.msra.mxu0 %v1745
    %1760 = vmatprep.subr.bf16.mxu0 0
    %1761 = vmatpush1.bf16.msra.mxu0 %v1746
    %1762 = vmatprep.subr.bf16.mxu0 0
    %1763 = vmatpush1.bf16.msra.mxu0 0
    %1764 = vmatprep.subr.bf16.mxu0 0
    %1765 = vmatpush1.bf16.msra.mxu0 0
    %1766 = vmatprep.subr.bf16.mxu0 0
    %1767 = vmatpush1.bf16.msra.mxu0 0
    %1768 = vmatprep.subr.bf16.mxu0 0
    %1769 = vmatpush1.bf16.msra.mxu0 0
    %1770 = vmatprep.subr.bf16.mxu0 0
    %1771 = vmatpush1.bf16.msra.mxu0 0
    %1772 = vmatprep.subr.bf16.mxu0 0
    %1773 = vmatpush1.bf16.msra.mxu0 0
    %1774 = vmatprep.subr.bf16.mxu0 0
    %1775 = vmatpush1.bf16.msra.mxu0 0
    %1776 = vmatprep.subr.bf16.mxu0 0
    %1777 = vmatpush1.bf16.msra.mxu0 0
    %1778 = vmatprep.subr.bf16.mxu0 0
    %1779 = vmatpush1.bf16.msra.mxu0 0
    %1780 = vmatprep.subr.bf16.mxu0 0
    %1781 = vmatpush1.bf16.msra.mxu0 0
    %1782 = vmatprep.subr.bf16.mxu0 0
    %1783 = vmatpush1.bf16.msra.mxu0 0
    %1784 = vmatprep.subr.bf16.mxu0 0
    %1785 = vmatpush1.bf16.msra.mxu0 0
    %1786 = vmatprep.mubr.bf16.mxu0 0
    %1787 = vmatmul.mubr.bf16.gmra.mrb[0].mxu0 %v1752
    %v1788 = vpop.f32.mrb[0].mxu0
    %v1789 = vadd.f32 0.0, %v1788
    %v1790 = vpop.f32.mrb[0].mxu0
    %v1791 = vpop.f32.mrb[0].mxu0
    %v1792 = vpop.f32.mrb[0].mxu0
    %1793 = vdwg.mxu0
    %vm1794 = vcmask 17408
    %v1795 = vsel %vm1794, %v1655, 0.0
    %v1796 = vsel %vm1794, %v1722, 0.0
    %v1797 = vadd.f32 %v1795, %v1796
    %v1798 = vsel %vm1794, %v1789, 0.0
    %v1799 = vadd.f32 %v1797, %v1798
    %v1800 = vld [vmem:[%s12] sm:$0x1]
    %v1802 = vlaneseq
    %v1803 = vshrl.u32 %v1802, 7
    %v1804 = vsub.s32 0, %v1803
    %v1805 = vrot.slane %v1800, %v1804
    %v1807 = vadd.f32 %v1799, %v1805
    %1808 = vst.msk [vmem:[#allocation2] sm:$0x3] %vm1794, %v1807
    // Predicated region
    $region54: #{forward.3} parent=1 // pred_check
      _
    $region55: #{forward.3} parent=1 // pred_check_branch
      %1810 = sbr.rel (0) target = $region57
    $region56: #{forward.3} parent=1 // pred_region
      %s1812 = ssub.s32 32, 32
      %1813 = vsyncadd [#allocation3], %s1812
      %s1815 = sshll.u32 [#allocation2], 4
      %s1816 = int_to_ptr.vmem [resolvable:$true] %s1815
      %1818 = dma.vmem_to_hbm [thread:$0]  %s1816, 32, %s13, [#allocation3]
    $region57: #{forward.3} parent=1 // pred_fallthru
      _
    // Predicated region
    $region58: #{forward.3} parent=1 // pred_check
      _
    $region59: #{forward.3} parent=1 // pred_check_branch
      %1820 = sbr.rel (0) target = $region61
    $region60: #{forward.3} parent=1 // pred_region
      %1821 = dma.done [#allocation3], 32
    $region61: #{forward.3} parent=1 // pred_fallthru
      _
    %1822 = vsyncpa [#allocation3], 1

// kernel: forward.2
$region0: #{forward.2}
  #allocation0 [shape = 'u32[]', space=smem, size = 0x4, offset = 0x4, fixed_abs, tag = 'smem constant byte address 0x4 - core index']
  #allocation1 [shape = 'u32[144,128]{1,0:T(1,128)}', space=vmem, size = 0x12000, scoped, tag = 'internal scratch']
  %s0 = inlined_call_operand.vmem [shape: f32[3,2,8,4], index: 0, kind: input, shape index: {}]
  %s1 = inlined_call_operand.vmem [shape: bf16[3,12,64], index: 1, kind: input, shape index: {}]
  %s2 = inlined_call_operand.vmem [shape: f32[3,1,64], index: 2, kind: input, shape index: {}]
  %s3 = inlined_call_operand.vmem [shape: bf16[3,192,64], index: 3, kind: input, shape index: {}]
  %s4 = inlined_call_operand.vmem [shape: f32[3,1,64], index: 4, kind: input, shape index: {}]
  %s5 = inlined_call_operand.vmem [shape: bf16[3,4,64], index: 5, kind: input, shape index: {}]
  %s6 = inlined_call_operand.vmem [shape: f32[3,1,64], index: 6, kind: input, shape index: {}]
  %s7 = inlined_call_operand.vmem [shape: bf16[3,192,64], index: 7, kind: input, shape index: {}]
  %s8 = inlined_call_operand.vmem [shape: f32[3,1,64], index: 8, kind: input, shape index: {}]
  %s9 = inlined_call_operand.vmem [shape: bf16[3,192,64], index: 9, kind: input, shape index: {}]
  %s10 = inlined_call_operand.vmem [shape: f32[3,1,64], index: 10, kind: input, shape index: {}]
  %s11 = inlined_call_operand.vmem [shape: bf16[3,64,192], index: 11, kind: input, shape index: {}]
  %s12 = inlined_call_operand.vmem [shape: bf16[3,64,192], index: 12, kind: input, shape index: {}]
  %s13 = inlined_call_operand.vmem [shape: f32[3,1,192], index: 13, kind: input, shape index: {}]
  %s14 = inlined_call_operand.vmem [shape: f32[3,1,192], index: 14, kind: input, shape index: {}]
  %s15 = inlined_call_operand.vmem [shape: bf16[3,64,192], index: 15, kind: input, shape index: {}]
  %s16 = inlined_call_operand.vmem [shape: f32[3,1,192], index: 16, kind: input, shape index: {}]
  %s17 = inlined_call_operand.vmem [shape: bf16[3,64,64], index: 17, kind: input, shape index: {}]
  %s18 = inlined_call_operand.vmem [shape: f32[3,1,64], index: 18, kind: input, shape index: {}]
  %s19 = inlined_call_operand.vmem [shape: f32[3,2,64], index: 19, kind: output, shape index: {}]
  %s20 = sld [smem:[#allocation0]]
  $region109: #{forward.2} parent=0
    _
  %s22 = ssub.s32 1, %s20
  %s23 = scalar_select 0, %s22, %s20
  loop: start=0, step=1, limit=5
  $region2: #{forward.2} parent=0 // loop_pre_header
    _
  $region3: #{forward.2} parent=0 // loop_header
    %s25 = sphi 0, %s29
    %p26 = scmp.ge.s32.totalorder %s25, 5
    %s35 = sphi 0, %s37
    %s38 = sphi 0, %s35
    %s39 = sphi 0, %s38
    %s55 = sphi 0, %s39
    %s61 = sphi 0, %s63
    %s64 = sphi 0, %s61
    %s65 = sphi 0, %s64
    %s81 = sphi 0, %s65
    %s87 = sphi 0, %s89
    %s90 = sphi 0, %s87
    %s91 = sphi 0, %s90
    %s107 = sphi 0, %s91
    %s113 = sphi 0, %s115
    %s116 = sphi 0, %s113
    %s117 = sphi 0, %s116
    %s133 = sphi 0, %s117
    %s139 = sphi 0, %s141
    %s142 = sphi 0, %s139
    %s143 = sphi 0, %s142
    %s159 = sphi 0, %s143
    %s165 = sphi 0, %s167
    %s168 = sphi 0, %s165
    %s169 = sphi 0, %s168
    %s185 = sphi 0, %s169
    %s191 = sphi 0, %s193
    %s194 = sphi 0, %s191
    %s195 = sphi 0, %s194
    %s211 = sphi 0, %s195
    %s217 = sphi 0, %s219
    %s220 = sphi 0, %s217
    %s221 = sphi 0, %s220
    %s237 = sphi 0, %s221
    %s243 = sphi 0, %s245
    %s246 = sphi 0, %s243
    %s247 = sphi 0, %s246
    %s263 = sphi 0, %s247
    %s269 = sphi 0, %s271
    %s272 = sphi 0, %s269
    %s273 = sphi 0, %s272
    %s289 = sphi 0, %s273
    %s295 = sphi 0, %s297
    %s298 = sphi 0, %s295
    %s299 = sphi 0, %s298
    %s315 = sphi 0, %s299
    %s321 = sphi 0, %s323
    %s324 = sphi 0, %s321
    %s325 = sphi 0, %s324
    %s341 = sphi 0, %s325
    %s347 = sphi 0, %s349
    %s350 = sphi 0, %s347
    %s351 = sphi 0, %s350
    %s367 = sphi 0, %s351
    %s373 = sphi 0, %s375
    %s376 = sphi 0, %s373
    %s377 = sphi 0, %s376
    %s393 = sphi 0, %s377
    %s399 = sphi 0, %s401
    %s402 = sphi 0, %s399
    %s403 = sphi 0, %s402
    %s419 = sphi 0, %s403
    %s425 = sphi 0, %s427
    %s428 = sphi 0, %s425
    %s429 = sphi 0, %s428
    %s445 = sphi 0, %s429
    %s451 = sphi 0, %s453
    %s454 = sphi 0, %s451
    %s455 = sphi 0, %s454
    %s471 = sphi 0, %s455
    %s477 = sphi 0, %s479
    %s480 = sphi 0, %s477
    %s481 = sphi 0, %s480
    %s497 = sphi 0, %s481
    %s503 = sphi 0, %s505
    %s506 = sphi 0, %s503
    %s507 = sphi 0, %s506
    %s523 = sphi 0, %s507
    %s529 = sphi 0, %s531
    %s532 = sphi 0, %s529
    %s533 = sphi 0, %s532
    %s549 = sphi 0, %s533
  $region4: #{forward.2} parent=0 // loop_header_branch
    %28 = sbr.rel (%p26) target = $region8
  $region5: #{forward.2} parent=0 // loop_body
    %s30 = ssub.s32 %s25, 1
    %s31 = ssub.s32 %s25, 2
    %s32 = sadd.s32 %s25, 1
    %s33 = ssub.s32 %s25, %s32
    %p34 = scmp.eq.s32.totalorder %s33, 0
    %s36 = sadd.s32 %s35, 1
    %s37 = scalar_select %p34, %s35, %s36
    %p40 = pneg %p34
    %p41 = scmp.eq.s32.totalorder %s25, 2
    %p42 = por %p40, %p41
    %p43 = scmp.ne.s32.totalorder %s35, %s38
    %p44 = scmp.eq.s32.totalorder %s25, 0
    %p45 = por %p43, %p44
    %p46 = scmp.ne.s32.totalorder %s35, %s38
    %p47 = scmp.eq.s32.totalorder %s30, 2
    %p48 = por %p46, %p47
    %p49 = scmp.ne.s32.totalorder %s38, %s39
    %p50 = scmp.eq.s32.totalorder %s30, 0
    %p51 = por %p49, %p50
    %p52 = scmp.ne.s32.totalorder %s38, %s39
    %p53 = scmp.eq.s32.totalorder %s31, 2
    %p54 = por %p52, %p53
    %p56 = scmp.ne.s32.totalorder %s39, %s55
    %p57 = scmp.eq.s32.totalorder %s31, 0
    %p58 = por %p56, %p57
    %s59 = ssub.s32 %s25, %s32
    %p60 = scmp.eq.s32.totalorder %s59, 0
    %s62 = sadd.s32 %s61, 1
    %s63 = scalar_select %p60, %s61, %s62
    %p66 = pneg %p60
    %p67 = scmp.eq.s32.totalorder %s25, 2
    %p68 = por %p66, %p67
    %p69 = scmp.ne.s32.totalorder %s61, %s64
    %p70 = scmp.eq.s32.totalorder %s25, 0
    %p71 = por %p69, %p70
    %p72 = scmp.ne.s32.totalorder %s61, %s64
    %p73 = scmp.eq.s32.totalorder %s30, 2
    %p74 = por %p72, %p73
    %p75 = scmp.ne.s32.totalorder %s64, %s65
    %p76 = scmp.eq.s32.totalorder %s30, 0
    %p77 = por %p75, %p76
    %p78 = scmp.ne.s32.totalorder %s64, %s65
    %p79 = scmp.eq.s32.totalorder %s31, 2
    %p80 = por %p78, %p79
    %p82 = scmp.ne.s32.totalorder %s65, %s81
    %p83 = scmp.eq.s32.totalorder %s31, 0
    %p84 = por %p82, %p83
    %s85 = ssub.s32 %s25, %s32
    %p86 = scmp.eq.s32.totalorder %s85, 0
    %s88 = sadd.s32 %s87, 1
    %s89 = scalar_select %p86, %s87, %s88
    %p92 = pneg %p86
    %p93 = scmp.eq.s32.totalorder %s25, 2
    %p94 = por %p92, %p93
    %p95 = scmp.ne.s32.totalorder %s87, %s90
    %p96 = scmp.eq.s32.totalorder %s25, 0
    %p97 = por %p95, %p96
    %p98 = scmp.ne.s32.totalorder %s87, %s90
    %p99 = scmp.eq.s32.totalorder %s30, 2
    %p100 = por %p98, %p99
    %p101 = scmp.ne.s32.totalorder %s90, %s91
    %p102 = scmp.eq.s32.totalorder %s30, 0
    %p103 = por %p101, %p102
    %p104 = scmp.ne.s32.totalorder %s90, %s91
    %p105 = scmp.eq.s32.totalorder %s31, 2
    %p106 = por %p104, %p105
    %p108 = scmp.ne.s32.totalorder %s91, %s107
    %p109 = scmp.eq.s32.totalorder %s31, 0
    %p110 = por %p108, %p109
    %s111 = ssub.s32 %s25, %s32
    %p112 = scmp.eq.s32.totalorder %s111, 0
    %s114 = sadd.s32 %s113, 1
    %s115 = scalar_select %p112, %s113, %s114
    %p118 = pneg %p112
    %p119 = scmp.eq.s32.totalorder %s25, 2
    %p120 = por %p118, %p119
    %p121 = scmp.ne.s32.totalorder %s113, %s116
    %p122 = scmp.eq.s32.totalorder %s25, 0
    %p123 = por %p121, %p122
    %p124 = scmp.ne.s32.totalorder %s113, %s116
    %p125 = scmp.eq.s32.totalorder %s30, 2
    %p126 = por %p124, %p125
    %p127 = scmp.ne.s32.totalorder %s116, %s117
    %p128 = scmp.eq.s32.totalorder %s30, 0
    %p129 = por %p127, %p128
    %p130 = scmp.ne.s32.totalorder %s116, %s117
    %p131 = scmp.eq.s32.totalorder %s31, 2
    %p132 = por %p130, %p131
    %p134 = scmp.ne.s32.totalorder %s117, %s133
    %p135 = scmp.eq.s32.totalorder %s31, 0
    %p136 = por %p134, %p135
    %s137 = ssub.s32 %s25, %s32
    %p138 = scmp.eq.s32.totalorder %s137, 0
    %s140 = sadd.s32 %s139, 1
    %s141 = scalar_select %p138, %s139, %s140
    %p144 = pneg %p138
    %p145 = scmp.eq.s32.totalorder %s25, 2
    %p146 = por %p144, %p145
    %p147 = scmp.ne.s32.totalorder %s139, %s142
    %p148 = scmp.eq.s32.totalorder %s25, 0
    %p149 = por %p147, %p148
    %p150 = scmp.ne.s32.totalorder %s139, %s142
    %p151 = scmp.eq.s32.totalorder %s30, 2
    %p152 = por %p150, %p151
    %p153 = scmp.ne.s32.totalorder %s142, %s143
    %p154 = scmp.eq.s32.totalorder %s30, 0
    %p155 = por %p153, %p154
    %p156 = scmp.ne.s32.totalorder %s142, %s143
    %p157 = scmp.eq.s32.totalorder %s31, 2
    %p158 = por %p156, %p157
    %p160 = scmp.ne.s32.totalorder %s143, %s159
    %p161 = scmp.eq.s32.totalorder %s31, 0
    %p162 = por %p160, %p161
    %s163 = ssub.s32 %s25, %s32
    %p164 = scmp.eq.s32.totalorder %s163, 0
    %s166 = sadd.s32 %s165, 1
    %s167 = scalar_select %p164, %s165, %s166
    %p170 = pneg %p164
    %p171 = scmp.eq.s32.totalorder %s25, 2
    %p172 = por %p170, %p171
    %p173 = scmp.ne.s32.totalorder %s165, %s168
    %p174 = scmp.eq.s32.totalorder %s25, 0
    %p175 = por %p173, %p174
    %p176 = scmp.ne.s32.totalorder %s165, %s168
    %p177 = scmp.eq.s32.totalorder %s30, 2
    %p178 = por %p176, %p177
    %p179 = scmp.ne.s32.totalorder %s168, %s169
    %p180 = scmp.eq.s32.totalorder %s30, 0
    %p181 = por %p179, %p180
    %p182 = scmp.ne.s32.totalorder %s168, %s169
    %p183 = scmp.eq.s32.totalorder %s31, 2
    %p184 = por %p182, %p183
    %p186 = scmp.ne.s32.totalorder %s169, %s185
    %p187 = scmp.eq.s32.totalorder %s31, 0
    %p188 = por %p186, %p187
    %s189 = ssub.s32 %s25, %s32
    %p190 = scmp.eq.s32.totalorder %s189, 0
    %s192 = sadd.s32 %s191, 1
    %s193 = scalar_select %p190, %s191, %s192
    %p196 = pneg %p190
    %p197 = scmp.eq.s32.totalorder %s25, 2
    %p198 = por %p196, %p197
    %p199 = scmp.ne.s32.totalorder %s191, %s194
    %p200 = scmp.eq.s32.totalorder %s25, 0
    %p201 = por %p199, %p200
    %p202 = scmp.ne.s32.totalorder %s191, %s194
    %p203 = scmp.eq.s32.totalorder %s30, 2
    %p204 = por %p202, %p203
    %p205 = scmp.ne.s32.totalorder %s194, %s195
    %p206 = scmp.eq.s32.totalorder %s30, 0
    %p207 = por %p205, %p206
    %p208 = scmp.ne.s32.totalorder %s194, %s195
    %p209 = scmp.eq.s32.totalorder %s31, 2
    %p210 = por %p208, %p209
    %p212 = scmp.ne.s32.totalorder %s195, %s211
    %p213 = scmp.eq.s32.totalorder %s31, 0
    %p214 = por %p212, %p213
    %s215 = ssub.s32 %s25, %s32
    %p216 = scmp.eq.s32.totalorder %s215, 0
    %s218 = sadd.s32 %s217, 1
    %s219 = scalar_select %p216, %s217, %s218
    %p222 = pneg %p216
    %p223 = scmp.eq.s32.totalorder %s25, 2
    %p224 = por %p222, %p223
    %p225 = scmp.ne.s32.totalorder %s217, %s220
    %p226 = scmp.eq.s32.totalorder %s25, 0
    %p227 = por %p225, %p226
    %p228 = scmp.ne.s32.totalorder %s217, %s220
    %p229 = scmp.eq.s32.totalorder %s30, 2
    %p230 = por %p228, %p229
    %p231 = scmp.ne.s32.totalorder %s220, %s221
    %p232 = scmp.eq.s32.totalorder %s30, 0
    %p233 = por %p231, %p232
    %p234 = scmp.ne.s32.totalorder %s220, %s221
    %p235 = scmp.eq.s32.totalorder %s31, 2
    %p236 = por %p234, %p235
    %p238 = scmp.ne.s32.totalorder %s221, %s237
    %p239 = scmp.eq.s32.totalorder %s31, 0
    %p240 = por %p238, %p239
    %s241 = ssub.s32 %s25, %s32
    %p242 = scmp.eq.s32.totalorder %s241, 0
    %s244 = sadd.s32 %s243, 1
    %s245 = scalar_select %p242, %s243, %s244
    %p248 = pneg %p242
    %p249 = scmp.eq.s32.totalorder %s25, 2
    %p250 = por %p248, %p249
    %p251 = scmp.ne.s32.totalorder %s243, %s246
    %p252 = scmp.eq.s32.totalorder %s25, 0
    %p253 = por %p251, %p252
    %p254 = scmp.ne.s32.totalorder %s243, %s246
    %p255 = scmp.eq.s32.totalorder %s30, 2
    %p256 = por %p254, %p255
    %p257 = scmp.ne.s32.totalorder %s246, %s247
    %p258 = scmp.eq.s32.totalorder %s30, 0
    %p259 = por %p257, %p258
    %p260 = scmp.ne.s32.totalorder %s246, %s247
    %p261 = scmp.eq.s32.totalorder %s31, 2
    %p262 = por %p260, %p261
    %p264 = scmp.ne.s32.totalorder %s247, %s263
    %p265 = scmp.eq.s32.totalorder %s31, 0
    %p266 = por %p264, %p265
    %s267 = ssub.s32 %s25, %s32
    %p268 = scmp.eq.s32.totalorder %s267, 0
    %s270 = sadd.s32 %s269, 1
    %s271 = scalar_select %p268, %s269, %s270
    %p274 = pneg %p268
    %p275 = scmp.eq.s32.totalorder %s25, 2
    %p276 = por %p274, %p275
    %p277 = scmp.ne.s32.totalorder %s269, %s272
    %p278 = scmp.eq.s32.totalorder %s25, 0
    %p279 = por %p277, %p278
    %p280 = scmp.ne.s32.totalorder %s269, %s272
    %p281 = scmp.eq.s32.totalorder %s30, 2
    %p282 = por %p280, %p281
    %p283 = scmp.ne.s32.totalorder %s272, %s273
    %p284 = scmp.eq.s32.totalorder %s30, 0
    %p285 = por %p283, %p284
    %p286 = scmp.ne.s32.totalorder %s272, %s273
    %p287 = scmp.eq.s32.totalorder %s31, 2
    %p288 = por %p286, %p287
    %p290 = scmp.ne.s32.totalorder %s273, %s289
    %p291 = scmp.eq.s32.totalorder %s31, 0
    %p292 = por %p290, %p291
    %s293 = ssub.s32 %s25, %s32
    %p294 = scmp.eq.s32.totalorder %s293, 0
    %s296 = sadd.s32 %s295, 1
    %s297 = scalar_select %p294, %s295, %s296
    %p300 = pneg %p294
    %p301 = scmp.eq.s32.totalorder %s25, 2
    %p302 = por %p300, %p301
    %p303 = scmp.ne.s32.totalorder %s295, %s298
    %p304 = scmp.eq.s32.totalorder %s25, 0
    %p305 = por %p303, %p304
    %p306 = scmp.ne.s32.totalorder %s295, %s298
    %p307 = scmp.eq.s32.totalorder %s30, 2
    %p308 = por %p306, %p307
    %p309 = scmp.ne.s32.totalorder %s298, %s299
    %p310 = scmp.eq.s32.totalorder %s30, 0
    %p311 = por %p309, %p310
    %p312 = scmp.ne.s32.totalorder %s298, %s299
    %p313 = scmp.eq.s32.totalorder %s31, 2
    %p314 = por %p312, %p313
    %p316 = scmp.ne.s32.totalorder %s299, %s315
    %p317 = scmp.eq.s32.totalorder %s31, 0
    %p318 = por %p316, %p317
    %s319 = ssub.s32 %s25, %s32
    %p320 = scmp.eq.s32.totalorder %s319, 0
    %s322 = sadd.s32 %s321, 1
    %s323 = scalar_select %p320, %s321, %s322
    %p326 = pneg %p320
    %p327 = scmp.eq.s32.totalorder %s25, 2
    %p328 = por %p326, %p327
    %p329 = scmp.ne.s32.totalorder %s321, %s324
    %p330 = scmp.eq.s32.totalorder %s25, 0
    %p331 = por %p329, %p330
    %p332 = scmp.ne.s32.totalorder %s321, %s324
    %p333 = scmp.eq.s32.totalorder %s30, 2
    %p334 = por %p332, %p333
    %p335 = scmp.ne.s32.totalorder %s324, %s325
    %p336 = scmp.eq.s32.totalorder %s30, 0
    %p337 = por %p335, %p336
    %p338 = scmp.ne.s32.totalorder %s324, %s325
    %p339 = scmp.eq.s32.totalorder %s31, 2
    %p340 = por %p338, %p339
    %p342 = scmp.ne.s32.totalorder %s325, %s341
    %p343 = scmp.eq.s32.totalorder %s31, 0
    %p344 = por %p342, %p343
    %s345 = ssub.s32 %s25, %s32
    %p346 = scmp.eq.s32.totalorder %s345, 0
    %s348 = sadd.s32 %s347, 1
    %s349 = scalar_select %p346, %s347, %s348
    %p352 = pneg %p346
    %p353 = scmp.eq.s32.totalorder %s25, 2
    %p354 = por %p352, %p353
    %p355 = scmp.ne.s32.totalorder %s347, %s350
    %p356 = scmp.eq.s32.totalorder %s25, 0
    %p357 = por %p355, %p356
    %p358 = scmp.ne.s32.totalorder %s347, %s350
    %p359 = scmp.eq.s32.totalorder %s30, 2
    %p360 = por %p358, %p359
    %p361 = scmp.ne.s32.totalorder %s350, %s351
    %p362 = scmp.eq.s32.totalorder %s30, 0
    %p363 = por %p361, %p362
    %p364 = scmp.ne.s32.totalorder %s350, %s351
    %p365 = scmp.eq.s32.totalorder %s31, 2
    %p366 = por %p364, %p365
    %p368 = scmp.ne.s32.totalorder %s351, %s367
    %p369 = scmp.eq.s32.totalorder %s31, 0
    %p370 = por %p368, %p369
    %s371 = ssub.s32 %s25, %s32
    %p372 = scmp.eq.s32.totalorder %s371, 0
    %s374 = sadd.s32 %s373, 1
    %s375 = scalar_select %p372, %s373, %s374
    %p378 = pneg %p372
    %p379 = scmp.eq.s32.totalorder %s25, 2
    %p380 = por %p378, %p379
    %p381 = scmp.ne.s32.totalorder %s373, %s376
    %p382 = scmp.eq.s32.totalorder %s25, 0
    %p383 = por %p381, %p382
    %p384 = scmp.ne.s32.totalorder %s373, %s376
    %p385 = scmp.eq.s32.totalorder %s30, 2
    %p386 = por %p384, %p385
    %p387 = scmp.ne.s32.totalorder %s376, %s377
    %p388 = scmp.eq.s32.totalorder %s30, 0
    %p389 = por %p387, %p388
    %p390 = scmp.ne.s32.totalorder %s376, %s377
    %p391 = scmp.eq.s32.totalorder %s31, 2
    %p392 = por %p390, %p391
    %p394 = scmp.ne.s32.totalorder %s377, %s393
    %p395 = scmp.eq.s32.totalorder %s31, 0
    %p396 = por %p394, %p395
    %s397 = ssub.s32 %s25, %s32
    %p398 = scmp.eq.s32.totalorder %s397, 0
    %s400 = sadd.s32 %s399, 1
    %s401 = scalar_select %p398, %s399, %s400
    %p404 = pneg %p398
    %p405 = scmp.eq.s32.totalorder %s25, 2
    %p406 = por %p404, %p405
    %p407 = scmp.ne.s32.totalorder %s399, %s402
    %p408 = scmp.eq.s32.totalorder %s25, 0
    %p409 = por %p407, %p408
    %p410 = scmp.ne.s32.totalorder %s399, %s402
    %p411 = scmp.eq.s32.totalorder %s30, 2
    %p412 = por %p410, %p411
    %p413 = scmp.ne.s32.totalorder %s402, %s403
    %p414 = scmp.eq.s32.totalorder %s30, 0
    %p415 = por %p413, %p414
    %p416 = scmp.ne.s32.totalorder %s402, %s403
    %p417 = scmp.eq.s32.totalorder %s31, 2
    %p418 = por %p416, %p417
    %p420 = scmp.ne.s32.totalorder %s403, %s419
    %p421 = scmp.eq.s32.totalorder %s31, 0
    %p422 = por %p420, %p421
    %s423 = ssub.s32 %s25, %s32
    %p424 = scmp.eq.s32.totalorder %s423, 0
    %s426 = sadd.s32 %s425, 1
    %s427 = scalar_select %p424, %s425, %s426
    %p430 = pneg %p424
    %p431 = scmp.eq.s32.totalorder %s25, 2
    %p432 = por %p430, %p431
    %p433 = scmp.ne.s32.totalorder %s425, %s428
    %p434 = scmp.eq.s32.totalorder %s25, 0
    %p435 = por %p433, %p434
    %p436 = scmp.ne.s32.totalorder %s425, %s428
    %p437 = scmp.eq.s32.totalorder %s30, 2
    %p438 = por %p436, %p437
    %p439 = scmp.ne.s32.totalorder %s428, %s429
    %p440 = scmp.eq.s32.totalorder %s30, 0
    %p441 = por %p439, %p440
    %p442 = scmp.ne.s32.totalorder %s428, %s429
    %p443 = scmp.eq.s32.totalorder %s31, 2
    %p444 = por %p442, %p443
    %p446 = scmp.ne.s32.totalorder %s429, %s445
    %p447 = scmp.eq.s32.totalorder %s31, 0
    %p448 = por %p446, %p447
    %s449 = ssub.s32 %s25, %s32
    %p450 = scmp.eq.s32.totalorder %s449, 0
    %s452 = sadd.s32 %s451, 1
    %s453 = scalar_select %p450, %s451, %s452
    %p456 = pneg %p450
    %p457 = scmp.eq.s32.totalorder %s25, 2
    %p458 = por %p456, %p457
    %p459 = scmp.ne.s32.totalorder %s451, %s454
    %p460 = scmp.eq.s32.totalorder %s25, 0
    %p461 = por %p459, %p460
    %p462 = scmp.ne.s32.totalorder %s451, %s454
    %p463 = scmp.eq.s32.totalorder %s30, 2
    %p464 = por %p462, %p463
    %p465 = scmp.ne.s32.totalorder %s454, %s455
    %p466 = scmp.eq.s32.totalorder %s30, 0
    %p467 = por %p465, %p466
    %p468 = scmp.ne.s32.totalorder %s454, %s455
    %p469 = scmp.eq.s32.totalorder %s31, 2
    %p470 = por %p468, %p469
    %p472 = scmp.ne.s32.totalorder %s455, %s471
    %p473 = scmp.eq.s32.totalorder %s31, 0
    %p474 = por %p472, %p473
    %s475 = ssub.s32 %s25, %s32
    %p476 = scmp.eq.s32.totalorder %s475, 0
    %s478 = sadd.s32 %s477, 1
    %s479 = scalar_select %p476, %s477, %s478
    %p482 = pneg %p476
    %p483 = scmp.eq.s32.totalorder %s25, 2
    %p484 = por %p482, %p483
    %p485 = scmp.ne.s32.totalorder %s477, %s480
    %p486 = scmp.eq.s32.totalorder %s25, 0
    %p487 = por %p485, %p486
    %p488 = scmp.ne.s32.totalorder %s477, %s480
    %p489 = scmp.eq.s32.totalorder %s30, 2
    %p490 = por %p488, %p489
    %p491 = scmp.ne.s32.totalorder %s480, %s481
    %p492 = scmp.eq.s32.totalorder %s30, 0
    %p493 = por %p491, %p492
    %p494 = scmp.ne.s32.totalorder %s480, %s481
    %p495 = scmp.eq.s32.totalorder %s31, 2
    %p496 = por %p494, %p495
    %p498 = scmp.ne.s32.totalorder %s481, %s497
    %p499 = scmp.eq.s32.totalorder %s31, 0
    %p500 = por %p498, %p499
    %s501 = ssub.s32 %s25, %s32
    %p502 = scmp.eq.s32.totalorder %s501, 0
    %s504 = sadd.s32 %s503, 1
    %s505 = scalar_select %p502, %s503, %s504
    %p508 = pneg %p502
    %p509 = scmp.eq.s32.totalorder %s25, 2
    %p510 = por %p508, %p509
    %p511 = scmp.ne.s32.totalorder %s503, %s506
    %p512 = scmp.eq.s32.totalorder %s25, 0
    %p513 = por %p511, %p512
    %p514 = scmp.ne.s32.totalorder %s503, %s506
    %p515 = scmp.eq.s32.totalorder %s30, 2
    %p516 = por %p514, %p515
    %p517 = scmp.ne.s32.totalorder %s506, %s507
    %p518 = scmp.eq.s32.totalorder %s30, 0
    %p519 = por %p517, %p518
    %p520 = scmp.ne.s32.totalorder %s506, %s507
    %p521 = scmp.eq.s32.totalorder %s31, 2
    %p522 = por %p520, %p521
    %p524 = scmp.ne.s32.totalorder %s507, %s523
    %p525 = scmp.eq.s32.totalorder %s31, 0
    %p526 = por %p524, %p525
    %s527 = ssub.s32 %s25, %s32
    %p528 = scmp.eq.s32.totalorder %s527, 0
    %s530 = sadd.s32 %s529, 1
    %s531 = scalar_select %p528, %s529, %s530
    %p534 = pneg %p528
    %p535 = scmp.eq.s32.totalorder %s25, 2
    %p536 = por %p534, %p535
    %p537 = scmp.ne.s32.totalorder %s529, %s532
    %p538 = scmp.eq.s32.totalorder %s25, 0
    %p539 = por %p537, %p538
    %p540 = scmp.ne.s32.totalorder %s529, %s532
    %p541 = scmp.eq.s32.totalorder %s30, 2
    %p542 = por %p540, %p541
    %p543 = scmp.ne.s32.totalorder %s532, %s533
    %p544 = scmp.eq.s32.totalorder %s30, 0
    %p545 = por %p543, %p544
    %p546 = scmp.ne.s32.totalorder %s532, %s533
    %p547 = scmp.eq.s32.totalorder %s31, 2
    %p548 = por %p546, %p547
    %p550 = scmp.ne.s32.totalorder %s533, %s549
    %p551 = scmp.eq.s32.totalorder %s31, 0
    %p552 = por %p550, %p551
    %p553 = scmp.le.s32.totalorder 1, %s25
    %p554 = scmp.lt.s32.totalorder %s25, 4
    %p555 = pnand %p553, %p554
    %p556 = pneg %p555
    // Predicated region
    $region9: #{forward.2} parent=5 // pred_check
      _
    $region10: #{forward.2} parent=5 // pred_check_branch
      %558 = sbr.rel (%p555) target = $region12
    $region11: #{forward.2} parent=5 // pred_region
      %s559 = ssub.s32 %s25, 1
    $region12: #{forward.2} parent=5 // pred_fallthru
      _
    %p560 = scmp.lt.s32.totalorder %s25, 3
    // Predicated region
    $region13: #{forward.2} parent=5 // pred_check
      %p561 = pneg %p560
    $region14: #{forward.2} parent=5 // pred_check_branch
      %563 = sbr.rel (%p561) target = $region16
    $region15: #{forward.2} parent=5 // pred_region
      // Predicated region
      $region17: #{forward.2} parent=15 // pred_check
        %p564 = pneg %p45
      $region18: #{forward.2} parent=15 // pred_check_branch
        %566 = sbr.rel (%p564) target = $region20
      $region19: #{forward.2} parent=15 // pred_region
        %p567 = scmp.lt.s32.totalorder %s25, 2
        %s568 = scalar_select %p567, %s25, 2
        %s569 = smul.addr %s568, 2
        %s570 = smul.addr %s569, 8
        %s571 = scalar_lea.vmem %s0, %s570
      $region20: #{forward.2} parent=15 // pred_fallthru
        _
      // Predicated region
      $region21: #{forward.2} parent=15 // pred_check
        %p572 = pneg %p71
      $region22: #{forward.2} parent=15 // pred_check_branch
        %574 = sbr.rel (%p572) target = $region24
      $region23: #{forward.2} parent=15 // pred_region
        %p575 = scmp.lt.s32.totalorder %s25, 2
        %s576 = scalar_select %p575, %s25, 2
        %s577 = smul.addr %s576, 2
        %s578 = smul.addr %s577, 4
        %s579 = scalar_lea.vmem %s1, %s578
      $region24: #{forward.2} parent=15 // pred_fallthru
        _
      // Predicated region
      $region25: #{forward.2} parent=15 // pred_check
        %p580 = pneg %p97
      $region26: #{forward.2} parent=15 // pred_check_branch
        %582 = sbr.rel (%p580) target = $region28
      $region27: #{forward.2} parent=15 // pred_region
        %p583 = scmp.lt.s32.totalorder %s25, 2
        %s584 = scalar_select %p583, %s25, 2
        %s585 = scalar_lea.vmem %s2, %s584
      $region28: #{forward.2} parent=15 // pred_fallthru
        _
      // Predicated region
      $region29: #{forward.2} parent=15 // pred_check
        %p586 = pneg %p123
      $region30: #{forward.2} parent=15 // pred_check_branch
        %588 = sbr.rel (%p586) target = $region32
      $region31: #{forward.2} parent=15 // pred_region
        %p589 = scmp.lt.s32.totalorder %s25, 2
        %s590 = scalar_select %p589, %s25, 2
        %s591 = smul.addr %s590, 24
        %s592 = smul.addr %s591, 4
        %s593 = scalar_lea.vmem %s3, %s592
      $region32: #{forward.2} parent=15 // pred_fallthru
        _
      // Predicated region
      $region33: #{forward.2} parent=15 // pred_check
        %p594 = pneg %p149
      $region34: #{forward.2} parent=15 // pred_check_branch
        %596 = sbr.rel (%p594) target = $region36
      $region35: #{forward.2} parent=15 // pred_region
        %p597 = scmp.lt.s32.totalorder %s25, 2
        %s598 = scalar_select %p597, %s25, 2
        %s599 = scalar_lea.vmem %s4, %s598
      $region36: #{forward.2} parent=15 // pred_fallthru
        _
      // Predicated region
      $region37: #{forward.2} parent=15 // pred_check
        %p600 = pneg %p175
      $region38: #{forward.2} parent=15 // pred_check_branch
        %602 = sbr.rel (%p600) target = $region40
      $region39: #{forward.2} parent=15 // pred_region
        %p603 = scmp.lt.s32.totalorder %s25, 2
        %s604 = scalar_select %p603, %s25, 2
        %s605 = smul.addr %s604, 2
        %s606 = scalar_lea.vmem %s5, %s605
      $region40: #{forward.2} parent=15 // pred_fallthru
        _
      // Predicated region
      $region41: #{forward.2} parent=15 // pred_check
        %p607 = pneg %p201
      $region42: #{forward.2} parent=15 // pred_check_branch
        %609 = sbr.rel (%p607) target = $region44
      $region43: #{forward.2} parent=15 // pred_region
        %p610 = scmp.lt.s32.totalorder %s25, 2
        %s611 = scalar_select %p610, %s25, 2
        %s612 = scalar_lea.vmem %s6, %s611
      $region44: #{forward.2} parent=15 // pred_fallthru
        _
      // Predicated region
      $region45: #{forward.2} parent=15 // pred_check
        %p613 = pneg %p227
      $region46: #{forward.2} parent=15 // pred_check_branch
        %615 = sbr.rel (%p613) target = $region48
      $region47: #{forward.2} parent=15 // pred_region
        %p616 = scmp.lt.s32.totalorder %s25, 2
        %s617 = scalar_select %p616, %s25, 2
        %s618 = smul.addr %s617, 24
        %s619 = smul.addr %s618, 4
        %s620 = scalar_lea.vmem %s7, %s619
      $region48: #{forward.2} parent=15 // pred_fallthru
        _
      // Predicated region
      $region49: #{forward.2} parent=15 // pred_check
        %p621 = pneg %p253
      $region50: #{forward.2} parent=15 // pred_check_branch
        %623 = sbr.rel (%p621) target = $region52
      $region51: #{forward.2} parent=15 // pred_region
        %p624 = scmp.lt.s32.totalorder %s25, 2
        %s625 = scalar_select %p624, %s25, 2
        %s626 = scalar_lea.vmem %s8, %s625
      $region52: #{forward.2} parent=15 // pred_fallthru
        _
      // Predicated region
      $region53: #{forward.2} parent=15 // pred_check
        %p627 = pneg %p279
      $region54: #{forward.2} parent=15 // pred_check_branch
        %629 = sbr.rel (%p627) target = $region56
      $region55: #{forward.2} parent=15 // pred_region
        %p630 = scmp.lt.s32.totalorder %s25, 2
        %s631 = scalar_select %p630, %s25, 2
        %s632 = smul.addr %s631, 24
        %s633 = smul.addr %s632, 4
        %s634 = scalar_lea.vmem %s9, %s633
      $region56: #{forward.2} parent=15 // pred_fallthru
        _
      // Predicated region
      $region57: #{forward.2} parent=15 // pred_check
        %p635 = pneg %p305
      $region58: #{forward.2} parent=15 // pred_check_branch
        %637 = sbr.rel (%p635) target = $region60
      $region59: #{forward.2} parent=15 // pred_region
        %p638 = scmp.lt.s32.totalorder %s25, 2
        %s639 = scalar_select %p638, %s25, 2
        %s640 = scalar_lea.vmem %s10, %s639
      $region60: #{forward.2} parent=15 // pred_fallthru
        _
      // Predicated region
      $region61: #{forward.2} parent=15 // pred_check
        %p641 = pneg %p331
      $region62: #{forward.2} parent=15 // pred_check_branch
        %643 = sbr.rel (%p641) target = $region64
      $region63: #{forward.2} parent=15 // pred_region
        %p644 = scmp.lt.s32.totalorder %s25, 2
        %s645 = scalar_select %p644, %s25, 2
        %s646 = smul.addr %s645, 16
        %s647 = smul.addr %s646, 4
        %s648 = scalar_lea.vmem %s11, %s647
      $region64: #{forward.2} parent=15 // pred_fallthru
        _
      // Predicated region
      $region65: #{forward.2} parent=15 // pred_check
        %p649 = pneg %p357
      $region66: #{forward.2} parent=15 // pred_check_branch
        %651 = sbr.rel (%p649) target = $region68
      $region67: #{forward.2} parent=15 // pred_region
        %p652 = scmp.lt.s32.totalorder %s25, 2
        %s653 = scalar_select %p652, %s25, 2
        %s654 = smul.addr %s653, 16
        %s655 = smul.addr %s654, 4
        %s656 = scalar_lea.vmem %s12, %s655
      $region68: #{forward.2} parent=15 // pred_fallthru
        _
      // Predicated region
      $region69: #{forward.2} parent=15 // pred_check
        %p657 = pneg %p383
      $region70: #{forward.2} parent=15 // pred_check_branch
        %659 = sbr.rel (%p657) target = $region72
      $region71: #{forward.2} parent=15 // pred_region
        %p660 = scmp.lt.s32.totalorder %s25, 2
        %s661 = scalar_select %p660, %s25, 2
        %s662 = smul.addr %s661, 2
        %s663 = scalar_lea.vmem %s13, %s662
      $region72: #{forward.2} parent=15 // pred_fallthru
        _
      // Predicated region
      $region73: #{forward.2} parent=15 // pred_check
        %p664 = pneg %p409
      $region74: #{forward.2} parent=15 // pred_check_branch
        %666 = sbr.rel (%p664) target = $region76
      $region75: #{forward.2} parent=15 // pred_region
        %p667 = scmp.lt.s32.totalorder %s25, 2
        %s668 = scalar_select %p667, %s25, 2
        %s669 = smul.addr %s668, 2
        %s670 = scalar_lea.vmem %s14, %s669
      $region76: #{forward.2} parent=15 // pred_fallthru
        _
      // Predicated region
      $region77: #{forward.2} parent=15 // pred_check
        %p671 = pneg %p435
      $region78: #{forward.2} parent=15 // pred_check_branch
        %673 = sbr.rel (%p671) target = $region80
      $region79: #{forward.2} parent=15 // pred_region
        %p674 = scmp.lt.s32.totalorder %s25, 2
        %s675 = scalar_select %p674, %s25, 2
        %s676 = smul.addr %s675, 16
        %s677 = smul.addr %s676, 4
        %s678 = scalar_lea.vmem %s15, %s677
      $region80: #{forward.2} parent=15 // pred_fallthru
        _
      // Predicated region
      $region81: #{forward.2} parent=15 // pred_check
        %p679 = pneg %p461
      $region82: #{forward.2} parent=15 // pred_check_branch
        %681 = sbr.rel (%p679) target = $region84
      $region83: #{forward.2} parent=15 // pred_region
        %p682 = scmp.lt.s32.totalorder %s25, 2
        %s683 = scalar_select %p682, %s25, 2
        %s684 = smul.addr %s683, 2
        %s685 = scalar_lea.vmem %s16, %s684
      $region84: #{forward.2} parent=15 // pred_fallthru
        _
      // Predicated region
      $region85: #{forward.2} parent=15 // pred_check
        %p686 = pneg %p487
      $region86: #{forward.2} parent=15 // pred_check_branch
        %688 = sbr.rel (%p686) target = $region88
      $region87: #{forward.2} parent=15 // pred_region
        %p689 = scmp.lt.s32.totalorder %s25, 2
        %s690 = scalar_select %p689, %s25, 2
        %s691 = smul.addr %s690, 8
        %s692 = smul.addr %s691, 4
        %s693 = scalar_lea.vmem %s17, %s692
      $region88: #{forward.2} parent=15 // pred_fallthru
        _
      // Predicated region
      $region89: #{forward.2} parent=15 // pred_check
        %p694 = pneg %p513
      $region90: #{forward.2} parent=15 // pred_check_branch
        %696 = sbr.rel (%p694) target = $region92
      $region91: #{forward.2} parent=15 // pred_region
        %p697 = scmp.lt.s32.totalorder %s25, 2
        %s698 = scalar_select %p697, %s25, 2
        %s699 = scalar_lea.vmem %s18, %s698
      $region92: #{forward.2} parent=15 // pred_fallthru
        _
    $region16: #{forward.2} parent=5 // pred_fallthru
      _
    %p700 = scmp.le.s32.totalorder 1, %s25
    %p701 = scmp.lt.s32.totalorder %s25, 4
    %p702 = pnand %p700, %p701
    %p703 = pneg %p702
    // Predicated region
    $region93: #{forward.2} parent=5 // pred_check
      _
    $region94: #{forward.2} parent=5 // pred_check_branch
      %705 = sbr.rel (%p702) target = $region96
    $region95: #{forward.2} parent=5 // pred_region
      %s706 = ssub.s32 %s25, 1
      %p707 = scmp.lt.s32.totalorder %s30, 2
      %s708 = scalar_select %p707, %s30, 2
      %s709 = smul.addr %s708, 2
      %s710 = smul.addr %s709, 8
      %s711 = scalar_lea.vmem %s0, %s710
      %p712 = pneg %p51
      %p713 = pneg %p48
      %p714 = scmp.lt.s32.totalorder %s30, 2
      %s715 = scalar_select %p714, %s30, 2
      %s716 = smul.addr %s715, 2
      %s717 = smul.addr %s716, 4
      %s718 = scalar_lea.vmem %s1, %s717
      %p719 = pneg %p77
      %p720 = pneg %p74
      %p721 = scmp.lt.s32.totalorder %s30, 2
      %s722 = scalar_select %p721, %s30, 2
      %s723 = scalar_lea.vmem %s2, %s722
      %p724 = pneg %p103
      %p725 = pneg %p100
      %p726 = scmp.lt.s32.totalorder %s30, 2
      %s727 = scalar_select %p726, %s30, 2
      %s728 = smul.addr %s727, 24
      %s729 = smul.addr %s728, 4
      %s730 = scalar_lea.vmem %s3, %s729
      %p731 = pneg %p129
      %p732 = pneg %p126
      %p733 = scmp.lt.s32.totalorder %s30, 2
      %s734 = scalar_select %p733, %s30, 2
      %s735 = scalar_lea.vmem %s4, %s734
      %p736 = pneg %p155
      %p737 = pneg %p152
      %p738 = scmp.lt.s32.totalorder %s30, 2
      %s739 = scalar_select %p738, %s30, 2
      %s740 = smul.addr %s739, 2
      %s741 = scalar_lea.vmem %s5, %s740
      %p742 = pneg %p181
      %p743 = pneg %p178
      %p744 = scmp.lt.s32.totalorder %s30, 2
      %s745 = scalar_select %p744, %s30, 2
      %s746 = scalar_lea.vmem %s6, %s745
      %p747 = pneg %p207
      %p748 = pneg %p204
      %p749 = scmp.lt.s32.totalorder %s30, 2
      %s750 = scalar_select %p749, %s30, 2
      %s751 = smul.addr %s750, 24
      %s752 = smul.addr %s751, 4
      %s753 = scalar_lea.vmem %s7, %s752
      %p754 = pneg %p233
      %p755 = pneg %p230
      %p756 = scmp.lt.s32.totalorder %s30, 2
      %s757 = scalar_select %p756, %s30, 2
      %s758 = scalar_lea.vmem %s8, %s757
      %p759 = pneg %p259
      %p760 = pneg %p256
      %p761 = scmp.lt.s32.totalorder %s30, 2
      %s762 = scalar_select %p761, %s30, 2
      %s763 = smul.addr %s762, 24
      %s764 = smul.addr %s763, 4
      %s765 = scalar_lea.vmem %s9, %s764
      %p766 = pneg %p285
      %p767 = pneg %p282
      %p768 = scmp.lt.s32.totalorder %s30, 2
      %s769 = scalar_select %p768, %s30, 2
      %s770 = scalar_lea.vmem %s10, %s769
      %p771 = pneg %p311
      %p772 = pneg %p308
      %p773 = scmp.lt.s32.totalorder %s30, 2
      %s774 = scalar_select %p773, %s30, 2
      %s775 = smul.addr %s774, 16
      %s776 = smul.addr %s775, 4
      %s777 = scalar_lea.vmem %s11, %s776
      %p778 = pneg %p337
      %p779 = pneg %p334
      %p780 = scmp.lt.s32.totalorder %s30, 2
      %s781 = scalar_select %p780, %s30, 2
      %s782 = smul.addr %s781, 16
      %s783 = smul.addr %s782, 4
      %s784 = scalar_lea.vmem %s12, %s783
      %p785 = pneg %p363
      %p786 = pneg %p360
      %p787 = scmp.lt.s32.totalorder %s30, 2
      %s788 = scalar_select %p787, %s30, 2
      %s789 = smul.addr %s788, 2
      %s790 = scalar_lea.vmem %s13, %s789
      %p791 = pneg %p389
      %p792 = pneg %p386
      %p793 = scmp.lt.s32.totalorder %s30, 2
      %s794 = scalar_select %p793, %s30, 2
      %s795 = smul.addr %s794, 2
      %s796 = scalar_lea.vmem %s14, %s795
      %p797 = pneg %p415
      %p798 = pneg %p412
      %p799 = scmp.lt.s32.totalorder %s30, 2
      %s800 = scalar_select %p799, %s30, 2
      %s801 = smul.addr %s800, 16
      %s802 = smul.addr %s801, 4
      %s803 = scalar_lea.vmem %s15, %s802
      %p804 = pneg %p441
      %p805 = pneg %p438
      %p806 = scmp.lt.s32.totalorder %s30, 2
      %s807 = scalar_select %p806, %s30, 2
      %s808 = smul.addr %s807, 2
      %s809 = scalar_lea.vmem %s16, %s808
      %p810 = pneg %p467
      %p811 = pneg %p464
      %p812 = scmp.lt.s32.totalorder %s30, 2
      %s813 = scalar_select %p812, %s30, 2
      %s814 = smul.addr %s813, 8
      %s815 = smul.addr %s814, 4
      %s816 = scalar_lea.vmem %s17, %s815
      %p817 = pneg %p493
      %p818 = pneg %p490
      %p819 = scmp.lt.s32.totalorder %s30, 2
      %s820 = scalar_select %p819, %s30, 2
      %s821 = scalar_lea.vmem %s18, %s820
      %p822 = pneg %p519
      %p823 = pneg %p516
      %p824 = pneg %p545
      %p825 = pneg %p542
      %p826 = scmp.lt.s32.totalorder %s30, 2
      %s827 = scalar_select %p826, %s30, 2
      %s828 = smul.addr %s827, 2
      %s829 = scalar_lea.vmem %s19, %s828
      %p830 = scmp.lt.s32.totalorder %s30, 2
      %s831 = scalar_select %p830, %s30, 2
      %s832 = smul.addr %s831, 2
      %s833 = smul.addr %s832, 8
      %s834 = scalar_lea.vmem %s0, %s833
      %p835 = scmp.lt.s32.totalorder %s30, 2
      %s836 = scalar_select %p835, %s30, 2
      %s837 = smul.addr %s836, 2
      %s838 = smul.addr %s837, 4
      %s839 = scalar_lea.vmem %s1, %s838
      %p840 = scmp.lt.s32.totalorder %s30, 2
      %s841 = scalar_select %p840, %s30, 2
      %s842 = scalar_lea.vmem %s2, %s841
      %p843 = scmp.lt.s32.totalorder %s30, 2
      %s844 = scalar_select %p843, %s30, 2
      %s845 = smul.addr %s844, 24
      %s846 = smul.addr %s845, 4
      %s847 = scalar_lea.vmem %s3, %s846
      %p848 = scmp.lt.s32.totalorder %s30, 2
      %s849 = scalar_select %p848, %s30, 2
      %s850 = scalar_lea.vmem %s4, %s849
      %p851 = scmp.lt.s32.totalorder %s30, 2
      %s852 = scalar_select %p851, %s30, 2
      %s853 = smul.addr %s852, 2
      %s854 = scalar_lea.vmem %s5, %s853
      %p855 = scmp.lt.s32.totalorder %s30, 2
      %s856 = scalar_select %p855, %s30, 2
      %s857 = scalar_lea.vmem %s6, %s856
      %p858 = scmp.lt.s32.totalorder %s30, 2
      %s859 = scalar_select %p858, %s30, 2
      %s860 = smul.addr %s859, 24
      %s861 = smul.addr %s860, 4
      %s862 = scalar_lea.vmem %s7, %s861
      %p863 = scmp.lt.s32.totalorder %s30, 2
      %s864 = scalar_select %p863, %s30, 2
      %s865 = scalar_lea.vmem %s8, %s864
      %p866 = scmp.lt.s32.totalorder %s30, 2
      %s867 = scalar_select %p866, %s30, 2
      %s868 = smul.addr %s867, 24
      %s869 = smul.addr %s868, 4
      %s870 = scalar_lea.vmem %s9, %s869
      %p871 = scmp.lt.s32.totalorder %s30, 2
      %s872 = scalar_select %p871, %s30, 2
      %s873 = scalar_lea.vmem %s10, %s872
      %p874 = scmp.lt.s32.totalorder %s30, 2
      %s875 = scalar_select %p874, %s30, 2
      %s876 = smul.addr %s875, 16
      %s877 = smul.addr %s876, 4
      %s878 = scalar_lea.vmem %s11, %s877
      %p879 = scmp.lt.s32.totalorder %s30, 2
      %s880 = scalar_select %p879, %s30, 2
      %s881 = smul.addr %s880, 16
      %s882 = smul.addr %s881, 4
      %s883 = scalar_lea.vmem %s12, %s882
      %p884 = scmp.lt.s32.totalorder %s30, 2
      %s885 = scalar_select %p884, %s30, 2
      %s886 = smul.addr %s885, 2
      %s887 = scalar_lea.vmem %s13, %s886
      %p888 = scmp.lt.s32.totalorder %s30, 2
      %s889 = scalar_select %p888, %s30, 2
      %s890 = smul.addr %s889, 2
      %s891 = scalar_lea.vmem %s14, %s890
      %p892 = scmp.lt.s32.totalorder %s30, 2
      %s893 = scalar_select %p892, %s30, 2
      %s894 = smul.addr %s893, 16
      %s895 = smul.addr %s894, 4
      %s896 = scalar_lea.vmem %s15, %s895
      %p897 = scmp.lt.s32.totalorder %s30, 2
      %s898 = scalar_select %p897, %s30, 2
      %s899 = smul.addr %s898, 2
      %s900 = scalar_lea.vmem %s16, %s899
      %p901 = scmp.lt.s32.totalorder %s30, 2
      %s902 = scalar_select %p901, %s30, 2
      %s903 = smul.addr %s902, 8
      %s904 = smul.addr %s903, 4
      %s905 = scalar_lea.vmem %s17, %s904
      %p906 = scmp.lt.s32.totalorder %s30, 2
      %s907 = scalar_select %p906, %s30, 2
      %s908 = scalar_lea.vmem %s18, %s907
      %p909 = scmp.lt.s32.totalorder %s30, 2
      %s910 = scalar_select %p909, %s30, 2
      %s911 = smul.addr %s910, 2
      %s912 = scalar_lea.vmem %s19, %s911
      %v914 = vld [vmem:[%s834] sm:$0xff]
      %v915 = vld [vmem:[%s834 + $0x8] sm:$0xff]
      %v918 = vrot.slane %v914, 7
      %v919 = vrot.slane %v915, 7
      %vm922 = vcmask 1040384
      %v923 = vsel %vm922, 0.0, %v918
      %v924 = vsel %vm922, 0.0, %v919
      %v925 = vrot.slane %v914, 1
      %v926 = vrot.slane %v915, 1
      %vm929 = vcmask 1046528
      %v930 = vsel %vm929, %v925, 0.0
      %v931 = vsel %vm929, %v926, 0.0
      %932 = vrot.lane.b32.xlu0 %v914, 4
      %v933 = vpop.permute.xlu0 %932
      %934 = vrot.lane.b32.xlu0 %v915, 4
      %v935 = vpop.permute.xlu0 %934
      %940 = vrot.lane.b32.xlu0 %v930, 8
      %v941 = vpop.permute.xlu0 %940
      %942 = vrot.lane.b32.xlu0 %v931, 8
      %v943 = vpop.permute.xlu0 %942
      %vm946 = vcmask 31744
      %v947 = vsel %vm946, %v923, %v933
      %v948 = vsel %vm946, %v924, %v935
      %vm949 = vcmask 64512
      %v950 = vsel %vm949, %v947, %v941
      %v951 = vsel %vm949, %v948, %v943
      %v952 = vpack.c.bf16 %v951, %v950
      %v953 = vld [vmem:[%s839] sm:$0xf]
      %v954 = vld [vmem:[%s839 + $0x4] sm:$0x3]
      %v957 = vunpack.c.l.b16 %v953
      %v958 = vunpack.c.l.b16 %v954
      %v959 = vpack.c.b16 %v958, %v957
      %vm960 = vcmask 97280
      %v962 = vsel %vm960, %v952, 0
      %vm964 = vcmask 1045504
      %v966 = vsel %vm964, %v959, 0
      %968 = vmatprep.subr.bf16.mxu0 0
      %969 = vmatpush1.bf16.msra.mxu0 %v966
      %970 = vmatprep.subr.bf16.mxu0 0
      %971 = vmatpush1.bf16.msra.mxu0 0
      %972 = vmatprep.subr.bf16.mxu0 0
      %973 = vmatpush1.bf16.msra.mxu0 0
      %974 = vmatprep.subr.bf16.mxu0 0
      %975 = vmatpush1.bf16.msra.mxu0 0
      %976 = vmatprep.subr.bf16.mxu0 0
      %977 = vmatpush1.bf16.msra.mxu0 0
      %978 = vmatprep.subr.bf16.mxu0 0
      %979 = vmatpush1.bf16.msra.mxu0 0
      %980 = vmatprep.subr.bf16.mxu0 0
      %981 = vmatpush1.bf16.msra.mxu0 0
      %982 = vmatprep.subr.bf16.mxu0 0
      %983 = vmatpush1.bf16.msra.mxu0 0
      %984 = vmatprep.subr.bf16.mxu0 0
      %985 = vmatpush1.bf16.msra.mxu0 0
      %986 = vmatprep.subr.bf16.mxu0 0
      %987 = vmatpush1.bf16.msra.mxu0 0
      %988 = vmatprep.subr.bf16.mxu0 0
      %989 = vmatpush1.bf16.msra.mxu0 0
      %990 = vmatprep.subr.bf16.mxu0 0
      %991 = vmatpush1.bf16.msra.mxu0 0
      %992 = vmatprep.subr.bf16.mxu0 0
      %993 = vmatpush1.bf16.msra.mxu0 0
      %994 = vmatprep.subr.bf16.mxu0 0
      %995 = vmatpush1.bf16.msra.mxu0 0
      %996 = vmatprep.subr.bf16.mxu0 0
      %997 = vmatpush1.bf16.msra.mxu0 0
      %998 = vmatprep.subr.bf16.mxu0 0
      %999 = vmatpush1.bf16.msra.mxu0 0
      %1000 = vmatprep.mubr.bf16.mxu0 0
      %1001 = vmatmul.mubr.bf16.gmra.mrb[0].mxu0 %v962
      %v1002 = vpop.f32.mrb[0].mxu0
      %v1003 = vadd.f32 0.0, %v1002
      %v1004 = vpop.f32.mrb[0].mxu0
      %v1005 = vpop.f32.mrb[0].mxu0
      %v1006 = vadd.f32 0.0, %v1005
      %v1007 = vpop.f32.mrb[0].mxu0
      %1008 = vdwg.mxu0
      %v1009 = vld [vmem:[%s842] sm:$0x1]
      %v1011 = vlaneseq
      %v1012 = vshrl.u32 %v1011, 7
      %v1013 = vsub.s32 0, %v1012
      %v1014 = vrot.slane %v1009, %v1013
      %v1016 = vadd.f32 %v1003, %v1014
      %v1017 = vadd.f32 %v1006, %v1014
      %v1018 = vmax.f32 %v1016, 0.0
      %v1019 = vmax.f32 %v1017, 0.0
      %v1022 = vrot.slane %v1018, 7
      %v1023 = vrot.slane %v1019, 7
      %v1026 = vsel %vm922, 0.0, %v1022
      %v1027 = vsel %vm922, 0.0, %v1023
      %v1028 = vrot.slane %v1018, 1
      %v1029 = vrot.slane %v1019, 1
      %v1032 = vsel %vm929, %v1028, 0.0
      %v1033 = vsel %vm929, %v1029, 0.0
      %1034 = vrot.lane.b32.xlu0 %v1018, 64
      %v1035 = vpop.permute.xlu0 %1034
      %1036 = vrot.lane.b32.xlu0 %v1019, 64
      %v1037 = vpop.permute.xlu0 %1036
      %vm1040 = vcmask 523264
      %v1041 = vsel %vm1040, %v1026, %v1035
      %v1042 = vsel %vm1040, %v1027, %v1037
      %v1043 = vpack.c.bf16 %v1042, %v1041
      %v1044 = vpack.c.bf16 %v1033, %v1032
      %v1045 = vld [vmem:[%s847] sm:$0xf]
      %v1046 = vld [vmem:[%s847 + $0x4] sm:$0xf]
      %v1047 = vld [vmem:[%s847 + $0x8] sm:$0xf]
      %v1048 = vld [vmem:[%s847 + $0xc] sm:$0xf]
      %v1049 = vld [vmem:[%s847 + $0x10] sm:$0xf]
      %v1050 = vld [vmem:[%s847 + $0x14] sm:$0xf]
      %v1051 = vld [vmem:[%s847 + $0x18] sm:$0xf]
      %v1052 = vld [vmem:[%s847 + $0x1c] sm:$0xf]
      %v1053 = vld [vmem:[%s847 + $0x20] sm:$0xf]
      %v1054 = vld [vmem:[%s847 + $0x24] sm:$0xf]
      %v1055 = vld [vmem:[%s847 + $0x28] sm:$0xf]
      %v1056 = vld [vmem:[%s847 + $0x2c] sm:$0xf]
      %v1057 = vld [vmem:[%s847 + $0x30] sm:$0xf]
      %v1058 = vld [vmem:[%s847 + $0x34] sm:$0xf]
      %v1059 = vld [vmem:[%s847 + $0x38] sm:$0xf]
      %v1060 = vld [vmem:[%s847 + $0x3c] sm:$0xf]
      %v1061 = vld [vmem:[%s847 + $0x40] sm:$0xf]
      %v1062 = vld [vmem:[%s847 + $0x44] sm:$0xf]
      %v1063 = vld [vmem:[%s847 + $0x48] sm:$0xf]
      %v1064 = vld [vmem:[%s847 + $0x4c] sm:$0xf]
      %v1065 = vld [vmem:[%s847 + $0x50] sm:$0xf]
      %v1066 = vld [vmem:[%s847 + $0x54] sm:$0xf]
      %v1067 = vld [vmem:[%s847 + $0x58] sm:$0xf]
      %v1068 = vld [vmem:[%s847 + $0x5c] sm:$0xf]
      %v1093 = vunpack.c.l.b16 %v1045
      %v1094 = vunpack.c.l.b16 %v1046
      %v1095 = vunpack.c.l.b16 %v1047
      %v1096 = vunpack.c.l.b16 %v1048
      %v1097 = vunpack.c.l.b16 %v1049
      %v1098 = vunpack.c.l.b16 %v1050
      %v1099 = vunpack.c.l.b16 %v1051
      %v1100 = vunpack.c.l.b16 %v1052
      %v1101 = vunpack.c.l.b16 %v1053
      %v1102 = vunpack.c.l.b16 %v1054
      %v1103 = vunpack.c.l.b16 %v1055
      %v1104 = vunpack.c.l.b16 %v1056
      %v1105 = vunpack.c.l.b16 %v1057
      %v1106 = vunpack.c.l.b16 %v1058
      %v1107 = vunpack.c.l.b16 %v1059
      %v1108 = vunpack.c.l.b16 %v1060
      %v1109 = vunpack.c.l.b16 %v1061
      %v1110 = vunpack.c.l.b16 %v1062
      %v1111 = vunpack.c.l.b16 %v1063
      %v1112 = vunpack.c.l.b16 %v1064
      %v1113 = vunpack.c.l.b16 %v1065
      %v1114 = vunpack.c.l.b16 %v1066
      %v1115 = vunpack.c.l.b16 %v1067
      %v1116 = vunpack.c.l.b16 %v1068
      %v1117 = vpack.c.b16 %v1094, %v1093
      %v1118 = vpack.c.b16 %v1096, %v1095
      %v1119 = vpack.c.b16 %v1098, %v1097
      %v1120 = vpack.c.b16 %v1100, %v1099
      %v1121 = vpack.c.b16 %v1102, %v1101
      %v1122 = vpack.c.b16 %v1104, %v1103
      %v1123 = vpack.c.b16 %v1106, %v1105
      %v1124 = vpack.c.b16 %v1108, %v1107
      %v1125 = vpack.c.b16 %v1110, %v1109
      %v1126 = vpack.c.b16 %v1112, %v1111
      %v1127 = vpack.c.b16 %v1114, %v1113
      %v1128 = vpack.c.b16 %v1116, %v1115
      %v1142 = vsel %vm1040, %v1044, 0
      %1144 = vmatprep.subr.bf16.mxu0 0
      %1145 = vmatpush1.bf16.msra.mxu0 %v1117
      %1146 = vmatprep.subr.bf16.mxu0 0
      %1147 = vmatpush1.bf16.msra.mxu0 %v1118
      %1148 = vmatprep.subr.bf16.mxu0 0
      %1149 = vmatpush1.bf16.msra.mxu0 %v1119
      %1150 = vmatprep.subr.bf16.mxu0 0
      %1151 = vmatpush1.bf16.msra.mxu0 %v1120
      %1152 = vmatprep.subr.bf16.mxu0 0
      %1153 = vmatpush1.bf16.msra.mxu0 %v1121
      %1154 = vmatprep.subr.bf16.mxu0 0
      %1155 = vmatpush1.bf16.msra.mxu0 %v1122
      %1156 = vmatprep.subr.bf16.mxu0 0
      %1157 = vmatpush1.bf16.msra.mxu0 %v1123
      %1158 = vmatprep.subr.bf16.mxu0 0
      %1159 = vmatpush1.bf16.msra.mxu0 %v1124
      %1160 = vmatprep.subr.bf16.mxu0 0
      %1161 = vmatpush1.bf16.msra.mxu0 %v1125
      %1162 = vmatprep.subr.bf16.mxu0 0
      %1163 = vmatpush1.bf16.msra.mxu0 %v1126
      %1164 = vmatprep.subr.bf16.mxu0 0
      %1165 = vmatpush1.bf16.msra.mxu0 %v1127
      %1166 = vmatprep.subr.bf16.mxu0 0
      %1167 = vmatpush1.bf16.msra.mxu0 %v1128
      %1168 = vmatprep.subr.bf16.mxu0 0
      %1169 = vmatpush1.bf16.msra.mxu0 0
      %1170 = vmatprep.subr.bf16.mxu0 0
      %1171 = vmatpush1.bf16.msra.mxu0 0
      %1172 = vmatprep.subr.bf16.mxu0 0
      %1173 = vmatpush1.bf16.msra.mxu0 0
      %1174 = vmatprep.subr.bf16.mxu0 0
      %1175 = vmatpush1.bf16.msra.mxu0 0
      %1176 = vmatprep.mubr.bf16.mxu0 %v1142
      %1177 = vmatmul.mubr.bf16.gmra.mrb[0].mxu0 %v1043
      %v1178 = vpop.f32.mrb[0].mxu0
      %v1179 = vadd.f32 0.0, %v1178
      %v1180 = vpop.f32.mrb[0].mxu0
      %v1181 = vpop.f32.mrb[0].mxu0
      %v1182 = vadd.f32 0.0, %v1181
      %v1183 = vpop.f32.mrb[0].mxu0
      %1184 = vdwg.mxu0
      %v1185 = vld [vmem:[%s850] sm:$0x1]
      %v1187 = vlaneseq
      %v1188 = vshrl.u32 %v1187, 7
      %v1189 = vsub.s32 0, %v1188
      %v1190 = vrot.slane %v1185, %v1189
      %v1192 = vadd.f32 %v1179, %v1190
      %v1193 = vadd.f32 %v1182, %v1190
      %v1194 = vmax.f32 %v1192, 0.0
      %v1195 = vmax.f32 %v1193, 0.0
      %v1196 = vpack.c.bf16 %v915, %v914
      %v1197 = vld [vmem:[%s854] sm:$0x3]
      %v1198 = vld [vmem:[%s857] sm:$0x1]
      %v1200 = vlaneseq
      %v1201 = vshrl.u32 %v1200, 7
      %v1202 = vsub.s32 0, %v1201
      %v1203 = vrot.slane %v1198, %v1202
      %v1206 = vsel %vm946, %v1196, 0
      %vm1208 = vcmask 1041408
      %v1210 = vsel %vm1208, %v1197, 0
      %1212 = vmatprep.subr.bf16.mxu0 0
      %1213 = vmatpush1.bf16.msra.mxu0 %v1210
      %1214 = vmatprep.subr.bf16.mxu0 0
      %1215 = vmatpush1.bf16.msra.mxu0 0
      %1216 = vmatprep.subr.bf16.mxu0 0
      %1217 = vmatpush1.bf16.msra.mxu0 0
      %1218 = vmatprep.subr.bf16.mxu0 0
      %1219 = vmatpush1.bf16.msra.mxu0 0
      %1220 = vmatprep.subr.bf16.mxu0 0
      %1221 = vmatpush1.bf16.msra.mxu0 0
      %1222 = vmatprep.subr.bf16.mxu0 0
      %1223 = vmatpush1.bf16.msra.mxu0 0
      %1224 = vmatprep.subr.bf16.mxu0 0
      %1225 = vmatpush1.bf16.msra.mxu0 0
      %1226 = vmatprep.subr.bf16.mxu0 0
      %1227 = vmatpush1.bf16.msra.mxu0 0
      %1228 = vmatprep.subr.bf16.mxu0 0
      %1229 = vmatpush1.bf16.msra.mxu0 0
      %1230 = vmatprep.subr.bf16.mxu0 0
      %1231 = vmatpush1.bf16.msra.mxu0 0
      %1232 = vmatprep.subr.bf16.mxu0 0
      %1233 = vmatpush1.bf16.msra.mxu0 0
      %1234 = vmatprep.subr.bf16.mxu0 0
      %1235 = vmatpush1.bf16.msra.mxu0 0
      %1236 = vmatprep.subr.bf16.mxu0 0
      %1237 = vmatpush1.bf16.msra.mxu0 0
      %1238 = vmatprep.subr.bf16.mxu0 0
      %1239 = vmatpush1.bf16.msra.mxu0 0
      %1240 = vmatprep.subr.bf16.mxu0 0
      %1241 = vmatpush1.bf16.msra.mxu0 0
      %1242 = vmatprep.subr.bf16.mxu0 0
      %1243 = vmatpush1.bf16.msra.mxu0 0
      %1244 = vmatprep.mubr.bf16.mxu0 0
      %1245 = vmatmul.mubr.bf16.gmra.mrb[0].mxu0 %v1206
      %v1246 = vpop.f32.mrb[0].mxu0
      %v1247 = vadd.f32 %v1203, %v1246
      %v1248 = vpop.f32.mrb[0].mxu0
      %v1249 = vpop.f32.mrb[0].mxu0
      %v1250 = vadd.f32 %v1203, %v1249
      %v1251 = vpop.f32.mrb[0].mxu0
      %1252 = vdwg.mxu0
      %v1253 = vadd.f32 %v1194, %v1247
      %v1254 = vadd.f32 %v1195, %v1250
      %v1255 = vmax.f32 %v1253, 0.0
      %v1256 = vmax.f32 %v1254, 0.0
      %v1259 = vrot.slane %v1255, 6
      %v1260 = vrot.slane %v1256, 6
      %v1263 = vsel %vm1208, 0.0, %v1259
      %v1264 = vsel %vm1208, 0.0, %v1260
      %v1265 = vrot.slane %v1255, 2
      %v1266 = vrot.slane %v1256, 2
      %v1269 = vsel %vm964, %v1265, 0.0
      %v1270 = vsel %vm964, %v1266, 0.0
      %1271 = vrot.lane.b32.xlu0 %v1255, 64
      %v1272 = vpop.permute.xlu0 %1271
      %1273 = vrot.lane.b32.xlu0 %v1256, 64
      %v1274 = vpop.permute.xlu0 %1273
      %v1277 = vsel %vm1040, %v1263, %v1272
      %v1278 = vsel %vm1040, %v1264, %v1274
      %v1279 = vpack.c.bf16 %v1278, %v1277
      %v1280 = vpack.c.bf16 %v1270, %v1269
      %v1281 = vld [vmem:[%s862] sm:$0xf]
      %v1282 = vld [vmem:[%s862 + $0x4] sm:$0xf]
      %v1283 = vld [vmem:[%s862 + $0x8] sm:$0xf]
      %v1284 = vld [vmem:[%s862 + $0xc] sm:$0xf]
      %v1285 = vld [vmem:[%s862 + $0x10] sm:$0xf]
      %v1286 = vld [vmem:[%s862 + $0x14] sm:$0xf]
      %v1287 = vld [vmem:[%s862 + $0x18] sm:$0xf]
      %v1288 = vld [vmem:[%s862 + $0x1c] sm:$0xf]
      %v1289 = vld [vmem:[%s862 + $0x20] sm:$0xf]
      %v1290 = vld [vmem:[%s862 + $0x24] sm:$0xf]
      %v1291 = vld [vmem:[%s862 + $0x28] sm:$0xf]
      %v1292 = vld [vmem:[%s862 + $0x2c] sm:$0xf]
      %v1293 = vld [vmem:[%s862 + $0x30] sm:$0xf]
      %v1294 = vld [vmem:[%s862 + $0x34] sm:$0xf]
      %v1295 = vld [vmem:[%s862 + $0x38] sm:$0xf]
      %v1296 = vld [vmem:[%s862 + $0x3c] sm:$0xf]
      %v1297 = vld [vmem:[%s862 + $0x40] sm:$0xf]
      %v1298 = vld [vmem:[%s862 + $0x44] sm:$0xf]
      %v1299 = vld [vmem:[%s862 + $0x48] sm:$0xf]
      %v1300 = vld [vmem:[%s862 + $0x4c] sm:$0xf]
      %v1301 = vld [vmem:[%s862 + $0x50] sm:$0xf]
      %v1302 = vld [vmem:[%s862 + $0x54] sm:$0xf]
      %v1303 = vld [vmem:[%s862 + $0x58] sm:$0xf]
      %v1304 = vld [vmem:[%s862 + $0x5c] sm:$0xf]
      %v1329 = vunpack.c.l.b16 %v1281
      %v1330 = vunpack.c.l.b16 %v1282
      %v1331 = vunpack.c.l.b16 %v1283
      %v1332 = vunpack.c.l.b16 %v1284
      %v1333 = vunpack.c.l.b16 %v1285
      %v1334 = vunpack.c.l.b16 %v1286
      %v1335 = vunpack.c.l.b16 %v1287
      %v1336 = vunpack.c.l.b16 %v1288
      %v1337 = vunpack.c.l.b16 %v1289
      %v1338 = vunpack.c.l.b16 %v1290
      %v1339 = vunpack.c.l.b16 %v1291
      %v1340 = vunpack.c.l.b16 %v1292
      %v1341 = vunpack.c.l.b16 %v1293
      %v1342 = vunpack.c.l.b16 %v1294
      %v1343 = vunpack.c.l.b16 %v1295
      %v1344 = vunpack.c.l.b16 %v1296
      %v1345 = vunpack.c.l.b16 %v1297
      %v1346 = vunpack.c.l.b16 %v1298
      %v1347 = vunpack.c.l.b16 %v1299
      %v1348 = vunpack.c.l.b16 %v1300
      %v1349 = vunpack.c.l.b16 %v1301
      %v1350 = vunpack.c.l.b16 %v1302
      %v1351 = vunpack.c.l.b16 %v1303
      %v1352 = vunpack.c.l.b16 %v1304
      %v1353 = vpack.c.b16 %v1330, %v1329
      %v1354 = vpack.c.b16 %v1332, %v1331
      %v1355 = vpack.c.b16 %v1334, %v1333
      %v1356 = vpack.c.b16 %v1336, %v1335
      %v1357 = vpack.c.b16 %v1338, %v1337
      %v1358 = vpack.c.b16 %v1340, %v1339
      %v1359 = vpack.c.b16 %v1342, %v1341
      %v1360 = vpack.c.b16 %v1344, %v1343
      %v1361 = vpack.c.b16 %v1346, %v1345
      %v1362 = vpack.c.b16 %v1348, %v1347
      %v1363 = vpack.c.b16 %v1350, %v1349
      %v1364 = vpack.c.b16 %v1352, %v1351
      %v1378 = vsel %vm1040, %v1280, 0
      %1380 = vmatprep.subr.bf16.mxu0 0
      %1381 = vmatpush1.bf16.msra.mxu0 %v1353
      %1382 = vmatprep.subr.bf16.mxu0 0
      %1383 = vmatpush1.bf16.msra.mxu0 %v1354
      %1384 = vmatprep.subr.bf16.mxu0 0
      %1385 = vmatpush1.bf16.msra.mxu0 %v1355
      %1386 = vmatprep.subr.bf16.mxu0 0
      %1387 = vmatpush1.bf16.msra.mxu0 %v1356
      %1388 = vmatprep.subr.bf16.mxu0 0
      %1389 = vmatpush1.bf16.msra.mxu0 %v1357
      %1390 = vmatprep.subr.bf16.mxu0 0
      %1391 = vmatpush1.bf16.msra.mxu0 %v1358
      %1392 = vmatprep.subr.bf16.mxu0 0
      %1393 = vmatpush1.bf16.msra.mxu0 %v1359
      %1394 = vmatprep.subr.bf16.mxu0 0
      %1395 = vmatpush1.bf16.msra.mxu0 %v1360
      %1396 = vmatprep.subr.bf16.mxu0 0
      %1397 = vmatpush1.bf16.msra.mxu0 %v1361
      %1398 = vmatprep.subr.bf16.mxu0 0
      %1399 = vmatpush1.bf16.msra.mxu0 %v1362
      %1400 = vmatprep.subr.bf16.mxu0 0
      %1401 = vmatpush1.bf16.msra.mxu0 %v1363
      %1402 = vmatprep.subr.bf16.mxu0 0
      %1403 = vmatpush1.bf16.msra.mxu0 %v1364
      %1404 = vmatprep.subr.bf16.mxu0 0
      %1405 = vmatpush1.bf16.msra.mxu0 0
      %1406 = vmatprep.subr.bf16.mxu0 0
      %1407 = vmatpush1.bf16.msra.mxu0 0
      %1408 = vmatprep.subr.bf16.mxu0 0
      %1409 = vmatpush1.bf16.msra.mxu0 0
      %1410 = vmatprep.subr.bf16.mxu0 0
      %1411 = vmatpush1.bf16.msra.mxu0 0
      %1412 = vmatprep.mubr.bf16.mxu0 %v1378
      %1413 = vmatmul.mubr.bf16.gmra.mrb[0].mxu0 %v1279
      %v1414 = vpop.f32.mrb[0].mxu0
      %v1415 = vadd.f32 0.0, %v1414
      %v1416 = vpop.f32.mrb[0].mxu0
      %v1417 = vpop.f32.mrb[0].mxu0
      %v1418 = vadd.f32 0.0, %v1417
      %v1419 = vpop.f32.mrb[0].mxu0
      %1420 = vdwg.mxu0
      %v1421 = vld [vmem:[%s865] sm:$0x1]
      %v1423 = vlaneseq
      %v1424 = vshrl.u32 %v1423, 7
      %v1425 = vsub.s32 0, %v1424
      %v1426 = vrot.slane %v1421, %v1425
      %v1428 = vadd.f32 %v1415, %v1426
      %v1429 = vadd.f32 %v1418, %v1426
      %v1430 = vmax.f32 %v1428, 0.0
      %v1431 = vmax.f32 %v1429, 0.0
      %v1434 = vrot.slane %v1430, 6
      %v1435 = vrot.slane %v1431, 6
      %v1438 = vsel %vm1208, 0.0, %v1434
      %v1439 = vsel %vm1208, 0.0, %v1435
      %v1440 = vrot.slane %v1430, 2
      %v1441 = vrot.slane %v1431, 2
      %v1444 = vsel %vm964, %v1440, 0.0
      %v1445 = vsel %vm964, %v1441, 0.0
      %1446 = vrot.lane.b32.xlu0 %v1430, 64
      %v1447 = vpop.permute.xlu0 %1446
      %1448 = vrot.lane.b32.xlu0 %v1431, 64
      %v1449 = vpop.permute.xlu0 %1448
      %v1452 = vsel %vm1040, %v1438, %v1447
      %v1453 = vsel %vm1040, %v1439, %v1449
      %v1454 = vpack.c.bf16 %v1453, %v1452
      %v1455 = vpack.c.bf16 %v1445, %v1444
      %v1456 = vld [vmem:[%s870] sm:$0xf]
      %v1457 = vld [vmem:[%s870 + $0x4] sm:$0xf]
      %v1458 = vld [vmem:[%s870 + $0x8] sm:$0xf]
      %v1459 = vld [vmem:[%s870 + $0xc] sm:$0xf]
      %v1460 = vld [vmem:[%s870 + $0x10] sm:$0xf]
      %v1461 = vld [vmem:[%s870 + $0x14] sm:$0xf]
      %v1462 = vld [vmem:[%s870 + $0x18] sm:$0xf]
      %v1463 = vld [vmem:[%s870 + $0x1c] sm:$0xf]
      %v1464 = vld [vmem:[%s870 + $0x20] sm:$0xf]
      %v1465 = vld [vmem:[%s870 + $0x24] sm:$0xf]
      %v1466 = vld [vmem:[%s870 + $0x28] sm:$0xf]
      %v1467 = vld [vmem:[%s870 + $0x2c] sm:$0xf]
      %v1468 = vld [vmem:[%s870 + $0x30] sm:$0xf]
      %v1469 = vld [vmem:[%s870 + $0x34] sm:$0xf]
      %v1470 = vld [vmem:[%s870 + $0x38] sm:$0xf]
      %v1471 = vld [vmem:[%s870 + $0x3c] sm:$0xf]
      %v1472 = vld [vmem:[%s870 + $0x40] sm:$0xf]
      %v1473 = vld [vmem:[%s870 + $0x44] sm:$0xf]
      %v1474 = vld [vmem:[%s870 + $0x48] sm:$0xf]
      %v1475 = vld [vmem:[%s870 + $0x4c] sm:$0xf]
      %v1476 = vld [vmem:[%s870 + $0x50] sm:$0xf]
      %v1477 = vld [vmem:[%s870 + $0x54] sm:$0xf]
      %v1478 = vld [vmem:[%s870 + $0x58] sm:$0xf]
      %v1479 = vld [vmem:[%s870 + $0x5c] sm:$0xf]
      %v1504 = vunpack.c.l.b16 %v1456
      %v1505 = vunpack.c.l.b16 %v1457
      %v1506 = vunpack.c.l.b16 %v1458
      %v1507 = vunpack.c.l.b16 %v1459
      %v1508 = vunpack.c.l.b16 %v1460
      %v1509 = vunpack.c.l.b16 %v1461
      %v1510 = vunpack.c.l.b16 %v1462
      %v1511 = vunpack.c.l.b16 %v1463
      %v1512 = vunpack.c.l.b16 %v1464
      %v1513 = vunpack.c.l.b16 %v1465
      %v1514 = vunpack.c.l.b16 %v1466
      %v1515 = vunpack.c.l.b16 %v1467
      %v1516 = vunpack.c.l.b16 %v1468
      %v1517 = vunpack.c.l.b16 %v1469
      %v1518 = vunpack.c.l.b16 %v1470
      %v1519 = vunpack.c.l.b16 %v1471
      %v1520 = vunpack.c.l.b16 %v1472
      %v1521 = vunpack.c.l.b16 %v1473
      %v1522 = vunpack.c.l.b16 %v1474
      %v1523 = vunpack.c.l.b16 %v1475
      %v1524 = vunpack.c.l.b16 %v1476
      %v1525 = vunpack.c.l.b16 %v1477
      %v1526 = vunpack.c.l.b16 %v1478
      %v1527 = vunpack.c.l.b16 %v1479
      %v1528 = vpack.c.b16 %v1505, %v1504
      %v1529 = vpack.c.b16 %v1507, %v1506
      %v1530 = vpack.c.b16 %v1509, %v1508
      %v1531 = vpack.c.b16 %v1511, %v1510
      %v1532 = vpack.c.b16 %v1513, %v1512
      %v1533 = vpack.c.b16 %v1515, %v1514
      %v1534 = vpack.c.b16 %v1517, %v1516
      %v1535 = vpack.c.b16 %v1519, %v1518
      %v1536 = vpack.c.b16 %v1521, %v1520
      %v1537 = vpack.c.b16 %v1523, %v1522
      %v1538 = vpack.c.b16 %v1525, %v1524
      %v1539 = vpack.c.b16 %v1527, %v1526
      %v1553 = vsel %vm1040, %v1455, 0
      %1555 = vmatprep.subr.bf16.mxu0 0
      %1556 = vmatpush1.bf16.msra.mxu0 %v1528
      %1557 = vmatprep.subr.bf16.mxu0 0
      %1558 = vmatpush1.bf16.msra.mxu0 %v1529
      %1559 = vmatprep.subr.bf16.mxu0 0
      %1560 = vmatpush1.bf16.msra.mxu0 %v1530
      %1561 = vmatprep.subr.bf16.mxu0 0
      %1562 = vmatpush1.bf16.msra.mxu0 %v1531
      %1563 = vmatprep.subr.bf16.mxu0 0
      %1564 = vmatpush1.bf16.msra.mxu0 %v1532
      %1565 = vmatprep.subr.bf16.mxu0 0
      %1566 = vmatpush1.bf16.msra.mxu0 %v1533
      %1567 = vmatprep.subr.bf16.mxu0 0
      %1568 = vmatpush1.bf16.msra.mxu0 %v1534
      %1569 = vmatprep.subr.bf16.mxu0 0
      %1570 = vmatpush1.bf16.msra.mxu0 %v1535
      %1571 = vmatprep.subr.bf16.mxu0 0
      %1572 = vmatpush1.bf16.msra.mxu0 %v1536
      %1573 = vmatprep.subr.bf16.mxu0 0
      %1574 = vmatpush1.bf16.msra.mxu0 %v1537
      %1575 = vmatprep.subr.bf16.mxu0 0
      %1576 = vmatpush1.bf16.msra.mxu0 %v1538
      %1577 = vmatprep.subr.bf16.mxu0 0
      %1578 = vmatpush1.bf16.msra.mxu0 %v1539
      %1579 = vmatprep.subr.bf16.mxu0 0
      %1580 = vmatpush1.bf16.msra.mxu0 0
      %1581 = vmatprep.subr.bf16.mxu0 0
      %1582 = vmatpush1.bf16.msra.mxu0 0
      %1583 = vmatprep.subr.bf16.mxu0 0
      %1584 = vmatpush1.bf16.msra.mxu0 0
      %1585 = vmatprep.subr.bf16.mxu0 0
      %1586 = vmatpush1.bf16.msra.mxu0 0
      %1587 = vmatprep.mubr.bf16.mxu0 %v1553
      %1588 = vmatmul.mubr.bf16.gmra.mrb[0].mxu0 %v1454
      %v1589 = vpop.f32.mrb[0].mxu0
      %v1590 = vadd.f32 0.0, %v1589
      %v1591 = vpop.f32.mrb[0].mxu0
      %v1592 = vpop.f32.mrb[0].mxu0
      %v1593 = vadd.f32 0.0, %v1592
      %v1594 = vpop.f32.mrb[0].mxu0
      %1595 = vdwg.mxu0
      %v1596 = vld [vmem:[%s873] sm:$0x1]
      %v1598 = vlaneseq
      %v1599 = vshrl.u32 %v1598, 7
      %v1600 = vsub.s32 0, %v1599
      %v1601 = vrot.slane %v1596, %v1600
      %v1603 = vadd.f32 %v1590, %v1601
      %v1604 = vadd.f32 %v1593, %v1601
      %v1605 = vmax.f32 %v1603, 0.0
      %v1606 = vmax.f32 %v1604, 0.0
      %v1607 = vadd.f32 %v1605, %v1255
      %v1608 = vadd.f32 %v1606, %v1256
      %v1609 = vmax.f32 %v1607, 0.0
      %v1610 = vmax.f32 %v1608, 0.0
      %v1611 = vpack.c.bf16 %v1610, %v1609
      %v1612 = vld [vmem:[%s878] sm:$0xff]
      %v1613 = vld [vmem:[%s878 + $0x8] sm:$0xff]
      %v1614 = vld [vmem:[%s878 + $0x10] sm:$0xff]
      %v1615 = vld [vmem:[%s878 + $0x18] sm:$0xff]
      %v1616 = vld [vmem:[%s878 + $0x20] sm:$0xff]
      %v1617 = vld [vmem:[%s878 + $0x28] sm:$0xff]
      %v1618 = vld [vmem:[%s878 + $0x30] sm:$0xff]
      %v1619 = vld [vmem:[%s878 + $0x38] sm:$0xff]
      %v1620 = vld [vmem:[%s887] sm:$0x3]
      %v1622 = vlaneseq
      %v1623 = vshrl.u32 %v1622, 7
      %v1624 = vsub.s32 0, %v1623
      %v1625 = vrot.slane %v1620, %v1624
      %v1626 = vlaneseq
      %v1627 = vshrl.u32 %v1626, 7
      %v1628 = vsub.s32 1, %v1627
      %v1629 = vrot.slane %v1620, %v1628
      %v1640 = vunpack.c.l.b16 %v1612
      %v1641 = vunpack.c.h.b16 %v1612
      %v1642 = vunpack.c.l.b16 %v1613
      %v1643 = vunpack.c.h.b16 %v1613
      %v1644 = vunpack.c.l.b16 %v1614
      %v1645 = vunpack.c.h.b16 %v1614
      %v1646 = vunpack.c.l.b16 %v1615
      %v1647 = vunpack.c.h.b16 %v1615
      %v1648 = vunpack.c.l.b16 %v1616
      %v1649 = vunpack.c.h.b16 %v1616
      %v1650 = vunpack.c.l.b16 %v1617
      %v1651 = vunpack.c.h.b16 %v1617
      %v1652 = vunpack.c.l.b16 %v1618
      %v1653 = vunpack.c.h.b16 %v1618
      %v1654 = vunpack.c.l.b16 %v1619
      %v1655 = vunpack.c.h.b16 %v1619
      %v1656 = vpack.c.b16 %v1642, %v1640
      %v1657 = vpack.c.b16 %v1643, %v1641
      %v1658 = vpack.c.b16 %v1646, %v1644
      %v1659 = vpack.c.b16 %v1647, %v1645
      %v1660 = vpack.c.b16 %v1650, %v1648
      %v1661 = vpack.c.b16 %v1651, %v1649
      %v1662 = vpack.c.b16 %v1654, %v1652
      %v1663 = vpack.c.b16 %v1655, %v1653
      %v1673 = vsel %vm1040, %v1611, 0
      %1675 = vmatprep.subr.bf16.mxu0 %v1657
      %1676 = vmatpush1.bf16.msra.mxu0 %v1656
      %1677 = vmatprep.subr.bf16.mxu0 %v1659
      %1678 = vmatpush1.bf16.msra.mxu0 %v1658
      %1679 = vmatprep.subr.bf16.mxu0 %v1661
      %1680 = vmatpush1.bf16.msra.mxu0 %v1660
      %1681 = vmatprep.subr.bf16.mxu0 %v1663
      %1682 = vmatpush1.bf16.msra.mxu0 %v1662
      %1683 = vmatprep.subr.bf16.mxu0 0
      %1684 = vmatpush1.bf16.msra.mxu0 0
      %1685 = vmatprep.subr.bf16.mxu0 0
      %1686 = vmatpush1.bf16.msra.mxu0 0
      %1687 = vmatprep.subr.bf16.mxu0 0
      %1688 = vmatpush1.bf16.msra.mxu0 0
      %1689 = vmatprep.subr.bf16.mxu0 0
      %1690 = vmatpush1.bf16.msra.mxu0 0
      %1691 = vmatprep.subr.bf16.mxu0 0
      %1692 = vmatpush1.bf16.msra.mxu0 0
      %1693 = vmatprep.subr.bf16.mxu0 0
      %1694 = vmatpush1.bf16.msra.mxu0 0
      %1695 = vmatprep.subr.bf16.mxu0 0
      %1696 = vmatpush1.bf16.msra.mxu0 0
      %1697 = vmatprep.subr.bf16.mxu0 0
      %1698 = vmatpush1.bf16.msra.mxu0 0
      %1699 = vmatprep.subr.bf16.mxu0 0
      %1700 = vmatpush1.bf16.msra.mxu0 0
      %1701 = vmatprep.subr.bf16.mxu0 0
      %1702 = vmatpush1.bf16.msra.mxu0 0
      %1703 = vmatprep.subr.bf16.mxu0 0
      %1704 = vmatpush1.bf16.msra.mxu0 0
      %1705 = vmatprep.subr.bf16.mxu0 0
      %1706 = vmatpush1.bf16.msra.mxu0 0
      %1707 = vmatprep.mubr.bf16.mxu0 0
      %1708 = vmatmul.mubr.bf16.gmra.mrb[0].mxu0 %v1673
      %v1709 = vpop.f32.mrb[0].mxu0
      %v1710 = vadd.f32 %v1625, %v1709
      %v1711 = vpop.f32.mrb[0].mxu0
      %v1712 = vadd.f32 %v1629, %v1711
      %v1713 = vpop.f32.mrb[0].mxu0
      %v1714 = vadd.f32 %v1625, %v1713
      %v1715 = vpop.f32.mrb[0].mxu0
      %v1716 = vadd.f32 %v1629, %v1715
      %1717 = vdwg.mxu0
      %v1718 = vld [vmem:[%s883] sm:$0xff]
      %v1719 = vld [vmem:[%s883 + $0x8] sm:$0xff]
      %v1720 = vld [vmem:[%s883 + $0x10] sm:$0xff]
      %v1721 = vld [vmem:[%s883 + $0x18] sm:$0xff]
      %v1722 = vld [vmem:[%s883 + $0x20] sm:$0xff]
      %v1723 = vld [vmem:[%s883 + $0x28] sm:$0xff]
      %v1724 = vld [vmem:[%s883 + $0x30] sm:$0xff]
      %v1725 = vld [vmem:[%s883 + $0x38] sm:$0xff]
      %v1726 = vld [vmem:[%s891] sm:$0x3]
      %v1728 = vlaneseq
      %v1729 = vshrl.u32 %v1728, 7
      %v1730 = vsub.s32 0, %v1729
      %v1731 = vrot.slane %v1726, %v1730
      %v1732 = vlaneseq
      %v1733 = vshrl.u32 %v1732, 7
      %v1734 = vsub.s32 1, %v1733
      %v1735 = vrot.slane %v1726, %v1734
      %v1746 = vunpack.c.l.b16 %v1718
      %v1747 = vunpack.c.h.b16 %v1718
      %v1748 = vunpack.c.l.b16 %v1719
      %v1749 = vunpack.c.h.b16 %v1719
      %v1750 = vunpack.c.l.b16 %v1720
      %v1751 = vunpack.c.h.b16 %v1720
      %v1752 = vunpack.c.l.b16 %v1721
      %v1753 = vunpack.c.h.b16 %v1721
      %v1754 = vunpack.c.l.b16 %v1722
      %v1755 = vunpack.c.h.b16 %v1722
      %v1756 = vunpack.c.l.b16 %v1723
      %v1757 = vunpack.c.h.b16 %v1723
      %v1758 = vunpack.c.l.b16 %v1724
      %v1759 = vunpack.c.h.b16 %v1724
      %v1760 = vunpack.c.l.b16 %v1725
      %v1761 = vunpack.c.h.b16 %v1725
      %v1762 = vpack.c.b16 %v1748, %v1746
      %v1763 = vpack.c.b16 %v1749, %v1747
      %v1764 = vpack.c.b16 %v1752, %v1750
      %v1765 = vpack.c.b16 %v1753, %v1751
      %v1766 = vpack.c.b16 %v1756, %v1754
      %v1767 = vpack.c.b16 %v1757, %v1755
      %v1768 = vpack.c.b16 %v1760, %v1758
      %v1769 = vpack.c.b16 %v1761, %v1759
      %v1779 = vsel %vm1040, 0, 0
      %1781 = vmatprep.subr.bf16.mxu0 %v1763
      %1782 = vmatpush1.bf16.msra.mxu0 %v1762
      %1783 = vmatprep.subr.bf16.mxu0 %v1765
      %1784 = vmatpush1.bf16.msra.mxu0 %v1764
      %1785 = vmatprep.subr.bf16.mxu0 %v1767
      %1786 = vmatpush1.bf16.msra.mxu0 %v1766
      %1787 = vmatprep.subr.bf16.mxu0 %v1769
      %1788 = vmatpush1.bf16.msra.mxu0 %v1768
      %1789 = vmatprep.subr.bf16.mxu0 0
      %1790 = vmatpush1.bf16.msra.mxu0 0
      %1791 = vmatprep.subr.bf16.mxu0 0
      %1792 = vmatpush1.bf16.msra.mxu0 0
      %1793 = vmatprep.subr.bf16.mxu0 0
      %1794 = vmatpush1.bf16.msra.mxu0 0
      %1795 = vmatprep.subr.bf16.mxu0 0
      %1796 = vmatpush1.bf16.msra.mxu0 0
      %1797 = vmatprep.subr.bf16.mxu0 0
      %1798 = vmatpush1.bf16.msra.mxu0 0
      %1799 = vmatprep.subr.bf16.mxu0 0
      %1800 = vmatpush1.bf16.msra.mxu0 0
      %1801 = vmatprep.subr.bf16.mxu0 0
      %1802 = vmatpush1.bf16.msra.mxu0 0
      %1803 = vmatprep.subr.bf16.mxu0 0
      %1804 = vmatpush1.bf16.msra.mxu0 0
      %1805 = vmatprep.subr.bf16.mxu0 0
      %1806 = vmatpush1.bf16.msra.mxu0 0
      %1807 = vmatprep.subr.bf16.mxu0 0
      %1808 = vmatpush1.bf16.msra.mxu0 0
      %1809 = vmatprep.subr.bf16.mxu0 0
      %1810 = vmatpush1.bf16.msra.mxu0 0
      %1811 = vmatprep.subr.bf16.mxu0 0
      %1812 = vmatpush1.bf16.msra.mxu0 0
      %1813 = vmatprep.mubr.bf16.mxu0 0
      %1814 = vmatmul.mubr.bf16.gmra.mrb[0].mxu0 %v1779
      %v1815 = vpop.f32.mrb[0].mxu0
      %v1816 = vadd.f32 %v1731, %v1815
      %v1817 = vpop.f32.mrb[0].mxu0
      %v1818 = vadd.f32 %v1735, %v1817
      %v1819 = vpop.f32.mrb[0].mxu0
      %v1820 = vpop.f32.mrb[0].mxu0
      %1821 = vdwg.mxu0
      %v1823 = vrot.slane %v1816, 1
      %v1826 = vadd.f32 %v1710, %v1816
      %v1827 = vadd.f32 %v1714, %v1823
      %v1828 = vxor.u32 %v1826, 2147483648
      %v1829 = vxor.u32 %v1827, 2147483648
      %v1830 = vmul.f32 %v1828, 1.442695
      %v1831 = vpow.pop %v1830
      %v1832 = vmul.f32 %v1829, 1.442695
      %v1833 = vpow.pop %v1832
      %v1834 = vadd.f32 %v1831, 1.0
      %v1835 = vadd.f32 %v1833, 1.0
      %v1836 = vrcp.pop %v1834
      %v1837 = vmul.f32 1.0, %v1836
      %v1838 = vrcp.pop %v1835
      %v1839 = vmul.f32 1.0, %v1838
      %v1841 = vrot.slane %v1818, 1
      %v1844 = vmul.f32 %v1837, %v1818
      %v1845 = vmul.f32 %v1839, %v1841
      %v1846 = vadd.f32 %v1712, %v1844
      %v1847 = vadd.f32 %v1716, %v1845
      %v1848 = vtanh.pop %v1846
      %v1849 = vtanh.pop %v1847
      %v1850 = vsub.f32 1.0, %v1837
      %v1851 = vsub.f32 1.0, %v1839
      %1854 = vrot.lane.b32.xlu0 %v1848, 64
      %v1855 = vpop.permute.xlu0 %1854
      %1856 = vrot.lane.b32.xlu0 %v1849, 64
      %v1857 = vpop.permute.xlu0 %1856
      %v1860 = vmul.f32 %v1850, %v1855
      %v1861 = vmul.f32 %v1851, %v1857
      %v1862 = vmul.f32 %v1837, 0.0
      %v1863 = vmul.f32 %v1839, 0.0
      %v1864 = vadd.f32 %v1860, %v1862
      %v1865 = vadd.f32 %v1861, %v1863
      %v1866 = vpack.c.bf16 %v1864, %v1864
      %v1867 = vpack.c.bf16 %v1865, %v1865
      %v1870 = vunpack.c.l.b16 %v1866
      %v1871 = vunpack.c.l.b16 %v1867
      %v1872 = vrot.slane %v1871, 7
      %vm1873 = vcmask 1041409
      %v1874 = vsel %vm1873, %v1872, %v1870
      %v1875 = vpack.c.b16 %v1874, %v1874
      %1876 = vrot.lane.b32.xlu0 %v1875, 64
      %v1877 = vpop.permute.xlu0 %1876
      %v1879 = vsel %vm1040, %v1877, 0
      %1881 = vmatprep.subr.bf16.mxu0 %v1763
      %1882 = vmatpush1.bf16.msra.mxu0 %v1762
      %1883 = vmatprep.subr.bf16.mxu0 %v1765
      %1884 = vmatpush1.bf16.msra.mxu0 %v1764
      %1885 = vmatprep.subr.bf16.mxu0 %v1767
      %1886 = vmatpush1.bf16.msra.mxu0 %v1766
      %1887 = vmatprep.subr.bf16.mxu0 %v1769
      %1888 = vmatpush1.bf16.msra.mxu0 %v1768
      %1889 = vmatprep.subr.bf16.mxu0 0
      %1890 = vmatpush1.bf16.msra.mxu0 0
      %1891 = vmatprep.subr.bf16.mxu0 0
      %1892 = vmatpush1.bf16.msra.mxu0 0
      %1893 = vmatprep.subr.bf16.mxu0 0
      %1894 = vmatpush1.bf16.msra.mxu0 0
      %1895 = vmatprep.subr.bf16.mxu0 0
      %1896 = vmatpush1.bf16.msra.mxu0 0
      %1897 = vmatprep.subr.bf16.mxu0 0
      %1898 = vmatpush1.bf16.msra.mxu0 0
      %1899 = vmatprep.subr.bf16.mxu0 0
      %1900 = vmatpush1.bf16.msra.mxu0 0
      %1901 = vmatprep.subr.bf16.mxu0 0
      %1902 = vmatpush1.bf16.msra.mxu0 0
      %1903 = vmatprep.subr.bf16.mxu0 0
      %1904 = vmatpush1.bf16.msra.mxu0 0
      %1905 = vmatprep.subr.bf16.mxu0 0
      %1906 = vmatpush1.bf16.msra.mxu0 0
      %1907 = vmatprep.subr.bf16.mxu0 0
      %1908 = vmatpush1.bf16.msra.mxu0 0
      %1909 = vmatprep.subr.bf16.mxu0 0
      %1910 = vmatpush1.bf16.msra.mxu0 0
      %1911 = vmatprep.subr.bf16.mxu0 0
      %1912 = vmatpush1.bf16.msra.mxu0 0
      %1913 = vmatprep.mubr.bf16.mxu0 0
      %1914 = vmatmul.mubr.bf16.gmra.mrb[0].mxu0 %v1879
      %v1915 = vpop.f32.mrb[0].mxu0
      %v1916 = vadd.f32 %v1731, %v1915
      %v1917 = vpop.f32.mrb[0].mxu0
      %v1918 = vadd.f32 %v1735, %v1917
      %v1919 = vpop.f32.mrb[0].mxu0
      %v1920 = vpop.f32.mrb[0].mxu0
      %1921 = vdwg.mxu0
      %v1923 = vrot.slane %v1916, 7
      %v1926 = vadd.f32 %v1710, %v1923
      %v1927 = vadd.f32 %v1714, %v1916
      %v1928 = vxor.u32 %v1926, 2147483648
      %v1929 = vxor.u32 %v1927, 2147483648
      %v1930 = vmul.f32 %v1928, 1.442695
      %v1931 = vpow.pop %v1930
      %v1932 = vmul.f32 %v1929, 1.442695
      %v1933 = vpow.pop %v1932
      %v1934 = vadd.f32 %v1931, 1.0
      %v1935 = vadd.f32 %v1933, 1.0
      %v1936 = vrcp.pop %v1934
      %v1937 = vmul.f32 1.0, %v1936
      %v1938 = vrcp.pop %v1935
      %v1939 = vmul.f32 1.0, %v1938
      %v1941 = vrot.slane %v1918, 7
      %v1944 = vmul.f32 %v1937, %v1941
      %v1945 = vmul.f32 %v1939, %v1918
      %v1946 = vadd.f32 %v1712, %v1944
      %v1947 = vadd.f32 %v1716, %v1945
      %v1948 = vtanh.pop %v1946
      %v1949 = vtanh.pop %v1947
      %v1950 = vsub.f32 1.0, %v1937
      %v1951 = vsub.f32 1.0, %v1939
      %1954 = vrot.lane.b32.xlu0 %v1948, 64
      %v1955 = vpop.permute.xlu0 %1954
      %1956 = vrot.lane.b32.xlu0 %v1949, 64
      %v1957 = vpop.permute.xlu0 %1956
      %v1960 = vmul.f32 %v1950, %v1955
      %v1961 = vmul.f32 %v1951, %v1957
      %v1964 = vrot.slane %v1864, 7
      %v1965 = vrot.slane %v1865, 7
      %v1968 = vmul.f32 %v1937, %v1964
      %v1969 = vmul.f32 %v1939, %v1965
      %v1970 = vadd.f32 %v1960, %v1968
      %v1971 = vadd.f32 %v1961, %v1969
      %v1972 = vpack.c.bf16 %v1970, %v1970
      %v1973 = vpack.c.bf16 %v1971, %v1971
      %v1976 = vunpack.c.l.b16 %v1972
      %v1977 = vunpack.c.l.b16 %v1973
      %v1978 = vrot.slane %v1976, 1
      %v1979 = vsel %vm1873, %v1977, %v1978
      %v1980 = vpack.c.b16 %v1979, %v1979
      %1981 = vrot.lane.b32.xlu0 %v1980, 64
      %v1982 = vpop.permute.xlu0 %1981
      %v1984 = vsel %vm1040, %v1982, 0
      %1986 = vmatprep.subr.bf16.mxu0 %v1763
      %1987 = vmatpush1.bf16.msra.mxu0 %v1762
      %1988 = vmatprep.subr.bf16.mxu0 %v1765
      %1989 = vmatpush1.bf16.msra.mxu0 %v1764
      %1990 = vmatprep.subr.bf16.mxu0 %v1767
      %1991 = vmatpush1.bf16.msra.mxu0 %v1766
      %1992 = vmatprep.subr.bf16.mxu0 %v1769
      %1993 = vmatpush1.bf16.msra.mxu0 %v1768
      %1994 = vmatprep.subr.bf16.mxu0 0
      %1995 = vmatpush1.bf16.msra.mxu0 0
      %1996 = vmatprep.subr.bf16.mxu0 0
      %1997 = vmatpush1.bf16.msra.mxu0 0
      %1998 = vmatprep.subr.bf16.mxu0 0
      %1999 = vmatpush1.bf16.msra.mxu0 0
      %2000 = vmatprep.subr.bf16.mxu0 0
      %2001 = vmatpush1.bf16.msra.mxu0 0
      %2002 = vmatprep.subr.bf16.mxu0 0
      %2003 = vmatpush1.bf16.msra.mxu0 0
      %2004 = vmatprep.subr.bf16.mxu0 0
      %2005 = vmatpush1.bf16.msra.mxu0 0
      %2006 = vmatprep.subr.bf16.mxu0 0
      %2007 = vmatpush1.bf16.msra.mxu0 0
      %2008 = vmatprep.subr.bf16.mxu0 0
      %2009 = vmatpush1.bf16.msra.mxu0 0
      %2010 = vmatprep.subr.bf16.mxu0 0
      %2011 = vmatpush1.bf16.msra.mxu0 0
      %2012 = vmatprep.subr.bf16.mxu0 0
      %2013 = vmatpush1.bf16.msra.mxu0 0
      %2014 = vmatprep.subr.bf16.mxu0 0
      %2015 = vmatpush1.bf16.msra.mxu0 0
      %2016 = vmatprep.subr.bf16.mxu0 0
      %2017 = vmatpush1.bf16.msra.mxu0 0
      %2018 = vmatprep.mubr.bf16.mxu0 0
      %2019 = vmatmul.mubr.bf16.gmra.mrb[0].mxu0 %v1984
      %v2020 = vpop.f32.mrb[0].mxu0
      %v2021 = vadd.f32 %v1731, %v2020
      %v2022 = vpop.f32.mrb[0].mxu0
      %v2023 = vadd.f32 %v1735, %v2022
      %v2024 = vpop.f32.mrb[0].mxu0
      %v2025 = vpop.f32.mrb[0].mxu0
      %2026 = vdwg.mxu0
      %v2028 = vrot.slane %v2021, 6
      %v2029 = vrot.slane %v2021, 7
      %v2032 = vadd.f32 %v1710, %v2028
      %v2033 = vadd.f32 %v1714, %v2029
      %v2034 = vxor.u32 %v2032, 2147483648
      %v2035 = vxor.u32 %v2033, 2147483648
      %v2036 = vmul.f32 %v2034, 1.442695
      %v2037 = vpow.pop %v2036
      %v2038 = vmul.f32 %v2035, 1.442695
      %v2039 = vpow.pop %v2038
      %v2040 = vadd.f32 %v2037, 1.0
      %v2041 = vadd.f32 %v2039, 1.0
      %v2042 = vrcp.pop %v2040
      %v2043 = vmul.f32 1.0, %v2042
      %v2044 = vrcp.pop %v2041
      %v2045 = vmul.f32 1.0, %v2044
      %v2047 = vrot.slane %v2023, 6
      %v2048 = vrot.slane %v2023, 7
      %v2051 = vmul.f32 %v2043, %v2047
      %v2052 = vmul.f32 %v2045, %v2048
      %v2053 = vadd.f32 %v1712, %v2051
      %v2054 = vadd.f32 %v1716, %v2052
      %v2055 = vtanh.pop %v2053
      %v2056 = vtanh.pop %v2054
      %v2057 = vsub.f32 1.0, %v2043
      %v2058 = vsub.f32 1.0, %v2045
      %2061 = vrot.lane.b32.xlu0 %v2055, 64
      %v2062 = vpop.permute.xlu0 %2061
      %2063 = vrot.lane.b32.xlu0 %v2056, 64
      %v2064 = vpop.permute.xlu0 %2063
      %v2067 = vmul.f32 %v2057, %v2062
      %v2068 = vmul.f32 %v2058, %v2064
      %v2071 = vrot.slane %v1970, 7
      %v2072 = vrot.slane %v1971, 7
      %v2075 = vmul.f32 %v2043, %v2071
      %v2076 = vmul.f32 %v2045, %v2072
      %v2077 = vadd.f32 %v2067, %v2075
      %v2078 = vadd.f32 %v2068, %v2076
      %v2079 = vpack.c.bf16 %v2077, %v2077
      %v2080 = vpack.c.bf16 %v2078, %v2078
      %v2083 = vunpack.c.l.b16 %v2079
      %v2084 = vunpack.c.l.b16 %v2080
      %v2085 = vrot.slane %v2083, 2
      %v2086 = vrot.slane %v2084, 1
      %v2087 = vsel %vm1873, %v2086, %v2085
      %v2088 = vpack.c.b16 %v2087, %v2087
      %2089 = vrot.lane.b32.xlu0 %v2088, 64
      %v2090 = vpop.permute.xlu0 %2089
      %v2092 = vsel %vm1040, %v2090, 0
      %2094 = vmatprep.subr.bf16.mxu0 %v1763
      %2095 = vmatpush1.bf16.msra.mxu0 %v1762
      %2096 = vmatprep.subr.bf16.mxu0 %v1765
      %2097 = vmatpush1.bf16.msra.mxu0 %v1764
      %2098 = vmatprep.subr.bf16.mxu0 %v1767
      %2099 = vmatpush1.bf16.msra.mxu0 %v1766
      %2100 = vmatprep.subr.bf16.mxu0 %v1769
      %2101 = vmatpush1.bf16.msra.mxu0 %v1768
      %2102 = vmatprep.subr.bf16.mxu0 0
      %2103 = vmatpush1.bf16.msra.mxu0 0
      %2104 = vmatprep.subr.bf16.mxu0 0
      %2105 = vmatpush1.bf16.msra.mxu0 0
      %2106 = vmatprep.subr.bf16.mxu0 0
      %2107 = vmatpush1.bf16.msra.mxu0 0
      %2108 = vmatprep.subr.bf16.mxu0 0
      %2109 = vmatpush1.bf16.msra.mxu0 0
      %2110 = vmatprep.subr.bf16.mxu0 0
      %2111 = vmatpush1.bf16.msra.mxu0 0
      %2112 = vmatprep.subr.bf16.mxu0 0
      %2113 = vmatpush1.bf16.msra.mxu0 0
      %2114 = vmatprep.subr.bf16.mxu0 0
      %2115 = vmatpush1.bf16.msra.mxu0 0
      %2116 = vmatprep.subr.bf16.mxu0 0
      %2117 = vmatpush1.bf16.msra.mxu0 0
      %2118 = vmatprep.subr.bf16.mxu0 0
      %2119 = vmatpush1.bf16.msra.mxu0 0
      %2120 = vmatprep.subr.bf16.mxu0 0
      %2121 = vmatpush1.bf16.msra.mxu0 0
      %2122 = vmatprep.subr.bf16.mxu0 0
      %2123 = vmatpush1.bf16.msra.mxu0 0
      %2124 = vmatprep.subr.bf16.mxu0 0
      %2125 = vmatpush1.bf16.msra.mxu0 0
      %2126 = vmatprep.mubr.bf16.mxu0 0
      %2127 = vmatmul.mubr.bf16.gmra.mrb[0].mxu0 %v2092
      %v2128 = vpop.f32.mrb[0].mxu0
      %v2129 = vadd.f32 %v1731, %v2128
      %v2130 = vpop.f32.mrb[0].mxu0
      %v2131 = vadd.f32 %v1735, %v2130
      %v2132 = vpop.f32.mrb[0].mxu0
      %v2133 = vpop.f32.mrb[0].mxu0
      %2134 = vdwg.mxu0
      %v2136 = vrot.slane %v2129, 5
      %v2137 = vrot.slane %v2129, 6
      %v2140 = vadd.f32 %v1710, %v2136
      %v2141 = vadd.f32 %v1714, %v2137
      %v2142 = vxor.u32 %v2140, 2147483648
      %v2143 = vxor.u32 %v2141, 2147483648
      %v2144 = vmul.f32 %v2142, 1.442695
      %v2145 = vpow.pop %v2144
      %v2146 = vmul.f32 %v2143, 1.442695
      %v2147 = vpow.pop %v2146
      %v2148 = vadd.f32 %v2145, 1.0
      %v2149 = vadd.f32 %v2147, 1.0
      %v2150 = vrcp.pop %v2148
      %v2151 = vmul.f32 1.0, %v2150
      %v2152 = vrcp.pop %v2149
      %v2153 = vmul.f32 1.0, %v2152
      %v2155 = vrot.slane %v2131, 5
      %v2156 = vrot.slane %v2131, 6
      %v2159 = vmul.f32 %v2151, %v2155
      %v2160 = vmul.f32 %v2153, %v2156
      %v2161 = vadd.f32 %v1712, %v2159
      %v2162 = vadd.f32 %v1716, %v2160
      %v2163 = vtanh.pop %v2161
      %v2164 = vtanh.pop %v2162
      %v2165 = vsub.f32 1.0, %v2151
      %v2166 = vsub.f32 1.0, %v2153
      %2169 = vrot.lane.b32.xlu0 %v2163, 64
      %v2170 = vpop.permute.xlu0 %2169
      %2171 = vrot.lane.b32.xlu0 %v2164, 64
      %v2172 = vpop.permute.xlu0 %2171
      %v2175 = vmul.f32 %v2165, %v2170
      %v2176 = vmul.f32 %v2166, %v2172
      %v2179 = vrot.slane %v2077, 7
      %v2180 = vrot.slane %v2078, 7
      %v2183 = vmul.f32 %v2151, %v2179
      %v2184 = vmul.f32 %v2153, %v2180
      %v2185 = vadd.f32 %v2175, %v2183
      %v2186 = vadd.f32 %v2176, %v2184
      %v2187 = vpack.c.bf16 %v2185, %v2185
      %v2188 = vpack.c.bf16 %v2186, %v2186
      %v2191 = vunpack.c.l.b16 %v2187
      %v2192 = vunpack.c.l.b16 %v2188
      %v2193 = vrot.slane %v2191, 3
      %v2194 = vrot.slane %v2192, 2
      %v2195 = vsel %vm1873, %v2194, %v2193
      %v2196 = vpack.c.b16 %v2195, %v2195
      %2197 = vrot.lane.b32.xlu0 %v2196, 64
      %v2198 = vpop.permute.xlu0 %2197
      %v2200 = vsel %vm1040, %v2198, 0
      %2202 = vmatprep.subr.bf16.mxu0 %v1763
      %2203 = vmatpush1.bf16.msra.mxu0 %v1762
      %2204 = vmatprep.subr.bf16.mxu0 %v1765
      %2205 = vmatpush1.bf16.msra.mxu0 %v1764
      %2206 = vmatprep.subr.bf16.mxu0 %v1767
      %2207 = vmatpush1.bf16.msra.mxu0 %v1766
      %2208 = vmatprep.subr.bf16.mxu0 %v1769
      %2209 = vmatpush1.bf16.msra.mxu0 %v1768
      %2210 = vmatprep.subr.bf16.mxu0 0
      %2211 = vmatpush1.bf16.msra.mxu0 0
      %2212 = vmatprep.subr.bf16.mxu0 0
      %2213 = vmatpush1.bf16.msra.mxu0 0
      %2214 = vmatprep.subr.bf16.mxu0 0
      %2215 = vmatpush1.bf16.msra.mxu0 0
      %2216 = vmatprep.subr.bf16.mxu0 0
      %2217 = vmatpush1.bf16.msra.mxu0 0
      %2218 = vmatprep.subr.bf16.mxu0 0
      %2219 = vmatpush1.bf16.msra.mxu0 0
      %2220 = vmatprep.subr.bf16.mxu0 0
      %2221 = vmatpush1.bf16.msra.mxu0 0
      %2222 = vmatprep.subr.bf16.mxu0 0
      %2223 = vmatpush1.bf16.msra.mxu0 0
      %2224 = vmatprep.subr.bf16.mxu0 0
      %2225 = vmatpush1.bf16.msra.mxu0 0
      %2226 = vmatprep.subr.bf16.mxu0 0
      %2227 = vmatpush1.bf16.msra.mxu0 0
      %2228 = vmatprep.subr.bf16.mxu0 0
      %2229 = vmatpush1.bf16.msra.mxu0 0
      %2230 = vmatprep.subr.bf16.mxu0 0
      %2231 = vmatpush1.bf16.msra.mxu0 0
      %2232 = vmatprep.subr.bf16.mxu0 0
      %2233 = vmatpush1.bf16.msra.mxu0 0
      %2234 = vmatprep.mubr.bf16.mxu0 0
      %2235 = vmatmul.mubr.bf16.gmra.mrb[0].mxu0 %v2200
      %v2236 = vpop.f32.mrb[0].mxu0
      %v2237 = vadd.f32 %v1731, %v2236
      %v2238 = vpop.f32.mrb[0].mxu0
      %v2239 = vadd.f32 %v1735, %v2238
      %v2240 = vpop.f32.mrb[0].mxu0
      %v2241 = vpop.f32.mrb[0].mxu0
      %2242 = vdwg.mxu0
      %v2244 = vrot.slane %v2237, 4
      %v2245 = vrot.slane %v2237, 5
      %v2248 = vadd.f32 %v1710, %v2244
      %v2249 = vadd.f32 %v1714, %v2245
      %v2250 = vxor.u32 %v2248, 2147483648
      %v2251 = vxor.u32 %v2249, 2147483648
      %v2252 = vmul.f32 %v2250, 1.442695
      %v2253 = vpow.pop %v2252
      %v2254 = vmul.f32 %v2251, 1.442695
      %v2255 = vpow.pop %v2254
      %v2256 = vadd.f32 %v2253, 1.0
      %v2257 = vadd.f32 %v2255, 1.0
      %v2258 = vrcp.pop %v2256
      %v2259 = vmul.f32 1.0, %v2258
      %v2260 = vrcp.pop %v2257
      %v2261 = vmul.f32 1.0, %v2260
      %v2263 = vrot.slane %v2239, 4
      %v2264 = vrot.slane %v2239, 5
      %v2267 = vmul.f32 %v2259, %v2263
      %v2268 = vmul.f32 %v2261, %v2264
      %v2269 = vadd.f32 %v1712, %v2267
      %v2270 = vadd.f32 %v1716, %v2268
      %v2271 = vtanh.pop %v2269
      %v2272 = vtanh.pop %v2270
      %v2273 = vsub.f32 1.0, %v2259
      %v2274 = vsub.f32 1.0, %v2261
      %2277 = vrot.lane.b32.xlu0 %v2271, 64
      %v2278 = vpop.permute.xlu0 %2277
      %2279 = vrot.lane.b32.xlu0 %v2272, 64
      %v2280 = vpop.permute.xlu0 %2279
      %v2283 = vmul.f32 %v2273, %v2278
      %v2284 = vmul.f32 %v2274, %v2280
      %v2287 = vrot.slane %v2185, 7
      %v2288 = vrot.slane %v2186, 7
      %v2291 = vmul.f32 %v2259, %v2287
      %v2292 = vmul.f32 %v2261, %v2288
      %v2293 = vadd.f32 %v2283, %v2291
      %v2294 = vadd.f32 %v2284, %v2292
      %v2295 = vpack.c.bf16 %v2293, %v2293
      %v2296 = vpack.c.bf16 %v2294, %v2294
      %v2299 = vunpack.c.l.b16 %v2295
      %v2300 = vunpack.c.l.b16 %v2296
      %v2301 = vrot.slane %v2299, 4
      %v2302 = vrot.slane %v2300, 3
      %v2303 = vsel %vm1873, %v2302, %v2301
      %v2304 = vpack.c.b16 %v2303, %v2303
      %2305 = vrot.lane.b32.xlu0 %v2304, 64
      %v2306 = vpop.permute.xlu0 %2305
      %v2308 = vsel %vm1040, %v2306, 0
      %2310 = vmatprep.subr.bf16.mxu0 %v1763
      %2311 = vmatpush1.bf16.msra.mxu0 %v1762
      %2312 = vmatprep.subr.bf16.mxu0 %v1765
      %2313 = vmatpush1.bf16.msra.mxu0 %v1764
      %2314 = vmatprep.subr.bf16.mxu0 %v1767
      %2315 = vmatpush1.bf16.msra.mxu0 %v1766
      %2316 = vmatprep.subr.bf16.mxu0 %v1769
      %2317 = vmatpush1.bf16.msra.mxu0 %v1768
      %2318 = vmatprep.subr.bf16.mxu0 0
      %2319 = vmatpush1.bf16.msra.mxu0 0
      %2320 = vmatprep.subr.bf16.mxu0 0
      %2321 = vmatpush1.bf16.msra.mxu0 0
      %2322 = vmatprep.subr.bf16.mxu0 0
      %2323 = vmatpush1.bf16.msra.mxu0 0
      %2324 = vmatprep.subr.bf16.mxu0 0
      %2325 = vmatpush1.bf16.msra.mxu0 0
      %2326 = vmatprep.subr.bf16.mxu0 0
      %2327 = vmatpush1.bf16.msra.mxu0 0
      %2328 = vmatprep.subr.bf16.mxu0 0
      %2329 = vmatpush1.bf16.msra.mxu0 0
      %2330 = vmatprep.subr.bf16.mxu0 0
      %2331 = vmatpush1.bf16.msra.mxu0 0
      %2332 = vmatprep.subr.bf16.mxu0 0
      %2333 = vmatpush1.bf16.msra.mxu0 0
      %2334 = vmatprep.subr.bf16.mxu0 0
      %2335 = vmatpush1.bf16.msra.mxu0 0
      %2336 = vmatprep.subr.bf16.mxu0 0
      %2337 = vmatpush1.bf16.msra.mxu0 0
      %2338 = vmatprep.subr.bf16.mxu0 0
      %2339 = vmatpush1.bf16.msra.mxu0 0
      %2340 = vmatprep.subr.bf16.mxu0 0
      %2341 = vmatpush1.bf16.msra.mxu0 0
      %2342 = vmatprep.mubr.bf16.mxu0 0
      %2343 = vmatmul.mubr.bf16.gmra.mrb[0].mxu0 %v2308
      %v2344 = vpop.f32.mrb[0].mxu0
      %v2345 = vadd.f32 %v1731, %v2344
      %v2346 = vpop.f32.mrb[0].mxu0
      %v2347 = vadd.f32 %v1735, %v2346
      %v2348 = vpop.f32.mrb[0].mxu0
      %v2349 = vpop.f32.mrb[0].mxu0
      %2350 = vdwg.mxu0
      %v2352 = vrot.slane %v2345, 3
      %v2353 = vrot.slane %v2345, 4
      %v2356 = vadd.f32 %v1710, %v2352
      %v2357 = vadd.f32 %v1714, %v2353
      %v2358 = vxor.u32 %v2356, 2147483648
      %v2359 = vxor.u32 %v2357, 2147483648
      %v2360 = vmul.f32 %v2358, 1.442695
      %v2361 = vpow.pop %v2360
      %v2362 = vmul.f32 %v2359, 1.442695
      %v2363 = vpow.pop %v2362
      %v2364 = vadd.f32 %v2361, 1.0
      %v2365 = vadd.f32 %v2363, 1.0
      %v2366 = vrcp.pop %v2364
      %v2367 = vmul.f32 1.0, %v2366
      %v2368 = vrcp.pop %v2365
      %v2369 = vmul.f32 1.0, %v2368
      %v2371 = vrot.slane %v2347, 3
      %v2372 = vrot.slane %v2347, 4
      %v2375 = vmul.f32 %v2367, %v2371
      %v2376 = vmul.f32 %v2369, %v2372
      %v2377 = vadd.f32 %v1712, %v2375
      %v2378 = vadd.f32 %v1716, %v2376
      %v2379 = vtanh.pop %v2377
      %v2380 = vtanh.pop %v2378
      %v2381 = vsub.f32 1.0, %v2367
      %v2382 = vsub.f32 1.0, %v2369
      %2385 = vrot.lane.b32.xlu0 %v2379, 64
      %v2386 = vpop.permute.xlu0 %2385
      %2387 = vrot.lane.b32.xlu0 %v2380, 64
      %v2388 = vpop.permute.xlu0 %2387
      %v2391 = vmul.f32 %v2381, %v2386
      %v2392 = vmul.f32 %v2382, %v2388
      %v2395 = vrot.slane %v2293, 7
      %v2396 = vrot.slane %v2294, 7
      %v2399 = vmul.f32 %v2367, %v2395
      %v2400 = vmul.f32 %v2369, %v2396
      %v2401 = vadd.f32 %v2391, %v2399
      %v2402 = vadd.f32 %v2392, %v2400
      %v2403 = vpack.c.bf16 %v2401, %v2401
      %v2404 = vpack.c.bf16 %v2402, %v2402
      %v2407 = vunpack.c.l.b16 %v2403
      %v2408 = vunpack.c.l.b16 %v2404
      %v2409 = vrot.slane %v2407, 5
      %v2410 = vrot.slane %v2408, 4
      %v2411 = vsel %vm1873, %v2410, %v2409
      %v2412 = vpack.c.b16 %v2411, %v2411
      %2413 = vrot.lane.b32.xlu0 %v2412, 64
      %v2414 = vpop.permute.xlu0 %2413
      %v2416 = vsel %vm1040, %v2414, 0
      %2418 = vmatprep.subr.bf16.mxu0 %v1763
      %2419 = vmatpush1.bf16.msra.mxu0 %v1762
      %2420 = vmatprep.subr.bf16.mxu0 %v1765
      %2421 = vmatpush1.bf16.msra.mxu0 %v1764
      %2422 = vmatprep.subr.bf16.mxu0 %v1767
      %2423 = vmatpush1.bf16.msra.mxu0 %v1766
      %2424 = vmatprep.subr.bf16.mxu0 %v1769
      %2425 = vmatpush1.bf16.msra.mxu0 %v1768
      %2426 = vmatprep.subr.bf16.mxu0 0
      %2427 = vmatpush1.bf16.msra.mxu0 0
      %2428 = vmatprep.subr.bf16.mxu0 0
      %2429 = vmatpush1.bf16.msra.mxu0 0
      %2430 = vmatprep.subr.bf16.mxu0 0
      %2431 = vmatpush1.bf16.msra.mxu0 0
      %2432 = vmatprep.subr.bf16.mxu0 0
      %2433 = vmatpush1.bf16.msra.mxu0 0
      %2434 = vmatprep.subr.bf16.mxu0 0
      %2435 = vmatpush1.bf16.msra.mxu0 0
      %2436 = vmatprep.subr.bf16.mxu0 0
      %2437 = vmatpush1.bf16.msra.mxu0 0
      %2438 = vmatprep.subr.bf16.mxu0 0
      %2439 = vmatpush1.bf16.msra.mxu0 0
      %2440 = vmatprep.subr.bf16.mxu0 0
      %2441 = vmatpush1.bf16.msra.mxu0 0
      %2442 = vmatprep.subr.bf16.mxu0 0
      %2443 = vmatpush1.bf16.msra.mxu0 0
      %2444 = vmatprep.subr.bf16.mxu0 0
      %2445 = vmatpush1.bf16.msra.mxu0 0
      %2446 = vmatprep.subr.bf16.mxu0 0
      %2447 = vmatpush1.bf16.msra.mxu0 0
      %2448 = vmatprep.subr.bf16.mxu0 0
      %2449 = vmatpush1.bf16.msra.mxu0 0
      %2450 = vmatprep.mubr.bf16.mxu0 0
      %2451 = vmatmul.mubr.bf16.gmra.mrb[0].mxu0 %v2416
      %v2452 = vpop.f32.mrb[0].mxu0
      %v2453 = vadd.f32 %v1731, %v2452
      %v2454 = vpop.f32.mrb[0].mxu0
      %v2455 = vadd.f32 %v1735, %v2454
      %v2456 = vpop.f32.mrb[0].mxu0
      %v2457 = vpop.f32.mrb[0].mxu0
      %2458 = vdwg.mxu0
      %v2460 = vrot.slane %v2453, 2
      %v2461 = vrot.slane %v2453, 3
      %v2464 = vadd.f32 %v1710, %v2460
      %v2465 = vadd.f32 %v1714, %v2461
      %v2466 = vxor.u32 %v2464, 2147483648
      %v2467 = vxor.u32 %v2465, 2147483648
      %v2468 = vmul.f32 %v2466, 1.442695
      %v2469 = vpow.pop %v2468
      %v2470 = vmul.f32 %v2467, 1.442695
      %v2471 = vpow.pop %v2470
      %v2472 = vadd.f32 %v2469, 1.0
      %v2473 = vadd.f32 %v2471, 1.0
      %v2474 = vrcp.pop %v2472
      %v2475 = vmul.f32 1.0, %v2474
      %v2476 = vrcp.pop %v2473
      %v2477 = vmul.f32 1.0, %v2476
      %v2479 = vrot.slane %v2455, 2
      %v2480 = vrot.slane %v2455, 3
      %v2483 = vmul.f32 %v2475, %v2479
      %v2484 = vmul.f32 %v2477, %v2480
      %v2485 = vadd.f32 %v1712, %v2483
      %v2486 = vadd.f32 %v1716, %v2484
      %v2487 = vtanh.pop %v2485
      %v2488 = vtanh.pop %v2486
      %v2489 = vsub.f32 1.0, %v2475
      %v2490 = vsub.f32 1.0, %v2477
      %2493 = vrot.lane.b32.xlu0 %v2487, 64
      %v2494 = vpop.permute.xlu0 %2493
      %2495 = vrot.lane.b32.xlu0 %v2488, 64
      %v2496 = vpop.permute.xlu0 %2495
      %v2499 = vmul.f32 %v2489, %v2494
      %v2500 = vmul.f32 %v2490, %v2496
      %v2503 = vrot.slane %v2401, 7
      %v2504 = vrot.slane %v2402, 7
      %v2507 = vmul.f32 %v2475, %v2503
      %v2508 = vmul.f32 %v2477, %v2504
      %v2509 = vadd.f32 %v2499, %v2507
      %v2510 = vadd.f32 %v2500, %v2508
      %v2511 = vpack.c.bf16 %v2509, %v2509
      %v2512 = vpack.c.bf16 %v2510, %v2510
      %v2515 = vunpack.c.l.b16 %v2511
      %v2516 = vunpack.c.l.b16 %v2512
      %v2517 = vrot.slane %v2515, 6
      %v2518 = vrot.slane %v2516, 5
      %v2519 = vsel %vm1873, %v2518, %v2517
      %v2520 = vpack.c.b16 %v2519, %v2519
      %2521 = vrot.lane.b32.xlu0 %v2520, 64
      %v2522 = vpop.permute.xlu0 %2521
      %v2524 = vsel %vm1040, %v2522, 0
      %2526 = vmatprep.subr.bf16.mxu0 %v1763
      %2527 = vmatpush1.bf16.msra.mxu0 %v1762
      %2528 = vmatprep.subr.bf16.mxu0 %v1765
      %2529 = vmatpush1.bf16.msra.mxu0 %v1764
      %2530 = vmatprep.subr.bf16.mxu0 %v1767
      %2531 = vmatpush1.bf16.msra.mxu0 %v1766
      %2532 = vmatprep.subr.bf16.mxu0 %v1769
      %2533 = vmatpush1.bf16.msra.mxu0 %v1768
      %2534 = vmatprep.subr.bf16.mxu0 0
      %2535 = vmatpush1.bf16.msra.mxu0 0
      %2536 = vmatprep.subr.bf16.mxu0 0
      %2537 = vmatpush1.bf16.msra.mxu0 0
      %2538 = vmatprep.subr.bf16.mxu0 0
      %2539 = vmatpush1.bf16.msra.mxu0 0
      %2540 = vmatprep.subr.bf16.mxu0 0
      %2541 = vmatpush1.bf16.msra.mxu0 0
      %2542 = vmatprep.subr.bf16.mxu0 0
      %2543 = vmatpush1.bf16.msra.mxu0 0
      %2544 = vmatprep.subr.bf16.mxu0 0
      %2545 = vmatpush1.bf16.msra.mxu0 0
      %2546 = vmatprep.subr.bf16.mxu0 0
      %2547 = vmatpush1.bf16.msra.mxu0 0
      %2548 = vmatprep.subr.bf16.mxu0 0
      %2549 = vmatpush1.bf16.msra.mxu0 0
      %2550 = vmatprep.subr.bf16.mxu0 0
      %2551 = vmatpush1.bf16.msra.mxu0 0
      %2552 = vmatprep.subr.bf16.mxu0 0
      %2553 = vmatpush1.bf16.msra.mxu0 0
      %2554 = vmatprep.subr.bf16.mxu0 0
      %2555 = vmatpush1.bf16.msra.mxu0 0
      %2556 = vmatprep.subr.bf16.mxu0 0
      %2557 = vmatpush1.bf16.msra.mxu0 0
      %2558 = vmatprep.mubr.bf16.mxu0 0
      %2559 = vmatmul.mubr.bf16.gmra.mrb[0].mxu0 %v2524
      %v2560 = vpop.f32.mrb[0].mxu0
      %v2561 = vadd.f32 %v1731, %v2560
      %v2562 = vpop.f32.mrb[0].mxu0
      %v2563 = vadd.f32 %v1735, %v2562
      %v2564 = vpop.f32.mrb[0].mxu0
      %v2565 = vpop.f32.mrb[0].mxu0
      %2566 = vdwg.mxu0
      %v2568 = vrot.slane %v2561, 1
      %v2569 = vrot.slane %v2561, 2
      %v2572 = vadd.f32 %v1710, %v2568
      %v2573 = vadd.f32 %v1714, %v2569
      %v2574 = vxor.u32 %v2572, 2147483648
      %v2575 = vxor.u32 %v2573, 2147483648
      %v2576 = vmul.f32 %v2574, 1.442695
      %v2577 = vpow.pop %v2576
      %v2578 = vmul.f32 %v2575, 1.442695
      %v2579 = vpow.pop %v2578
      %v2580 = vadd.f32 %v2577, 1.0
      %v2581 = vadd.f32 %v2579, 1.0
      %v2582 = vrcp.pop %v2580
      %v2583 = vmul.f32 1.0, %v2582
      %v2584 = vrcp.pop %v2581
      %v2585 = vmul.f32 1.0, %v2584
      %v2587 = vrot.slane %v2563, 1
      %v2588 = vrot.slane %v2563, 2
      %v2591 = vmul.f32 %v2583, %v2587
      %v2592 = vmul.f32 %v2585, %v2588
      %v2593 = vadd.f32 %v1712, %v2591
      %v2594 = vadd.f32 %v1716, %v2592
      %v2595 = vtanh.pop %v2593
      %v2596 = vtanh.pop %v2594
      %v2597 = vsub.f32 1.0, %v2583
      %v2598 = vsub.f32 1.0, %v2585
      %2601 = vrot.lane.b32.xlu0 %v2595, 64
      %v2602 = vpop.permute.xlu0 %2601
      %2603 = vrot.lane.b32.xlu0 %v2596, 64
      %v2604 = vpop.permute.xlu0 %2603
      %v2607 = vmul.f32 %v2597, %v2602
      %v2608 = vmul.f32 %v2598, %v2604
      %v2611 = vrot.slane %v2509, 7
      %v2612 = vrot.slane %v2510, 7
      %v2615 = vmul.f32 %v2583, %v2611
      %v2616 = vmul.f32 %v2585, %v2612
      %v2617 = vadd.f32 %v2607, %v2615
      %v2618 = vadd.f32 %v2608, %v2616
      %v2619 = vsel %vm922, %v1864, %v1970
      %v2620 = vsel %vm922, %v1865, %v1971
      %v2621 = vsel %vm1208, %v2619, %v2077
      %v2622 = vsel %vm1208, %v2620, %v2078
      %vm2623 = vcmask 1042432
      %v2624 = vsel %vm2623, %v2621, %v2185
      %v2625 = vsel %vm2623, %v2622, %v2186
      %vm2626 = vcmask 1043456
      %v2627 = vsel %vm2626, %v2624, %v2293
      %v2628 = vsel %vm2626, %v2625, %v2294
      %vm2629 = vcmask 1044480
      %v2630 = vsel %vm2629, %v2627, %v2401
      %v2631 = vsel %vm2629, %v2628, %v2402
      %v2632 = vsel %vm964, %v2630, %v2509
      %v2633 = vsel %vm964, %v2631, %v2510
      %v2634 = vsel %vm929, %v2632, %v2617
      %v2635 = vsel %vm929, %v2633, %v2618
      %2638 = vrot.lane.b32.xlu0 %v1609, 64
      %v2639 = vpop.permute.xlu0 %2638
      %2640 = vrot.lane.b32.xlu0 %v1610, 64
      %v2641 = vpop.permute.xlu0 %2640
      %v2644 = vadd.f32 %v2634, %v2639
      %v2645 = vadd.f32 %v2635, %v2641
      %v2646 = vpack.c.bf16 %v2645, %v2644
      %v2647 = vld [vmem:[%s896] sm:$0xff]
      %v2648 = vld [vmem:[%s896 + $0x8] sm:$0xff]
      %v2649 = vld [vmem:[%s896 + $0x10] sm:$0xff]
      %v2650 = vld [vmem:[%s896 + $0x18] sm:$0xff]
      %v2651 = vld [vmem:[%s896 + $0x20] sm:$0xff]
      %v2652 = vld [vmem:[%s896 + $0x28] sm:$0xff]
      %v2653 = vld [vmem:[%s896 + $0x30] sm:$0xff]
      %v2654 = vld [vmem:[%s896 + $0x38] sm:$0xff]
      %v2655 = vld [vmem:[%s900] sm:$0x3]
      %v2657 = vlaneseq
      %v2658 = vshrl.u32 %v2657, 7
      %v2659 = vsub.s32 0, %v2658
      %v2660 = vrot.slane %v2655, %v2659
      %v2661 = vlaneseq
      %v2662 = vshrl.u32 %v2661, 7
      %v2663 = vsub.s32 1, %v2662
      %v2664 = vrot.slane %v2655, %v2663
      %2668 = vrot.lane.b32.xlu0 %v2646, 64
      %v2669 = vpop.permute.xlu0 %2668
      %v2678 = vunpack.c.l.b16 %v2647
      %v2679 = vunpack.c.h.b16 %v2647
      %v2680 = vunpack.c.l.b16 %v2648
      %v2681 = vunpack.c.h.b16 %v2648
      %v2682 = vunpack.c.l.b16 %v2649
      %v2683 = vunpack.c.h.b16 %v2649
      %v2684 = vunpack.c.l.b16 %v2650
      %v2685 = vunpack.c.h.b16 %v2650
      %v2686 = vunpack.c.l.b16 %v2651
      %v2687 = vunpack.c.h.b16 %v2651
      %v2688 = vunpack.c.l.b16 %v2652
      %v2689 = vunpack.c.h.b16 %v2652
      %v2690 = vunpack.c.l.b16 %v2653
      %v2691 = vunpack.c.h.b16 %v2653
      %v2692 = vunpack.c.l.b16 %v2654
      %v2693 = vunpack.c.h.b16 %v2654
      %v2694 = vpack.c.b16 %v2680, %v2678
      %v2695 = vpack.c.b16 %v2681, %v2679
      %v2696 = vpack.c.b16 %v2684, %v2682
      %v2697 = vpack.c.b16 %v2685, %v2683
      %v2698 = vpack.c.b16 %v2688, %v2686
      %v2699 = vpack.c.b16 %v2689, %v2687
      %v2700 = vpack.c.b16 %v2692, %v2690
      %v2701 = vpack.c.b16 %v2693, %v2691
      %v2711 = vsel %vm1040, %v2669, 0
      %2713 = vmatprep.subr.bf16.mxu0 %v2695
      %2714 = vmatpush1.bf16.msra.mxu0 %v2694
      %2715 = vmatprep.subr.bf16.mxu0 %v2697
      %2716 = vmatpush1.bf16.msra.mxu0 %v2696
      %2717 = vmatprep.subr.bf16.mxu0 %v2699
      %2718 = vmatpush1.bf16.msra.mxu0 %v2698
      %2719 = vmatprep.subr.bf16.mxu0 %v2701
      %2720 = vmatpush1.bf16.msra.mxu0 %v2700
      %2721 = vmatprep.subr.bf16.mxu0 0
      %2722 = vmatpush1.bf16.msra.mxu0 0
      %2723 = vmatprep.subr.bf16.mxu0 0
      %2724 = vmatpush1.bf16.msra.mxu0 0
      %2725 = vmatprep.subr.bf16.mxu0 0
      %2726 = vmatpush1.bf16.msra.mxu0 0
      %2727 = vmatprep.subr.bf16.mxu0 0
      %2728 = vmatpush1.bf16.msra.mxu0 0
      %2729 = vmatprep.subr.bf16.mxu0 0
      %2730 = vmatpush1.bf16.msra.mxu0 0
      %2731 = vmatprep.subr.bf16.mxu0 0
      %2732 = vmatpush1.bf16.msra.mxu0 0
      %2733 = vmatprep.subr.bf16.mxu0 0
      %2734 = vmatpush1.bf16.msra.mxu0 0
      %2735 = vmatprep.subr.bf16.mxu0 0
      %2736 = vmatpush1.bf16.msra.mxu0 0
      %2737 = vmatprep.subr.bf16.mxu0 0
      %2738 = vmatpush1.bf16.msra.mxu0 0
      %2739 = vmatprep.subr.bf16.mxu0 0
      %2740 = vmatpush1.bf16.msra.mxu0 0
      %2741 = vmatprep.subr.bf16.mxu0 0
      %2742 = vmatpush1.bf16.msra.mxu0 0
      %2743 = vmatprep.subr.bf16.mxu0 0
      %2744 = vmatpush1.bf16.msra.mxu0 0
      %2745 = vmatprep.mubr.bf16.mxu0 0
      %2746 = vmatmul.mubr.bf16.gmra.mrb[0].mxu0 %v2711
      %v2747 = vpop.f32.mrb[0].mxu0
      %v2748 = vadd.f32 %v2660, %v2747
      %v2749 = vpop.f32.mrb[0].mxu0
      %v2750 = vadd.f32 %v2664, %v2749
      %v2751 = vpop.f32.mrb[0].mxu0
      %v2752 = vadd.f32 %v2660, %v2751
      %v2753 = vpop.f32.mrb[0].mxu0
      %v2754 = vadd.f32 %v2664, %v2753
      %2755 = vdwg.mxu0
      %v2756 = vmul.f32 %v2748, 0.25
      %v2757 = vmul.f32 %v2752, 0.25
      %v2758 = vpack.c.bf16 %v2756, %v2756
      %v2759 = vpack.c.bf16 %v2757, %v2757
      %v2760 = vpack.c.bf16 %v2748, %v2748
      %v2761 = vpack.c.bf16 %v2752, %v2752
      %2763 = vrot.lane.b32.xlu0 %v2760, 64
      %v2764 = vpop.permute.xlu0 %2763
      %vm2765 = vcmask 130048
      %v2767 = vsel %vm2765, %v2758, 0
      %v2770 = vsel %vm2765, %v2764, 0
      %2772 = vmatprep.subr.bf16.mxu0 0
      %2773 = vmatpush1.bf16.xpose.msra.mxu0 %v2770
      %2774 = vmatprep.subr.bf16.mxu0 0
      %2775 = vmatpush1.bf16.xpose.msra.mxu0 0
      %2776 = vmatprep.subr.bf16.mxu0 0
      %2777 = vmatpush1.bf16.xpose.msra.mxu0 0
      %2778 = vmatprep.subr.bf16.mxu0 0
      %2779 = vmatpush1.bf16.xpose.msra.mxu0 0
      %2780 = vmatprep.subr.bf16.mxu0 0
      %2781 = vmatpush1.bf16.xpose.msra.mxu0 0
      %2782 = vmatprep.subr.bf16.mxu0 0
      %2783 = vmatpush1.bf16.xpose.msra.mxu0 0
      %2784 = vmatprep.subr.bf16.mxu0 0
      %2785 = vmatpush1.bf16.xpose.msra.mxu0 0
      %2786 = vmatprep.subr.bf16.mxu0 0
      %2787 = vmatpush1.bf16.xpose.msra.mxu0 0
      %2788 = vmatprep.subr.bf16.mxu0 0
      %2789 = vmatpush1.bf16.xpose.msra.mxu0 0
      %2790 = vmatprep.subr.bf16.mxu0 0
      %2791 = vmatpush1.bf16.xpose.msra.mxu0 0
      %2792 = vmatprep.subr.bf16.mxu0 0
      %2793 = vmatpush1.bf16.xpose.msra.mxu0 0
      %2794 = vmatprep.subr.bf16.mxu0 0
      %2795 = vmatpush1.bf16.xpose.msra.mxu0 0
      %2796 = vmatprep.subr.bf16.mxu0 0
      %2797 = vmatpush1.bf16.xpose.msra.mxu0 0
      %2798 = vmatprep.subr.bf16.mxu0 0
      %2799 = vmatpush1.bf16.xpose.msra.mxu0 0
      %2800 = vmatprep.subr.bf16.mxu0 0
      %2801 = vmatpush1.bf16.xpose.msra.mxu0 0
      %2802 = vmatprep.subr.bf16.mxu0 0
      %2803 = vmatpush1.bf16.xpose.msra.mxu0 0
      %2804 = vmatprep.mubr.bf16.mxu0 0
      %2805 = vmatmul.mubr.bf16.gmra.mrb[0].mxu0 %v2767
      %v2806 = vpop.f32.mrb[0].mxu0
      %v2807 = vadd.f32 0.0, %v2806
      %v2808 = vpop.f32.mrb[0].mxu0
      %v2809 = vpop.f32.mrb[0].mxu0
      %v2810 = vpop.f32.mrb[0].mxu0
      %2811 = vdwg.mxu0
      %2813 = vrot.lane.b32.xlu0 %v2761, 64
      %v2814 = vpop.permute.xlu0 %2813
      %v2816 = vsel %vm2765, %v2759, 0
      %v2819 = vsel %vm2765, %v2814, 0
      %2821 = vmatprep.subr.bf16.mxu0 0
      %2822 = vmatpush1.bf16.xpose.msra.mxu0 %v2819
      %2823 = vmatprep.subr.bf16.mxu0 0
      %2824 = vmatpush1.bf16.xpose.msra.mxu0 0
      %2825 = vmatprep.subr.bf16.mxu0 0
      %2826 = vmatpush1.bf16.xpose.msra.mxu0 0
      %2827 = vmatprep.subr.bf16.mxu0 0
      %2828 = vmatpush1.bf16.xpose.msra.mxu0 0
      %2829 = vmatprep.subr.bf16.mxu0 0
      %2830 = vmatpush1.bf16.xpose.msra.mxu0 0
      %2831 = vmatprep.subr.bf16.mxu0 0
      %2832 = vmatpush1.bf16.xpose.msra.mxu0 0
      %2833 = vmatprep.subr.bf16.mxu0 0
      %2834 = vmatpush1.bf16.xpose.msra.mxu0 0
      %2835 = vmatprep.subr.bf16.mxu0 0
      %2836 = vmatpush1.bf16.xpose.msra.mxu0 0
      %2837 = vmatprep.subr.bf16.mxu0 0
      %2838 = vmatpush1.bf16.xpose.msra.mxu0 0
      %2839 = vmatprep.subr.bf16.mxu0 0
      %2840 = vmatpush1.bf16.xpose.msra.mxu0 0
      %2841 = vmatprep.subr.bf16.mxu0 0
      %2842 = vmatpush1.bf16.xpose.msra.mxu0 0
      %2843 = vmatprep.subr.bf16.mxu0 0
      %2844 = vmatpush1.bf16.xpose.msra.mxu0 0
      %2845 = vmatprep.subr.bf16.mxu0 0
      %2846 = vmatpush1.bf16.xpose.msra.mxu0 0
      %2847 = vmatprep.subr.bf16.mxu0 0
      %2848 = vmatpush1.bf16.xpose.msra.mxu0 0
      %2849 = vmatprep.subr.bf16.mxu0 0
      %2850 = vmatpush1.bf16.xpose.msra.mxu0 0
      %2851 = vmatprep.subr.bf16.mxu0 0
      %2852 = vmatpush1.bf16.xpose.msra.mxu0 0
      %2853 = vmatprep.mubr.bf16.mxu0 0
      %2854 = vmatmul.mubr.bf16.gmra.mrb[0].mxu0 %v2816
      %v2855 = vpop.f32.mrb[0].mxu0
      %v2856 = vadd.f32 0.0, %v2855
      %v2857 = vpop.f32.mrb[0].mxu0
      %v2858 = vpop.f32.mrb[0].mxu0
      %v2859 = vpop.f32.mrb[0].mxu0
      %2860 = vdwg.mxu0
      %v2861 = vsel %vm949, %v2807, -inf
      %2862 = vmax.xlane.f32.xlu0 %v2861
      %v2863 = vpop.xlane.xlu0 %2862
      %v2864 = vsel %vm949, %v2856, -inf
      %2865 = vmax.xlane.f32.xlu0 %v2864
      %v2866 = vpop.xlane.xlu0 %2865
      %v2867 = vsub.f32 %v2807, %v2863
      %v2868 = vsub.f32 %v2856, %v2866
      %v2869 = vmul.f32 %v2867, 1.442695
      %v2870 = vpow.pop %v2869
      %v2871 = vmul.f32 %v2868, 1.442695
      %v2872 = vpow.pop %v2871
      %v2873 = vsel %vm949, %v2870, 0.0
      %2874 = vadd.xlane.f32.xlu0 %v2873
      %v2875 = vpop.xlane.xlu0 %2874
      %v2876 = vsel %vm949, %v2872, 0.0
      %2877 = vadd.xlane.f32.xlu0 %v2876
      %v2878 = vpop.xlane.xlu0 %2877
      %v2879 = vrcp.pop %v2875
      %v2880 = vmul.f32 %v2870, %v2879
      %v2881 = vrcp.pop %v2878
      %v2882 = vmul.f32 %v2872, %v2881
      %v2883 = vpack.c.bf16 %v2880, %v2880
      %v2884 = vpack.c.bf16 %v2882, %v2882
      %v2885 = vpack.c.bf16 %v2750, %v2750
      %v2886 = vpack.c.bf16 %v2754, %v2754
      %v2888 = vsel %vm949, %v2883, 0
      %v2891 = vsel %vm2626, %v2885, 0
      %2893 = vmatprep.subr.bf16.mxu0 0
      %2894 = vmatpush1.bf16.msra.mxu0 %v2891
      %2895 = vmatprep.subr.bf16.mxu0 0
      %2896 = vmatpush1.bf16.msra.mxu0 0
      %2897 = vmatprep.subr.bf16.mxu0 0
      %2898 = vmatpush1.bf16.msra.mxu0 0
      %2899 = vmatprep.subr.bf16.mxu0 0
      %2900 = vmatpush1.bf16.msra.mxu0 0
      %2901 = vmatprep.subr.bf16.mxu0 0
      %2902 = vmatpush1.bf16.msra.mxu0 0
      %2903 = vmatprep.subr.bf16.mxu0 0
      %2904 = vmatpush1.bf16.msra.mxu0 0
      %2905 = vmatprep.subr.bf16.mxu0 0
      %2906 = vmatpush1.bf16.msra.mxu0 0
      %2907 = vmatprep.subr.bf16.mxu0 0
      %2908 = vmatpush1.bf16.msra.mxu0 0
      %2909 = vmatprep.subr.bf16.mxu0 0
      %2910 = vmatpush1.bf16.msra.mxu0 0
      %2911 = vmatprep.subr.bf16.mxu0 0
      %2912 = vmatpush1.bf16.msra.mxu0 0
      %2913 = vmatprep.subr.bf16.mxu0 0
      %2914 = vmatpush1.bf16.msra.mxu0 0
      %2915 = vmatprep.subr.bf16.mxu0 0
      %2916 = vmatpush1.bf16.msra.mxu0 0
      %2917 = vmatprep.subr.bf16.mxu0 0
      %2918 = vmatpush1.bf16.msra.mxu0 0
      %2919 = vmatprep.subr.bf16.mxu0 0
      %2920 = vmatpush1.bf16.msra.mxu0 0
      %2921 = vmatprep.subr.bf16.mxu0 0
      %2922 = vmatpush1.bf16.msra.mxu0 0
      %2923 = vmatprep.subr.bf16.mxu0 0
      %2924 = vmatpush1.bf16.msra.mxu0 0
      %2925 = vmatprep.mubr.bf16.mxu0 0
      %2926 = vmatmul.mubr.bf16.gmra.mrb[0].mxu0 %v2888
      %v2927 = vpop.f32.mrb[0].mxu0
      %v2928 = vadd.f32 0.0, %v2927
      %v2929 = vpop.f32.mrb[0].mxu0
      %v2930 = vpop.f32.mrb[0].mxu0
      %v2931 = vpop.f32.mrb[0].mxu0
      %2932 = vdwg.mxu0
      %v2934 = vsel %vm949, %v2884, 0
      %v2937 = vsel %vm2626, %v2886, 0
      %2939 = vmatprep.subr.bf16.mxu0 0
      %2940 = vmatpush1.bf16.msra.mxu0 %v2937
      %2941 = vmatprep.subr.bf16.mxu0 0
      %2942 = vmatpush1.bf16.msra.mxu0 0
      %2943 = vmatprep.subr.bf16.mxu0 0
      %2944 = vmatpush1.bf16.msra.mxu0 0
      %2945 = vmatprep.subr.bf16.mxu0 0
      %2946 = vmatpush1.bf16.msra.mxu0 0
      %2947 = vmatprep.subr.bf16.mxu0 0
      %2948 = vmatpush1.bf16.msra.mxu0 0
      %2949 = vmatprep.subr.bf16.mxu0 0
      %2950 = vmatpush1.bf16.msra.mxu0 0
      %2951 = vmatprep.subr.bf16.mxu0 0
      %2952 = vmatpush1.bf16.msra.mxu0 0
      %2953 = vmatprep.subr.bf16.mxu0 0
      %2954 = vmatpush1.bf16.msra.mxu0 0
      %2955 = vmatprep.subr.bf16.mxu0 0
      %2956 = vmatpush1.bf16.msra.mxu0 0
      %2957 = vmatprep.subr.bf16.mxu0 0
      %2958 = vmatpush1.bf16.msra.mxu0 0
      %2959 = vmatprep.subr.bf16.mxu0 0
      %2960 = vmatpush1.bf16.msra.mxu0 0
      %2961 = vmatprep.subr.bf16.mxu0 0
      %2962 = vmatpush1.bf16.msra.mxu0 0
      %2963 = vmatprep.subr.bf16.mxu0 0
      %2964 = vmatpush1.bf16.msra.mxu0 0
      %2965 = vmatprep.subr.bf16.mxu0 0
      %2966 = vmatpush1.bf16.msra.mxu0 0
      %2967 = vmatprep.subr.bf16.mxu0 0
      %2968 = vmatpush1.bf16.msra.mxu0 0
      %2969 = vmatprep.subr.bf16.mxu0 0
      %2970 = vmatpush1.bf16.msra.mxu0 0
      %2971 = vmatprep.mubr.bf16.mxu0 0
      %2972 = vmatmul.mubr.bf16.gmra.mrb[0].mxu0 %v2934
      %v2973 = vpop.f32.mrb[0].mxu0
      %v2974 = vadd.f32 0.0, %v2973
      %v2975 = vpop.f32.mrb[0].mxu0
      %v2976 = vpop.f32.mrb[0].mxu0
      %v2977 = vpop.f32.mrb[0].mxu0
      %2978 = vdwg.mxu0
      %v2979 = vsel %vm2765, %v2928, 0.0
      %v2980 = vrot.slane %v2979, 4
      %v2981 = vadd.f32 %v2979, %v2980
      %v2982 = vrot.slane %v2981, 2
      %v2983 = vadd.f32 %v2981, %v2982
      %v2984 = vrot.slane %v2983, 1
      %v2985 = vadd.f32 %v2983, %v2984
      %v2986 = vsel %vm2765, %v2974, 0.0
      %v2987 = vrot.slane %v2986, 4
      %v2988 = vadd.f32 %v2986, %v2987
      %v2989 = vrot.slane %v2988, 2
      %v2990 = vadd.f32 %v2988, %v2989
      %v2991 = vrot.slane %v2990, 1
      %v2992 = vadd.f32 %v2990, %v2991
      %v2993 = vrcp.pop 8.0
      %v2994 = vmul.f32 %v2985, %v2993
      %v2995 = vmul.f32 %v2992, %v2993
      %2997 = vrot.lane.b32.xlu0 %v2758, 112
      %v2998 = vpop.permute.xlu0 %2997
      %2999 = vrot.lane.b32.xlu0 %v2760, 48
      %v3000 = vpop.permute.xlu0 %2999
      %v3002 = vsel %vm2765, %v2998, 0
      %v3005 = vsel %vm2765, %v3000, 0
      %3007 = vmatprep.subr.bf16.mxu0 0
      %3008 = vmatpush1.bf16.xpose.msra.mxu0 %v3005
      %3009 = vmatprep.subr.bf16.mxu0 0
      %3010 = vmatpush1.bf16.xpose.msra.mxu0 0
      %3011 = vmatprep.subr.bf16.mxu0 0
      %3012 = vmatpush1.bf16.xpose.msra.mxu0 0
      %3013 = vmatprep.subr.bf16.mxu0 0
      %3014 = vmatpush1.bf16.xpose.msra.mxu0 0
      %3015 = vmatprep.subr.bf16.mxu0 0
      %3016 = vmatpush1.bf16.xpose.msra.mxu0 0
      %3017 = vmatprep.subr.bf16.mxu0 0
      %3018 = vmatpush1.bf16.xpose.msra.mxu0 0
      %3019 = vmatprep.subr.bf16.mxu0 0
      %3020 = vmatpush1.bf16.xpose.msra.mxu0 0
      %3021 = vmatprep.subr.bf16.mxu0 0
      %3022 = vmatpush1.bf16.xpose.msra.mxu0 0
      %3023 = vmatprep.subr.bf16.mxu0 0
      %3024 = vmatpush1.bf16.xpose.msra.mxu0 0
      %3025 = vmatprep.subr.bf16.mxu0 0
      %3026 = vmatpush1.bf16.xpose.msra.mxu0 0
      %3027 = vmatprep.subr.bf16.mxu0 0
      %3028 = vmatpush1.bf16.xpose.msra.mxu0 0
      %3029 = vmatprep.subr.bf16.mxu0 0
      %3030 = vmatpush1.bf16.xpose.msra.mxu0 0
      %3031 = vmatprep.subr.bf16.mxu0 0
      %3032 = vmatpush1.bf16.xpose.msra.mxu0 0
      %3033 = vmatprep.subr.bf16.mxu0 0
      %3034 = vmatpush1.bf16.xpose.msra.mxu0 0
      %3035 = vmatprep.subr.bf16.mxu0 0
      %3036 = vmatpush1.bf16.xpose.msra.mxu0 0
      %3037 = vmatprep.subr.bf16.mxu0 0
      %3038 = vmatpush1.bf16.xpose.msra.mxu0 0
      %3039 = vmatprep.mubr.bf16.mxu0 0
      %3040 = vmatmul.mubr.bf16.gmra.mrb[0].mxu0 %v3002
      %v3041 = vpop.f32.mrb[0].mxu0
      %v3042 = vadd.f32 0.0, %v3041
      %v3043 = vpop.f32.mrb[0].mxu0
      %v3044 = vpop.f32.mrb[0].mxu0
      %v3045 = vpop.f32.mrb[0].mxu0
      %3046 = vdwg.mxu0
      %3048 = vrot.lane.b32.xlu0 %v2759, 112
      %v3049 = vpop.permute.xlu0 %3048
      %3050 = vrot.lane.b32.xlu0 %v2761, 48
      %v3051 = vpop.permute.xlu0 %3050
      %v3053 = vsel %vm2765, %v3049, 0
      %v3056 = vsel %vm2765, %v3051, 0
      %3058 = vmatprep.subr.bf16.mxu0 0
      %3059 = vmatpush1.bf16.xpose.msra.mxu0 %v3056
      %3060 = vmatprep.subr.bf16.mxu0 0
      %3061 = vmatpush1.bf16.xpose.msra.mxu0 0
      %3062 = vmatprep.subr.bf16.mxu0 0
      %3063 = vmatpush1.bf16.xpose.msra.mxu0 0
      %3064 = vmatprep.subr.bf16.mxu0 0
      %3065 = vmatpush1.bf16.xpose.msra.mxu0 0
      %3066 = vmatprep.subr.bf16.mxu0 0
      %3067 = vmatpush1.bf16.xpose.msra.mxu0 0
      %3068 = vmatprep.subr.bf16.mxu0 0
      %3069 = vmatpush1.bf16.xpose.msra.mxu0 0
      %3070 = vmatprep.subr.bf16.mxu0 0
      %3071 = vmatpush1.bf16.xpose.msra.mxu0 0
      %3072 = vmatprep.subr.bf16.mxu0 0
      %3073 = vmatpush1.bf16.xpose.msra.mxu0 0
      %3074 = vmatprep.subr.bf16.mxu0 0
      %3075 = vmatpush1.bf16.xpose.msra.mxu0 0
      %3076 = vmatprep.subr.bf16.mxu0 0
      %3077 = vmatpush1.bf16.xpose.msra.mxu0 0
      %3078 = vmatprep.subr.bf16.mxu0 0
      %3079 = vmatpush1.bf16.xpose.msra.mxu0 0
      %3080 = vmatprep.subr.bf16.mxu0 0
      %3081 = vmatpush1.bf16.xpose.msra.mxu0 0
      %3082 = vmatprep.subr.bf16.mxu0 0
      %3083 = vmatpush1.bf16.xpose.msra.mxu0 0
      %3084 = vmatprep.subr.bf16.mxu0 0
      %3085 = vmatpush1.bf16.xpose.msra.mxu0 0
      %3086 = vmatprep.subr.bf16.mxu0 0
      %3087 = vmatpush1.bf16.xpose.msra.mxu0 0
      %3088 = vmatprep.subr.bf16.mxu0 0
      %3089 = vmatpush1.bf16.xpose.msra.mxu0 0
      %3090 = vmatprep.mubr.bf16.mxu0 0
      %3091 = vmatmul.mubr.bf16.gmra.mrb[0].mxu0 %v3053
      %v3092 = vpop.f32.mrb[0].mxu0
      %v3093 = vadd.f32 0.0, %v3092
      %v3094 = vpop.f32.mrb[0].mxu0
      %v3095 = vpop.f32.mrb[0].mxu0
      %v3096 = vpop.f32.mrb[0].mxu0
      %3097 = vdwg.mxu0
      %v3098 = vsel %vm949, %v3042, -inf
      %3099 = vmax.xlane.f32.xlu0 %v3098
      %v3100 = vpop.xlane.xlu0 %3099
      %v3101 = vsel %vm949, %v3093, -inf
      %3102 = vmax.xlane.f32.xlu0 %v3101
      %v3103 = vpop.xlane.xlu0 %3102
      %v3104 = vsub.f32 %v3042, %v3100
      %v3105 = vsub.f32 %v3093, %v3103
      %v3106 = vmul.f32 %v3104, 1.442695
      %v3107 = vpow.pop %v3106
      %v3108 = vmul.f32 %v3105, 1.442695
      %v3109 = vpow.pop %v3108
      %v3110 = vsel %vm949, %v3107, 0.0
      %3111 = vadd.xlane.f32.xlu0 %v3110
      %v3112 = vpop.xlane.xlu0 %3111
      %v3113 = vsel %vm949, %v3109, 0.0
      %3114 = vadd.xlane.f32.xlu0 %v3113
      %v3115 = vpop.xlane.xlu0 %3114
      %v3116 = vrcp.pop %v3112
      %v3117 = vmul.f32 %v3107, %v3116
      %v3118 = vrcp.pop %v3115
      %v3119 = vmul.f32 %v3109, %v3118
      %v3120 = vpack.c.bf16 %v3117, %v3117
      %v3121 = vpack.c.bf16 %v3119, %v3119
      %3123 = vrot.lane.b32.xlu0 %v2885, 112
      %v3124 = vpop.permute.xlu0 %3123
      %v3126 = vsel %vm949, %v3120, 0
      %v3129 = vsel %vm2626, %v3124, 0
      %3131 = vmatprep.subr.bf16.mxu0 0
      %3132 = vmatpush1.bf16.msra.mxu0 %v3129
      %3133 = vmatprep.subr.bf16.mxu0 0
      %3134 = vmatpush1.bf16.msra.mxu0 0
      %3135 = vmatprep.subr.bf16.mxu0 0
      %3136 = vmatpush1.bf16.msra.mxu0 0
      %3137 = vmatprep.subr.bf16.mxu0 0
      %3138 = vmatpush1.bf16.msra.mxu0 0
      %3139 = vmatprep.subr.bf16.mxu0 0
      %3140 = vmatpush1.bf16.msra.mxu0 0
      %3141 = vmatprep.subr.bf16.mxu0 0
      %3142 = vmatpush1.bf16.msra.mxu0 0
      %3143 = vmatprep.subr.bf16.mxu0 0
      %3144 = vmatpush1.bf16.msra.mxu0 0
      %3145 = vmatprep.subr.bf16.mxu0 0
      %3146 = vmatpush1.bf16.msra.mxu0 0
      %3147 = vmatprep.subr.bf16.mxu0 0
      %3148 = vmatpush1.bf16.msra.mxu0 0
      %3149 = vmatprep.subr.bf16.mxu0 0
      %3150 = vmatpush1.bf16.msra.mxu0 0
      %3151 = vmatprep.subr.bf16.mxu0 0
      %3152 = vmatpush1.bf16.msra.mxu0 0
      %3153 = vmatprep.subr.bf16.mxu0 0
      %3154 = vmatpush1.bf16.msra.mxu0 0
      %3155 = vmatprep.subr.bf16.mxu0 0
      %3156 = vmatpush1.bf16.msra.mxu0 0
      %3157 = vmatprep.subr.bf16.mxu0 0
      %3158 = vmatpush1.bf16.msra.mxu0 0
      %3159 = vmatprep.subr.bf16.mxu0 0
      %3160 = vmatpush1.bf16.msra.mxu0 0
      %3161 = vmatprep.subr.bf16.mxu0 0
      %3162 = vmatpush1.bf16.msra.mxu0 0
      %3163 = vmatprep.mubr.bf16.mxu0 0
      %3164 = vmatmul.mubr.bf16.gmra.mrb[0].mxu0 %v3126
      %v3165 = vpop.f32.mrb[0].mxu0
      %v3166 = vadd.f32 0.0, %v3165
      %v3167 = vpop.f32.mrb[0].mxu0
      %v3168 = vpop.f32.mrb[0].mxu0
      %v3169 = vpop.f32.mrb[0].mxu0
      %3170 = vdwg.mxu0
      %3172 = vrot.lane.b32.xlu0 %v2886, 112
      %v3173 = vpop.permute.xlu0 %3172
      %v3175 = vsel %vm949, %v3121, 0
      %v3178 = vsel %vm2626, %v3173, 0
      %3180 = vmatprep.subr.bf16.mxu0 0
      %3181 = vmatpush1.bf16.msra.mxu0 %v3178
      %3182 = vmatprep.subr.bf16.mxu0 0
      %3183 = vmatpush1.bf16.msra.mxu0 0
      %3184 = vmatprep.subr.bf16.mxu0 0
      %3185 = vmatpush1.bf16.msra.mxu0 0
      %3186 = vmatprep.subr.bf16.mxu0 0
      %3187 = vmatpush1.bf16.msra.mxu0 0
      %3188 = vmatprep.subr.bf16.mxu0 0
      %3189 = vmatpush1.bf16.msra.mxu0 0
      %3190 = vmatprep.subr.bf16.mxu0 0
      %3191 = vmatpush1.bf16.msra.mxu0 0
      %3192 = vmatprep.subr.bf16.mxu0 0
      %3193 = vmatpush1.bf16.msra.mxu0 0
      %3194 = vmatprep.subr.bf16.mxu0 0
      %3195 = vmatpush1.bf16.msra.mxu0 0
      %3196 = vmatprep.subr.bf16.mxu0 0
      %3197 = vmatpush1.bf16.msra.mxu0 0
      %3198 = vmatprep.subr.bf16.mxu0 0
      %3199 = vmatpush1.bf16.msra.mxu0 0
      %3200 = vmatprep.subr.bf16.mxu0 0
      %3201 = vmatpush1.bf16.msra.mxu0 0
      %3202 = vmatprep.subr.bf16.mxu0 0
      %3203 = vmatpush1.bf16.msra.mxu0 0
      %3204 = vmatprep.subr.bf16.mxu0 0
      %3205 = vmatpush1.bf16.msra.mxu0 0
      %3206 = vmatprep.subr.bf16.mxu0 0
      %3207 = vmatpush1.bf16.msra.mxu0 0
      %3208 = vmatprep.subr.bf16.mxu0 0
      %3209 = vmatpush1.bf16.msra.mxu0 0
      %3210 = vmatprep.subr.bf16.mxu0 0
      %3211 = vmatpush1.bf16.msra.mxu0 0
      %3212 = vmatprep.mubr.bf16.mxu0 0
      %3213 = vmatmul.mubr.bf16.gmra.mrb[0].mxu0 %v3175
      %v3214 = vpop.f32.mrb[0].mxu0
      %v3215 = vadd.f32 0.0, %v3214
      %v3216 = vpop.f32.mrb[0].mxu0
      %v3217 = vpop.f32.mrb[0].mxu0
      %v3218 = vpop.f32.mrb[0].mxu0
      %3219 = vdwg.mxu0
      %v3220 = vsel %vm2765, %v3166, 0.0
      %v3221 = vrot.slane %v3220, 4
      %v3222 = vadd.f32 %v3220, %v3221
      %v3223 = vrot.slane %v3222, 2
      %v3224 = vadd.f32 %v3222, %v3223
      %v3225 = vrot.slane %v3224, 1
      %v3226 = vadd.f32 %v3224, %v3225
      %v3227 = vsel %vm2765, %v3215, 0.0
      %v3228 = vrot.slane %v3227, 4
      %v3229 = vadd.f32 %v3227, %v3228
      %v3230 = vrot.slane %v3229, 2
      %v3231 = vadd.f32 %v3229, %v3230
      %v3232 = vrot.slane %v3231, 1
      %v3233 = vadd.f32 %v3231, %v3232
      %v3234 = vmul.f32 %v3226, %v2993
      %v3235 = vmul.f32 %v3233, %v2993
      %3236 = vrot.lane.b32.xlu0 %v2758, 96
      %v3237 = vpop.permute.xlu0 %3236
      %3238 = vrot.lane.b32.xlu0 %v2760, 32
      %v3239 = vpop.permute.xlu0 %3238
      %v3241 = vsel %vm2765, %v3237, 0
      %v3244 = vsel %vm2765, %v3239, 0
      %3246 = vmatprep.subr.bf16.mxu0 0
      %3247 = vmatpush1.bf16.xpose.msra.mxu0 %v3244
      %3248 = vmatprep.subr.bf16.mxu0 0
      %3249 = vmatpush1.bf16.xpose.msra.mxu0 0
      %3250 = vmatprep.subr.bf16.mxu0 0
      %3251 = vmatpush1.bf16.xpose.msra.mxu0 0
      %3252 = vmatprep.subr.bf16.mxu0 0
      %3253 = vmatpush1.bf16.xpose.msra.mxu0 0
      %3254 = vmatprep.subr.bf16.mxu0 0
      %3255 = vmatpush1.bf16.xpose.msra.mxu0 0
      %3256 = vmatprep.subr.bf16.mxu0 0
      %3257 = vmatpush1.bf16.xpose.msra.mxu0 0
      %3258 = vmatprep.subr.bf16.mxu0 0
      %3259 = vmatpush1.bf16.xpose.msra.mxu0 0
      %3260 = vmatprep.subr.bf16.mxu0 0
      %3261 = vmatpush1.bf16.xpose.msra.mxu0 0
      %3262 = vmatprep.subr.bf16.mxu0 0
      %3263 = vmatpush1.bf16.xpose.msra.mxu0 0
      %3264 = vmatprep.subr.bf16.mxu0 0
      %3265 = vmatpush1.bf16.xpose.msra.mxu0 0
      %3266 = vmatprep.subr.bf16.mxu0 0
      %3267 = vmatpush1.bf16.xpose.msra.mxu0 0
      %3268 = vmatprep.subr.bf16.mxu0 0
      %3269 = vmatpush1.bf16.xpose.msra.mxu0 0
      %3270 = vmatprep.subr.bf16.mxu0 0
      %3271 = vmatpush1.bf16.xpose.msra.mxu0 0
      %3272 = vmatprep.subr.bf16.mxu0 0
      %3273 = vmatpush1.bf16.xpose.msra.mxu0 0
      %3274 = vmatprep.subr.bf16.mxu0 0
      %3275 = vmatpush1.bf16.xpose.msra.mxu0 0
      %3276 = vmatprep.subr.bf16.mxu0 0
      %3277 = vmatpush1.bf16.xpose.msra.mxu0 0
      %3278 = vmatprep.mubr.bf16.mxu0 0
      %3279 = vmatmul.mubr.bf16.gmra.mrb[0].mxu0 %v3241
      %v3280 = vpop.f32.mrb[0].mxu0
      %v3281 = vadd.f32 0.0, %v3280
      %v3282 = vpop.f32.mrb[0].mxu0
      %v3283 = vpop.f32.mrb[0].mxu0
      %v3284 = vpop.f32.mrb[0].mxu0
      %3285 = vdwg.mxu0
      %3286 = vrot.lane.b32.xlu0 %v2759, 96
      %v3287 = vpop.permute.xlu0 %3286
      %3288 = vrot.lane.b32.xlu0 %v2761, 32
      %v3289 = vpop.permute.xlu0 %3288
      %v3291 = vsel %vm2765, %v3287, 0
      %v3294 = vsel %vm2765, %v3289, 0
      %3296 = vmatprep.subr.bf16.mxu0 0
      %3297 = vmatpush1.bf16.xpose.msra.mxu0 %v3294
      %3298 = vmatprep.subr.bf16.mxu0 0
      %3299 = vmatpush1.bf16.xpose.msra.mxu0 0
      %3300 = vmatprep.subr.bf16.mxu0 0
      %3301 = vmatpush1.bf16.xpose.msra.mxu0 0
      %3302 = vmatprep.subr.bf16.mxu0 0
      %3303 = vmatpush1.bf16.xpose.msra.mxu0 0
      %3304 = vmatprep.subr.bf16.mxu0 0
      %3305 = vmatpush1.bf16.xpose.msra.mxu0 0
      %3306 = vmatprep.subr.bf16.mxu0 0
      %3307 = vmatpush1.bf16.xpose.msra.mxu0 0
      %3308 = vmatprep.subr.bf16.mxu0 0
      %3309 = vmatpush1.bf16.xpose.msra.mxu0 0
      %3310 = vmatprep.subr.bf16.mxu0 0
      %3311 = vmatpush1.bf16.xpose.msra.mxu0 0
      %3312 = vmatprep.subr.bf16.mxu0 0
      %3313 = vmatpush1.bf16.xpose.msra.mxu0 0
      %3314 = vmatprep.subr.bf16.mxu0 0
      %3315 = vmatpush1.bf16.xpose.msra.mxu0 0
      %3316 = vmatprep.subr.bf16.mxu0 0
      %3317 = vmatpush1.bf16.xpose.msra.mxu0 0
      %3318 = vmatprep.subr.bf16.mxu0 0
      %3319 = vmatpush1.bf16.xpose.msra.mxu0 0
      %3320 = vmatprep.subr.bf16.mxu0 0
      %3321 = vmatpush1.bf16.xpose.msra.mxu0 0
      %3322 = vmatprep.subr.bf16.mxu0 0
      %3323 = vmatpush1.bf16.xpose.msra.mxu0 0
      %3324 = vmatprep.subr.bf16.mxu0 0
      %3325 = vmatpush1.bf16.xpose.msra.mxu0 0
      %3326 = vmatprep.subr.bf16.mxu0 0
      %3327 = vmatpush1.bf16.xpose.msra.mxu0 0
      %3328 = vmatprep.mubr.bf16.mxu0 0
      %3329 = vmatmul.mubr.bf16.gmra.mrb[0].mxu0 %v3291
      %v3330 = vpop.f32.mrb[0].mxu0
      %v3331 = vadd.f32 0.0, %v3330
      %v3332 = vpop.f32.mrb[0].mxu0
      %v3333 = vpop.f32.mrb[0].mxu0
      %v3334 = vpop.f32.mrb[0].mxu0
      %3335 = vdwg.mxu0
      %v3336 = vsel %vm949, %v3281, -inf
      %3337 = vmax.xlane.f32.xlu0 %v3336
      %v3338 = vpop.xlane.xlu0 %3337
      %v3339 = vsel %vm949, %v3331, -inf
      %3340 = vmax.xlane.f32.xlu0 %v3339
      %v3341 = vpop.xlane.xlu0 %3340
      %v3342 = vsub.f32 %v3281, %v3338
      %v3343 = vsub.f32 %v3331, %v3341
      %v3344 = vmul.f32 %v3342, 1.442695
      %v3345 = vpow.pop %v3344
      %v3346 = vmul.f32 %v3343, 1.442695
      %v3347 = vpow.pop %v3346
      %v3348 = vsel %vm949, %v3345, 0.0
      %3349 = vadd.xlane.f32.xlu0 %v3348
      %v3350 = vpop.xlane.xlu0 %3349
      %v3351 = vsel %vm949, %v3347, 0.0
      %3352 = vadd.xlane.f32.xlu0 %v3351
      %v3353 = vpop.xlane.xlu0 %3352
      %v3354 = vrcp.pop %v3350
      %v3355 = vmul.f32 %v3345, %v3354
      %v3356 = vrcp.pop %v3353
      %v3357 = vmul.f32 %v3347, %v3356
      %v3358 = vpack.c.bf16 %v3355, %v3355
      %v3359 = vpack.c.bf16 %v3357, %v3357
      %3360 = vrot.lane.b32.xlu0 %v2885, 96
      %v3361 = vpop.permute.xlu0 %3360
      %v3363 = vsel %vm949, %v3358, 0
      %v3366 = vsel %vm2626, %v3361, 0
      %3368 = vmatprep.subr.bf16.mxu0 0
      %3369 = vmatpush1.bf16.msra.mxu0 %v3366
      %3370 = vmatprep.subr.bf16.mxu0 0
      %3371 = vmatpush1.bf16.msra.mxu0 0
      %3372 = vmatprep.subr.bf16.mxu0 0
      %3373 = vmatpush1.bf16.msra.mxu0 0
      %3374 = vmatprep.subr.bf16.mxu0 0
      %3375 = vmatpush1.bf16.msra.mxu0 0
      %3376 = vmatprep.subr.bf16.mxu0 0
      %3377 = vmatpush1.bf16.msra.mxu0 0
      %3378 = vmatprep.subr.bf16.mxu0 0
      %3379 = vmatpush1.bf16.msra.mxu0 0
      %3380 = vmatprep.subr.bf16.mxu0 0
      %3381 = vmatpush1.bf16.msra.mxu0 0
      %3382 = vmatprep.subr.bf16.mxu0 0
      %3383 = vmatpush1.bf16.msra.mxu0 0
      %3384 = vmatprep.subr.bf16.mxu0 0
      %3385 = vmatpush1.bf16.msra.mxu0 0
      %3386 = vmatprep.subr.bf16.mxu0 0
      %3387 = vmatpush1.bf16.msra.mxu0 0
      %3388 = vmatprep.subr.bf16.mxu0 0
      %3389 = vmatpush1.bf16.msra.mxu0 0
      %3390 = vmatprep.subr.bf16.mxu0 0
      %3391 = vmatpush1.bf16.msra.mxu0 0
      %3392 = vmatprep.subr.bf16.mxu0 0
      %3393 = vmatpush1.bf16.msra.mxu0 0
      %3394 = vmatprep.subr.bf16.mxu0 0
      %3395 = vmatpush1.bf16.msra.mxu0 0
      %3396 = vmatprep.subr.bf16.mxu0 0
      %3397 = vmatpush1.bf16.msra.mxu0 0
      %3398 = vmatprep.subr.bf16.mxu0 0
      %3399 = vmatpush1.bf16.msra.mxu0 0
      %3400 = vmatprep.mubr.bf16.mxu0 0
      %3401 = vmatmul.mubr.bf16.gmra.mrb[0].mxu0 %v3363
      %v3402 = vpop.f32.mrb[0].mxu0
      %v3403 = vadd.f32 0.0, %v3402
      %v3404 = vpop.f32.mrb[0].mxu0
      %v3405 = vpop.f32.mrb[0].mxu0
      %v3406 = vpop.f32.mrb[0].mxu0
      %3407 = vdwg.mxu0
      %3408 = vrot.lane.b32.xlu0 %v2886, 96
      %v3409 = vpop.permute.xlu0 %3408
      %v3411 = vsel %vm949, %v3359, 0
      %v3414 = vsel %vm2626, %v3409, 0
      %3416 = vmatprep.subr.bf16.mxu0 0
      %3417 = vmatpush1.bf16.msra.mxu0 %v3414
      %3418 = vmatprep.subr.bf16.mxu0 0
      %3419 = vmatpush1.bf16.msra.mxu0 0
      %3420 = vmatprep.subr.bf16.mxu0 0
      %3421 = vmatpush1.bf16.msra.mxu0 0
      %3422 = vmatprep.subr.bf16.mxu0 0
      %3423 = vmatpush1.bf16.msra.mxu0 0
      %3424 = vmatprep.subr.bf16.mxu0 0
      %3425 = vmatpush1.bf16.msra.mxu0 0
      %3426 = vmatprep.subr.bf16.mxu0 0
      %3427 = vmatpush1.bf16.msra.mxu0 0
      %3428 = vmatprep.subr.bf16.mxu0 0
      %3429 = vmatpush1.bf16.msra.mxu0 0
      %3430 = vmatprep.subr.bf16.mxu0 0
      %3431 = vmatpush1.bf16.msra.mxu0 0
      %3432 = vmatprep.subr.bf16.mxu0 0
      %3433 = vmatpush1.bf16.msra.mxu0 0
      %3434 = vmatprep.subr.bf16.mxu0 0
      %3435 = vmatpush1.bf16.msra.mxu0 0
      %3436 = vmatprep.subr.bf16.mxu0 0
      %3437 = vmatpush1.bf16.msra.mxu0 0
      %3438 = vmatprep.subr.bf16.mxu0 0
      %3439 = vmatpush1.bf16.msra.mxu0 0
      %3440 = vmatprep.subr.bf16.mxu0 0
      %3441 = vmatpush1.bf16.msra.mxu0 0
      %3442 = vmatprep.subr.bf16.mxu0 0
      %3443 = vmatpush1.bf16.msra.mxu0 0
      %3444 = vmatprep.subr.bf16.mxu0 0
      %3445 = vmatpush1.bf16.msra.mxu0 0
      %3446 = vmatprep.subr.bf16.mxu0 0
      %3447 = vmatpush1.bf16.msra.mxu0 0
      %3448 = vmatprep.mubr.bf16.mxu0 0
      %3449 = vmatmul.mubr.bf16.gmra.mrb[0].mxu0 %v3411
      %v3450 = vpop.f32.mrb[0].mxu0
      %v3451 = vadd.f32 0.0, %v3450
      %v3452 = vpop.f32.mrb[0].mxu0
      %v3453 = vpop.f32.mrb[0].mxu0
      %v3454 = vpop.f32.mrb[0].mxu0
      %3455 = vdwg.mxu0
      %v3456 = vsel %vm2765, %v3403, 0.0
      %v3457 = vrot.slane %v3456, 4
      %v3458 = vadd.f32 %v3456, %v3457
      %v3459 = vrot.slane %v3458, 2
      %v3460 = vadd.f32 %v3458, %v3459
      %v3461 = vrot.slane %v3460, 1
      %v3462 = vadd.f32 %v3460, %v3461
      %v3463 = vsel %vm2765, %v3451, 0.0
      %v3464 = vrot.slane %v3463, 4
      %v3465 = vadd.f32 %v3463, %v3464
      %v3466 = vrot.slane %v3465, 2
      %v3467 = vadd.f32 %v3465, %v3466
      %v3468 = vrot.slane %v3467, 1
      %v3469 = vadd.f32 %v3467, %v3468
      %v3470 = vmul.f32 %v3462, %v2993
      %v3471 = vmul.f32 %v3469, %v2993
      %3472 = vrot.lane.b32.xlu0 %v2758, 80
      %v3473 = vpop.permute.xlu0 %3472
      %3474 = vrot.lane.b32.xlu0 %v2760, 16
      %v3475 = vpop.permute.xlu0 %3474
      %v3477 = vsel %vm2765, %v3473, 0
      %v3480 = vsel %vm2765, %v3475, 0
      %3482 = vmatprep.subr.bf16.mxu0 0
      %3483 = vmatpush1.bf16.xpose.msra.mxu0 %v3480
      %3484 = vmatprep.subr.bf16.mxu0 0
      %3485 = vmatpush1.bf16.xpose.msra.mxu0 0
      %3486 = vmatprep.subr.bf16.mxu0 0
      %3487 = vmatpush1.bf16.xpose.msra.mxu0 0
      %3488 = vmatprep.subr.bf16.mxu0 0
      %3489 = vmatpush1.bf16.xpose.msra.mxu0 0
      %3490 = vmatprep.subr.bf16.mxu0 0
      %3491 = vmatpush1.bf16.xpose.msra.mxu0 0
      %3492 = vmatprep.subr.bf16.mxu0 0
      %3493 = vmatpush1.bf16.xpose.msra.mxu0 0
      %3494 = vmatprep.subr.bf16.mxu0 0
      %3495 = vmatpush1.bf16.xpose.msra.mxu0 0
      %3496 = vmatprep.subr.bf16.mxu0 0
      %3497 = vmatpush1.bf16.xpose.msra.mxu0 0
      %3498 = vmatprep.subr.bf16.mxu0 0
      %3499 = vmatpush1.bf16.xpose.msra.mxu0 0
      %3500 = vmatprep.subr.bf16.mxu0 0
      %3501 = vmatpush1.bf16.xpose.msra.mxu0 0
      %3502 = vmatprep.subr.bf16.mxu0 0
      %3503 = vmatpush1.bf16.xpose.msra.mxu0 0
      %3504 = vmatprep.subr.bf16.mxu0 0
      %3505 = vmatpush1.bf16.xpose.msra.mxu0 0
      %3506 = vmatprep.subr.bf16.mxu0 0
      %3507 = vmatpush1.bf16.xpose.msra.mxu0 0
      %3508 = vmatprep.subr.bf16.mxu0 0
      %3509 = vmatpush1.bf16.xpose.msra.mxu0 0
      %3510 = vmatprep.subr.bf16.mxu0 0
      %3511 = vmatpush1.bf16.xpose.msra.mxu0 0
      %3512 = vmatprep.subr.bf16.mxu0 0
      %3513 = vmatpush1.bf16.xpose.msra.mxu0 0
      %3514 = vmatprep.mubr.bf16.mxu0 0
      %3515 = vmatmul.mubr.bf16.gmra.mrb[0].mxu0 %v3477
      %v3516 = vpop.f32.mrb[0].mxu0
      %v3517 = vadd.f32 0.0, %v3516
      %v3518 = vpop.f32.mrb[0].mxu0
      %v3519 = vpop.f32.mrb[0].mxu0
      %v3520 = vpop.f32.mrb[0].mxu0
      %3521 = vdwg.mxu0
      %3522 = vrot.lane.b32.xlu0 %v2759, 80
      %v3523 = vpop.permute.xlu0 %3522
      %3524 = vrot.lane.b32.xlu0 %v2761, 16
      %v3525 = vpop.permute.xlu0 %3524
      %v3527 = vsel %vm2765, %v3523, 0
      %v3530 = vsel %vm2765, %v3525, 0
      %3532 = vmatprep.subr.bf16.mxu0 0
      %3533 = vmatpush1.bf16.xpose.msra.mxu0 %v3530
      %3534 = vmatprep.subr.bf16.mxu0 0
      %3535 = vmatpush1.bf16.xpose.msra.mxu0 0
      %3536 = vmatprep.subr.bf16.mxu0 0
      %3537 = vmatpush1.bf16.xpose.msra.mxu0 0
      %3538 = vmatprep.subr.bf16.mxu0 0
      %3539 = vmatpush1.bf16.xpose.msra.mxu0 0
      %3540 = vmatprep.subr.bf16.mxu0 0
      %3541 = vmatpush1.bf16.xpose.msra.mxu0 0
      %3542 = vmatprep.subr.bf16.mxu0 0
      %3543 = vmatpush1.bf16.xpose.msra.mxu0 0
      %3544 = vmatprep.subr.bf16.mxu0 0
      %3545 = vmatpush1.bf16.xpose.msra.mxu0 0
      %3546 = vmatprep.subr.bf16.mxu0 0
      %3547 = vmatpush1.bf16.xpose.msra.mxu0 0
      %3548 = vmatprep.subr.bf16.mxu0 0
      %3549 = vmatpush1.bf16.xpose.msra.mxu0 0
      %3550 = vmatprep.subr.bf16.mxu0 0
      %3551 = vmatpush1.bf16.xpose.msra.mxu0 0
      %3552 = vmatprep.subr.bf16.mxu0 0
      %3553 = vmatpush1.bf16.xpose.msra.mxu0 0
      %3554 = vmatprep.subr.bf16.mxu0 0
      %3555 = vmatpush1.bf16.xpose.msra.mxu0 0
      %3556 = vmatprep.subr.bf16.mxu0 0
      %3557 = vmatpush1.bf16.xpose.msra.mxu0 0
      %3558 = vmatprep.subr.bf16.mxu0 0
      %3559 = vmatpush1.bf16.xpose.msra.mxu0 0
      %3560 = vmatprep.subr.bf16.mxu0 0
      %3561 = vmatpush1.bf16.xpose.msra.mxu0 0
      %3562 = vmatprep.subr.bf16.mxu0 0
      %3563 = vmatpush1.bf16.xpose.msra.mxu0 0
      %3564 = vmatprep.mubr.bf16.mxu0 0
      %3565 = vmatmul.mubr.bf16.gmra.mrb[0].mxu0 %v3527
      %v3566 = vpop.f32.mrb[0].mxu0
      %v3567 = vadd.f32 0.0, %v3566
      %v3568 = vpop.f32.mrb[0].mxu0
      %v3569 = vpop.f32.mrb[0].mxu0
      %v3570 = vpop.f32.mrb[0].mxu0
      %3571 = vdwg.mxu0
      %v3572 = vsel %vm949, %v3517, -inf
      %3573 = vmax.xlane.f32.xlu0 %v3572
      %v3574 = vpop.xlane.xlu0 %3573
      %v3575 = vsel %vm949, %v3567, -inf
      %3576 = vmax.xlane.f32.xlu0 %v3575
      %v3577 = vpop.xlane.xlu0 %3576
      %v3578 = vsub.f32 %v3517, %v3574
      %v3579 = vsub.f32 %v3567, %v3577
      %v3580 = vmul.f32 %v3578, 1.442695
      %v3581 = vpow.pop %v3580
      %v3582 = vmul.f32 %v3579, 1.442695
      %v3583 = vpow.pop %v3582
      %v3584 = vsel %vm949, %v3581, 0.0
      %3585 = vadd.xlane.f32.xlu0 %v3584
      %v3586 = vpop.xlane.xlu0 %3585
      %v3587 = vsel %vm949, %v3583, 0.0
      %3588 = vadd.xlane.f32.xlu0 %v3587
      %v3589 = vpop.xlane.xlu0 %3588
      %v3590 = vrcp.pop %v3586
      %v3591 = vmul.f32 %v3581, %v3590
      %v3592 = vrcp.pop %v3589
      %v3593 = vmul.f32 %v3583, %v3592
      %v3594 = vpack.c.bf16 %v3591, %v3591
      %v3595 = vpack.c.bf16 %v3593, %v3593
      %3596 = vrot.lane.b32.xlu0 %v2885, 80
      %v3597 = vpop.permute.xlu0 %3596
      %v3599 = vsel %vm949, %v3594, 0
      %v3602 = vsel %vm2626, %v3597, 0
      %3604 = vmatprep.subr.bf16.mxu0 0
      %3605 = vmatpush1.bf16.msra.mxu0 %v3602
      %3606 = vmatprep.subr.bf16.mxu0 0
      %3607 = vmatpush1.bf16.msra.mxu0 0
      %3608 = vmatprep.subr.bf16.mxu0 0
      %3609 = vmatpush1.bf16.msra.mxu0 0
      %3610 = vmatprep.subr.bf16.mxu0 0
      %3611 = vmatpush1.bf16.msra.mxu0 0
      %3612 = vmatprep.subr.bf16.mxu0 0
      %3613 = vmatpush1.bf16.msra.mxu0 0
      %3614 = vmatprep.subr.bf16.mxu0 0
      %3615 = vmatpush1.bf16.msra.mxu0 0
      %3616 = vmatprep.subr.bf16.mxu0 0
      %3617 = vmatpush1.bf16.msra.mxu0 0
      %3618 = vmatprep.subr.bf16.mxu0 0
      %3619 = vmatpush1.bf16.msra.mxu0 0
      %3620 = vmatprep.subr.bf16.mxu0 0
      %3621 = vmatpush1.bf16.msra.mxu0 0
      %3622 = vmatprep.subr.bf16.mxu0 0
      %3623 = vmatpush1.bf16.msra.mxu0 0
      %3624 = vmatprep.subr.bf16.mxu0 0
      %3625 = vmatpush1.bf16.msra.mxu0 0
      %3626 = vmatprep.subr.bf16.mxu0 0
      %3627 = vmatpush1.bf16.msra.mxu0 0
      %3628 = vmatprep.subr.bf16.mxu0 0
      %3629 = vmatpush1.bf16.msra.mxu0 0
      %3630 = vmatprep.subr.bf16.mxu0 0
      %3631 = vmatpush1.bf16.msra.mxu0 0
      %3632 = vmatprep.subr.bf16.mxu0 0
      %3633 = vmatpush1.bf16.msra.mxu0 0
      %3634 = vmatprep.subr.bf16.mxu0 0
      %3635 = vmatpush1.bf16.msra.mxu0 0
      %3636 = vmatprep.mubr.bf16.mxu0 0
      %3637 = vmatmul.mubr.bf16.gmra.mrb[0].mxu0 %v3599
      %v3638 = vpop.f32.mrb[0].mxu0
      %v3639 = vadd.f32 0.0, %v3638
      %v3640 = vpop.f32.mrb[0].mxu0
      %v3641 = vpop.f32.mrb[0].mxu0
      %v3642 = vpop.f32.mrb[0].mxu0
      %3643 = vdwg.mxu0
      %3644 = vrot.lane.b32.xlu0 %v2886, 80
      %v3645 = vpop.permute.xlu0 %3644
      %v3647 = vsel %vm949, %v3595, 0
      %v3650 = vsel %vm2626, %v3645, 0
      %3652 = vmatprep.subr.bf16.mxu0 0
      %3653 = vmatpush1.bf16.msra.mxu0 %v3650
      %3654 = vmatprep.subr.bf16.mxu0 0
      %3655 = vmatpush1.bf16.msra.mxu0 0
      %3656 = vmatprep.subr.bf16.mxu0 0
      %3657 = vmatpush1.bf16.msra.mxu0 0
      %3658 = vmatprep.subr.bf16.mxu0 0
      %3659 = vmatpush1.bf16.msra.mxu0 0
      %3660 = vmatprep.subr.bf16.mxu0 0
      %3661 = vmatpush1.bf16.msra.mxu0 0
      %3662 = vmatprep.subr.bf16.mxu0 0
      %3663 = vmatpush1.bf16.msra.mxu0 0
      %3664 = vmatprep.subr.bf16.mxu0 0
      %3665 = vmatpush1.bf16.msra.mxu0 0
      %3666 = vmatprep.subr.bf16.mxu0 0
      %3667 = vmatpush1.bf16.msra.mxu0 0
      %3668 = vmatprep.subr.bf16.mxu0 0
      %3669 = vmatpush1.bf16.msra.mxu0 0
      %3670 = vmatprep.subr.bf16.mxu0 0
      %3671 = vmatpush1.bf16.msra.mxu0 0
      %3672 = vmatprep.subr.bf16.mxu0 0
      %3673 = vmatpush1.bf16.msra.mxu0 0
      %3674 = vmatprep.subr.bf16.mxu0 0
      %3675 = vmatpush1.bf16.msra.mxu0 0
      %3676 = vmatprep.subr.bf16.mxu0 0
      %3677 = vmatpush1.bf16.msra.mxu0 0
      %3678 = vmatprep.subr.bf16.mxu0 0
      %3679 = vmatpush1.bf16.msra.mxu0 0
      %3680 = vmatprep.subr.bf16.mxu0 0
      %3681 = vmatpush1.bf16.msra.mxu0 0
      %3682 = vmatprep.subr.bf16.mxu0 0
      %3683 = vmatpush1.bf16.msra.mxu0 0
      %3684 = vmatprep.mubr.bf16.mxu0 0
      %3685 = vmatmul.mubr.bf16.gmra.mrb[0].mxu0 %v3647
      %v3686 = vpop.f32.mrb[0].mxu0
      %v3687 = vadd.f32 0.0, %v3686
      %v3688 = vpop.f32.mrb[0].mxu0
      %v3689 = vpop.f32.mrb[0].mxu0
      %v3690 = vpop.f32.mrb[0].mxu0
      %3691 = vdwg.mxu0
      %v3692 = vsel %vm2765, %v3639, 0.0
      %v3693 = vrot.slane %v3692, 4
      %v3694 = vadd.f32 %v3692, %v3693
      %v3695 = vrot.slane %v3694, 2
      %v3696 = vadd.f32 %v3694, %v3695
      %v3697 = vrot.slane %v3696, 1
      %v3698 = vadd.f32 %v3696, %v3697
      %v3699 = vsel %vm2765, %v3687, 0.0
      %v3700 = vrot.slane %v3699, 4
      %v3701 = vadd.f32 %v3699, %v3700
      %v3702 = vrot.slane %v3701, 2
      %v3703 = vadd.f32 %v3701, %v3702
      %v3704 = vrot.slane %v3703, 1
      %v3705 = vadd.f32 %v3703, %v3704
      %v3706 = vmul.f32 %v3698, %v2993
      %v3707 = vmul.f32 %v3705, %v2993
      %v3710 = vsel %vm1873, %v2995, %v2994
      %v3714 = vsel %vm1873, %v3235, %v3234
      %3715 = vrot.lane.b32.xlu0 %v3714, 16
      %v3716 = vpop.permute.xlu0 %3715
      %v3720 = vsel %vm1873, %v3471, %v3470
      %3721 = vrot.lane.b32.xlu0 %v3720, 32
      %v3722 = vpop.permute.xlu0 %3721
      %v3726 = vsel %vm1873, %v3707, %v3706
      %3727 = vrot.lane.b32.xlu0 %v3726, 48
      %v3728 = vpop.permute.xlu0 %3727
      %v3730 = vsel %vm2765, %v3710, %v3716
      %vm3731 = vcmask 261120
      %v3732 = vsel %vm3731, %v3730, %v3722
      %vm3733 = vcmask 392192
      %v3734 = vsel %vm3733, %v3732, %v3728
      %v3735 = vpack.c.bf16 %v3734, %v3734
      %v3736 = vld [vmem:[%s905] sm:$0xf]
      %v3737 = vld [vmem:[%s905 + $0x4] sm:$0xf]
      %v3738 = vld [vmem:[%s905 + $0x8] sm:$0xf]
      %v3739 = vld [vmem:[%s905 + $0xc] sm:$0xf]
      %v3740 = vld [vmem:[%s905 + $0x10] sm:$0xf]
      %v3741 = vld [vmem:[%s905 + $0x14] sm:$0xf]
      %v3742 = vld [vmem:[%s905 + $0x18] sm:$0xf]
      %v3743 = vld [vmem:[%s905 + $0x1c] sm:$0xf]
      %v3744 = vld [vmem:[%s908] sm:$0x1]
      %v3746 = vlaneseq
      %v3747 = vshrl.u32 %v3746, 7
      %v3748 = vsub.s32 0, %v3747
      %v3749 = vrot.slane %v3744, %v3748
      %v3759 = vunpack.c.l.b16 %v3736
      %v3760 = vunpack.c.l.b16 %v3737
      %v3761 = vunpack.c.l.b16 %v3738
      %v3762 = vunpack.c.l.b16 %v3739
      %v3763 = vunpack.c.l.b16 %v3740
      %v3764 = vunpack.c.l.b16 %v3741
      %v3765 = vunpack.c.l.b16 %v3742
      %v3766 = vunpack.c.l.b16 %v3743
      %v3767 = vpack.c.b16 %v3760, %v3759
      %v3768 = vpack.c.b16 %v3762, %v3761
      %v3769 = vpack.c.b16 %v3764, %v3763
      %v3770 = vpack.c.b16 %v3766, %v3765
      %v3776 = vsel %vm1040, %v3735, 0
      %3778 = vmatprep.subr.bf16.mxu0 0
      %3779 = vmatpush1.bf16.msra.mxu0 %v3767
      %3780 = vmatprep.subr.bf16.mxu0 0
      %3781 = vmatpush1.bf16.msra.mxu0 %v3768
      %3782 = vmatprep.subr.bf16.mxu0 0
      %3783 = vmatpush1.bf16.msra.mxu0 %v3769
      %3784 = vmatprep.subr.bf16.mxu0 0
      %3785 = vmatpush1.bf16.msra.mxu0 %v3770
      %3786 = vmatprep.subr.bf16.mxu0 0
      %3787 = vmatpush1.bf16.msra.mxu0 0
      %3788 = vmatprep.subr.bf16.mxu0 0
      %3789 = vmatpush1.bf16.msra.mxu0 0
      %3790 = vmatprep.subr.bf16.mxu0 0
      %3791 = vmatpush1.bf16.msra.mxu0 0
      %3792 = vmatprep.subr.bf16.mxu0 0
      %3793 = vmatpush1.bf16.msra.mxu0 0
      %3794 = vmatprep.subr.bf16.mxu0 0
      %3795 = vmatpush1.bf16.msra.mxu0 0
      %3796 = vmatprep.subr.bf16.mxu0 0
      %3797 = vmatpush1.bf16.msra.mxu0 0
      %3798 = vmatprep.subr.bf16.mxu0 0
      %3799 = vmatpush1.bf16.msra.mxu0 0
      %3800 = vmatprep.subr.bf16.mxu0 0
      %3801 = vmatpush1.bf16.msra.mxu0 0
      %3802 = vmatprep.subr.bf16.mxu0 0
      %3803 = vmatpush1.bf16.msra.mxu0 0
      %3804 = vmatprep.subr.bf16.mxu0 0
      %3805 = vmatpush1.bf16.msra.mxu0 0
      %3806 = vmatprep.subr.bf16.mxu0 0
      %3807 = vmatpush1.bf16.msra.mxu0 0
      %3808 = vmatprep.subr.bf16.mxu0 0
      %3809 = vmatpush1.bf16.msra.mxu0 0
      %3810 = vmatprep.mubr.bf16.mxu0 0
      %3811 = vmatmul.mubr.bf16.gmra.mrb[0].mxu0 %v3776
      %v3812 = vpop.f32.mrb[0].mxu0
      %v3813 = vadd.f32 %v3749, %v3812
      %v3814 = vpop.f32.mrb[0].mxu0
      %v3815 = vpop.f32.mrb[0].mxu0
      %v3816 = vpop.f32.mrb[0].mxu0
      %3817 = vdwg.mxu0
      %vm3818 = vcmask 517120
      %3819 = vst.msk [vmem:[%s912] sm:$0x3] %vm3818, %v3813
      %p3820 = scmp.lt.s32.totalorder %s30, 2
      %s3821 = scalar_select %p3820, %s30, 2
      %s3822 = smul.addr %s3821, 2
      %s3823 = scalar_lea.vmem %s19, %s3822
      // Predicated region
      $region97: #{forward.2} parent=95 // pred_check
        %p3824 = pneg %p542
      $region98: #{forward.2} parent=95 // pred_check_branch
        %3826 = sbr.rel (%p3824) target = $region100
      $region99: #{forward.2} parent=95 // pred_region
        _
      $region100: #{forward.2} parent=95 // pred_fallthru
        _
    $region96: #{forward.2} parent=5 // pred_fallthru
      _
    %p3827 = scmp.le.s32.totalorder 2, %s25
    // Predicated region
    $region101: #{forward.2} parent=5 // pred_check
      %p3828 = pneg %p3827
    $region102: #{forward.2} parent=5 // pred_check_branch
      %3830 = sbr.rel (%p3828) target = $region104
    $region103: #{forward.2} parent=5 // pred_region
      %s3831 = ssub.s32 %s25, 2
      // Predicated region
      $region105: #{forward.2} parent=103 // pred_check
        %p3832 = pneg %p548
      $region106: #{forward.2} parent=103 // pred_check_branch
        %3834 = sbr.rel (%p3832) target = $region108
      $region107: #{forward.2} parent=103 // pred_region
        %p3835 = scmp.lt.s32.totalorder %s31, 2
        %s3836 = scalar_select %p3835, %s31, 2
        %s3837 = smul.addr %s3836, 2
        %s3838 = scalar_lea.vmem %s19, %s3837
      $region108: #{forward.2} parent=103 // pred_fallthru
        _
    $region104: #{forward.2} parent=5 // pred_fallthru
      _
  $region6: #{forward.2} parent=0 // loop_footer
    %s29 = sadd.s32 1, %s25
  $region7: #{forward.2} parent=0 // loop_footer_branch
    %24 = sbr.rel target = $region3
  $region8: #{forward.2} parent=0 // loop_exit
    _

</llo_original>
